<compile_context>
chip_gen: v7x
topology: tpu7x:2x2x1
jax: 0.10.0
libtpu: 0.0.40
codegen_flags: <defaults>
</compile_context>

<pallas_src>
import functools

import jax
import jax.numpy as jnp
from jax.experimental import pallas as pl
from jax.experimental.pallas import tpu as pltpu


# ----------------------------------------------------------------------------
# Fused forward builder
# ----------------------------------------------------------------------------
def build_forward(H, W, filters, num_classes):
    Ho, Wo = H - 6, W - 6                         # spatial size after 3 valid convs
    S1, S2, S3 = (H - 2) * W, (H - 4) * W, (H - 6) * W   # "wide" (stride-W) sizes
    ACT_W = S1 + 8                                # activation scratch lanes (>= 2W+2+S2)
    XLEN = H * W + 8                              # padded flat input (>= 2W+2+S1)
    FLAT = filters * Ho * Wo                      # torch flatten_shape
    TAPS = tuple(dy * W + dx for dy in range(3) for dx in range(3))
    NT = len(TAPS)                                # 9
    HWO = Ho * Wo

    def kernel(x_ref, w1_ref, b1_ref, w2_ref, b2_ref, w3_ref, b3_ref,
               wl_ref, bl_ref, feat_ref, out_ref, act_ref):
        f32 = jnp.float32

        def conv_relu(src, s_out, w_ref, b_ref):
            # src: channel-major activations (Cin, >= 2*W+2+s_out)  (ref or value)
            # im2col: 9 lane-shifted copies stacked along sublanes -> one MXU matmul
            col = jnp.concatenate([src[:, t:t + s_out] for t in TAPS], axis=0)
            y = jnp.dot(w_ref[...], col, preferred_element_type=f32)
            return jnp.maximum(y + b_ref[...], 0.0)          # (Cout, s_out)

        # ---- conv1 (Cin=1): flattened input row as a lane vector, K=9 matmul ----
        x = x_ref[0].astype(f32)                              # (1, H*W)
        xp = jnp.concatenate([x, jnp.zeros((1, XLEN - H * W), f32)], axis=1)
        y1 = conv_relu(xp, S1, w1_ref, b1_ref)                # (filters, S1)
        act_ref[:, 0:S1] = y1
        act_ref[:, S1:ACT_W] = jnp.zeros((filters, ACT_W - S1), f32)

        # ---- conv2 ----
        y2 = conv_relu(act_ref, S2, w2_ref, b2_ref)           # (filters, S2)
        act_ref[:, 0:S2] = y2
        act_ref[:, S2:ACT_W] = jnp.zeros((filters, ACT_W - S2), f32)

        # ---- conv3 ----
        y3 = conv_relu(act_ref, S3, w3_ref, b3_ref)           # (filters, S3)

        # ---- features: drop the W-Wo garbage columns per spatial row ----
        featT = jnp.concatenate([y3[:, r * W:r * W + Wo] for r in range(Ho)],
                                axis=1)                        # (filters, Ho*Wo)

        # Scatter channel rows into torch.flatten(NCHW) order as one lane-dense
        # (1, FLAT) output slab (FLAT is a multiple of 128).
        for c in range(filters):
            feat_ref[0, :, c * HWO:(c + 1) * HWO] = featT[c:c + 1, :]

        # ---- classifier: Dropout(p=0.2) is identity at inference + Linear ----
        flat = feat_ref[0]                                     # (1, FLAT)
        logits = jnp.dot(flat, wl_ref[...], preferred_element_type=f32) + bl_ref[...]
        out_ref[0] = logits.astype(out_ref.dtype)

    def forward(x_nchw, kp):
        B = x_nchw.shape[0]
        xf = x_nchw.reshape(B, 1, H * W).astype(jnp.float32)   # free reshape
        feat, logits = pl.pallas_call(
            kernel,
            out_shape=(jax.ShapeDtypeStruct((B, 1, FLAT), jnp.float32),
                       jax.ShapeDtypeStruct((B, 1, num_classes), jnp.float32)),
            grid=(B,),
            in_specs=[
                pl.BlockSpec((1, 1, H * W), lambda i: (i, 0, 0)),        # x
                pl.BlockSpec((filters, NT), lambda i: (0, 0)),           # w1 (64, 9)
                pl.BlockSpec((filters, 1), lambda i: (0, 0)),            # b1
                pl.BlockSpec((filters, NT * filters), lambda i: (0, 0)), # w2 (64, 576)
                pl.BlockSpec((filters, 1), lambda i: (0, 0)),            # b2
                pl.BlockSpec((filters, NT * filters), lambda i: (0, 0)), # w3 (64, 576)
                pl.BlockSpec((filters, 1), lambda i: (0, 0)),            # b3
                pl.BlockSpec((FLAT, num_classes), lambda i: (0, 0)),     # wl (6400, 10)
                pl.BlockSpec((1, num_classes), lambda i: (0, 0)),        # bl
            ],
            out_specs=(
                pl.BlockSpec((1, 1, FLAT), lambda i: (i, 0, 0)),
                pl.BlockSpec((1, 1, num_classes), lambda i: (i, 0, 0)),
            ),
            scratch_shapes=[pltpu.VMEM((filters, ACT_W), jnp.float32)],
            compiler_params=pltpu.CompilerParams(
                dimension_semantics=("parallel",),
                vmem_limit_bytes=32 * 1024 * 1024),
        )(xf, kp["w1"], kp["b1"], kp["w2"], kp["b2"], kp["w3"], kp["b3"],
          kp["wl"], kp["bl"])
        return feat.reshape(B, FLAT), logits.reshape(B, num_classes)

    return jax.jit(forward)


# ----------------------------------------------------------------------------
# Parameters (torch layouts) and one-time conversion to kernel layouts
# ----------------------------------------------------------------------------
def init_torch_params(key, filters, num_classes, flatten, dtype=jnp.float32):
    """Synthetic weights in PyTorch layouts: conv (Cout,Cin,3,3), linear (N,F)."""
    ks = jax.random.split(key, 8)
    s = 0.05
    return {
        "w1": s * jax.random.normal(ks[0], (filters, 1, 3, 3), dtype),
        "b1": s * jax.random.normal(ks[1], (filters,), dtype),
        "w2": s * jax.random.normal(ks[2], (filters, filters, 3, 3), dtype),
        "b2": s * jax.random.normal(ks[3], (filters,), dtype),
        "w3": s * jax.random.normal(ks[4], (filters, filters, 3, 3), dtype),
        "b3": s * jax.random.normal(ks[5], (filters,), dtype),
        "wl": s * jax.random.normal(ks[6], (num_classes, flatten), dtype),
        "bl": s * jax.random.normal(ks[7], (num_classes,), dtype),
    }


def to_kernel_params(tp):
    """One-time host-side repack: conv -> (Cout, 9*Cin) with col = (dy*3+dx)*Cin+ci,
    linear -> (F, N); biases as column / row vectors."""
    def conv_w(w):
        co, ci = w.shape[0], w.shape[1]
        return jnp.transpose(w, (0, 2, 3, 1)).reshape(co, 9 * ci)
    return {
        "w1": conv_w(tp["w1"]), "b1": tp["b1"].reshape(-1, 1),
        "w2": conv_w(tp["w2"]), "b2": tp["b2"].reshape(-1, 1),
        "w3": conv_w(tp["w3"]), "b3": tp["b3"].reshape(-1, 1),
        "wl": tp["wl"].T,       "bl": tp["bl"].reshape(1, -1),
    }


# ----------------------------------------------------------------------------
# Pure-JAX reference (mirrors LatentEncoder.forward) for a correctness check
# ----------------------------------------------------------------------------
def reference_forward(x_nchw, tp):
    hi = jax.lax.Precision.HIGHEST
    act = x_nchw
    for wn, bn in (("w1", "b1"), ("w2", "b2"), ("w3", "b3")):
        act = jax.lax.conv_general_dilated(
            act, tp[wn], window_strides=(1, 1), padding="VALID",
            dimension_numbers=("NCHW", "OIHW", "NCHW"), precision=hi)
        act = jnp.maximum(act + tp[bn][None, :, None, None], 0.0)
    feats = act.reshape(act.shape[0], -1)
    logits = jnp.dot(feats, tp["wl"].T, precision=hi) + tp["bl"]
    return feats, logits


# ----------------------------------------------------------------------------
# Driver
# ----------------------------------------------------------------------------
if __name__ == "__main__":
    key = jax.random.PRNGKey(0)
    k_x, k_p = jax.random.split(key)

    B, C, H, W = 2, 1, 16, 16          # small input_shape analogue (B, 1, 16, 16)
    num_classes, filters = 10, 64
    flatten = filters * (H - 6) * (W - 6)

    x = jax.random.normal(k_x, (B, C, H, W), jnp.float32)       # NCHW like PyTorch
    tparams = init_torch_params(k_p, filters, num_classes, flatten)
    kparams = to_kernel_params(tparams)

    forward = build_forward(H, W, filters, num_classes)
    features, logits = forward(x, kparams)
    jax.block_until_ready((features, logits))

    assert features.shape == (B, flatten)
    assert logits.shape == (B, num_classes)

    # Correctness vs. a pure-JAX reference of the PyTorch module.
    f_ref, l_ref = reference_forward(x, tparams)
    assert float(jnp.max(jnp.abs(features - f_ref))) < 5e-3
    assert float(jnp.max(jnp.abs(logits - l_ref))) < 5e-3

    print("KERNEL_OK")
</pallas_src>

<mosaic_0001>
module attributes {stable_mosaic.version = 11 : i64} {
  func.func @kernel(%arg0: i32, %arg1: memref<1x1x256xf32, #tpu.memory_space<vmem>>, %arg2: memref<64x9xf32, #tpu.memory_space<vmem>>, %arg3: memref<64x1xf32, #tpu.memory_space<vmem>>, %arg4: memref<64x576xf32, #tpu.memory_space<vmem>>, %arg5: memref<64x1xf32, #tpu.memory_space<vmem>>, %arg6: memref<64x576xf32, #tpu.memory_space<vmem>>, %arg7: memref<64x1xf32, #tpu.memory_space<vmem>>, %arg8: memref<6400x10xf32, #tpu.memory_space<vmem>>, %arg9: memref<1x10xf32, #tpu.memory_space<vmem>>, %arg10: memref<1x1x6400xf32, #tpu.memory_space<vmem>>, %arg11: memref<1x1x10xf32, #tpu.memory_space<vmem>>, %arg12: memref<64x232xf32, #tpu.memory_space<vmem>>) attributes {dimension_semantics = [#tpu.dimension_semantics<parallel>], iteration_bounds = array<i64: 2>, scalar_prefetch = 0 : i64, scratch_operands = 1 : i64, tpu.core_type = #tpu.core_type<tc>, window_params = [{transform_indices = @transform_0, window_bounds = array<i64: 1, 1, 256>}, {pipeline_mode = #tpu.pipeline_mode<synchronous>, transform_indices = @transform_1, window_bounds = array<i64: 64, 9>}, {pipeline_mode = #tpu.pipeline_mode<synchronous>, transform_indices = @transform_2, window_bounds = array<i64: 64, 1>}, {pipeline_mode = #tpu.pipeline_mode<synchronous>, transform_indices = @transform_3, window_bounds = array<i64: 64, 576>}, {pipeline_mode = #tpu.pipeline_mode<synchronous>, transform_indices = @transform_4, window_bounds = array<i64: 64, 1>}, {pipeline_mode = #tpu.pipeline_mode<synchronous>, transform_indices = @transform_5, window_bounds = array<i64: 64, 576>}, {pipeline_mode = #tpu.pipeline_mode<synchronous>, transform_indices = @transform_6, window_bounds = array<i64: 64, 1>}, {pipeline_mode = #tpu.pipeline_mode<synchronous>, transform_indices = @transform_7, window_bounds = array<i64: 6400, 10>}, {pipeline_mode = #tpu.pipeline_mode<synchronous>, transform_indices = @transform_8, window_bounds = array<i64: 1, 10>}, {transform_indices = @transform_9, window_bounds = array<i64: 1, 1, 6400>}, {transform_indices = @transform_10, window_bounds = array<i64: 1, 1, 10>}]} {
    %c0 = arith.constant 0 : index
    %c0_0 = arith.constant 0 : index
    %c0_1 = arith.constant 0 : index
    %0 = vector.load %arg1[%c0, %c0_0, %c0_1] : memref<1x1x256xf32, #tpu.memory_space<vmem>>, vector<1x1x256xf32>
    %1 = vector.shape_cast %0 : vector<1x1x256xf32> to vector<1x256xf32>
    %cst = arith.constant 0.000000e+00 : f32
    %2 = vector.broadcast %cst : f32 to vector<1x8xf32>
    %3 = tpu.concatenate %1, %2 in 1 : vector<1x256xf32>, vector<1x8xf32> -> vector<1x264xf32>
    %4 = vector.extract_strided_slice %3 {offsets = [0, 0], sizes = [1, 224], strides = [1, 1]} : vector<1x264xf32> to vector<1x224xf32>
    %5 = vector.extract_strided_slice %3 {offsets = [0, 1], sizes = [1, 224], strides = [1, 1]} : vector<1x264xf32> to vector<1x224xf32>
    %6 = vector.extract_strided_slice %3 {offsets = [0, 2], sizes = [1, 224], strides = [1, 1]} : vector<1x264xf32> to vector<1x224xf32>
    %7 = vector.extract_strided_slice %3 {offsets = [0, 16], sizes = [1, 224], strides = [1, 1]} : vector<1x264xf32> to vector<1x224xf32>
    %8 = vector.extract_strided_slice %3 {offsets = [0, 17], sizes = [1, 224], strides = [1, 1]} : vector<1x264xf32> to vector<1x224xf32>
    %9 = vector.extract_strided_slice %3 {offsets = [0, 18], sizes = [1, 224], strides = [1, 1]} : vector<1x264xf32> to vector<1x224xf32>
    %10 = vector.extract_strided_slice %3 {offsets = [0, 32], sizes = [1, 224], strides = [1, 1]} : vector<1x264xf32> to vector<1x224xf32>
    %11 = vector.extract_strided_slice %3 {offsets = [0, 33], sizes = [1, 224], strides = [1, 1]} : vector<1x264xf32> to vector<1x224xf32>
    %12 = vector.extract_strided_slice %3 {offsets = [0, 34], sizes = [1, 224], strides = [1, 1]} : vector<1x264xf32> to vector<1x224xf32>
    %13 = tpu.concatenate %4, %5, %6, %7, %8, %9, %10, %11, %12 in 0 : vector<1x224xf32>, vector<1x224xf32>, vector<1x224xf32>, vector<1x224xf32>, vector<1x224xf32>, vector<1x224xf32>, vector<1x224xf32>, vector<1x224xf32>, vector<1x224xf32> -> vector<9x224xf32>
    %c0_2 = arith.constant 0 : index
    %c0_3 = arith.constant 0 : index
    %14 = vector.load %arg2[%c0_2, %c0_3] : memref<64x9xf32, #tpu.memory_space<vmem>>, vector<64x9xf32>
    %cst_4 = arith.constant dense<0.000000e+00> : vector<64x224xf32>
    %15 = tpu.matmul %14, %13, %cst_4 {dimension_numbers = #tpu.dot_dimension_numbers<[1], [0], [0], [1], [0, 0, 1, 1], [], []>} : vector<64x9xf32>, vector<9x224xf32>, vector<64x224xf32> -> vector<64x224xf32>
    %c0_5 = arith.constant 0 : index
    %c0_6 = arith.constant 0 : index
    %16 = vector.load %arg3[%c0_5, %c0_6] : memref<64x1xf32, #tpu.memory_space<vmem>>, vector<64x1xf32>
    %17 = vector.broadcast %16 : vector<64x1xf32> to vector<64x224xf32>
    %18 = arith.addf %15, %17 : vector<64x224xf32>
    %cst_7 = arith.constant 0.000000e+00 : f32
    %19 = vector.broadcast %cst_7 : f32 to vector<64x224xf32>
    %20 = arith.maximumf %18, %19 : vector<64x224xf32>
    %c0_8 = arith.constant 0 : index
    %c0_9 = arith.constant 0 : index
    %21 = vector.load %arg12[%c0_8, %c0_9] : memref<64x232xf32, #tpu.memory_space<vmem>>, vector<64x224xf32>
    tpu.vector_store %arg12[%c0_8, %c0_9], %20 {strides = array<i32>} : memref<64x232xf32, #tpu.memory_space<vmem>>, vector<64x224xf32>,
    %cst_10 = arith.constant 0.000000e+00 : f32
    %22 = vector.broadcast %cst_10 : f32 to vector<64x8xf32>
    %c0_11 = arith.constant 0 : index
    %c224 = arith.constant 224 : index
    %23 = vector.load %arg12[%c0_11, %c224] : memref<64x232xf32, #tpu.memory_space<vmem>>, vector<64x8xf32>
    tpu.vector_store %arg12[%c0_11, %c224], %22 {strides = array<i32>} : memref<64x232xf32, #tpu.memory_space<vmem>>, vector<64x8xf32>,
    %c0_12 = arith.constant 0 : index
    %c0_13 = arith.constant 0 : index
    %24 = vector.load %arg12[%c0_12, %c0_13] : memref<64x232xf32, #tpu.memory_space<vmem>>, vector<64x192xf32>
    %c0_14 = arith.constant 0 : index
    %c1 = arith.constant 1 : index
    %25 = vector.load %arg12[%c0_14, %c1] : memref<64x232xf32, #tpu.memory_space<vmem>>, vector<64x192xf32>
    %c0_15 = arith.constant 0 : index
    %c2 = arith.constant 2 : index
    %26 = vector.load %arg12[%c0_15, %c2] : memref<64x232xf32, #tpu.memory_space<vmem>>, vector<64x192xf32>
    %c0_16 = arith.constant 0 : index
    %c16 = arith.constant 16 : index
    %27 = vector.load %arg12[%c0_16, %c16] : memref<64x232xf32, #tpu.memory_space<vmem>>, vector<64x192xf32>
    %c0_17 = arith.constant 0 : index
    %c17 = arith.constant 17 : index
    %28 = vector.load %arg12[%c0_17, %c17] : memref<64x232xf32, #tpu.memory_space<vmem>>, vector<64x192xf32>
    %c0_18 = arith.constant 0 : index
    %c18 = arith.constant 18 : index
    %29 = vector.load %arg12[%c0_18, %c18] : memref<64x232xf32, #tpu.memory_space<vmem>>, vector<64x192xf32>
    %c0_19 = arith.constant 0 : index
    %c32 = arith.constant 32 : index
    %30 = vector.load %arg12[%c0_19, %c32] : memref<64x232xf32, #tpu.memory_space<vmem>>, vector<64x192xf32>
    %c0_20 = arith.constant 0 : index
    %c33 = arith.constant 33 : index
    %31 = vector.load %arg12[%c0_20, %c33] : memref<64x232xf32, #tpu.memory_space<vmem>>, vector<64x192xf32>
    %c0_21 = arith.constant 0 : index
    %c34 = arith.constant 34 : index
    %32 = vector.load %arg12[%c0_21, %c34] : memref<64x232xf32, #tpu.memory_space<vmem>>, vector<64x192xf32>
    %33 = tpu.concatenate %24, %25, %26, %27, %28, %29, %30, %31, %32 in 0 : vector<64x192xf32>, vector<64x192xf32>, vector<64x192xf32>, vector<64x192xf32>, vector<64x192xf32>, vector<64x192xf32>, vector<64x192xf32>, vector<64x192xf32>, vector<64x192xf32> -> vector<576x192xf32>
    %c0_22 = arith.constant 0 : index
    %c0_23 = arith.constant 0 : index
    %34 = vector.load %arg4[%c0_22, %c0_23] : memref<64x576xf32, #tpu.memory_space<vmem>>, vector<64x576xf32>
    %cst_24 = arith.constant dense<0.000000e+00> : vector<64x192xf32>
    %35 = tpu.matmul %34, %33, %cst_24 {dimension_numbers = #tpu.dot_dimension_numbers<[1], [0], [0], [1], [0, 0, 1, 1], [], []>} : vector<64x576xf32>, vector<576x192xf32>, vector<64x192xf32> -> vector<64x192xf32>
    %c0_25 = arith.constant 0 : index
    %c0_26 = arith.constant 0 : index
    %36 = vector.load %arg5[%c0_25, %c0_26] : memref<64x1xf32, #tpu.memory_space<vmem>>, vector<64x1xf32>
    %37 = vector.broadcast %36 : vector<64x1xf32> to vector<64x192xf32>
    %38 = arith.addf %35, %37 : vector<64x192xf32>
    %cst_27 = arith.constant 0.000000e+00 : f32
    %39 = vector.broadcast %cst_27 : f32 to vector<64x192xf32>
    %40 = arith.maximumf %38, %39 : vector<64x192xf32>
    %c0_28 = arith.constant 0 : index
    %c0_29 = arith.constant 0 : index
    %41 = vector.load %arg12[%c0_28, %c0_29] : memref<64x232xf32, #tpu.memory_space<vmem>>, vector<64x192xf32>
    tpu.vector_store %arg12[%c0_28, %c0_29], %40 {strides = array<i32>} : memref<64x232xf32, #tpu.memory_space<vmem>>, vector<64x192xf32>,
    %cst_30 = arith.constant 0.000000e+00 : f32
    %42 = vector.broadcast %cst_30 : f32 to vector<64x40xf32>
    %c0_31 = arith.constant 0 : index
    %c192 = arith.constant 192 : index
    %43 = vector.load %arg12[%c0_31, %c192] : memref<64x232xf32, #tpu.memory_space<vmem>>, vector<64x40xf32>
    tpu.vector_store %arg12[%c0_31, %c192], %42 {strides = array<i32>} : memref<64x232xf32, #tpu.memory_space<vmem>>, vector<64x40xf32>,
    %c0_32 = arith.constant 0 : index
    %c0_33 = arith.constant 0 : index
    %44 = vector.load %arg12[%c0_32, %c0_33] : memref<64x232xf32, #tpu.memory_space<vmem>>, vector<64x160xf32>
    %c0_34 = arith.constant 0 : index
    %c1_35 = arith.constant 1 : index
    %45 = vector.load %arg12[%c0_34, %c1_35] : memref<64x232xf32, #tpu.memory_space<vmem>>, vector<64x160xf32>
    %c0_36 = arith.constant 0 : index
    %c2_37 = arith.constant 2 : index
    %46 = vector.load %arg12[%c0_36, %c2_37] : memref<64x232xf32, #tpu.memory_space<vmem>>, vector<64x160xf32>
    %c0_38 = arith.constant 0 : index
    %c16_39 = arith.constant 16 : index
    %47 = vector.load %arg12[%c0_38, %c16_39] : memref<64x232xf32, #tpu.memory_space<vmem>>, vector<64x160xf32>
    %c0_40 = arith.constant 0 : index
    %c17_41 = arith.constant 17 : index
    %48 = vector.load %arg12[%c0_40, %c17_41] : memref<64x232xf32, #tpu.memory_space<vmem>>, vector<64x160xf32>
    %c0_42 = arith.constant 0 : index
    %c18_43 = arith.constant 18 : index
    %49 = vector.load %arg12[%c0_42, %c18_43] : memref<64x232xf32, #tpu.memory_space<vmem>>, vector<64x160xf32>
    %c0_44 = arith.constant 0 : index
    %c32_45 = arith.constant 32 : index
    %50 = vector.load %arg12[%c0_44, %c32_45] : memref<64x232xf32, #tpu.memory_space<vmem>>, vector<64x160xf32>
    %c0_46 = arith.constant 0 : index
    %c33_47 = arith.constant 33 : index
    %51 = vector.load %arg12[%c0_46, %c33_47] : memref<64x232xf32, #tpu.memory_space<vmem>>, vector<64x160xf32>
    %c0_48 = arith.constant 0 : index
    %c34_49 = arith.constant 34 : index
    %52 = vector.load %arg12[%c0_48, %c34_49] : memref<64x232xf32, #tpu.memory_space<vmem>>, vector<64x160xf32>
    %53 = tpu.concatenate %44, %45, %46, %47, %48, %49, %50, %51, %52 in 0 : vector<64x160xf32>, vector<64x160xf32>, vector<64x160xf32>, vector<64x160xf32>, vector<64x160xf32>, vector<64x160xf32>, vector<64x160xf32>, vector<64x160xf32>, vector<64x160xf32> -> vector<576x160xf32>
    %c0_50 = arith.constant 0 : index
    %c0_51 = arith.constant 0 : index
    %54 = vector.load %arg6[%c0_50, %c0_51] : memref<64x576xf32, #tpu.memory_space<vmem>>, vector<64x576xf32>
    %cst_52 = arith.constant dense<0.000000e+00> : vector<64x160xf32>
    %55 = tpu.matmul %54, %53, %cst_52 {dimension_numbers = #tpu.dot_dimension_numbers<[1], [0], [0], [1], [0, 0, 1, 1], [], []>} : vector<64x576xf32>, vector<576x160xf32>, vector<64x160xf32> -> vector<64x160xf32>
    %c0_53 = arith.constant 0 : index
    %c0_54 = arith.constant 0 : index
    %56 = vector.load %arg7[%c0_53, %c0_54] : memref<64x1xf32, #tpu.memory_space<vmem>>, vector<64x1xf32>
    %57 = vector.broadcast %56 : vector<64x1xf32> to vector<64x160xf32>
    %58 = arith.addf %55, %57 : vector<64x160xf32>
    %cst_55 = arith.constant 0.000000e+00 : f32
    %59 = vector.broadcast %cst_55 : f32 to vector<64x160xf32>
    %60 = arith.maximumf %58, %59 : vector<64x160xf32>
    %61 = vector.extract_strided_slice %60 {offsets = [0, 0], sizes = [64, 10], strides = [1, 1]} : vector<64x160xf32> to vector<64x10xf32>
    %62 = vector.extract_strided_slice %60 {offsets = [0, 16], sizes = [64, 10], strides = [1, 1]} : vector<64x160xf32> to vector<64x10xf32>
    %63 = vector.extract_strided_slice %60 {offsets = [0, 32], sizes = [64, 10], strides = [1, 1]} : vector<64x160xf32> to vector<64x10xf32>
    %64 = vector.extract_strided_slice %60 {offsets = [0, 48], sizes = [64, 10], strides = [1, 1]} : vector<64x160xf32> to vector<64x10xf32>
    %65 = vector.extract_strided_slice %60 {offsets = [0, 64], sizes = [64, 10], strides = [1, 1]} : vector<64x160xf32> to vector<64x10xf32>
    %66 = vector.extract_strided_slice %60 {offsets = [0, 80], sizes = [64, 10], strides = [1, 1]} : vector<64x160xf32> to vector<64x10xf32>
    %67 = vector.extract_strided_slice %60 {offsets = [0, 96], sizes = [64, 10], strides = [1, 1]} : vector<64x160xf32> to vector<64x10xf32>
    %68 = vector.extract_strided_slice %60 {offsets = [0, 112], sizes = [64, 10], strides = [1, 1]} : vector<64x160xf32> to vector<64x10xf32>
    %69 = vector.extract_strided_slice %60 {offsets = [0, 128], sizes = [64, 10], strides = [1, 1]} : vector<64x160xf32> to vector<64x10xf32>
    %70 = vector.extract_strided_slice %60 {offsets = [0, 144], sizes = [64, 10], strides = [1, 1]} : vector<64x160xf32> to vector<64x10xf32>
    %71 = tpu.concatenate %61, %62, %63, %64, %65, %66, %67, %68, %69, %70 in 1 : vector<64x10xf32>, vector<64x10xf32>, vector<64x10xf32>, vector<64x10xf32>, vector<64x10xf32>, vector<64x10xf32>, vector<64x10xf32>, vector<64x10xf32>, vector<64x10xf32>, vector<64x10xf32> -> vector<64x100xf32>
    %72 = vector.extract_strided_slice %71 {offsets = [0, 0], sizes = [1, 100], strides = [1, 1]} : vector<64x100xf32> to vector<1x100xf32>
    %c0_56 = arith.constant 0 : index
    %c0_57 = arith.constant 0 : index
    %c0_58 = arith.constant 0 : index
    %73 = vector.load %arg10[%c0_56, %c0_57, %c0_58] : memref<1x1x6400xf32, #tpu.memory_space<vmem>>, vector<1x1x100xf32>
    %74 = vector.shape_cast %73 : vector<1x1x100xf32> to vector<1x100xf32>
    %75 = vector.shape_cast %72 : vector<1x100xf32> to vector<1x1x100xf32>
    tpu.vector_store %arg10[%c0_56, %c0_57, %c0_58], %75 {strides = array<i32>} : memref<1x1x6400xf32, #tpu.memory_space<vmem>>, vector<1x1x100xf32>,
    %76 = vector.extract_strided_slice %71 {offsets = [1, 0], sizes = [1, 100], strides = [1, 1]} : vector<64x100xf32> to vector<1x100xf32>
    %c0_59 = arith.constant 0 : index
    %c0_60 = arith.constant 0 : index
    %c100 = arith.constant 100 : index
    %77 = vector.load %arg10[%c0_59, %c0_60, %c100] : memref<1x1x6400xf32, #tpu.memory_space<vmem>>, vector<1x1x100xf32>
    %78 = vector.shape_cast %77 : vector<1x1x100xf32> to vector<1x100xf32>
    %79 = vector.shape_cast %76 : vector<1x100xf32> to vector<1x1x100xf32>
    tpu.vector_store %arg10[%c0_59, %c0_60, %c100], %79 {strides = array<i32>} : memref<1x1x6400xf32, #tpu.memory_space<vmem>>, vector<1x1x100xf32>,
    %80 = vector.extract_strided_slice %71 {offsets = [2, 0], sizes = [1, 100], strides = [1, 1]} : vector<64x100xf32> to vector<1x100xf32>
    %c0_61 = arith.constant 0 : index
    %c0_62 = arith.constant 0 : index
    %c200 = arith.constant 200 : index
    %81 = vector.load %arg10[%c0_61, %c0_62, %c200] : memref<1x1x6400xf32, #tpu.memory_space<vmem>>, vector<1x1x100xf32>
    %82 = vector.shape_cast %81 : vector<1x1x100xf32> to vector<1x100xf32>
    %83 = vector.shape_cast %80 : vector<1x100xf32> to vector<1x1x100xf32>
    tpu.vector_store %arg10[%c0_61, %c0_62, %c200], %83 {strides = array<i32>} : memref<1x1x6400xf32, #tpu.memory_space<vmem>>, vector<1x1x100xf32>,
    %84 = vector.extract_strided_slice %71 {offsets = [3, 0], sizes = [1, 100], strides = [1, 1]} : vector<64x100xf32> to vector<1x100xf32>
    %c0_63 = arith.constant 0 : index
    %c0_64 = arith.constant 0 : index
    %c300 = arith.constant 300 : index
    %85 = vector.load %arg10[%c0_63, %c0_64, %c300] : memref<1x1x6400xf32, #tpu.memory_space<vmem>>, vector<1x1x100xf32>
    %86 = vector.shape_cast %85 : vector<1x1x100xf32> to vector<1x100xf32>
    %87 = vector.shape_cast %84 : vector<1x100xf32> to vector<1x1x100xf32>
    tpu.vector_store %arg10[%c0_63, %c0_64, %c300], %87 {strides = array<i32>} : memref<1x1x6400xf32, #tpu.memory_space<vmem>>, vector<1x1x100xf32>,
    %88 = vector.extract_strided_slice %71 {offsets = [4, 0], sizes = [1, 100], strides = [1, 1]} : vector<64x100xf32> to vector<1x100xf32>
    %c0_65 = arith.constant 0 : index
    %c0_66 = arith.constant 0 : index
    %c400 = arith.constant 400 : index
    %89 = vector.load %arg10[%c0_65, %c0_66, %c400] : memref<1x1x6400xf32, #tpu.memory_space<vmem>>, vector<1x1x100xf32>
    %90 = vector.shape_cast %89 : vector<1x1x100xf32> to vector<1x100xf32>
    %91 = vector.shape_cast %88 : vector<1x100xf32> to vector<1x1x100xf32>
    tpu.vector_store %arg10[%c0_65, %c0_66, %c400], %91 {strides = array<i32>} : memref<1x1x6400xf32, #tpu.memory_space<vmem>>, vector<1x1x100xf32>,
    %92 = vector.extract_strided_slice %71 {offsets = [5, 0], sizes = [1, 100], strides = [1, 1]} : vector<64x100xf32> to vector<1x100xf32>
    %c0_67 = arith.constant 0 : index
    %c0_68 = arith.constant 0 : index
    %c500 = arith.constant 500 : index
    %93 = vector.load %arg10[%c0_67, %c0_68, %c500] : memref<1x1x6400xf32, #tpu.memory_space<vmem>>, vector<1x1x100xf32>
    %94 = vector.shape_cast %93 : vector<1x1x100xf32> to vector<1x100xf32>
    %95 = vector.shape_cast %92 : vector<1x100xf32> to vector<1x1x100xf32>
    tpu.vector_store %arg10[%c0_67, %c0_68, %c500], %95 {strides = array<i32>} : memref<1x1x6400xf32, #tpu.memory_space<vmem>>, vector<1x1x100xf32>,
    %96 = vector.extract_strided_slice %71 {offsets = [6, 0], sizes = [1, 100], strides = [1, 1]} : vector<64x100xf32> to vector<1x100xf32>
    %c0_69 = arith.constant 0 : index
    %c0_70 = arith.constant 0 : index
    %c600 = arith.constant 600 : index
    %97 = vector.load %arg10[%c0_69, %c0_70, %c600] : memref<1x1x6400xf32, #tpu.memory_space<vmem>>, vector<1x1x100xf32>
    %98 = vector.shape_cast %97 : vector<1x1x100xf32> to vector<1x100xf32>
    %99 = vector.shape_cast %96 : vector<1x100xf32> to vector<1x1x100xf32>
    tpu.vector_store %arg10[%c0_69, %c0_70, %c600], %99 {strides = array<i32>} : memref<1x1x6400xf32, #tpu.memory_space<vmem>>, vector<1x1x100xf32>,
    %100 = vector.extract_strided_slice %71 {offsets = [7, 0], sizes = [1, 100], strides = [1, 1]} : vector<64x100xf32> to vector<1x100xf32>
    %c0_71 = arith.constant 0 : index
    %c0_72 = arith.constant 0 : index
    %c700 = arith.constant 700 : index
    %101 = vector.load %arg10[%c0_71, %c0_72, %c700] : memref<1x1x6400xf32, #tpu.memory_space<vmem>>, vector<1x1x100xf32>
    %102 = vector.shape_cast %101 : vector<1x1x100xf32> to vector<1x100xf32>
    %103 = vector.shape_cast %100 : vector<1x100xf32> to vector<1x1x100xf32>
    tpu.vector_store %arg10[%c0_71, %c0_72, %c700], %103 {strides = array<i32>} : memref<1x1x6400xf32, #tpu.memory_space<vmem>>, vector<1x1x100xf32>,
    %104 = vector.extract_strided_slice %71 {offsets = [8, 0], sizes = [1, 100], strides = [1, 1]} : vector<64x100xf32> to vector<1x100xf32>
    %c0_73 = arith.constant 0 : index
    %c0_74 = arith.constant 0 : index
    %c800 = arith.constant 800 : index
    %105 = vector.load %arg10[%c0_73, %c0_74, %c800] : memref<1x1x6400xf32, #tpu.memory_space<vmem>>, vector<1x1x100xf32>
    %106 = vector.shape_cast %105 : vector<1x1x100xf32> to vector<1x100xf32>
    %107 = vector.shape_cast %104 : vector<1x100xf32> to vector<1x1x100xf32>
    tpu.vector_store %arg10[%c0_73, %c0_74, %c800], %107 {strides = array<i32>} : memref<1x1x6400xf32, #tpu.memory_space<vmem>>, vector<1x1x100xf32>,
    %108 = vector.extract_strided_slice %71 {offsets = [9, 0], sizes = [1, 100], strides = [1, 1]} : vector<64x100xf32> to vector<1x100xf32>
    %c0_75 = arith.constant 0 : index
    %c0_76 = arith.constant 0 : index
    %c900 = arith.constant 900 : index
    %109 = vector.load %arg10[%c0_75, %c0_76, %c900] : memref<1x1x6400xf32, #tpu.memory_space<vmem>>, vector<1x1x100xf32>
    %110 = vector.shape_cast %109 : vector<1x1x100xf32> to vector<1x100xf32>
    %111 = vector.shape_cast %108 : vector<1x100xf32> to vector<1x1x100xf32>
    tpu.vector_store %arg10[%c0_75, %c0_76, %c900], %111 {strides = array<i32>} : memref<1x1x6400xf32, #tpu.memory_space<vmem>>, vector<1x1x100xf32>,
    %112 = vector.extract_strided_slice %71 {offsets = [10, 0], sizes = [1, 100], strides = [1, 1]} : vector<64x100xf32> to vector<1x100xf32>
    %c0_77 = arith.constant 0 : index
    %c0_78 = arith.constant 0 : index
    %c1000 = arith.constant 1000 : index
    %113 = vector.load %arg10[%c0_77, %c0_78, %c1000] : memref<1x1x6400xf32, #tpu.memory_space<vmem>>, vector<1x1x100xf32>
    %114 = vector.shape_cast %113 : vector<1x1x100xf32> to vector<1x100xf32>
    %115 = vector.shape_cast %112 : vector<1x100xf32> to vector<1x1x100xf32>
    tpu.vector_store %arg10[%c0_77, %c0_78, %c1000], %115 {strides = array<i32>} : memref<1x1x6400xf32, #tpu.memory_space<vmem>>, vector<1x1x100xf32>,
    %116 = vector.extract_strided_slice %71 {offsets = [11, 0], sizes = [1, 100], strides = [1, 1]} : vector<64x100xf32> to vector<1x100xf32>
    %c0_79 = arith.constant 0 : index
    %c0_80 = arith.constant 0 : index
    %c1100 = arith.constant 1100 : index
    %117 = vector.load %arg10[%c0_79, %c0_80, %c1100] : memref<1x1x6400xf32, #tpu.memory_space<vmem>>, vector<1x1x100xf32>
    %118 = vector.shape_cast %117 : vector<1x1x100xf32> to vector<1x100xf32>
    %119 = vector.shape_cast %116 : vector<1x100xf32> to vector<1x1x100xf32>
    tpu.vector_store %arg10[%c0_79, %c0_80, %c1100], %119 {strides = array<i32>} : memref<1x1x6400xf32, #tpu.memory_space<vmem>>, vector<1x1x100xf32>,
    %120 = vector.extract_strided_slice %71 {offsets = [12, 0], sizes = [1, 100], strides = [1, 1]} : vector<64x100xf32> to vector<1x100xf32>
    %c0_81 = arith.constant 0 : index
    %c0_82 = arith.constant 0 : index
    %c1200 = arith.constant 1200 : index
    %121 = vector.load %arg10[%c0_81, %c0_82, %c1200] : memref<1x1x6400xf32, #tpu.memory_space<vmem>>, vector<1x1x100xf32>
    %122 = vector.shape_cast %121 : vector<1x1x100xf32> to vector<1x100xf32>
    %123 = vector.shape_cast %120 : vector<1x100xf32> to vector<1x1x100xf32>
    tpu.vector_store %arg10[%c0_81, %c0_82, %c1200], %123 {strides = array<i32>} : memref<1x1x6400xf32, #tpu.memory_space<vmem>>, vector<1x1x100xf32>,
    %124 = vector.extract_strided_slice %71 {offsets = [13, 0], sizes = [1, 100], strides = [1, 1]} : vector<64x100xf32> to vector<1x100xf32>
    %c0_83 = arith.constant 0 : index
    %c0_84 = arith.constant 0 : index
    %c1300 = arith.constant 1300 : index
    %125 = vector.load %arg10[%c0_83, %c0_84, %c1300] : memref<1x1x6400xf32, #tpu.memory_space<vmem>>, vector<1x1x100xf32>
    %126 = vector.shape_cast %125 : vector<1x1x100xf32> to vector<1x100xf32>
    %127 = vector.shape_cast %124 : vector<1x100xf32> to vector<1x1x100xf32>
    tpu.vector_store %arg10[%c0_83, %c0_84, %c1300], %127 {strides = array<i32>} : memref<1x1x6400xf32, #tpu.memory_space<vmem>>, vector<1x1x100xf32>,
    %128 = vector.extract_strided_slice %71 {offsets = [14, 0], sizes = [1, 100], strides = [1, 1]} : vector<64x100xf32> to vector<1x100xf32>
    %c0_85 = arith.constant 0 : index
    %c0_86 = arith.constant 0 : index
    %c1400 = arith.constant 1400 : index
    %129 = vector.load %arg10[%c0_85, %c0_86, %c1400] : memref<1x1x6400xf32, #tpu.memory_space<vmem>>, vector<1x1x100xf32>
    %130 = vector.shape_cast %129 : vector<1x1x100xf32> to vector<1x100xf32>
    %131 = vector.shape_cast %128 : vector<1x100xf32> to vector<1x1x100xf32>
    tpu.vector_store %arg10[%c0_85, %c0_86, %c1400], %131 {strides = array<i32>} : memref<1x1x6400xf32, #tpu.memory_space<vmem>>, vector<1x1x100xf32>,
    %132 = vector.extract_strided_slice %71 {offsets = [15, 0], sizes = [1, 100], strides = [1, 1]} : vector<64x100xf32> to vector<1x100xf32>
    %c0_87 = arith.constant 0 : index
    %c0_88 = arith.constant 0 : index
    %c1500 = arith.constant 1500 : index
    %133 = vector.load %arg10[%c0_87, %c0_88, %c1500] : memref<1x1x6400xf32, #tpu.memory_space<vmem>>, vector<1x1x100xf32>
    %134 = vector.shape_cast %133 : vector<1x1x100xf32> to vector<1x100xf32>
    %135 = vector.shape_cast %132 : vector<1x100xf32> to vector<1x1x100xf32>
    tpu.vector_store %arg10[%c0_87, %c0_88, %c1500], %135 {strides = array<i32>} : memref<1x1x6400xf32, #tpu.memory_space<vmem>>, vector<1x1x100xf32>,
    %136 = vector.extract_strided_slice %71 {offsets = [16, 0], sizes = [1, 100], strides = [1, 1]} : vector<64x100xf32> to vector<1x100xf32>
    %c0_89 = arith.constant 0 : index
    %c0_90 = arith.constant 0 : index
    %c1600 = arith.constant 1600 : index
    %137 = vector.load %arg10[%c0_89, %c0_90, %c1600] : memref<1x1x6400xf32, #tpu.memory_space<vmem>>, vector<1x1x100xf32>
    %138 = vector.shape_cast %137 : vector<1x1x100xf32> to vector<1x100xf32>
    %139 = vector.shape_cast %136 : vector<1x100xf32> to vector<1x1x100xf32>
    tpu.vector_store %arg10[%c0_89, %c0_90, %c1600], %139 {strides = array<i32>} : memref<1x1x6400xf32, #tpu.memory_space<vmem>>, vector<1x1x100xf32>,
    %140 = vector.extract_strided_slice %71 {offsets = [17, 0], sizes = [1, 100], strides = [1, 1]} : vector<64x100xf32> to vector<1x100xf32>
    %c0_91 = arith.constant 0 : index
    %c0_92 = arith.constant 0 : index
    %c1700 = arith.constant 1700 : index
    %141 = vector.load %arg10[%c0_91, %c0_92, %c1700] : memref<1x1x6400xf32, #tpu.memory_space<vmem>>, vector<1x1x100xf32>
    %142 = vector.shape_cast %141 : vector<1x1x100xf32> to vector<1x100xf32>
    %143 = vector.shape_cast %140 : vector<1x100xf32> to vector<1x1x100xf32>
    tpu.vector_store %arg10[%c0_91, %c0_92, %c1700], %143 {strides = array<i32>} : memref<1x1x6400xf32, #tpu.memory_space<vmem>>, vector<1x1x100xf32>,
    %144 = vector.extract_strided_slice %71 {offsets = [18, 0], sizes = [1, 100], strides = [1, 1]} : vector<64x100xf32> to vector<1x100xf32>
    %c0_93 = arith.constant 0 : index
    %c0_94 = arith.constant 0 : index
    %c1800 = arith.constant 1800 : index
    %145 = vector.load %arg10[%c0_93, %c0_94, %c1800] : memref<1x1x6400xf32, #tpu.memory_space<vmem>>, vector<1x1x100xf32>
    %146 = vector.shape_cast %145 : vector<1x1x100xf32> to vector<1x100xf32>
    %147 = vector.shape_cast %144 : vector<1x100xf32> to vector<1x1x100xf32>
    tpu.vector_store %arg10[%c0_93, %c0_94, %c1800], %147 {strides = array<i32>} : memref<1x1x6400xf32, #tpu.memory_space<vmem>>, vector<1x1x100xf32>,
    %148 = vector.extract_strided_slice %71 {offsets = [19, 0], sizes = [1, 100], strides = [1, 1]} : vector<64x100xf32> to vector<1x100xf32>
    %c0_95 = arith.constant 0 : index
    %c0_96 = arith.constant 0 : index
    %c1900 = arith.constant 1900 : index
    %149 = vector.load %arg10[%c0_95, %c0_96, %c1900] : memref<1x1x6400xf32, #tpu.memory_space<vmem>>, vector<1x1x100xf32>
    %150 = vector.shape_cast %149 : vector<1x1x100xf32> to vector<1x100xf32>
    %151 = vector.shape_cast %148 : vector<1x100xf32> to vector<1x1x100xf32>
    tpu.vector_store %arg10[%c0_95, %c0_96, %c1900], %151 {strides = array<i32>} : memref<1x1x6400xf32, #tpu.memory_space<vmem>>, vector<1x1x100xf32>,
    %152 = vector.extract_strided_slice %71 {offsets = [20, 0], sizes = [1, 100], strides = [1, 1]} : vector<64x100xf32> to vector<1x100xf32>
    %c0_97 = arith.constant 0 : index
    %c0_98 = arith.constant 0 : index
    %c2000 = arith.constant 2000 : index
    %153 = vector.load %arg10[%c0_97, %c0_98, %c2000] : memref<1x1x6400xf32, #tpu.memory_space<vmem>>, vector<1x1x100xf32>
    %154 = vector.shape_cast %153 : vector<1x1x100xf32> to vector<1x100xf32>
    %155 = vector.shape_cast %152 : vector<1x100xf32> to vector<1x1x100xf32>
    tpu.vector_store %arg10[%c0_97, %c0_98, %c2000], %155 {strides = array<i32>} : memref<1x1x6400xf32, #tpu.memory_space<vmem>>, vector<1x1x100xf32>,
    %156 = vector.extract_strided_slice %71 {offsets = [21, 0], sizes = [1, 100], strides = [1, 1]} : vector<64x100xf32> to vector<1x100xf32>
    %c0_99 = arith.constant 0 : index
    %c0_100 = arith.constant 0 : index
    %c2100 = arith.constant 2100 : index
    %157 = vector.load %arg10[%c0_99, %c0_100, %c2100] : memref<1x1x6400xf32, #tpu.memory_space<vmem>>, vector<1x1x100xf32>
    %158 = vector.shape_cast %157 : vector<1x1x100xf32> to vector<1x100xf32>
    %159 = vector.shape_cast %156 : vector<1x100xf32> to vector<1x1x100xf32>
    tpu.vector_store %arg10[%c0_99, %c0_100, %c2100], %159 {strides = array<i32>} : memref<1x1x6400xf32, #tpu.memory_space<vmem>>, vector<1x1x100xf32>,
    %160 = vector.extract_strided_slice %71 {offsets = [22, 0], sizes = [1, 100], strides = [1, 1]} : vector<64x100xf32> to vector<1x100xf32>
    %c0_101 = arith.constant 0 : index
    %c0_102 = arith.constant 0 : index
    %c2200 = arith.constant 2200 : index
    %161 = vector.load %arg10[%c0_101, %c0_102, %c2200] : memref<1x1x6400xf32, #tpu.memory_space<vmem>>, vector<1x1x100xf32>
    %162 = vector.shape_cast %161 : vector<1x1x100xf32> to vector<1x100xf32>
    %163 = vector.shape_cast %160 : vector<1x100xf32> to vector<1x1x100xf32>
    tpu.vector_store %arg10[%c0_101, %c0_102, %c2200], %163 {strides = array<i32>} : memref<1x1x6400xf32, #tpu.memory_space<vmem>>, vector<1x1x100xf32>,
    %164 = vector.extract_strided_slice %71 {offsets = [23, 0], sizes = [1, 100], strides = [1, 1]} : vector<64x100xf32> to vector<1x100xf32>
    %c0_103 = arith.constant 0 : index
    %c0_104 = arith.constant 0 : index
    %c2300 = arith.constant 2300 : index
    %165 = vector.load %arg10[%c0_103, %c0_104, %c2300] : memref<1x1x6400xf32, #tpu.memory_space<vmem>>, vector<1x1x100xf32>
    %166 = vector.shape_cast %165 : vector<1x1x100xf32> to vector<1x100xf32>
    %167 = vector.shape_cast %164 : vector<1x100xf32> to vector<1x1x100xf32>
    tpu.vector_store %arg10[%c0_103, %c0_104, %c2300], %167 {strides = array<i32>} : memref<1x1x6400xf32, #tpu.memory_space<vmem>>, vector<1x1x100xf32>,
    %168 = vector.extract_strided_slice %71 {offsets = [24, 0], sizes = [1, 100], strides = [1, 1]} : vector<64x100xf32> to vector<1x100xf32>
    %c0_105 = arith.constant 0 : index
    %c0_106 = arith.constant 0 : index
    %c2400 = arith.constant 2400 : index
    %169 = vector.load %arg10[%c0_105, %c0_106, %c2400] : memref<1x1x6400xf32, #tpu.memory_space<vmem>>, vector<1x1x100xf32>
    %170 = vector.shape_cast %169 : vector<1x1x100xf32> to vector<1x100xf32>
    %171 = vector.shape_cast %168 : vector<1x100xf32> to vector<1x1x100xf32>
    tpu.vector_store %arg10[%c0_105, %c0_106, %c2400], %171 {strides = array<i32>} : memref<1x1x6400xf32, #tpu.memory_space<vmem>>, vector<1x1x100xf32>,
    %172 = vector.extract_strided_slice %71 {offsets = [25, 0], sizes = [1, 100], strides = [1, 1]} : vector<64x100xf32> to vector<1x100xf32>
    %c0_107 = arith.constant 0 : index
    %c0_108 = arith.constant 0 : index
    %c2500 = arith.constant 2500 : index
    %173 = vector.load %arg10[%c0_107, %c0_108, %c2500] : memref<1x1x6400xf32, #tpu.memory_space<vmem>>, vector<1x1x100xf32>
    %174 = vector.shape_cast %173 : vector<1x1x100xf32> to vector<1x100xf32>
    %175 = vector.shape_cast %172 : vector<1x100xf32> to vector<1x1x100xf32>
    tpu.vector_store %arg10[%c0_107, %c0_108, %c2500], %175 {strides = array<i32>} : memref<1x1x6400xf32, #tpu.memory_space<vmem>>, vector<1x1x100xf32>,
    %176 = vector.extract_strided_slice %71 {offsets = [26, 0], sizes = [1, 100], strides = [1, 1]} : vector<64x100xf32> to vector<1x100xf32>
    %c0_109 = arith.constant 0 : index
    %c0_110 = arith.constant 0 : index
    %c2600 = arith.constant 2600 : index
    %177 = vector.load %arg10[%c0_109, %c0_110, %c2600] : memref<1x1x6400xf32, #tpu.memory_space<vmem>>, vector<1x1x100xf32>
    %178 = vector.shape_cast %177 : vector<1x1x100xf32> to vector<1x100xf32>
    %179 = vector.shape_cast %176 : vector<1x100xf32> to vector<1x1x100xf32>
    tpu.vector_store %arg10[%c0_109, %c0_110, %c2600], %179 {strides = array<i32>} : memref<1x1x6400xf32, #tpu.memory_space<vmem>>, vector<1x1x100xf32>,
    %180 = vector.extract_strided_slice %71 {offsets = [27, 0], sizes = [1, 100], strides = [1, 1]} : vector<64x100xf32> to vector<1x100xf32>
    %c0_111 = arith.constant 0 : index
    %c0_112 = arith.constant 0 : index
    %c2700 = arith.constant 2700 : index
    %181 = vector.load %arg10[%c0_111, %c0_112, %c2700] : memref<1x1x6400xf32, #tpu.memory_space<vmem>>, vector<1x1x100xf32>
    %182 = vector.shape_cast %181 : vector<1x1x100xf32> to vector<1x100xf32>
    %183 = vector.shape_cast %180 : vector<1x100xf32> to vector<1x1x100xf32>
    tpu.vector_store %arg10[%c0_111, %c0_112, %c2700], %183 {strides = array<i32>} : memref<1x1x6400xf32, #tpu.memory_space<vmem>>, vector<1x1x100xf32>,
    %184 = vector.extract_strided_slice %71 {offsets = [28, 0], sizes = [1, 100], strides = [1, 1]} : vector<64x100xf32> to vector<1x100xf32>
    %c0_113 = arith.constant 0 : index
    %c0_114 = arith.constant 0 : index
    %c2800 = arith.constant 2800 : index
    %185 = vector.load %arg10[%c0_113, %c0_114, %c2800] : memref<1x1x6400xf32, #tpu.memory_space<vmem>>, vector<1x1x100xf32>
    %186 = vector.shape_cast %185 : vector<1x1x100xf32> to vector<1x100xf32>
    %187 = vector.shape_cast %184 : vector<1x100xf32> to vector<1x1x100xf32>
    tpu.vector_store %arg10[%c0_113, %c0_114, %c2800], %187 {strides = array<i32>} : memref<1x1x6400xf32, #tpu.memory_space<vmem>>, vector<1x1x100xf32>,
    %188 = vector.extract_strided_slice %71 {offsets = [29, 0], sizes = [1, 100], strides = [1, 1]} : vector<64x100xf32> to vector<1x100xf32>
    %c0_115 = arith.constant 0 : index
    %c0_116 = arith.constant 0 : index
    %c2900 = arith.constant 2900 : index
    %189 = vector.load %arg10[%c0_115, %c0_116, %c2900] : memref<1x1x6400xf32, #tpu.memory_space<vmem>>, vector<1x1x100xf32>
    %190 = vector.shape_cast %189 : vector<1x1x100xf32> to vector<1x100xf32>
    %191 = vector.shape_cast %188 : vector<1x100xf32> to vector<1x1x100xf32>
    tpu.vector_store %arg10[%c0_115, %c0_116, %c2900], %191 {strides = array<i32>} : memref<1x1x6400xf32, #tpu.memory_space<vmem>>, vector<1x1x100xf32>,
    %192 = vector.extract_strided_slice %71 {offsets = [30, 0], sizes = [1, 100], strides = [1, 1]} : vector<64x100xf32> to vector<1x100xf32>
    %c0_117 = arith.constant 0 : index
    %c0_118 = arith.constant 0 : index
    %c3000 = arith.constant 3000 : index
    %193 = vector.load %arg10[%c0_117, %c0_118, %c3000] : memref<1x1x6400xf32, #tpu.memory_space<vmem>>, vector<1x1x100xf32>
    %194 = vector.shape_cast %193 : vector<1x1x100xf32> to vector<1x100xf32>
    %195 = vector.shape_cast %192 : vector<1x100xf32> to vector<1x1x100xf32>
    tpu.vector_store %arg10[%c0_117, %c0_118, %c3000], %195 {strides = array<i32>} : memref<1x1x6400xf32, #tpu.memory_space<vmem>>, vector<1x1x100xf32>,
    %196 = vector.extract_strided_slice %71 {offsets = [31, 0], sizes = [1, 100], strides = [1, 1]} : vector<64x100xf32> to vector<1x100xf32>
    %c0_119 = arith.constant 0 : index
    %c0_120 = arith.constant 0 : index
    %c3100 = arith.constant 3100 : index
    %197 = vector.load %arg10[%c0_119, %c0_120, %c3100] : memref<1x1x6400xf32, #tpu.memory_space<vmem>>, vector<1x1x100xf32>
    %198 = vector.shape_cast %197 : vector<1x1x100xf32> to vector<1x100xf32>
    %199 = vector.shape_cast %196 : vector<1x100xf32> to vector<1x1x100xf32>
    tpu.vector_store %arg10[%c0_119, %c0_120, %c3100], %199 {strides = array<i32>} : memref<1x1x6400xf32, #tpu.memory_space<vmem>>, vector<1x1x100xf32>,
    %200 = vector.extract_strided_slice %71 {offsets = [32, 0], sizes = [1, 100], strides = [1, 1]} : vector<64x100xf32> to vector<1x100xf32>
    %c0_121 = arith.constant 0 : index
    %c0_122 = arith.constant 0 : index
    %c3200 = arith.constant 3200 : index
    %201 = vector.load %arg10[%c0_121, %c0_122, %c3200] : memref<1x1x6400xf32, #tpu.memory_space<vmem>>, vector<1x1x100xf32>
    %202 = vector.shape_cast %201 : vector<1x1x100xf32> to vector<1x100xf32>
    %203 = vector.shape_cast %200 : vector<1x100xf32> to vector<1x1x100xf32>
    tpu.vector_store %arg10[%c0_121, %c0_122, %c3200], %203 {strides = array<i32>} : memref<1x1x6400xf32, #tpu.memory_space<vmem>>, vector<1x1x100xf32>,
    %204 = vector.extract_strided_slice %71 {offsets = [33, 0], sizes = [1, 100], strides = [1, 1]} : vector<64x100xf32> to vector<1x100xf32>
    %c0_123 = arith.constant 0 : index
    %c0_124 = arith.constant 0 : index
    %c3300 = arith.constant 3300 : index
    %205 = vector.load %arg10[%c0_123, %c0_124, %c3300] : memref<1x1x6400xf32, #tpu.memory_space<vmem>>, vector<1x1x100xf32>
    %206 = vector.shape_cast %205 : vector<1x1x100xf32> to vector<1x100xf32>
    %207 = vector.shape_cast %204 : vector<1x100xf32> to vector<1x1x100xf32>
    tpu.vector_store %arg10[%c0_123, %c0_124, %c3300], %207 {strides = array<i32>} : memref<1x1x6400xf32, #tpu.memory_space<vmem>>, vector<1x1x100xf32>,
    %208 = vector.extract_strided_slice %71 {offsets = [34, 0], sizes = [1, 100], strides = [1, 1]} : vector<64x100xf32> to vector<1x100xf32>
    %c0_125 = arith.constant 0 : index
    %c0_126 = arith.constant 0 : index
    %c3400 = arith.constant 3400 : index
    %209 = vector.load %arg10[%c0_125, %c0_126, %c3400] : memref<1x1x6400xf32, #tpu.memory_space<vmem>>, vector<1x1x100xf32>
    %210 = vector.shape_cast %209 : vector<1x1x100xf32> to vector<1x100xf32>
    %211 = vector.shape_cast %208 : vector<1x100xf32> to vector<1x1x100xf32>
    tpu.vector_store %arg10[%c0_125, %c0_126, %c3400], %211 {strides = array<i32>} : memref<1x1x6400xf32, #tpu.memory_space<vmem>>, vector<1x1x100xf32>,
    %212 = vector.extract_strided_slice %71 {offsets = [35, 0], sizes = [1, 100], strides = [1, 1]} : vector<64x100xf32> to vector<1x100xf32>
    %c0_127 = arith.constant 0 : index
    %c0_128 = arith.constant 0 : index
    %c3500 = arith.constant 3500 : index
    %213 = vector.load %arg10[%c0_127, %c0_128, %c3500] : memref<1x1x6400xf32, #tpu.memory_space<vmem>>, vector<1x1x100xf32>
    %214 = vector.shape_cast %213 : vector<1x1x100xf32> to vector<1x100xf32>
    %215 = vector.shape_cast %212 : vector<1x100xf32> to vector<1x1x100xf32>
    tpu.vector_store %arg10[%c0_127, %c0_128, %c3500], %215 {strides = array<i32>} : memref<1x1x6400xf32, #tpu.memory_space<vmem>>, vector<1x1x100xf32>,
    %216 = vector.extract_strided_slice %71 {offsets = [36, 0], sizes = [1, 100], strides = [1, 1]} : vector<64x100xf32> to vector<1x100xf32>
    %c0_129 = arith.constant 0 : index
    %c0_130 = arith.constant 0 : index
    %c3600 = arith.constant 3600 : index
    %217 = vector.load %arg10[%c0_129, %c0_130, %c3600] : memref<1x1x6400xf32, #tpu.memory_space<vmem>>, vector<1x1x100xf32>
    %218 = vector.shape_cast %217 : vector<1x1x100xf32> to vector<1x100xf32>
    %219 = vector.shape_cast %216 : vector<1x100xf32> to vector<1x1x100xf32>
    tpu.vector_store %arg10[%c0_129, %c0_130, %c3600], %219 {strides = array<i32>} : memref<1x1x6400xf32, #tpu.memory_space<vmem>>, vector<1x1x100xf32>,
    %220 = vector.extract_strided_slice %71 {offsets = [37, 0], sizes = [1, 100], strides = [1, 1]} : vector<64x100xf32> to vector<1x100xf32>
    %c0_131 = arith.constant 0 : index
    %c0_132 = arith.constant 0 : index
    %c3700 = arith.constant 3700 : index
    %221 = vector.load %arg10[%c0_131, %c0_132, %c3700] : memref<1x1x6400xf32, #tpu.memory_space<vmem>>, vector<1x1x100xf32>
    %222 = vector.shape_cast %221 : vector<1x1x100xf32> to vector<1x100xf32>
    %223 = vector.shape_cast %220 : vector<1x100xf32> to vector<1x1x100xf32>
    tpu.vector_store %arg10[%c0_131, %c0_132, %c3700], %223 {strides = array<i32>} : memref<1x1x6400xf32, #tpu.memory_space<vmem>>, vector<1x1x100xf32>,
    %224 = vector.extract_strided_slice %71 {offsets = [38, 0], sizes = [1, 100], strides = [1, 1]} : vector<64x100xf32> to vector<1x100xf32>
    %c0_133 = arith.constant 0 : index
    %c0_134 = arith.constant 0 : index
    %c3800 = arith.constant 3800 : index
    %225 = vector.load %arg10[%c0_133, %c0_134, %c3800] : memref<1x1x6400xf32, #tpu.memory_space<vmem>>, vector<1x1x100xf32>
    %226 = vector.shape_cast %225 : vector<1x1x100xf32> to vector<1x100xf32>
    %227 = vector.shape_cast %224 : vector<1x100xf32> to vector<1x1x100xf32>
    tpu.vector_store %arg10[%c0_133, %c0_134, %c3800], %227 {strides = array<i32>} : memref<1x1x6400xf32, #tpu.memory_space<vmem>>, vector<1x1x100xf32>,
    %228 = vector.extract_strided_slice %71 {offsets = [39, 0], sizes = [1, 100], strides = [1, 1]} : vector<64x100xf32> to vector<1x100xf32>
    %c0_135 = arith.constant 0 : index
    %c0_136 = arith.constant 0 : index
    %c3900 = arith.constant 3900 : index
    %229 = vector.load %arg10[%c0_135, %c0_136, %c3900] : memref<1x1x6400xf32, #tpu.memory_space<vmem>>, vector<1x1x100xf32>
    %230 = vector.shape_cast %229 : vector<1x1x100xf32> to vector<1x100xf32>
    %231 = vector.shape_cast %228 : vector<1x100xf32> to vector<1x1x100xf32>
    tpu.vector_store %arg10[%c0_135, %c0_136, %c3900], %231 {strides = array<i32>} : memref<1x1x6400xf32, #tpu.memory_space<vmem>>, vector<1x1x100xf32>,
    %232 = vector.extract_strided_slice %71 {offsets = [40, 0], sizes = [1, 100], strides = [1, 1]} : vector<64x100xf32> to vector<1x100xf32>
    %c0_137 = arith.constant 0 : index
    %c0_138 = arith.constant 0 : index
    %c4000 = arith.constant 4000 : index
    %233 = vector.load %arg10[%c0_137, %c0_138, %c4000] : memref<1x1x6400xf32, #tpu.memory_space<vmem>>, vector<1x1x100xf32>
    %234 = vector.shape_cast %233 : vector<1x1x100xf32> to vector<1x100xf32>
    %235 = vector.shape_cast %232 : vector<1x100xf32> to vector<1x1x100xf32>
    tpu.vector_store %arg10[%c0_137, %c0_138, %c4000], %235 {strides = array<i32>} : memref<1x1x6400xf32, #tpu.memory_space<vmem>>, vector<1x1x100xf32>,
    %236 = vector.extract_strided_slice %71 {offsets = [41, 0], sizes = [1, 100], strides = [1, 1]} : vector<64x100xf32> to vector<1x100xf32>
    %c0_139 = arith.constant 0 : index
    %c0_140 = arith.constant 0 : index
    %c4100 = arith.constant 4100 : index
    %237 = vector.load %arg10[%c0_139, %c0_140, %c4100] : memref<1x1x6400xf32, #tpu.memory_space<vmem>>, vector<1x1x100xf32>
    %238 = vector.shape_cast %237 : vector<1x1x100xf32> to vector<1x100xf32>
    %239 = vector.shape_cast %236 : vector<1x100xf32> to vector<1x1x100xf32>
    tpu.vector_store %arg10[%c0_139, %c0_140, %c4100], %239 {strides = array<i32>} : memref<1x1x6400xf32, #tpu.memory_space<vmem>>, vector<1x1x100xf32>,
    %240 = vector.extract_strided_slice %71 {offsets = [42, 0], sizes = [1, 100], strides = [1, 1]} : vector<64x100xf32> to vector<1x100xf32>
    %c0_141 = arith.constant 0 : index
    %c0_142 = arith.constant 0 : index
    %c4200 = arith.constant 4200 : index
    %241 = vector.load %arg10[%c0_141, %c0_142, %c4200] : memref<1x1x6400xf32, #tpu.memory_space<vmem>>, vector<1x1x100xf32>
    %242 = vector.shape_cast %241 : vector<1x1x100xf32> to vector<1x100xf32>
    %243 = vector.shape_cast %240 : vector<1x100xf32> to vector<1x1x100xf32>
    tpu.vector_store %arg10[%c0_141, %c0_142, %c4200], %243 {strides = array<i32>} : memref<1x1x6400xf32, #tpu.memory_space<vmem>>, vector<1x1x100xf32>,
    %244 = vector.extract_strided_slice %71 {offsets = [43, 0], sizes = [1, 100], strides = [1, 1]} : vector<64x100xf32> to vector<1x100xf32>
    %c0_143 = arith.constant 0 : index
    %c0_144 = arith.constant 0 : index
    %c4300 = arith.constant 4300 : index
    %245 = vector.load %arg10[%c0_143, %c0_144, %c4300] : memref<1x1x6400xf32, #tpu.memory_space<vmem>>, vector<1x1x100xf32>
    %246 = vector.shape_cast %245 : vector<1x1x100xf32> to vector<1x100xf32>
    %247 = vector.shape_cast %244 : vector<1x100xf32> to vector<1x1x100xf32>
    tpu.vector_store %arg10[%c0_143, %c0_144, %c4300], %247 {strides = array<i32>} : memref<1x1x6400xf32, #tpu.memory_space<vmem>>, vector<1x1x100xf32>,
    %248 = vector.extract_strided_slice %71 {offsets = [44, 0], sizes = [1, 100], strides = [1, 1]} : vector<64x100xf32> to vector<1x100xf32>
    %c0_145 = arith.constant 0 : index
    %c0_146 = arith.constant 0 : index
    %c4400 = arith.constant 4400 : index
    %249 = vector.load %arg10[%c0_145, %c0_146, %c4400] : memref<1x1x6400xf32, #tpu.memory_space<vmem>>, vector<1x1x100xf32>
    %250 = vector.shape_cast %249 : vector<1x1x100xf32> to vector<1x100xf32>
    %251 = vector.shape_cast %248 : vector<1x100xf32> to vector<1x1x100xf32>
    tpu.vector_store %arg10[%c0_145, %c0_146, %c4400], %251 {strides = array<i32>} : memref<1x1x6400xf32, #tpu.memory_space<vmem>>, vector<1x1x100xf32>,
    %252 = vector.extract_strided_slice %71 {offsets = [45, 0], sizes = [1, 100], strides = [1, 1]} : vector<64x100xf32> to vector<1x100xf32>
    %c0_147 = arith.constant 0 : index
    %c0_148 = arith.constant 0 : index
    %c4500 = arith.constant 4500 : index
    %253 = vector.load %arg10[%c0_147, %c0_148, %c4500] : memref<1x1x6400xf32, #tpu.memory_space<vmem>>, vector<1x1x100xf32>
    %254 = vector.shape_cast %253 : vector<1x1x100xf32> to vector<1x100xf32>
    %255 = vector.shape_cast %252 : vector<1x100xf32> to vector<1x1x100xf32>
    tpu.vector_store %arg10[%c0_147, %c0_148, %c4500], %255 {strides = array<i32>} : memref<1x1x6400xf32, #tpu.memory_space<vmem>>, vector<1x1x100xf32>,
    %256 = vector.extract_strided_slice %71 {offsets = [46, 0], sizes = [1, 100], strides = [1, 1]} : vector<64x100xf32> to vector<1x100xf32>
    %c0_149 = arith.constant 0 : index
    %c0_150 = arith.constant 0 : index
    %c4600 = arith.constant 4600 : index
    %257 = vector.load %arg10[%c0_149, %c0_150, %c4600] : memref<1x1x6400xf32, #tpu.memory_space<vmem>>, vector<1x1x100xf32>
    %258 = vector.shape_cast %257 : vector<1x1x100xf32> to vector<1x100xf32>
    %259 = vector.shape_cast %256 : vector<1x100xf32> to vector<1x1x100xf32>
    tpu.vector_store %arg10[%c0_149, %c0_150, %c4600], %259 {strides = array<i32>} : memref<1x1x6400xf32, #tpu.memory_space<vmem>>, vector<1x1x100xf32>,
    %260 = vector.extract_strided_slice %71 {offsets = [47, 0], sizes = [1, 100], strides = [1, 1]} : vector<64x100xf32> to vector<1x100xf32>
    %c0_151 = arith.constant 0 : index
    %c0_152 = arith.constant 0 : index
    %c4700 = arith.constant 4700 : index
    %261 = vector.load %arg10[%c0_151, %c0_152, %c4700] : memref<1x1x6400xf32, #tpu.memory_space<vmem>>, vector<1x1x100xf32>
    %262 = vector.shape_cast %261 : vector<1x1x100xf32> to vector<1x100xf32>
    %263 = vector.shape_cast %260 : vector<1x100xf32> to vector<1x1x100xf32>
    tpu.vector_store %arg10[%c0_151, %c0_152, %c4700], %263 {strides = array<i32>} : memref<1x1x6400xf32, #tpu.memory_space<vmem>>, vector<1x1x100xf32>,
    %264 = vector.extract_strided_slice %71 {offsets = [48, 0], sizes = [1, 100], strides = [1, 1]} : vector<64x100xf32> to vector<1x100xf32>
    %c0_153 = arith.constant 0 : index
    %c0_154 = arith.constant 0 : index
    %c4800 = arith.constant 4800 : index
    %265 = vector.load %arg10[%c0_153, %c0_154, %c4800] : memref<1x1x6400xf32, #tpu.memory_space<vmem>>, vector<1x1x100xf32>
    %266 = vector.shape_cast %265 : vector<1x1x100xf32> to vector<1x100xf32>
    %267 = vector.shape_cast %264 : vector<1x100xf32> to vector<1x1x100xf32>
    tpu.vector_store %arg10[%c0_153, %c0_154, %c4800], %267 {strides = array<i32>} : memref<1x1x6400xf32, #tpu.memory_space<vmem>>, vector<1x1x100xf32>,
    %268 = vector.extract_strided_slice %71 {offsets = [49, 0], sizes = [1, 100], strides = [1, 1]} : vector<64x100xf32> to vector<1x100xf32>
    %c0_155 = arith.constant 0 : index
    %c0_156 = arith.constant 0 : index
    %c4900 = arith.constant 4900 : index
    %269 = vector.load %arg10[%c0_155, %c0_156, %c4900] : memref<1x1x6400xf32, #tpu.memory_space<vmem>>, vector<1x1x100xf32>
    %270 = vector.shape_cast %269 : vector<1x1x100xf32> to vector<1x100xf32>
    %271 = vector.shape_cast %268 : vector<1x100xf32> to vector<1x1x100xf32>
    tpu.vector_store %arg10[%c0_155, %c0_156, %c4900], %271 {strides = array<i32>} : memref<1x1x6400xf32, #tpu.memory_space<vmem>>, vector<1x1x100xf32>,
    %272 = vector.extract_strided_slice %71 {offsets = [50, 0], sizes = [1, 100], strides = [1, 1]} : vector<64x100xf32> to vector<1x100xf32>
    %c0_157 = arith.constant 0 : index
    %c0_158 = arith.constant 0 : index
    %c5000 = arith.constant 5000 : index
    %273 = vector.load %arg10[%c0_157, %c0_158, %c5000] : memref<1x1x6400xf32, #tpu.memory_space<vmem>>, vector<1x1x100xf32>
    %274 = vector.shape_cast %273 : vector<1x1x100xf32> to vector<1x100xf32>
    %275 = vector.shape_cast %272 : vector<1x100xf32> to vector<1x1x100xf32>
    tpu.vector_store %arg10[%c0_157, %c0_158, %c5000], %275 {strides = array<i32>} : memref<1x1x6400xf32, #tpu.memory_space<vmem>>, vector<1x1x100xf32>,
    %276 = vector.extract_strided_slice %71 {offsets = [51, 0], sizes = [1, 100], strides = [1, 1]} : vector<64x100xf32> to vector<1x100xf32>
    %c0_159 = arith.constant 0 : index
    %c0_160 = arith.constant 0 : index
    %c5100 = arith.constant 5100 : index
    %277 = vector.load %arg10[%c0_159, %c0_160, %c5100] : memref<1x1x6400xf32, #tpu.memory_space<vmem>>, vector<1x1x100xf32>
    %278 = vector.shape_cast %277 : vector<1x1x100xf32> to vector<1x100xf32>
    %279 = vector.shape_cast %276 : vector<1x100xf32> to vector<1x1x100xf32>
    tpu.vector_store %arg10[%c0_159, %c0_160, %c5100], %279 {strides = array<i32>} : memref<1x1x6400xf32, #tpu.memory_space<vmem>>, vector<1x1x100xf32>,
    %280 = vector.extract_strided_slice %71 {offsets = [52, 0], sizes = [1, 100], strides = [1, 1]} : vector<64x100xf32> to vector<1x100xf32>
    %c0_161 = arith.constant 0 : index
    %c0_162 = arith.constant 0 : index
    %c5200 = arith.constant 5200 : index
    %281 = vector.load %arg10[%c0_161, %c0_162, %c5200] : memref<1x1x6400xf32, #tpu.memory_space<vmem>>, vector<1x1x100xf32>
    %282 = vector.shape_cast %281 : vector<1x1x100xf32> to vector<1x100xf32>
    %283 = vector.shape_cast %280 : vector<1x100xf32> to vector<1x1x100xf32>
    tpu.vector_store %arg10[%c0_161, %c0_162, %c5200], %283 {strides = array<i32>} : memref<1x1x6400xf32, #tpu.memory_space<vmem>>, vector<1x1x100xf32>,
    %284 = vector.extract_strided_slice %71 {offsets = [53, 0], sizes = [1, 100], strides = [1, 1]} : vector<64x100xf32> to vector<1x100xf32>
    %c0_163 = arith.constant 0 : index
    %c0_164 = arith.constant 0 : index
    %c5300 = arith.constant 5300 : index
    %285 = vector.load %arg10[%c0_163, %c0_164, %c5300] : memref<1x1x6400xf32, #tpu.memory_space<vmem>>, vector<1x1x100xf32>
    %286 = vector.shape_cast %285 : vector<1x1x100xf32> to vector<1x100xf32>
    %287 = vector.shape_cast %284 : vector<1x100xf32> to vector<1x1x100xf32>
    tpu.vector_store %arg10[%c0_163, %c0_164, %c5300], %287 {strides = array<i32>} : memref<1x1x6400xf32, #tpu.memory_space<vmem>>, vector<1x1x100xf32>,
    %288 = vector.extract_strided_slice %71 {offsets = [54, 0], sizes = [1, 100], strides = [1, 1]} : vector<64x100xf32> to vector<1x100xf32>
    %c0_165 = arith.constant 0 : index
    %c0_166 = arith.constant 0 : index
    %c5400 = arith.constant 5400 : index
    %289 = vector.load %arg10[%c0_165, %c0_166, %c5400] : memref<1x1x6400xf32, #tpu.memory_space<vmem>>, vector<1x1x100xf32>
    %290 = vector.shape_cast %289 : vector<1x1x100xf32> to vector<1x100xf32>
    %291 = vector.shape_cast %288 : vector<1x100xf32> to vector<1x1x100xf32>
    tpu.vector_store %arg10[%c0_165, %c0_166, %c5400], %291 {strides = array<i32>} : memref<1x1x6400xf32, #tpu.memory_space<vmem>>, vector<1x1x100xf32>,
    %292 = vector.extract_strided_slice %71 {offsets = [55, 0], sizes = [1, 100], strides = [1, 1]} : vector<64x100xf32> to vector<1x100xf32>
    %c0_167 = arith.constant 0 : index
    %c0_168 = arith.constant 0 : index
    %c5500 = arith.constant 5500 : index
    %293 = vector.load %arg10[%c0_167, %c0_168, %c5500] : memref<1x1x6400xf32, #tpu.memory_space<vmem>>, vector<1x1x100xf32>
    %294 = vector.shape_cast %293 : vector<1x1x100xf32> to vector<1x100xf32>
    %295 = vector.shape_cast %292 : vector<1x100xf32> to vector<1x1x100xf32>
    tpu.vector_store %arg10[%c0_167, %c0_168, %c5500], %295 {strides = array<i32>} : memref<1x1x6400xf32, #tpu.memory_space<vmem>>, vector<1x1x100xf32>,
    %296 = vector.extract_strided_slice %71 {offsets = [56, 0], sizes = [1, 100], strides = [1, 1]} : vector<64x100xf32> to vector<1x100xf32>
    %c0_169 = arith.constant 0 : index
    %c0_170 = arith.constant 0 : index
    %c5600 = arith.constant 5600 : index
    %297 = vector.load %arg10[%c0_169, %c0_170, %c5600] : memref<1x1x6400xf32, #tpu.memory_space<vmem>>, vector<1x1x100xf32>
    %298 = vector.shape_cast %297 : vector<1x1x100xf32> to vector<1x100xf32>
    %299 = vector.shape_cast %296 : vector<1x100xf32> to vector<1x1x100xf32>
    tpu.vector_store %arg10[%c0_169, %c0_170, %c5600], %299 {strides = array<i32>} : memref<1x1x6400xf32, #tpu.memory_space<vmem>>, vector<1x1x100xf32>,
    %300 = vector.extract_strided_slice %71 {offsets = [57, 0], sizes = [1, 100], strides = [1, 1]} : vector<64x100xf32> to vector<1x100xf32>
    %c0_171 = arith.constant 0 : index
    %c0_172 = arith.constant 0 : index
    %c5700 = arith.constant 5700 : index
    %301 = vector.load %arg10[%c0_171, %c0_172, %c5700] : memref<1x1x6400xf32, #tpu.memory_space<vmem>>, vector<1x1x100xf32>
    %302 = vector.shape_cast %301 : vector<1x1x100xf32> to vector<1x100xf32>
    %303 = vector.shape_cast %300 : vector<1x100xf32> to vector<1x1x100xf32>
    tpu.vector_store %arg10[%c0_171, %c0_172, %c5700], %303 {strides = array<i32>} : memref<1x1x6400xf32, #tpu.memory_space<vmem>>, vector<1x1x100xf32>,
    %304 = vector.extract_strided_slice %71 {offsets = [58, 0], sizes = [1, 100], strides = [1, 1]} : vector<64x100xf32> to vector<1x100xf32>
    %c0_173 = arith.constant 0 : index
    %c0_174 = arith.constant 0 : index
    %c5800 = arith.constant 5800 : index
    %305 = vector.load %arg10[%c0_173, %c0_174, %c5800] : memref<1x1x6400xf32, #tpu.memory_space<vmem>>, vector<1x1x100xf32>
    %306 = vector.shape_cast %305 : vector<1x1x100xf32> to vector<1x100xf32>
    %307 = vector.shape_cast %304 : vector<1x100xf32> to vector<1x1x100xf32>
    tpu.vector_store %arg10[%c0_173, %c0_174, %c5800], %307 {strides = array<i32>} : memref<1x1x6400xf32, #tpu.memory_space<vmem>>, vector<1x1x100xf32>,
    %308 = vector.extract_strided_slice %71 {offsets = [59, 0], sizes = [1, 100], strides = [1, 1]} : vector<64x100xf32> to vector<1x100xf32>
    %c0_175 = arith.constant 0 : index
    %c0_176 = arith.constant 0 : index
    %c5900 = arith.constant 5900 : index
    %309 = vector.load %arg10[%c0_175, %c0_176, %c5900] : memref<1x1x6400xf32, #tpu.memory_space<vmem>>, vector<1x1x100xf32>
    %310 = vector.shape_cast %309 : vector<1x1x100xf32> to vector<1x100xf32>
    %311 = vector.shape_cast %308 : vector<1x100xf32> to vector<1x1x100xf32>
    tpu.vector_store %arg10[%c0_175, %c0_176, %c5900], %311 {strides = array<i32>} : memref<1x1x6400xf32, #tpu.memory_space<vmem>>, vector<1x1x100xf32>,
    %312 = vector.extract_strided_slice %71 {offsets = [60, 0], sizes = [1, 100], strides = [1, 1]} : vector<64x100xf32> to vector<1x100xf32>
    %c0_177 = arith.constant 0 : index
    %c0_178 = arith.constant 0 : index
    %c6000 = arith.constant 6000 : index
    %313 = vector.load %arg10[%c0_177, %c0_178, %c6000] : memref<1x1x6400xf32, #tpu.memory_space<vmem>>, vector<1x1x100xf32>
    %314 = vector.shape_cast %313 : vector<1x1x100xf32> to vector<1x100xf32>
    %315 = vector.shape_cast %312 : vector<1x100xf32> to vector<1x1x100xf32>
    tpu.vector_store %arg10[%c0_177, %c0_178, %c6000], %315 {strides = array<i32>} : memref<1x1x6400xf32, #tpu.memory_space<vmem>>, vector<1x1x100xf32>,
    %316 = vector.extract_strided_slice %71 {offsets = [61, 0], sizes = [1, 100], strides = [1, 1]} : vector<64x100xf32> to vector<1x100xf32>
    %c0_179 = arith.constant 0 : index
    %c0_180 = arith.constant 0 : index
    %c6100 = arith.constant 6100 : index
    %317 = vector.load %arg10[%c0_179, %c0_180, %c6100] : memref<1x1x6400xf32, #tpu.memory_space<vmem>>, vector<1x1x100xf32>
    %318 = vector.shape_cast %317 : vector<1x1x100xf32> to vector<1x100xf32>
    %319 = vector.shape_cast %316 : vector<1x100xf32> to vector<1x1x100xf32>
    tpu.vector_store %arg10[%c0_179, %c0_180, %c6100], %319 {strides = array<i32>} : memref<1x1x6400xf32, #tpu.memory_space<vmem>>, vector<1x1x100xf32>,
    %320 = vector.extract_strided_slice %71 {offsets = [62, 0], sizes = [1, 100], strides = [1, 1]} : vector<64x100xf32> to vector<1x100xf32>
    %c0_181 = arith.constant 0 : index
    %c0_182 = arith.constant 0 : index
    %c6200 = arith.constant 6200 : index
    %321 = vector.load %arg10[%c0_181, %c0_182, %c6200] : memref<1x1x6400xf32, #tpu.memory_space<vmem>>, vector<1x1x100xf32>
    %322 = vector.shape_cast %321 : vector<1x1x100xf32> to vector<1x100xf32>
    %323 = vector.shape_cast %320 : vector<1x100xf32> to vector<1x1x100xf32>
    tpu.vector_store %arg10[%c0_181, %c0_182, %c6200], %323 {strides = array<i32>} : memref<1x1x6400xf32, #tpu.memory_space<vmem>>, vector<1x1x100xf32>,
    %324 = vector.extract_strided_slice %71 {offsets = [63, 0], sizes = [1, 100], strides = [1, 1]} : vector<64x100xf32> to vector<1x100xf32>
    %c0_183 = arith.constant 0 : index
    %c0_184 = arith.constant 0 : index
    %c6300 = arith.constant 6300 : index
    %325 = vector.load %arg10[%c0_183, %c0_184, %c6300] : memref<1x1x6400xf32, #tpu.memory_space<vmem>>, vector<1x1x100xf32>
    %326 = vector.shape_cast %325 : vector<1x1x100xf32> to vector<1x100xf32>
    %327 = vector.shape_cast %324 : vector<1x100xf32> to vector<1x1x100xf32>
    tpu.vector_store %arg10[%c0_183, %c0_184, %c6300], %327 {strides = array<i32>} : memref<1x1x6400xf32, #tpu.memory_space<vmem>>, vector<1x1x100xf32>,
    %c0_185 = arith.constant 0 : index
    %c0_186 = arith.constant 0 : index
    %c0_187 = arith.constant 0 : index
    %328 = vector.load %arg10[%c0_185, %c0_186, %c0_187] : memref<1x1x6400xf32, #tpu.memory_space<vmem>>, vector<1x1x6400xf32>
    %329 = vector.shape_cast %328 : vector<1x1x6400xf32> to vector<1x6400xf32>
    %c0_188 = arith.constant 0 : index
    %c0_189 = arith.constant 0 : index
    %330 = vector.load %arg8[%c0_188, %c0_189] : memref<6400x10xf32, #tpu.memory_space<vmem>>, vector<6400x10xf32>
    %cst_190 = arith.constant dense<0.000000e+00> : vector<1x10xf32>
    %331 = tpu.matmul %329, %330, %cst_190 {dimension_numbers = #tpu.dot_dimension_numbers<[1], [0], [0], [1], [0, 0, 1, 1], [], []>} : vector<1x6400xf32>, vector<6400x10xf32>, vector<1x10xf32> -> vector<1x10xf32>
    %c0_191 = arith.constant 0 : index
    %c0_192 = arith.constant 0 : index
    %332 = vector.load %arg9[%c0_191, %c0_192] : memref<1x10xf32, #tpu.memory_space<vmem>>, vector<1x10xf32>
    %333 = arith.addf %331, %332 : vector<1x10xf32>
    %c0_193 = arith.constant 0 : index
    %c0_194 = arith.constant 0 : index
    %c0_195 = arith.constant 0 : index
    %334 = vector.load %arg11[%c0_193, %c0_194, %c0_195] : memref<1x1x10xf32, #tpu.memory_space<vmem>>, vector<1x1x10xf32>
    %335 = vector.shape_cast %334 : vector<1x1x10xf32> to vector<1x10xf32>
    %336 = vector.shape_cast %333 : vector<1x10xf32> to vector<1x1x10xf32>
    tpu.vector_store %arg11[%c0_193, %c0_194, %c0_195], %336 {strides = array<i32>} : memref<1x1x10xf32, #tpu.memory_space<vmem>>, vector<1x1x10xf32>,
    return
  }
  func.func @transform_0(%arg0: i32) -> (i32, i32, i32) {
    %c0_i32 = arith.constant 0 : i32
    %c0_i32_0 = arith.constant 0 : i32
    %c0_i32_1 = arith.constant 0 : i32
    return %arg0, %c0_i32, %c0_i32_0 : i32, i32, i32
  }
  func.func @transform_1(%arg0: i32) -> (i32, i32) {
    %c0_i32 = arith.constant 0 : i32
    %c0_i32_0 = arith.constant 0 : i32
    %c0_i32_1 = arith.constant 0 : i32
    return %c0_i32, %c0_i32_0 : i32, i32
  }
  func.func @transform_2(%arg0: i32) -> (i32, i32) {
    %c0_i32 = arith.constant 0 : i32
    %c0_i32_0 = arith.constant 0 : i32
    %c0_i32_1 = arith.constant 0 : i32
    return %c0_i32, %c0_i32_0 : i32, i32
  }
  func.func @transform_3(%arg0: i32) -> (i32, i32) {
    %c0_i32 = arith.constant 0 : i32
    %c0_i32_0 = arith.constant 0 : i32
    %c0_i32_1 = arith.constant 0 : i32
    return %c0_i32, %c0_i32_0 : i32, i32
  }
  func.func @transform_4(%arg0: i32) -> (i32, i32) {
    %c0_i32 = arith.constant 0 : i32
    %c0_i32_0 = arith.constant 0 : i32
    %c0_i32_1 = arith.constant 0 : i32
    return %c0_i32, %c0_i32_0 : i32, i32
  }
  func.func @transform_5(%arg0: i32) -> (i32, i32) {
    %c0_i32 = arith.constant 0 : i32
    %c0_i32_0 = arith.constant 0 : i32
    %c0_i32_1 = arith.constant 0 : i32
    return %c0_i32, %c0_i32_0 : i32, i32
  }
  func.func @transform_6(%arg0: i32) -> (i32, i32) {
    %c0_i32 = arith.constant 0 : i32
    %c0_i32_0 = arith.constant 0 : i32
    %c0_i32_1 = arith.constant 0 : i32
    return %c0_i32, %c0_i32_0 : i32, i32
  }
  func.func @transform_7(%arg0: i32) -> (i32, i32) {
    %c0_i32 = arith.constant 0 : i32
    %c0_i32_0 = arith.constant 0 : i32
    %c0_i32_1 = arith.constant 0 : i32
    return %c0_i32, %c0_i32_0 : i32, i32
  }
  func.func @transform_8(%arg0: i32) -> (i32, i32) {
    %c0_i32 = arith.constant 0 : i32
    %c0_i32_0 = arith.constant 0 : i32
    %c0_i32_1 = arith.constant 0 : i32
    return %c0_i32, %c0_i32_0 : i32, i32
  }
  func.func @transform_9(%arg0: i32) -> (i32, i32, i32) {
    %c0_i32 = arith.constant 0 : i32
    %c0_i32_0 = arith.constant 0 : i32
    %c0_i32_1 = arith.constant 0 : i32
    return %arg0, %c0_i32, %c0_i32_0 : i32, i32, i32
  }
  func.func @transform_10(%arg0: i32) -> (i32, i32, i32) {
    %c0_i32 = arith.constant 0 : i32
    %c0_i32_0 = arith.constant 0 : i32
    %c0_i32_1 = arith.constant 0 : i32
    return %arg0, %c0_i32, %c0_i32_0 : i32, i32, i32
  }
}

</mosaic_0001>

<llo_original>
// kernel: forward.1
$region0: #{forward.1}
  #allocation0 [shape = 'u32[]', space=smem, size = 0x4, offset = 0x4, fixed_abs, tag = 'smem constant byte address 0x4 - core index']
  #allocation1 [shape = 'u32[144,128]{1,0:T(1,128)}', space=vmem, size = 0x12000, scoped, tag = 'internal scratch']
  #allocation2 [shape = 'f32[64,232]{1,0:T(8,128)}', space=vmem, size = 0x10000, scoped, tag = 'scratch operand']
  %s0 = inlined_call_operand.vmem [shape: f32[2,1,256], index: 0, kind: input, shape index: {}]
  %s1 = inlined_call_operand.vmem [shape: f32[64,9], index: 1, kind: input, shape index: {}]
  %s2 = inlined_call_operand.vmem [shape: f32[64,1], index: 2, kind: input, shape index: {}]
  %s3 = inlined_call_operand.vmem [shape: f32[64,576], index: 3, kind: input, shape index: {}]
  %s4 = inlined_call_operand.vmem [shape: f32[64,1], index: 4, kind: input, shape index: {}]
  %s5 = inlined_call_operand.vmem [shape: f32[64,576], index: 5, kind: input, shape index: {}]
  %s6 = inlined_call_operand.vmem [shape: f32[64,1], index: 6, kind: input, shape index: {}]
  %s7 = inlined_call_operand.vmem [shape: f32[6400,10], index: 7, kind: input, shape index: {}]
  %s8 = inlined_call_operand.vmem [shape: f32[1,10], index: 8, kind: input, shape index: {}]
  %s9 = inlined_call_operand.vmem [shape: f32[2,1,6400], index: 9, kind: output, shape index: {0}]
  %s10 = inlined_call_operand.hbm [shape: f32[2,1,10], index: 10, kind: output, shape index: {1}]
  %11 = xla_tuple %s9, %s10
  %s12 = sld [smem:[#allocation0]]
  $region77: #{forward.1} parent=0
    _
  %s14 = ssub.s32 1, %s12
  %s15 = scalar_select 0, %s14, %s12
  $region1: #{forward.1} parent=0
    #allocation3 [shape = 'u8[1024]{0}', space=vmem, size = 0x400, scoped, tag = 'output window, operand 1']
    #allocation4 [shape = 's32[2]{0}', space=sflag, size = 0x8, scoped, tag = 'scoped memory for forward.1']
    %16 = vsyncpa [#allocation4], 0
    %s17 = scalar_lea.sflag [#allocation4], 1
    %18 = vsyncpa %s17, 0
    loop: start=0, step=1, limit=4
    $region2: #{forward.1} parent=1 // loop_pre_header
      _
    $region3: #{forward.1} parent=1 // loop_header
      %s20 = sphi 0, %s24
      %p21 = scmp.ge.s32.totalorder %s20, 4
      %s30 = sphi 0, %s32
      %s33 = sphi 0, %s30
      %s34 = sphi 0, %s33
      %s50 = sphi 0, %s34
      %s54 = sphi 0, %s54
      %s56 = sphi 0, %s54
      %s57 = sphi 0, %s56
      %s71 = sphi 0, %s57
      %s75 = sphi 0, %s75
      %s77 = sphi 0, %s75
      %s78 = sphi 0, %s77
      %s92 = sphi 0, %s78
      %s96 = sphi 0, %s96
      %s98 = sphi 0, %s96
      %s99 = sphi 0, %s98
      %s113 = sphi 0, %s99
      %s117 = sphi 0, %s117
      %s119 = sphi 0, %s117
      %s120 = sphi 0, %s119
      %s134 = sphi 0, %s120
      %s138 = sphi 0, %s138
      %s140 = sphi 0, %s138
      %s141 = sphi 0, %s140
      %s155 = sphi 0, %s141
      %s159 = sphi 0, %s159
      %s161 = sphi 0, %s159
      %s162 = sphi 0, %s161
      %s176 = sphi 0, %s162
      %s180 = sphi 0, %s180
      %s182 = sphi 0, %s180
      %s183 = sphi 0, %s182
      %s197 = sphi 0, %s183
      %s201 = sphi 0, %s201
      %s203 = sphi 0, %s201
      %s204 = sphi 0, %s203
      %s218 = sphi 0, %s204
      %s224 = sphi 0, %s226
      %s227 = sphi 0, %s224
      %s228 = sphi 0, %s227
      %s244 = sphi 0, %s228
      %s250 = sphi 0, %s252
      %s253 = sphi 0, %s250
      %s254 = sphi 0, %s253
      %s270 = sphi 0, %s254
    $region4: #{forward.1} parent=1 // loop_header_branch
      %23 = sbr.rel (%p21) target = $region8
    $region5: #{forward.1} parent=1 // loop_body
      %s25 = ssub.s32 %s20, 1
      %s26 = ssub.s32 %s20, 2
      %s27 = sadd.s32 %s20, 1
      %s28 = ssub.s32 %s20, %s27
      %p29 = scmp.eq.s32.totalorder %s28, 0
      %s31 = sadd.s32 %s30, 1
      %s32 = scalar_select %p29, %s30, %s31
      %p35 = pneg %p29
      %p36 = scmp.eq.s32.totalorder %s20, 1
      %p37 = por %p35, %p36
      %p38 = scmp.ne.s32.totalorder %s30, %s33
      %p39 = scmp.eq.s32.totalorder %s20, 0
      %p40 = por %p38, %p39
      %p41 = scmp.ne.s32.totalorder %s30, %s33
      %p42 = scmp.eq.s32.totalorder %s25, 1
      %p43 = por %p41, %p42
      %p44 = scmp.ne.s32.totalorder %s33, %s34
      %p45 = scmp.eq.s32.totalorder %s25, 0
      %p46 = por %p44, %p45
      %p47 = scmp.ne.s32.totalorder %s33, %s34
      %p48 = scmp.eq.s32.totalorder %s26, 1
      %p49 = por %p47, %p48
      %p51 = scmp.ne.s32.totalorder %s34, %s50
      %p52 = scmp.eq.s32.totalorder %s26, 0
      %p53 = por %p51, %p52
      %s55 = sadd.s32 %s54, 1
      %p58 = scmp.eq.s32.totalorder %s20, 1
      %p59 = scmp.ne.s32.totalorder %s54, %s56
      %p60 = scmp.eq.s32.totalorder %s20, 0
      %p61 = por %p59, %p60
      %p62 = scmp.ne.s32.totalorder %s54, %s56
      %p63 = scmp.eq.s32.totalorder %s25, 1
      %p64 = por %p62, %p63
      %p65 = scmp.ne.s32.totalorder %s56, %s57
      %p66 = scmp.eq.s32.totalorder %s25, 0
      %p67 = por %p65, %p66
      %p68 = scmp.ne.s32.totalorder %s56, %s57
      %p69 = scmp.eq.s32.totalorder %s26, 1
      %p70 = por %p68, %p69
      %p72 = scmp.ne.s32.totalorder %s57, %s71
      %p73 = scmp.eq.s32.totalorder %s26, 0
      %p74 = por %p72, %p73
      %s76 = sadd.s32 %s75, 1
      %p79 = scmp.eq.s32.totalorder %s20, 1
      %p80 = scmp.ne.s32.totalorder %s75, %s77
      %p81 = scmp.eq.s32.totalorder %s20, 0
      %p82 = por %p80, %p81
      %p83 = scmp.ne.s32.totalorder %s75, %s77
      %p84 = scmp.eq.s32.totalorder %s25, 1
      %p85 = por %p83, %p84
      %p86 = scmp.ne.s32.totalorder %s77, %s78
      %p87 = scmp.eq.s32.totalorder %s25, 0
      %p88 = por %p86, %p87
      %p89 = scmp.ne.s32.totalorder %s77, %s78
      %p90 = scmp.eq.s32.totalorder %s26, 1
      %p91 = por %p89, %p90
      %p93 = scmp.ne.s32.totalorder %s78, %s92
      %p94 = scmp.eq.s32.totalorder %s26, 0
      %p95 = por %p93, %p94
      %s97 = sadd.s32 %s96, 1
      %p100 = scmp.eq.s32.totalorder %s20, 1
      %p101 = scmp.ne.s32.totalorder %s96, %s98
      %p102 = scmp.eq.s32.totalorder %s20, 0
      %p103 = por %p101, %p102
      %p104 = scmp.ne.s32.totalorder %s96, %s98
      %p105 = scmp.eq.s32.totalorder %s25, 1
      %p106 = por %p104, %p105
      %p107 = scmp.ne.s32.totalorder %s98, %s99
      %p108 = scmp.eq.s32.totalorder %s25, 0
      %p109 = por %p107, %p108
      %p110 = scmp.ne.s32.totalorder %s98, %s99
      %p111 = scmp.eq.s32.totalorder %s26, 1
      %p112 = por %p110, %p111
      %p114 = scmp.ne.s32.totalorder %s99, %s113
      %p115 = scmp.eq.s32.totalorder %s26, 0
      %p116 = por %p114, %p115
      %s118 = sadd.s32 %s117, 1
      %p121 = scmp.eq.s32.totalorder %s20, 1
      %p122 = scmp.ne.s32.totalorder %s117, %s119
      %p123 = scmp.eq.s32.totalorder %s20, 0
      %p124 = por %p122, %p123
      %p125 = scmp.ne.s32.totalorder %s117, %s119
      %p126 = scmp.eq.s32.totalorder %s25, 1
      %p127 = por %p125, %p126
      %p128 = scmp.ne.s32.totalorder %s119, %s120
      %p129 = scmp.eq.s32.totalorder %s25, 0
      %p130 = por %p128, %p129
      %p131 = scmp.ne.s32.totalorder %s119, %s120
      %p132 = scmp.eq.s32.totalorder %s26, 1
      %p133 = por %p131, %p132
      %p135 = scmp.ne.s32.totalorder %s120, %s134
      %p136 = scmp.eq.s32.totalorder %s26, 0
      %p137 = por %p135, %p136
      %s139 = sadd.s32 %s138, 1
      %p142 = scmp.eq.s32.totalorder %s20, 1
      %p143 = scmp.ne.s32.totalorder %s138, %s140
      %p144 = scmp.eq.s32.totalorder %s20, 0
      %p145 = por %p143, %p144
      %p146 = scmp.ne.s32.totalorder %s138, %s140
      %p147 = scmp.eq.s32.totalorder %s25, 1
      %p148 = por %p146, %p147
      %p149 = scmp.ne.s32.totalorder %s140, %s141
      %p150 = scmp.eq.s32.totalorder %s25, 0
      %p151 = por %p149, %p150
      %p152 = scmp.ne.s32.totalorder %s140, %s141
      %p153 = scmp.eq.s32.totalorder %s26, 1
      %p154 = por %p152, %p153
      %p156 = scmp.ne.s32.totalorder %s141, %s155
      %p157 = scmp.eq.s32.totalorder %s26, 0
      %p158 = por %p156, %p157
      %s160 = sadd.s32 %s159, 1
      %p163 = scmp.eq.s32.totalorder %s20, 1
      %p164 = scmp.ne.s32.totalorder %s159, %s161
      %p165 = scmp.eq.s32.totalorder %s20, 0
      %p166 = por %p164, %p165
      %p167 = scmp.ne.s32.totalorder %s159, %s161
      %p168 = scmp.eq.s32.totalorder %s25, 1
      %p169 = por %p167, %p168
      %p170 = scmp.ne.s32.totalorder %s161, %s162
      %p171 = scmp.eq.s32.totalorder %s25, 0
      %p172 = por %p170, %p171
      %p173 = scmp.ne.s32.totalorder %s161, %s162
      %p174 = scmp.eq.s32.totalorder %s26, 1
      %p175 = por %p173, %p174
      %p177 = scmp.ne.s32.totalorder %s162, %s176
      %p178 = scmp.eq.s32.totalorder %s26, 0
      %p179 = por %p177, %p178
      %s181 = sadd.s32 %s180, 1
      %p184 = scmp.eq.s32.totalorder %s20, 1
      %p185 = scmp.ne.s32.totalorder %s180, %s182
      %p186 = scmp.eq.s32.totalorder %s20, 0
      %p187 = por %p185, %p186
      %p188 = scmp.ne.s32.totalorder %s180, %s182
      %p189 = scmp.eq.s32.totalorder %s25, 1
      %p190 = por %p188, %p189
      %p191 = scmp.ne.s32.totalorder %s182, %s183
      %p192 = scmp.eq.s32.totalorder %s25, 0
      %p193 = por %p191, %p192
      %p194 = scmp.ne.s32.totalorder %s182, %s183
      %p195 = scmp.eq.s32.totalorder %s26, 1
      %p196 = por %p194, %p195
      %p198 = scmp.ne.s32.totalorder %s183, %s197
      %p199 = scmp.eq.s32.totalorder %s26, 0
      %p200 = por %p198, %p199
      %s202 = sadd.s32 %s201, 1
      %p205 = scmp.eq.s32.totalorder %s20, 1
      %p206 = scmp.ne.s32.totalorder %s201, %s203
      %p207 = scmp.eq.s32.totalorder %s20, 0
      %p208 = por %p206, %p207
      %p209 = scmp.ne.s32.totalorder %s201, %s203
      %p210 = scmp.eq.s32.totalorder %s25, 1
      %p211 = por %p209, %p210
      %p212 = scmp.ne.s32.totalorder %s203, %s204
      %p213 = scmp.eq.s32.totalorder %s25, 0
      %p214 = por %p212, %p213
      %p215 = scmp.ne.s32.totalorder %s203, %s204
      %p216 = scmp.eq.s32.totalorder %s26, 1
      %p217 = por %p215, %p216
      %p219 = scmp.ne.s32.totalorder %s204, %s218
      %p220 = scmp.eq.s32.totalorder %s26, 0
      %p221 = por %p219, %p220
      %s222 = ssub.s32 %s20, %s27
      %p223 = scmp.eq.s32.totalorder %s222, 0
      %s225 = sadd.s32 %s224, 1
      %s226 = scalar_select %p223, %s224, %s225
      %p229 = pneg %p223
      %p230 = scmp.eq.s32.totalorder %s20, 1
      %p231 = por %p229, %p230
      %p232 = scmp.ne.s32.totalorder %s224, %s227
      %p233 = scmp.eq.s32.totalorder %s20, 0
      %p234 = por %p232, %p233
      %p235 = scmp.ne.s32.totalorder %s224, %s227
      %p236 = scmp.eq.s32.totalorder %s25, 1
      %p237 = por %p235, %p236
      %p238 = scmp.ne.s32.totalorder %s227, %s228
      %p239 = scmp.eq.s32.totalorder %s25, 0
      %p240 = por %p238, %p239
      %p241 = scmp.ne.s32.totalorder %s227, %s228
      %p242 = scmp.eq.s32.totalorder %s26, 1
      %p243 = por %p241, %p242
      %p245 = scmp.ne.s32.totalorder %s228, %s244
      %p246 = scmp.eq.s32.totalorder %s26, 0
      %p247 = por %p245, %p246
      %s248 = ssub.s32 %s20, %s27
      %p249 = scmp.eq.s32.totalorder %s248, 0
      %s251 = sadd.s32 %s250, 1
      %s252 = scalar_select %p249, %s250, %s251
      %p255 = pneg %p249
      %p256 = scmp.eq.s32.totalorder %s20, 1
      %p257 = por %p255, %p256
      %p258 = scmp.ne.s32.totalorder %s250, %s253
      %p259 = scmp.eq.s32.totalorder %s20, 0
      %p260 = por %p258, %p259
      %p261 = scmp.ne.s32.totalorder %s250, %s253
      %p262 = scmp.eq.s32.totalorder %s25, 1
      %p263 = por %p261, %p262
      %p264 = scmp.ne.s32.totalorder %s253, %s254
      %p265 = scmp.eq.s32.totalorder %s25, 0
      %p266 = por %p264, %p265
      %p267 = scmp.ne.s32.totalorder %s253, %s254
      %p268 = scmp.eq.s32.totalorder %s26, 1
      %p269 = por %p267, %p268
      %p271 = scmp.ne.s32.totalorder %s254, %s270
      %p272 = scmp.eq.s32.totalorder %s26, 0
      %p273 = por %p271, %p272
      %p274 = scmp.le.s32.totalorder 1, %s20
      %p275 = scmp.lt.s32.totalorder %s20, 3
      %p276 = pnand %p274, %p275
      %p277 = pneg %p276
      // Predicated region
      $region9: #{forward.1} parent=5 // pred_check
        _
      $region10: #{forward.1} parent=5 // pred_check_branch
        %279 = sbr.rel (%p276) target = $region12
      $region11: #{forward.1} parent=5 // pred_region
        %s280 = ssub.s32 %s20, 1
        // Predicated region
        $region13: #{forward.1} parent=11 // pred_check
          %p281 = pneg %p67
        $region14: #{forward.1} parent=11 // pred_check_branch
          %283 = sbr.rel (%p281) target = $region16
        $region15: #{forward.1} parent=11 // pred_region
          _
        $region16: #{forward.1} parent=11 // pred_fallthru
          _
        // Predicated region
        $region17: #{forward.1} parent=11 // pred_check
          %p284 = pneg %p88
        $region18: #{forward.1} parent=11 // pred_check_branch
          %286 = sbr.rel (%p284) target = $region20
        $region19: #{forward.1} parent=11 // pred_region
          _
        $region20: #{forward.1} parent=11 // pred_fallthru
          _
        // Predicated region
        $region21: #{forward.1} parent=11 // pred_check
          %p287 = pneg %p109
        $region22: #{forward.1} parent=11 // pred_check_branch
          %289 = sbr.rel (%p287) target = $region24
        $region23: #{forward.1} parent=11 // pred_region
          _
        $region24: #{forward.1} parent=11 // pred_fallthru
          _
        // Predicated region
        $region25: #{forward.1} parent=11 // pred_check
          %p290 = pneg %p130
        $region26: #{forward.1} parent=11 // pred_check_branch
          %292 = sbr.rel (%p290) target = $region28
        $region27: #{forward.1} parent=11 // pred_region
          _
        $region28: #{forward.1} parent=11 // pred_fallthru
          _
        // Predicated region
        $region29: #{forward.1} parent=11 // pred_check
          %p293 = pneg %p151
        $region30: #{forward.1} parent=11 // pred_check_branch
          %295 = sbr.rel (%p293) target = $region32
        $region31: #{forward.1} parent=11 // pred_region
          _
        $region32: #{forward.1} parent=11 // pred_fallthru
          _
        // Predicated region
        $region33: #{forward.1} parent=11 // pred_check
          %p296 = pneg %p172
        $region34: #{forward.1} parent=11 // pred_check_branch
          %298 = sbr.rel (%p296) target = $region36
        $region35: #{forward.1} parent=11 // pred_region
          _
        $region36: #{forward.1} parent=11 // pred_fallthru
          _
        // Predicated region
        $region37: #{forward.1} parent=11 // pred_check
          %p299 = pneg %p193
        $region38: #{forward.1} parent=11 // pred_check_branch
          %301 = sbr.rel (%p299) target = $region40
        $region39: #{forward.1} parent=11 // pred_region
          _
        $region40: #{forward.1} parent=11 // pred_fallthru
          _
        // Predicated region
        $region41: #{forward.1} parent=11 // pred_check
          %p302 = pneg %p214
        $region42: #{forward.1} parent=11 // pred_check_branch
          %304 = sbr.rel (%p302) target = $region44
        $region43: #{forward.1} parent=11 // pred_region
          _
        $region44: #{forward.1} parent=11 // pred_fallthru
          _
      $region12: #{forward.1} parent=5 // pred_fallthru
        _
      %p305 = scmp.lt.s32.totalorder %s20, 2
      // Predicated region
      $region45: #{forward.1} parent=5 // pred_check
        %p306 = pneg %p305
      $region46: #{forward.1} parent=5 // pred_check_branch
        %308 = sbr.rel (%p306) target = $region48
      $region47: #{forward.1} parent=5 // pred_region
        // Predicated region
        $region49: #{forward.1} parent=47 // pred_check
          %p309 = pneg %p40
        $region50: #{forward.1} parent=47 // pred_check_branch
          %311 = sbr.rel (%p309) target = $region52
        $region51: #{forward.1} parent=47 // pred_region
          %p312 = scmp.lt.s32.totalorder %s20, 1
          %s313 = scalar_select %p312, %s20, 1
          %s314 = smul.addr %s313, 2
          %s315 = scalar_lea.vmem %s0, %s314
        $region52: #{forward.1} parent=47 // pred_fallthru
          _
      $region48: #{forward.1} parent=5 // pred_fallthru
        _
      %p316 = scmp.le.s32.totalorder 1, %s20
      %p317 = scmp.lt.s32.totalorder %s20, 3
      %p318 = pnand %p316, %p317
      %p319 = pneg %p318
      // Predicated region
      $region53: #{forward.1} parent=5 // pred_check
        _
      $region54: #{forward.1} parent=5 // pred_check_branch
        %321 = sbr.rel (%p318) target = $region56
      $region55: #{forward.1} parent=5 // pred_region
        %s322 = ssub.s32 %s20, 1
        %p323 = scmp.lt.s32.totalorder %s25, 1
        %s324 = scalar_select %p323, %s25, 1
        %s325 = smul.addr %s324, 2
        %s326 = scalar_lea.vmem %s0, %s325
        %p327 = pneg %p46
        %p328 = pneg %p43
        %p329 = pneg %p67
        %p330 = pneg %p64
        %p331 = pneg %p88
        %p332 = pneg %p85
        %p333 = pneg %p109
        %p334 = pneg %p106
        %p335 = pneg %p130
        %p336 = pneg %p127
        %p337 = pneg %p151
        %p338 = pneg %p148
        %p339 = pneg %p172
        %p340 = pneg %p169
        %p341 = pneg %p193
        %p342 = pneg %p190
        %p343 = pneg %p214
        %p344 = pneg %p211
        %p345 = pneg %p240
        %p346 = pneg %p237
        %p347 = scmp.lt.s32.totalorder %s25, 1
        %s348 = scalar_select %p347, %s25, 1
        %s349 = smul.addr %s348, 50
        %s350 = scalar_lea.vmem %s9, %s349
        %p351 = pneg %p266
        %p352 = pneg %p263
        %s353 = sand.u32 %s253, 1
        %s354 = scalar_lea.sflag [#allocation4], %s353
        %s355 = sand.u32 %s253, 1
        %s356 = scalar_lea.vmem [#allocation3], %s355
        %p357 = scmp.lt.s32.totalorder %s25, 1
        %s358 = scalar_select %p357, %s25, 1
        %s359 = smul.addr %s358, 2
        %s360 = scalar_lea.vmem %s0, %s359
        %p361 = scmp.lt.s32.totalorder %s25, 1
        %s362 = scalar_select %p361, %s25, 1
        %s363 = smul.addr %s362, 50
        %s364 = scalar_lea.vmem %s9, %s363
        %v365 = vld [vmem:[%s360] sm:$0x3]
        %v367 = vlaneseq
        %v368 = vshrl.u32 %v367, 7
        %v369 = vsub.s32 0, %v368
        %v370 = vrot.slane %v365, %v369
        %v371 = vlaneseq
        %v372 = vshrl.u32 %v371, 7
        %v373 = vsub.s32 1, %v372
        %v374 = vrot.slane %v365, %v373
        %v377 = vrot.slane %v370, 7
        %v378 = vrot.slane %v374, 7
        %379 = vrot.lane.b32.xlu0 %v377, 127
        %v380 = vpop.permute.xlu0 %379
        %381 = vrot.lane.b32.xlu0 %v378, 127
        %v382 = vpop.permute.xlu0 %381
        %vm383 = vcmask 1039360
        %v384 = vsel %vm383, %v380, %v382
        %v387 = vrot.slane %v370, 6
        %v388 = vrot.slane %v374, 6
        %389 = vrot.lane.b32.xlu0 %v387, 126
        %v390 = vpop.permute.xlu0 %389
        %391 = vrot.lane.b32.xlu0 %v388, 126
        %v392 = vpop.permute.xlu0 %391
        %vm393 = vcmask 1031168
        %v394 = vsel %vm393, %v390, %v392
        %v397 = vrot.slane %v370, 5
        %v398 = vrot.slane %v374, 5
        %399 = vrot.lane.b32.xlu0 %v397, 112
        %v400 = vpop.permute.xlu0 %399
        %401 = vrot.lane.b32.xlu0 %v398, 112
        %v402 = vpop.permute.xlu0 %401
        %vm403 = vcmask 916480
        %v404 = vsel %vm403, %v400, %v402
        %v407 = vrot.slane %v370, 4
        %v408 = vrot.slane %v374, 4
        %409 = vrot.lane.b32.xlu0 %v407, 111
        %v410 = vpop.permute.xlu0 %409
        %411 = vrot.lane.b32.xlu0 %v408, 111
        %v412 = vpop.permute.xlu0 %411
        %vm413 = vcmask 908288
        %v414 = vsel %vm413, %v410, %v412
        %v417 = vrot.slane %v370, 3
        %v418 = vrot.slane %v374, 3
        %419 = vrot.lane.b32.xlu0 %v417, 110
        %v420 = vpop.permute.xlu0 %419
        %421 = vrot.lane.b32.xlu0 %v418, 110
        %v422 = vpop.permute.xlu0 %421
        %vm423 = vcmask 900096
        %v424 = vsel %vm423, %v420, %v422
        %v427 = vrot.slane %v370, 2
        %v428 = vrot.slane %v374, 2
        %429 = vrot.lane.b32.xlu0 %v427, 96
        %v430 = vpop.permute.xlu0 %429
        %431 = vrot.lane.b32.xlu0 %v428, 96
        %v432 = vpop.permute.xlu0 %431
        %vm433 = vcmask 785408
        %v434 = vsel %vm433, %v430, %v432
        %v438 = vrot.slane %v370, 1
        %v439 = vrot.slane %v374, 1
        %v440 = vrot.slane 0.0, 1
        %441 = vrot.lane.b32.xlu0 %v438, 95
        %v442 = vpop.permute.xlu0 %441
        %443 = vrot.lane.b32.xlu0 %v439, 95
        %v444 = vpop.permute.xlu0 %443
        %445 = vrot.lane.b32.xlu0 %v440, 95
        %v446 = vpop.permute.xlu0 %445
        %vm447 = vcmask 777216
        %v448 = vsel %vm447, %v442, %v444
        %v449 = vsel %vm447, %v444, %v446
        %452 = vrot.lane.b32.xlu0 %v370, 94
        %v453 = vpop.permute.xlu0 %452
        %454 = vrot.lane.b32.xlu0 %v374, 94
        %v455 = vpop.permute.xlu0 %454
        %456 = vrot.lane.b32.xlu0 0.0, 94
        %v457 = vpop.permute.xlu0 %456
        %vm458 = vcmask 769024
        %v459 = vsel %vm458, %v453, %v455
        %v460 = vsel %vm458, %v455, %v457
        %vm461 = vcmask 1040384
        %v462 = vsel %vm461, %v370, %v384
        %v463 = vsel %vm461, %v374, %v382
        %vm464 = vcmask 1041408
        %v465 = vsel %vm464, %v462, %v394
        %v466 = vsel %vm464, %v463, %v392
        %vm467 = vcmask 1042432
        %v468 = vsel %vm467, %v465, %v404
        %v469 = vsel %vm467, %v466, %v402
        %vm470 = vcmask 1043456
        %v471 = vsel %vm470, %v468, %v414
        %v472 = vsel %vm470, %v469, %v412
        %vm473 = vcmask 1044480
        %v474 = vsel %vm473, %v471, %v424
        %v475 = vsel %vm473, %v472, %v422
        %vm476 = vcmask 1045504
        %v477 = vsel %vm476, %v474, %v434
        %v478 = vsel %vm476, %v475, %v432
        %vm479 = vcmask 1046528
        %v480 = vsel %vm479, %v477, %v448
        %v481 = vsel %vm479, %v478, %v449
        %v482 = vld [vmem:[%s1] sm:$0xff]
        %v483 = vld [vmem:[%s1 + $0x8] sm:$0xff]
        %v484 = vld [vmem:[%s1 + $0x10] sm:$0xff]
        %v485 = vld [vmem:[%s1 + $0x18] sm:$0xff]
        %v486 = vld [vmem:[%s1 + $0x20] sm:$0xff]
        %v487 = vld [vmem:[%s1 + $0x28] sm:$0xff]
        %v488 = vld [vmem:[%s1 + $0x30] sm:$0xff]
        %v489 = vld [vmem:[%s1 + $0x38] sm:$0xff]
        %v490 = vld [vmem:[%s2] sm:$0xff]
        %v491 = vld [vmem:[%s2 + $0x8] sm:$0xff]
        %v492 = vld [vmem:[%s2 + $0x10] sm:$0xff]
        %v493 = vld [vmem:[%s2 + $0x18] sm:$0xff]
        %v494 = vld [vmem:[%s2 + $0x20] sm:$0xff]
        %v495 = vld [vmem:[%s2 + $0x28] sm:$0xff]
        %v496 = vld [vmem:[%s2 + $0x30] sm:$0xff]
        %v497 = vld [vmem:[%s2 + $0x38] sm:$0xff]
        %499 = vset.pattern.permute.xlu0 0
        %500 = vperm.xlu0 %499, %v490
        %v501 = vpop.permute.xlu0 %500
        %504 = vset.pattern.permute.xlu0 0
        %505 = vperm.xlu0 %504, %v491
        %v506 = vpop.permute.xlu0 %505
        %509 = vset.pattern.permute.xlu0 0
        %510 = vperm.xlu0 %509, %v492
        %v511 = vpop.permute.xlu0 %510
        %514 = vset.pattern.permute.xlu0 0
        %515 = vperm.xlu0 %514, %v493
        %v516 = vpop.permute.xlu0 %515
        %519 = vset.pattern.permute.xlu0 0
        %520 = vperm.xlu0 %519, %v494
        %v521 = vpop.permute.xlu0 %520
        %524 = vset.pattern.permute.xlu0 0
        %525 = vperm.xlu0 %524, %v495
        %v526 = vpop.permute.xlu0 %525
        %529 = vset.pattern.permute.xlu0 0
        %530 = vperm.xlu0 %529, %v496
        %v531 = vpop.permute.xlu0 %530
        %534 = vset.pattern.permute.xlu0 0
        %535 = vperm.xlu0 %534, %v497
        %v536 = vpop.permute.xlu0 %535
        %vm538 = vcmask 72704
        %v540 = vsel %vm538, %v482, 0
        %v543 = vsel %vm538, %v483, 0
        %v546 = vsel %vm538, %v484, 0
        %v549 = vsel %vm538, %v485, 0
        %v552 = vsel %vm538, %v486, 0
        %v555 = vsel %vm538, %v487, 0
        %v558 = vsel %vm538, %v488, 0
        %v561 = vsel %vm538, %v489, 0
        %v563 = vsel %vm461, %v459, 0
        %v565 = vsel %vm461, %v460, 0
        %567 = vmatprep.subr.mxu0 %v481
        %568 = vmatpush1.msra.mxu0 %v480
        %569 = vmatprep.subr.mxu0 %v565
        %570 = vmatpush1.msra.mxu0 %v563
        %571 = vmatprep.subr.mxu0 0.0
        %572 = vmatpush1.msra.mxu0 0.0
        %573 = vmatprep.subr.mxu0 0.0
        %574 = vmatpush1.msra.mxu0 0.0
        %575 = vmatprep.subr.mxu0 0.0
        %576 = vmatpush1.msra.mxu0 0.0
        %577 = vmatprep.subr.mxu0 0.0
        %578 = vmatpush1.msra.mxu0 0.0
        %579 = vmatprep.subr.mxu0 0.0
        %580 = vmatpush1.msra.mxu0 0.0
        %581 = vmatprep.subr.mxu0 0.0
        %582 = vmatpush1.msra.mxu0 0.0
        %583 = vmatprep.subr.mxu0 0.0
        %584 = vmatpush1.msra.mxu0 0.0
        %585 = vmatprep.subr.mxu0 0.0
        %586 = vmatpush1.msra.mxu0 0.0
        %587 = vmatprep.subr.mxu0 0.0
        %588 = vmatpush1.msra.mxu0 0.0
        %589 = vmatprep.subr.mxu0 0.0
        %590 = vmatpush1.msra.mxu0 0.0
        %591 = vmatprep.subr.mxu0 0.0
        %592 = vmatpush1.msra.mxu0 0.0
        %593 = vmatprep.subr.mxu0 0.0
        %594 = vmatpush1.msra.mxu0 0.0
        %595 = vmatprep.subr.mxu0 0.0
        %596 = vmatpush1.msra.mxu0 0.0
        %597 = vmatprep.subr.mxu0 0.0
        %598 = vmatpush1.msra.mxu0 0.0
        %599 = vmatprep.subr.mxu0 0.0
        %600 = vmatpush1.msra.mxu0 0.0
        %601 = vmatprep.subr.mxu0 0.0
        %602 = vmatpush1.msra.mxu0 0.0
        %603 = vmatprep.subr.mxu0 0.0
        %604 = vmatpush1.msra.mxu0 0.0
        %605 = vmatprep.subr.mxu0 0.0
        %606 = vmatpush1.msra.mxu0 0.0
        %607 = vmatprep.subr.mxu0 0.0
        %608 = vmatpush1.msra.mxu0 0.0
        %609 = vmatprep.subr.mxu0 0.0
        %610 = vmatpush1.msra.mxu0 0.0
        %611 = vmatprep.subr.mxu0 0.0
        %612 = vmatpush1.msra.mxu0 0.0
        %613 = vmatprep.subr.mxu0 0.0
        %614 = vmatpush1.msra.mxu0 0.0
        %615 = vmatprep.subr.mxu0 0.0
        %616 = vmatpush1.msra.mxu0 0.0
        %617 = vmatprep.subr.mxu0 0.0
        %618 = vmatpush1.msra.mxu0 0.0
        %619 = vmatprep.subr.mxu0 0.0
        %620 = vmatpush1.msra.mxu0 0.0
        %621 = vmatprep.subr.mxu0 0.0
        %622 = vmatpush1.msra.mxu0 0.0
        %623 = vmatprep.subr.mxu0 0.0
        %624 = vmatpush1.msra.mxu0 0.0
        %625 = vmatprep.subr.mxu0 0.0
        %626 = vmatpush1.msra.mxu0 0.0
        %627 = vmatprep.subr.mxu0 0.0
        %628 = vmatpush1.msra.mxu0 0.0
        %629 = vmatprep.subr.mxu0 0.0
        %630 = vmatpush1.msra.mxu0 0.0
        %631 = vmatprep.mubr.f32.mxu0 0.0
        %632 = vmatmul.mubr.f32.gmra.mrb[0].mxu0 %v540
        %v633 = vpop.f32.mrb[0].mxu0
        %v634 = vadd.f32 %v501, %v633
        %v635 = vpop.f32.mrb[0].mxu0
        %v636 = vadd.f32 %v501, %v635
        %637 = vmatprep.mubr.f32.mxu0 0.0
        %638 = vmatmul.mubr.f32.gmra.mrb[0].mxu0 %v543
        %v639 = vpop.f32.mrb[0].mxu0
        %v640 = vadd.f32 %v506, %v639
        %v641 = vpop.f32.mrb[0].mxu0
        %v642 = vadd.f32 %v506, %v641
        %643 = vmatprep.mubr.f32.mxu0 0.0
        %644 = vmatmul.mubr.f32.gmra.mrb[0].mxu0 %v546
        %v645 = vpop.f32.mrb[0].mxu0
        %v646 = vadd.f32 %v511, %v645
        %v647 = vpop.f32.mrb[0].mxu0
        %v648 = vadd.f32 %v511, %v647
        %649 = vmatprep.mubr.f32.mxu0 0.0
        %650 = vmatmul.mubr.f32.gmra.mrb[0].mxu0 %v549
        %v651 = vpop.f32.mrb[0].mxu0
        %v652 = vadd.f32 %v516, %v651
        %v653 = vpop.f32.mrb[0].mxu0
        %v654 = vadd.f32 %v516, %v653
        %655 = vmatprep.mubr.f32.mxu0 0.0
        %656 = vmatmul.mubr.f32.gmra.mrb[0].mxu0 %v552
        %v657 = vpop.f32.mrb[0].mxu0
        %v658 = vadd.f32 %v521, %v657
        %v659 = vpop.f32.mrb[0].mxu0
        %v660 = vadd.f32 %v521, %v659
        %661 = vmatprep.mubr.f32.mxu0 0.0
        %662 = vmatmul.mubr.f32.gmra.mrb[0].mxu0 %v555
        %v663 = vpop.f32.mrb[0].mxu0
        %v664 = vadd.f32 %v526, %v663
        %v665 = vpop.f32.mrb[0].mxu0
        %v666 = vadd.f32 %v526, %v665
        %667 = vmatprep.mubr.f32.mxu0 0.0
        %668 = vmatmul.mubr.f32.gmra.mrb[0].mxu0 %v558
        %v669 = vpop.f32.mrb[0].mxu0
        %v670 = vadd.f32 %v531, %v669
        %v671 = vpop.f32.mrb[0].mxu0
        %v672 = vadd.f32 %v531, %v671
        %673 = vmatprep.mubr.f32.mxu0 0.0
        %674 = vmatmul.mubr.f32.gmra.mrb[0].mxu0 %v561
        %v675 = vpop.f32.mrb[0].mxu0
        %v676 = vadd.f32 %v536, %v675
        %v677 = vpop.f32.mrb[0].mxu0
        %v678 = vadd.f32 %v536, %v677
        %679 = vdwg.mxu0
        %v680 = vmax.f32 %v634, 0.0
        %v681 = vmax.f32 %v636, 0.0
        %v682 = vmax.f32 %v640, 0.0
        %v683 = vmax.f32 %v642, 0.0
        %v684 = vmax.f32 %v646, 0.0
        %v685 = vmax.f32 %v648, 0.0
        %v686 = vmax.f32 %v652, 0.0
        %v687 = vmax.f32 %v654, 0.0
        %v688 = vmax.f32 %v658, 0.0
        %v689 = vmax.f32 %v660, 0.0
        %v690 = vmax.f32 %v664, 0.0
        %v691 = vmax.f32 %v666, 0.0
        %v692 = vmax.f32 %v670, 0.0
        %v693 = vmax.f32 %v672, 0.0
        %v694 = vmax.f32 %v676, 0.0
        %v695 = vmax.f32 %v678, 0.0
        %696 = vst [vmem:[#allocation2] sm:$0xff] %v680
        %697 = vst.msk [vmem:[#allocation2 + $0x8] sm:$0xff] %vm433, %v681
        %698 = vst [vmem:[#allocation2 + $0x10] sm:$0xff] %v682
        %699 = vst.msk [vmem:[#allocation2 + $0x18] sm:$0xff] %vm433, %v683
        %700 = vst [vmem:[#allocation2 + $0x20] sm:$0xff] %v684
        %701 = vst.msk [vmem:[#allocation2 + $0x28] sm:$0xff] %vm433, %v685
        %702 = vst [vmem:[#allocation2 + $0x30] sm:$0xff] %v686
        %703 = vst.msk [vmem:[#allocation2 + $0x38] sm:$0xff] %vm433, %v687
        %704 = vst [vmem:[#allocation2 + $0x40] sm:$0xff] %v688
        %705 = vst.msk [vmem:[#allocation2 + $0x48] sm:$0xff] %vm433, %v689
        %706 = vst [vmem:[#allocation2 + $0x50] sm:$0xff] %v690
        %707 = vst.msk [vmem:[#allocation2 + $0x58] sm:$0xff] %vm433, %v691
        %708 = vst [vmem:[#allocation2 + $0x60] sm:$0xff] %v692
        %709 = vst.msk [vmem:[#allocation2 + $0x68] sm:$0xff] %vm433, %v693
        %710 = vst [vmem:[#allocation2 + $0x70] sm:$0xff] %v694
        %711 = vst.msk [vmem:[#allocation2 + $0x78] sm:$0xff] %vm433, %v695
        %vm712 = vcmask 851712
        %713 = vst.msk [vmem:[#allocation2 + $0x8] sm:$0xff] %vm712, 0.0
        %714 = vst.msk [vmem:[#allocation2 + $0x18] sm:$0xff] %vm712, 0.0
        %715 = vst.msk [vmem:[#allocation2 + $0x28] sm:$0xff] %vm712, 0.0
        %716 = vst.msk [vmem:[#allocation2 + $0x38] sm:$0xff] %vm712, 0.0
        %717 = vst.msk [vmem:[#allocation2 + $0x48] sm:$0xff] %vm712, 0.0
        %718 = vst.msk [vmem:[#allocation2 + $0x58] sm:$0xff] %vm712, 0.0
        %719 = vst.msk [vmem:[#allocation2 + $0x68] sm:$0xff] %vm712, 0.0
        %720 = vst.msk [vmem:[#allocation2 + $0x78] sm:$0xff] %vm712, 0.0
        %v721 = vld [vmem:[#allocation2] sm:$0xff]
        %v722 = vld [vmem:[#allocation2 + $0x8] sm:$0xff]
        %v723 = vld [vmem:[#allocation2 + $0x10] sm:$0xff]
        %v724 = vld [vmem:[#allocation2 + $0x18] sm:$0xff]
        %v725 = vld [vmem:[#allocation2 + $0x20] sm:$0xff]
        %v726 = vld [vmem:[#allocation2 + $0x28] sm:$0xff]
        %v727 = vld [vmem:[#allocation2 + $0x30] sm:$0xff]
        %v728 = vld [vmem:[#allocation2 + $0x38] sm:$0xff]
        %v729 = vld [vmem:[#allocation2 + $0x40] sm:$0xff]
        %v730 = vld [vmem:[#allocation2 + $0x48] sm:$0xff]
        %v731 = vld [vmem:[#allocation2 + $0x50] sm:$0xff]
        %v732 = vld [vmem:[#allocation2 + $0x58] sm:$0xff]
        %v733 = vld [vmem:[#allocation2 + $0x60] sm:$0xff]
        %v734 = vld [vmem:[#allocation2 + $0x68] sm:$0xff]
        %v735 = vld [vmem:[#allocation2 + $0x70] sm:$0xff]
        %v736 = vld [vmem:[#allocation2 + $0x78] sm:$0xff]
        %753 = vrot.lane.b32.xlu0 %v721, 127
        %v754 = vpop.permute.xlu0 %753
        %755 = vrot.lane.b32.xlu0 %v722, 127
        %v756 = vpop.permute.xlu0 %755
        %757 = vrot.lane.b32.xlu0 %v723, 127
        %v758 = vpop.permute.xlu0 %757
        %759 = vrot.lane.b32.xlu0 %v724, 127
        %v760 = vpop.permute.xlu0 %759
        %761 = vrot.lane.b32.xlu0 %v725, 127
        %v762 = vpop.permute.xlu0 %761
        %763 = vrot.lane.b32.xlu0 %v726, 127
        %v764 = vpop.permute.xlu0 %763
        %765 = vrot.lane.b32.xlu0 %v727, 127
        %v766 = vpop.permute.xlu0 %765
        %767 = vrot.lane.b32.xlu0 %v728, 127
        %v768 = vpop.permute.xlu0 %767
        %769 = vrot.lane.b32.xlu0 %v729, 127
        %v770 = vpop.permute.xlu0 %769
        %771 = vrot.lane.b32.xlu0 %v730, 127
        %v772 = vpop.permute.xlu0 %771
        %773 = vrot.lane.b32.xlu0 %v731, 127
        %v774 = vpop.permute.xlu0 %773
        %775 = vrot.lane.b32.xlu0 %v732, 127
        %v776 = vpop.permute.xlu0 %775
        %777 = vrot.lane.b32.xlu0 %v733, 127
        %v778 = vpop.permute.xlu0 %777
        %779 = vrot.lane.b32.xlu0 %v734, 127
        %v780 = vpop.permute.xlu0 %779
        %781 = vrot.lane.b32.xlu0 %v735, 127
        %v782 = vpop.permute.xlu0 %781
        %783 = vrot.lane.b32.xlu0 %v736, 127
        %v784 = vpop.permute.xlu0 %783
        %v785 = vsel %vm383, %v754, %v756
        %v786 = vsel %vm383, %v758, %v760
        %v787 = vsel %vm383, %v762, %v764
        %v788 = vsel %vm383, %v766, %v768
        %v789 = vsel %vm383, %v770, %v772
        %v790 = vsel %vm383, %v774, %v776
        %v791 = vsel %vm383, %v778, %v780
        %v792 = vsel %vm383, %v782, %v784
        %809 = vrot.lane.b32.xlu0 %v721, 126
        %v810 = vpop.permute.xlu0 %809
        %811 = vrot.lane.b32.xlu0 %v722, 126
        %v812 = vpop.permute.xlu0 %811
        %813 = vrot.lane.b32.xlu0 %v723, 126
        %v814 = vpop.permute.xlu0 %813
        %815 = vrot.lane.b32.xlu0 %v724, 126
        %v816 = vpop.permute.xlu0 %815
        %817 = vrot.lane.b32.xlu0 %v725, 126
        %v818 = vpop.permute.xlu0 %817
        %819 = vrot.lane.b32.xlu0 %v726, 126
        %v820 = vpop.permute.xlu0 %819
        %821 = vrot.lane.b32.xlu0 %v727, 126
        %v822 = vpop.permute.xlu0 %821
        %823 = vrot.lane.b32.xlu0 %v728, 126
        %v824 = vpop.permute.xlu0 %823
        %825 = vrot.lane.b32.xlu0 %v729, 126
        %v826 = vpop.permute.xlu0 %825
        %827 = vrot.lane.b32.xlu0 %v730, 126
        %v828 = vpop.permute.xlu0 %827
        %829 = vrot.lane.b32.xlu0 %v731, 126
        %v830 = vpop.permute.xlu0 %829
        %831 = vrot.lane.b32.xlu0 %v732, 126
        %v832 = vpop.permute.xlu0 %831
        %833 = vrot.lane.b32.xlu0 %v733, 126
        %v834 = vpop.permute.xlu0 %833
        %835 = vrot.lane.b32.xlu0 %v734, 126
        %v836 = vpop.permute.xlu0 %835
        %837 = vrot.lane.b32.xlu0 %v735, 126
        %v838 = vpop.permute.xlu0 %837
        %839 = vrot.lane.b32.xlu0 %v736, 126
        %v840 = vpop.permute.xlu0 %839
        %v841 = vsel %vm393, %v810, %v812
        %v842 = vsel %vm393, %v814, %v816
        %v843 = vsel %vm393, %v818, %v820
        %v844 = vsel %vm393, %v822, %v824
        %v845 = vsel %vm393, %v826, %v828
        %v846 = vsel %vm393, %v830, %v832
        %v847 = vsel %vm393, %v834, %v836
        %v848 = vsel %vm393, %v838, %v840
        %865 = vrot.lane.b32.xlu0 %v721, 112
        %v866 = vpop.permute.xlu0 %865
        %867 = vrot.lane.b32.xlu0 %v722, 112
        %v868 = vpop.permute.xlu0 %867
        %869 = vrot.lane.b32.xlu0 %v723, 112
        %v870 = vpop.permute.xlu0 %869
        %871 = vrot.lane.b32.xlu0 %v724, 112
        %v872 = vpop.permute.xlu0 %871
        %873 = vrot.lane.b32.xlu0 %v725, 112
        %v874 = vpop.permute.xlu0 %873
        %875 = vrot.lane.b32.xlu0 %v726, 112
        %v876 = vpop.permute.xlu0 %875
        %877 = vrot.lane.b32.xlu0 %v727, 112
        %v878 = vpop.permute.xlu0 %877
        %879 = vrot.lane.b32.xlu0 %v728, 112
        %v880 = vpop.permute.xlu0 %879
        %881 = vrot.lane.b32.xlu0 %v729, 112
        %v882 = vpop.permute.xlu0 %881
        %883 = vrot.lane.b32.xlu0 %v730, 112
        %v884 = vpop.permute.xlu0 %883
        %885 = vrot.lane.b32.xlu0 %v731, 112
        %v886 = vpop.permute.xlu0 %885
        %887 = vrot.lane.b32.xlu0 %v732, 112
        %v888 = vpop.permute.xlu0 %887
        %889 = vrot.lane.b32.xlu0 %v733, 112
        %v890 = vpop.permute.xlu0 %889
        %891 = vrot.lane.b32.xlu0 %v734, 112
        %v892 = vpop.permute.xlu0 %891
        %893 = vrot.lane.b32.xlu0 %v735, 112
        %v894 = vpop.permute.xlu0 %893
        %895 = vrot.lane.b32.xlu0 %v736, 112
        %v896 = vpop.permute.xlu0 %895
        %v897 = vsel %vm403, %v866, %v868
        %v898 = vsel %vm403, %v870, %v872
        %v899 = vsel %vm403, %v874, %v876
        %v900 = vsel %vm403, %v878, %v880
        %v901 = vsel %vm403, %v882, %v884
        %v902 = vsel %vm403, %v886, %v888
        %v903 = vsel %vm403, %v890, %v892
        %v904 = vsel %vm403, %v894, %v896
        %921 = vrot.lane.b32.xlu0 %v721, 111
        %v922 = vpop.permute.xlu0 %921
        %923 = vrot.lane.b32.xlu0 %v722, 111
        %v924 = vpop.permute.xlu0 %923
        %925 = vrot.lane.b32.xlu0 %v723, 111
        %v926 = vpop.permute.xlu0 %925
        %927 = vrot.lane.b32.xlu0 %v724, 111
        %v928 = vpop.permute.xlu0 %927
        %929 = vrot.lane.b32.xlu0 %v725, 111
        %v930 = vpop.permute.xlu0 %929
        %931 = vrot.lane.b32.xlu0 %v726, 111
        %v932 = vpop.permute.xlu0 %931
        %933 = vrot.lane.b32.xlu0 %v727, 111
        %v934 = vpop.permute.xlu0 %933
        %935 = vrot.lane.b32.xlu0 %v728, 111
        %v936 = vpop.permute.xlu0 %935
        %937 = vrot.lane.b32.xlu0 %v729, 111
        %v938 = vpop.permute.xlu0 %937
        %939 = vrot.lane.b32.xlu0 %v730, 111
        %v940 = vpop.permute.xlu0 %939
        %941 = vrot.lane.b32.xlu0 %v731, 111
        %v942 = vpop.permute.xlu0 %941
        %943 = vrot.lane.b32.xlu0 %v732, 111
        %v944 = vpop.permute.xlu0 %943
        %945 = vrot.lane.b32.xlu0 %v733, 111
        %v946 = vpop.permute.xlu0 %945
        %947 = vrot.lane.b32.xlu0 %v734, 111
        %v948 = vpop.permute.xlu0 %947
        %949 = vrot.lane.b32.xlu0 %v735, 111
        %v950 = vpop.permute.xlu0 %949
        %951 = vrot.lane.b32.xlu0 %v736, 111
        %v952 = vpop.permute.xlu0 %951
        %v953 = vsel %vm413, %v922, %v924
        %v954 = vsel %vm413, %v926, %v928
        %v955 = vsel %vm413, %v930, %v932
        %v956 = vsel %vm413, %v934, %v936
        %v957 = vsel %vm413, %v938, %v940
        %v958 = vsel %vm413, %v942, %v944
        %v959 = vsel %vm413, %v946, %v948
        %v960 = vsel %vm413, %v950, %v952
        %977 = vrot.lane.b32.xlu0 %v721, 110
        %v978 = vpop.permute.xlu0 %977
        %979 = vrot.lane.b32.xlu0 %v722, 110
        %v980 = vpop.permute.xlu0 %979
        %981 = vrot.lane.b32.xlu0 %v723, 110
        %v982 = vpop.permute.xlu0 %981
        %983 = vrot.lane.b32.xlu0 %v724, 110
        %v984 = vpop.permute.xlu0 %983
        %985 = vrot.lane.b32.xlu0 %v725, 110
        %v986 = vpop.permute.xlu0 %985
        %987 = vrot.lane.b32.xlu0 %v726, 110
        %v988 = vpop.permute.xlu0 %987
        %989 = vrot.lane.b32.xlu0 %v727, 110
        %v990 = vpop.permute.xlu0 %989
        %991 = vrot.lane.b32.xlu0 %v728, 110
        %v992 = vpop.permute.xlu0 %991
        %993 = vrot.lane.b32.xlu0 %v729, 110
        %v994 = vpop.permute.xlu0 %993
        %995 = vrot.lane.b32.xlu0 %v730, 110
        %v996 = vpop.permute.xlu0 %995
        %997 = vrot.lane.b32.xlu0 %v731, 110
        %v998 = vpop.permute.xlu0 %997
        %999 = vrot.lane.b32.xlu0 %v732, 110
        %v1000 = vpop.permute.xlu0 %999
        %1001 = vrot.lane.b32.xlu0 %v733, 110
        %v1002 = vpop.permute.xlu0 %1001
        %1003 = vrot.lane.b32.xlu0 %v734, 110
        %v1004 = vpop.permute.xlu0 %1003
        %1005 = vrot.lane.b32.xlu0 %v735, 110
        %v1006 = vpop.permute.xlu0 %1005
        %1007 = vrot.lane.b32.xlu0 %v736, 110
        %v1008 = vpop.permute.xlu0 %1007
        %v1009 = vsel %vm423, %v978, %v980
        %v1010 = vsel %vm423, %v982, %v984
        %v1011 = vsel %vm423, %v986, %v988
        %v1012 = vsel %vm423, %v990, %v992
        %v1013 = vsel %vm423, %v994, %v996
        %v1014 = vsel %vm423, %v998, %v1000
        %v1015 = vsel %vm423, %v1002, %v1004
        %v1016 = vsel %vm423, %v1006, %v1008
        %1033 = vrot.lane.b32.xlu0 %v721, 96
        %v1034 = vpop.permute.xlu0 %1033
        %1035 = vrot.lane.b32.xlu0 %v722, 96
        %v1036 = vpop.permute.xlu0 %1035
        %1037 = vrot.lane.b32.xlu0 %v723, 96
        %v1038 = vpop.permute.xlu0 %1037
        %1039 = vrot.lane.b32.xlu0 %v724, 96
        %v1040 = vpop.permute.xlu0 %1039
        %1041 = vrot.lane.b32.xlu0 %v725, 96
        %v1042 = vpop.permute.xlu0 %1041
        %1043 = vrot.lane.b32.xlu0 %v726, 96
        %v1044 = vpop.permute.xlu0 %1043
        %1045 = vrot.lane.b32.xlu0 %v727, 96
        %v1046 = vpop.permute.xlu0 %1045
        %1047 = vrot.lane.b32.xlu0 %v728, 96
        %v1048 = vpop.permute.xlu0 %1047
        %1049 = vrot.lane.b32.xlu0 %v729, 96
        %v1050 = vpop.permute.xlu0 %1049
        %1051 = vrot.lane.b32.xlu0 %v730, 96
        %v1052 = vpop.permute.xlu0 %1051
        %1053 = vrot.lane.b32.xlu0 %v731, 96
        %v1054 = vpop.permute.xlu0 %1053
        %1055 = vrot.lane.b32.xlu0 %v732, 96
        %v1056 = vpop.permute.xlu0 %1055
        %1057 = vrot.lane.b32.xlu0 %v733, 96
        %v1058 = vpop.permute.xlu0 %1057
        %1059 = vrot.lane.b32.xlu0 %v734, 96
        %v1060 = vpop.permute.xlu0 %1059
        %1061 = vrot.lane.b32.xlu0 %v735, 96
        %v1062 = vpop.permute.xlu0 %1061
        %1063 = vrot.lane.b32.xlu0 %v736, 96
        %v1064 = vpop.permute.xlu0 %1063
        %v1065 = vsel %vm433, %v1034, %v1036
        %v1066 = vsel %vm433, %v1038, %v1040
        %v1067 = vsel %vm433, %v1042, %v1044
        %v1068 = vsel %vm433, %v1046, %v1048
        %v1069 = vsel %vm433, %v1050, %v1052
        %v1070 = vsel %vm433, %v1054, %v1056
        %v1071 = vsel %vm433, %v1058, %v1060
        %v1072 = vsel %vm433, %v1062, %v1064
        %1089 = vrot.lane.b32.xlu0 %v721, 95
        %v1090 = vpop.permute.xlu0 %1089
        %1091 = vrot.lane.b32.xlu0 %v722, 95
        %v1092 = vpop.permute.xlu0 %1091
        %1093 = vrot.lane.b32.xlu0 %v723, 95
        %v1094 = vpop.permute.xlu0 %1093
        %1095 = vrot.lane.b32.xlu0 %v724, 95
        %v1096 = vpop.permute.xlu0 %1095
        %1097 = vrot.lane.b32.xlu0 %v725, 95
        %v1098 = vpop.permute.xlu0 %1097
        %1099 = vrot.lane.b32.xlu0 %v726, 95
        %v1100 = vpop.permute.xlu0 %1099
        %1101 = vrot.lane.b32.xlu0 %v727, 95
        %v1102 = vpop.permute.xlu0 %1101
        %1103 = vrot.lane.b32.xlu0 %v728, 95
        %v1104 = vpop.permute.xlu0 %1103
        %1105 = vrot.lane.b32.xlu0 %v729, 95
        %v1106 = vpop.permute.xlu0 %1105
        %1107 = vrot.lane.b32.xlu0 %v730, 95
        %v1108 = vpop.permute.xlu0 %1107
        %1109 = vrot.lane.b32.xlu0 %v731, 95
        %v1110 = vpop.permute.xlu0 %1109
        %1111 = vrot.lane.b32.xlu0 %v732, 95
        %v1112 = vpop.permute.xlu0 %1111
        %1113 = vrot.lane.b32.xlu0 %v733, 95
        %v1114 = vpop.permute.xlu0 %1113
        %1115 = vrot.lane.b32.xlu0 %v734, 95
        %v1116 = vpop.permute.xlu0 %1115
        %1117 = vrot.lane.b32.xlu0 %v735, 95
        %v1118 = vpop.permute.xlu0 %1117
        %1119 = vrot.lane.b32.xlu0 %v736, 95
        %v1120 = vpop.permute.xlu0 %1119
        %v1121 = vsel %vm447, %v1090, %v1092
        %v1122 = vsel %vm447, %v1094, %v1096
        %v1123 = vsel %vm447, %v1098, %v1100
        %v1124 = vsel %vm447, %v1102, %v1104
        %v1125 = vsel %vm447, %v1106, %v1108
        %v1126 = vsel %vm447, %v1110, %v1112
        %v1127 = vsel %vm447, %v1114, %v1116
        %v1128 = vsel %vm447, %v1118, %v1120
        %1145 = vrot.lane.b32.xlu0 %v721, 94
        %v1146 = vpop.permute.xlu0 %1145
        %1147 = vrot.lane.b32.xlu0 %v722, 94
        %v1148 = vpop.permute.xlu0 %1147
        %1149 = vrot.lane.b32.xlu0 %v723, 94
        %v1150 = vpop.permute.xlu0 %1149
        %1151 = vrot.lane.b32.xlu0 %v724, 94
        %v1152 = vpop.permute.xlu0 %1151
        %1153 = vrot.lane.b32.xlu0 %v725, 94
        %v1154 = vpop.permute.xlu0 %1153
        %1155 = vrot.lane.b32.xlu0 %v726, 94
        %v1156 = vpop.permute.xlu0 %1155
        %1157 = vrot.lane.b32.xlu0 %v727, 94
        %v1158 = vpop.permute.xlu0 %1157
        %1159 = vrot.lane.b32.xlu0 %v728, 94
        %v1160 = vpop.permute.xlu0 %1159
        %1161 = vrot.lane.b32.xlu0 %v729, 94
        %v1162 = vpop.permute.xlu0 %1161
        %1163 = vrot.lane.b32.xlu0 %v730, 94
        %v1164 = vpop.permute.xlu0 %1163
        %1165 = vrot.lane.b32.xlu0 %v731, 94
        %v1166 = vpop.permute.xlu0 %1165
        %1167 = vrot.lane.b32.xlu0 %v732, 94
        %v1168 = vpop.permute.xlu0 %1167
        %1169 = vrot.lane.b32.xlu0 %v733, 94
        %v1170 = vpop.permute.xlu0 %1169
        %1171 = vrot.lane.b32.xlu0 %v734, 94
        %v1172 = vpop.permute.xlu0 %1171
        %1173 = vrot.lane.b32.xlu0 %v735, 94
        %v1174 = vpop.permute.xlu0 %1173
        %1175 = vrot.lane.b32.xlu0 %v736, 94
        %v1176 = vpop.permute.xlu0 %1175
        %v1177 = vsel %vm458, %v1146, %v1148
        %v1178 = vsel %vm458, %v1150, %v1152
        %v1179 = vsel %vm458, %v1154, %v1156
        %v1180 = vsel %vm458, %v1158, %v1160
        %v1181 = vsel %vm458, %v1162, %v1164
        %v1182 = vsel %vm458, %v1166, %v1168
        %v1183 = vsel %vm458, %v1170, %v1172
        %v1184 = vsel %vm458, %v1174, %v1176
        %v1201 = vld [vmem:[%s3] sm:$0xff]
        %v1202 = vld [vmem:[%s3 + $0x8] sm:$0xff]
        %v1203 = vld [vmem:[%s3 + $0x10] sm:$0xff]
        %v1204 = vld [vmem:[%s3 + $0x18] sm:$0xff]
        %v1205 = vld [vmem:[%s3 + $0x20] sm:$0xff]
        %v1206 = vld [vmem:[%s3 + $0x28] sm:$0xff]
        %v1207 = vld [vmem:[%s3 + $0x30] sm:$0xff]
        %v1208 = vld [vmem:[%s3 + $0x38] sm:$0xff]
        %v1209 = vld [vmem:[%s3 + $0x40] sm:$0xff]
        %v1210 = vld [vmem:[%s3 + $0x48] sm:$0xff]
        %v1211 = vld [vmem:[%s3 + $0x50] sm:$0xff]
        %v1212 = vld [vmem:[%s3 + $0x58] sm:$0xff]
        %v1213 = vld [vmem:[%s3 + $0x60] sm:$0xff]
        %v1214 = vld [vmem:[%s3 + $0x68] sm:$0xff]
        %v1215 = vld [vmem:[%s3 + $0x70] sm:$0xff]
        %v1216 = vld [vmem:[%s3 + $0x78] sm:$0xff]
        %v1217 = vld [vmem:[%s3 + $0x80] sm:$0xff]
        %v1218 = vld [vmem:[%s3 + $0x88] sm:$0xff]
        %v1219 = vld [vmem:[%s3 + $0x90] sm:$0xff]
        %v1220 = vld [vmem:[%s3 + $0x98] sm:$0xff]
        %v1221 = vld [vmem:[%s3 + $0xa0] sm:$0xff]
        %v1222 = vld [vmem:[%s3 + $0xa8] sm:$0xff]
        %v1223 = vld [vmem:[%s3 + $0xb0] sm:$0xff]
        %v1224 = vld [vmem:[%s3 + $0xb8] sm:$0xff]
        %v1225 = vld [vmem:[%s3 + $0xc0] sm:$0xff]
        %v1226 = vld [vmem:[%s3 + $0xc8] sm:$0xff]
        %v1227 = vld [vmem:[%s3 + $0xd0] sm:$0xff]
        %v1228 = vld [vmem:[%s3 + $0xd8] sm:$0xff]
        %v1229 = vld [vmem:[%s3 + $0xe0] sm:$0xff]
        %v1230 = vld [vmem:[%s3 + $0xe8] sm:$0xff]
        %v1231 = vld [vmem:[%s3 + $0xf0] sm:$0xff]
        %v1232 = vld [vmem:[%s3 + $0xf8] sm:$0xff]
        %v1233 = vld [vmem:[%s3 + $0x100] sm:$0xff]
        %v1234 = vld [vmem:[%s3 + $0x108] sm:$0xff]
        %v1235 = vld [vmem:[%s3 + $0x110] sm:$0xff]
        %v1236 = vld [vmem:[%s3 + $0x118] sm:$0xff]
        %v1237 = vld [vmem:[%s3 + $0x120] sm:$0xff]
        %v1238 = vld [vmem:[%s3 + $0x128] sm:$0xff]
        %v1239 = vld [vmem:[%s3 + $0x130] sm:$0xff]
        %v1240 = vld [vmem:[%s3 + $0x138] sm:$0xff]
        %v1241 = vld [vmem:[%s4] sm:$0xff]
        %v1242 = vld [vmem:[%s4 + $0x8] sm:$0xff]
        %v1243 = vld [vmem:[%s4 + $0x10] sm:$0xff]
        %v1244 = vld [vmem:[%s4 + $0x18] sm:$0xff]
        %v1245 = vld [vmem:[%s4 + $0x20] sm:$0xff]
        %v1246 = vld [vmem:[%s4 + $0x28] sm:$0xff]
        %v1247 = vld [vmem:[%s4 + $0x30] sm:$0xff]
        %v1248 = vld [vmem:[%s4 + $0x38] sm:$0xff]
        %1250 = vset.pattern.permute.xlu0 0
        %1251 = vperm.xlu0 %1250, %v1241
        %v1252 = vpop.permute.xlu0 %1251
        %1255 = vset.pattern.permute.xlu0 0
        %1256 = vperm.xlu0 %1255, %v1242
        %v1257 = vpop.permute.xlu0 %1256
        %1260 = vset.pattern.permute.xlu0 0
        %1261 = vperm.xlu0 %1260, %v1243
        %v1262 = vpop.permute.xlu0 %1261
        %1265 = vset.pattern.permute.xlu0 0
        %1266 = vperm.xlu0 %1265, %v1244
        %v1267 = vpop.permute.xlu0 %1266
        %1270 = vset.pattern.permute.xlu0 0
        %1271 = vperm.xlu0 %1270, %v1245
        %v1272 = vpop.permute.xlu0 %1271
        %1275 = vset.pattern.permute.xlu0 0
        %1276 = vperm.xlu0 %1275, %v1246
        %v1277 = vpop.permute.xlu0 %1276
        %1280 = vset.pattern.permute.xlu0 0
        %1281 = vperm.xlu0 %1280, %v1247
        %v1282 = vpop.permute.xlu0 %1281
        %1285 = vset.pattern.permute.xlu0 0
        %1286 = vperm.xlu0 %1285, %v1248
        %v1287 = vpop.permute.xlu0 %1286
        %vm1289 = vcmask 523264
        %v1291 = vsel %vm1289, %v1205, 0
        %v1294 = vsel %vm1289, %v1210, 0
        %v1297 = vsel %vm1289, %v1215, 0
        %v1300 = vsel %vm1289, %v1220, 0
        %v1303 = vsel %vm1289, %v1225, 0
        %v1306 = vsel %vm1289, %v1230, 0
        %v1309 = vsel %vm1289, %v1235, 0
        %v1312 = vsel %vm1289, %v1240, 0
        %1314 = vmatprep.subr.mxu0 %v722
        %1315 = vmatpush1.msra.mxu0 %v721
        %1316 = vmatprep.subr.mxu0 %v724
        %1317 = vmatpush1.msra.mxu0 %v723
        %1318 = vmatprep.subr.mxu0 %v726
        %1319 = vmatpush1.msra.mxu0 %v725
        %1320 = vmatprep.subr.mxu0 %v728
        %1321 = vmatpush1.msra.mxu0 %v727
        %1322 = vmatprep.subr.mxu0 %v730
        %1323 = vmatpush1.msra.mxu0 %v729
        %1324 = vmatprep.subr.mxu0 %v732
        %1325 = vmatpush1.msra.mxu0 %v731
        %1326 = vmatprep.subr.mxu0 %v734
        %1327 = vmatpush1.msra.mxu0 %v733
        %1328 = vmatprep.subr.mxu0 %v736
        %1329 = vmatpush1.msra.mxu0 %v735
        %1330 = vmatprep.subr.mxu0 %v756
        %1331 = vmatpush1.msra.mxu0 %v785
        %1332 = vmatprep.subr.mxu0 %v760
        %1333 = vmatpush1.msra.mxu0 %v786
        %1334 = vmatprep.subr.mxu0 %v764
        %1335 = vmatpush1.msra.mxu0 %v787
        %1336 = vmatprep.subr.mxu0 %v768
        %1337 = vmatpush1.msra.mxu0 %v788
        %1338 = vmatprep.subr.mxu0 %v772
        %1339 = vmatpush1.msra.mxu0 %v789
        %1340 = vmatprep.subr.mxu0 %v776
        %1341 = vmatpush1.msra.mxu0 %v790
        %1342 = vmatprep.subr.mxu0 %v780
        %1343 = vmatpush1.msra.mxu0 %v791
        %1344 = vmatprep.subr.mxu0 %v784
        %1345 = vmatpush1.msra.mxu0 %v792
        %1346 = vmatprep.subr.mxu0 %v812
        %1347 = vmatpush1.msra.mxu0 %v841
        %1348 = vmatprep.subr.mxu0 %v816
        %1349 = vmatpush1.msra.mxu0 %v842
        %1350 = vmatprep.subr.mxu0 %v820
        %1351 = vmatpush1.msra.mxu0 %v843
        %1352 = vmatprep.subr.mxu0 %v824
        %1353 = vmatpush1.msra.mxu0 %v844
        %1354 = vmatprep.subr.mxu0 %v828
        %1355 = vmatpush1.msra.mxu0 %v845
        %1356 = vmatprep.subr.mxu0 %v832
        %1357 = vmatpush1.msra.mxu0 %v846
        %1358 = vmatprep.subr.mxu0 %v836
        %1359 = vmatpush1.msra.mxu0 %v847
        %1360 = vmatprep.subr.mxu0 %v840
        %1361 = vmatpush1.msra.mxu0 %v848
        %1362 = vmatprep.subr.mxu0 %v868
        %1363 = vmatpush1.msra.mxu0 %v897
        %1364 = vmatprep.subr.mxu0 %v872
        %1365 = vmatpush1.msra.mxu0 %v898
        %1366 = vmatprep.subr.mxu0 %v876
        %1367 = vmatpush1.msra.mxu0 %v899
        %1368 = vmatprep.subr.mxu0 %v880
        %1369 = vmatpush1.msra.mxu0 %v900
        %1370 = vmatprep.subr.mxu0 %v884
        %1371 = vmatpush1.msra.mxu0 %v901
        %1372 = vmatprep.subr.mxu0 %v888
        %1373 = vmatpush1.msra.mxu0 %v902
        %1374 = vmatprep.subr.mxu0 %v892
        %1375 = vmatpush1.msra.mxu0 %v903
        %1376 = vmatprep.subr.mxu0 %v896
        %1377 = vmatpush1.msra.mxu0 %v904
        %1378 = vmatprep.mubr.f32.mxu0 %v1202
        %1379 = vmatmul.mubr.f32.gmra.mrb[0].mxu0 %v1201
        %v1380 = vpop.f32.mrb[0].mxu0
        %v1381 = vadd.f32 %v1252, %v1380
        %v1382 = vpop.f32.mrb[0].mxu0
        %v1383 = vadd.f32 %v1252, %v1382
        %1384 = vmatprep.mubr.f32.mxu0 %v1207
        %1385 = vmatmul.mubr.f32.gmra.mrb[0].mxu0 %v1206
        %v1386 = vpop.f32.mrb[0].mxu0
        %v1387 = vadd.f32 %v1257, %v1386
        %v1388 = vpop.f32.mrb[0].mxu0
        %v1389 = vadd.f32 %v1257, %v1388
        %1390 = vmatprep.mubr.f32.mxu0 %v1212
        %1391 = vmatmul.mubr.f32.gmra.mrb[0].mxu0 %v1211
        %v1392 = vpop.f32.mrb[0].mxu0
        %v1393 = vadd.f32 %v1262, %v1392
        %v1394 = vpop.f32.mrb[0].mxu0
        %v1395 = vadd.f32 %v1262, %v1394
        %1396 = vmatprep.mubr.f32.mxu0 %v1217
        %1397 = vmatmul.mubr.f32.gmra.mrb[0].mxu0 %v1216
        %v1398 = vpop.f32.mrb[0].mxu0
        %v1399 = vadd.f32 %v1267, %v1398
        %v1400 = vpop.f32.mrb[0].mxu0
        %v1401 = vadd.f32 %v1267, %v1400
        %1402 = vmatprep.mubr.f32.mxu0 %v1222
        %1403 = vmatmul.mubr.f32.gmra.mrb[0].mxu0 %v1221
        %v1404 = vpop.f32.mrb[0].mxu0
        %v1405 = vadd.f32 %v1272, %v1404
        %v1406 = vpop.f32.mrb[0].mxu0
        %v1407 = vadd.f32 %v1272, %v1406
        %1408 = vmatprep.mubr.f32.mxu0 %v1227
        %1409 = vmatmul.mubr.f32.gmra.mrb[0].mxu0 %v1226
        %v1410 = vpop.f32.mrb[0].mxu0
        %v1411 = vadd.f32 %v1277, %v1410
        %v1412 = vpop.f32.mrb[0].mxu0
        %v1413 = vadd.f32 %v1277, %v1412
        %1414 = vmatprep.mubr.f32.mxu0 %v1232
        %1415 = vmatmul.mubr.f32.gmra.mrb[0].mxu0 %v1231
        %v1416 = vpop.f32.mrb[0].mxu0
        %v1417 = vadd.f32 %v1282, %v1416
        %v1418 = vpop.f32.mrb[0].mxu0
        %v1419 = vadd.f32 %v1282, %v1418
        %1420 = vmatprep.mubr.f32.mxu0 %v1237
        %1421 = vmatmul.mubr.f32.gmra.mrb[0].mxu0 %v1236
        %v1422 = vpop.f32.mrb[0].mxu0
        %v1423 = vadd.f32 %v1287, %v1422
        %v1424 = vpop.f32.mrb[0].mxu0
        %v1425 = vadd.f32 %v1287, %v1424
        %1426 = vdwg.mxu0
        %1427 = vmatprep.subr.mxu0 %v924
        %1428 = vmatpush1.msra.mxu0 %v953
        %1429 = vmatprep.subr.mxu0 %v928
        %1430 = vmatpush1.msra.mxu0 %v954
        %1431 = vmatprep.subr.mxu0 %v932
        %1432 = vmatpush1.msra.mxu0 %v955
        %1433 = vmatprep.subr.mxu0 %v936
        %1434 = vmatpush1.msra.mxu0 %v956
        %1435 = vmatprep.subr.mxu0 %v940
        %1436 = vmatpush1.msra.mxu0 %v957
        %1437 = vmatprep.subr.mxu0 %v944
        %1438 = vmatpush1.msra.mxu0 %v958
        %1439 = vmatprep.subr.mxu0 %v948
        %1440 = vmatpush1.msra.mxu0 %v959
        %1441 = vmatprep.subr.mxu0 %v952
        %1442 = vmatpush1.msra.mxu0 %v960
        %1443 = vmatprep.subr.mxu0 %v980
        %1444 = vmatpush1.msra.mxu0 %v1009
        %1445 = vmatprep.subr.mxu0 %v984
        %1446 = vmatpush1.msra.mxu0 %v1010
        %1447 = vmatprep.subr.mxu0 %v988
        %1448 = vmatpush1.msra.mxu0 %v1011
        %1449 = vmatprep.subr.mxu0 %v992
        %1450 = vmatpush1.msra.mxu0 %v1012
        %1451 = vmatprep.subr.mxu0 %v996
        %1452 = vmatpush1.msra.mxu0 %v1013
        %1453 = vmatprep.subr.mxu0 %v1000
        %1454 = vmatpush1.msra.mxu0 %v1014
        %1455 = vmatprep.subr.mxu0 %v1004
        %1456 = vmatpush1.msra.mxu0 %v1015
        %1457 = vmatprep.subr.mxu0 %v1008
        %1458 = vmatpush1.msra.mxu0 %v1016
        %1459 = vmatprep.subr.mxu0 %v1036
        %1460 = vmatpush1.msra.mxu0 %v1065
        %1461 = vmatprep.subr.mxu0 %v1040
        %1462 = vmatpush1.msra.mxu0 %v1066
        %1463 = vmatprep.subr.mxu0 %v1044
        %1464 = vmatpush1.msra.mxu0 %v1067
        %1465 = vmatprep.subr.mxu0 %v1048
        %1466 = vmatpush1.msra.mxu0 %v1068
        %1467 = vmatprep.subr.mxu0 %v1052
        %1468 = vmatpush1.msra.mxu0 %v1069
        %1469 = vmatprep.subr.mxu0 %v1056
        %1470 = vmatpush1.msra.mxu0 %v1070
        %1471 = vmatprep.subr.mxu0 %v1060
        %1472 = vmatpush1.msra.mxu0 %v1071
        %1473 = vmatprep.subr.mxu0 %v1064
        %1474 = vmatpush1.msra.mxu0 %v1072
        %1475 = vmatprep.subr.mxu0 %v1092
        %1476 = vmatpush1.msra.mxu0 %v1121
        %1477 = vmatprep.subr.mxu0 %v1096
        %1478 = vmatpush1.msra.mxu0 %v1122
        %1479 = vmatprep.subr.mxu0 %v1100
        %1480 = vmatpush1.msra.mxu0 %v1123
        %1481 = vmatprep.subr.mxu0 %v1104
        %1482 = vmatpush1.msra.mxu0 %v1124
        %1483 = vmatprep.subr.mxu0 %v1108
        %1484 = vmatpush1.msra.mxu0 %v1125
        %1485 = vmatprep.subr.mxu0 %v1112
        %1486 = vmatpush1.msra.mxu0 %v1126
        %1487 = vmatprep.subr.mxu0 %v1116
        %1488 = vmatpush1.msra.mxu0 %v1127
        %1489 = vmatprep.subr.mxu0 %v1120
        %1490 = vmatpush1.msra.mxu0 %v1128
        %1491 = vmatprep.mubr.f32.mxu0 %v1204
        %1492 = vmatmul.mubr.f32.gmra.mrb[0].mxu0 %v1203
        %v1493 = vpop.f32.mrb[0].mxu0
        %v1494 = vadd.f32 %v1381, %v1493
        %v1495 = vpop.f32.mrb[0].mxu0
        %v1496 = vadd.f32 %v1383, %v1495
        %1497 = vmatprep.mubr.f32.mxu0 %v1209
        %1498 = vmatmul.mubr.f32.gmra.mrb[0].mxu0 %v1208
        %v1499 = vpop.f32.mrb[0].mxu0
        %v1500 = vadd.f32 %v1387, %v1499
        %v1501 = vpop.f32.mrb[0].mxu0
        %v1502 = vadd.f32 %v1389, %v1501
        %1503 = vmatprep.mubr.f32.mxu0 %v1214
        %1504 = vmatmul.mubr.f32.gmra.mrb[0].mxu0 %v1213
        %v1505 = vpop.f32.mrb[0].mxu0
        %v1506 = vadd.f32 %v1393, %v1505
        %v1507 = vpop.f32.mrb[0].mxu0
        %v1508 = vadd.f32 %v1395, %v1507
        %1509 = vmatprep.mubr.f32.mxu0 %v1219
        %1510 = vmatmul.mubr.f32.gmra.mrb[0].mxu0 %v1218
        %v1511 = vpop.f32.mrb[0].mxu0
        %v1512 = vadd.f32 %v1399, %v1511
        %v1513 = vpop.f32.mrb[0].mxu0
        %v1514 = vadd.f32 %v1401, %v1513
        %1515 = vmatprep.mubr.f32.mxu0 %v1224
        %1516 = vmatmul.mubr.f32.gmra.mrb[0].mxu0 %v1223
        %v1517 = vpop.f32.mrb[0].mxu0
        %v1518 = vadd.f32 %v1405, %v1517
        %v1519 = vpop.f32.mrb[0].mxu0
        %v1520 = vadd.f32 %v1407, %v1519
        %1521 = vmatprep.mubr.f32.mxu0 %v1229
        %1522 = vmatmul.mubr.f32.gmra.mrb[0].mxu0 %v1228
        %v1523 = vpop.f32.mrb[0].mxu0
        %v1524 = vadd.f32 %v1411, %v1523
        %v1525 = vpop.f32.mrb[0].mxu0
        %v1526 = vadd.f32 %v1413, %v1525
        %1527 = vmatprep.mubr.f32.mxu0 %v1234
        %1528 = vmatmul.mubr.f32.gmra.mrb[0].mxu0 %v1233
        %v1529 = vpop.f32.mrb[0].mxu0
        %v1530 = vadd.f32 %v1417, %v1529
        %v1531 = vpop.f32.mrb[0].mxu0
        %v1532 = vadd.f32 %v1419, %v1531
        %1533 = vmatprep.mubr.f32.mxu0 %v1239
        %1534 = vmatmul.mubr.f32.gmra.mrb[0].mxu0 %v1238
        %v1535 = vpop.f32.mrb[0].mxu0
        %v1536 = vadd.f32 %v1423, %v1535
        %v1537 = vpop.f32.mrb[0].mxu0
        %v1538 = vadd.f32 %v1425, %v1537
        %1539 = vdwg.mxu0
        %1540 = vmatprep.subr.mxu0 %v1148
        %1541 = vmatpush1.msra.mxu0 %v1177
        %1542 = vmatprep.subr.mxu0 %v1152
        %1543 = vmatpush1.msra.mxu0 %v1178
        %1544 = vmatprep.subr.mxu0 %v1156
        %1545 = vmatpush1.msra.mxu0 %v1179
        %1546 = vmatprep.subr.mxu0 %v1160
        %1547 = vmatpush1.msra.mxu0 %v1180
        %1548 = vmatprep.subr.mxu0 %v1164
        %1549 = vmatpush1.msra.mxu0 %v1181
        %1550 = vmatprep.subr.mxu0 %v1168
        %1551 = vmatpush1.msra.mxu0 %v1182
        %1552 = vmatprep.subr.mxu0 %v1172
        %1553 = vmatpush1.msra.mxu0 %v1183
        %1554 = vmatprep.subr.mxu0 %v1176
        %1555 = vmatpush1.msra.mxu0 %v1184
        %1556 = vmatprep.subr.mxu0 0.0
        %1557 = vmatpush1.msra.mxu0 0.0
        %1558 = vmatprep.subr.mxu0 0.0
        %1559 = vmatpush1.msra.mxu0 0.0
        %1560 = vmatprep.subr.mxu0 0.0
        %1561 = vmatpush1.msra.mxu0 0.0
        %1562 = vmatprep.subr.mxu0 0.0
        %1563 = vmatpush1.msra.mxu0 0.0
        %1564 = vmatprep.subr.mxu0 0.0
        %1565 = vmatpush1.msra.mxu0 0.0
        %1566 = vmatprep.subr.mxu0 0.0
        %1567 = vmatpush1.msra.mxu0 0.0
        %1568 = vmatprep.subr.mxu0 0.0
        %1569 = vmatpush1.msra.mxu0 0.0
        %1570 = vmatprep.subr.mxu0 0.0
        %1571 = vmatpush1.msra.mxu0 0.0
        %1572 = vmatprep.subr.mxu0 0.0
        %1573 = vmatpush1.msra.mxu0 0.0
        %1574 = vmatprep.subr.mxu0 0.0
        %1575 = vmatpush1.msra.mxu0 0.0
        %1576 = vmatprep.subr.mxu0 0.0
        %1577 = vmatpush1.msra.mxu0 0.0
        %1578 = vmatprep.subr.mxu0 0.0
        %1579 = vmatpush1.msra.mxu0 0.0
        %1580 = vmatprep.subr.mxu0 0.0
        %1581 = vmatpush1.msra.mxu0 0.0
        %1582 = vmatprep.subr.mxu0 0.0
        %1583 = vmatpush1.msra.mxu0 0.0
        %1584 = vmatprep.subr.mxu0 0.0
        %1585 = vmatpush1.msra.mxu0 0.0
        %1586 = vmatprep.subr.mxu0 0.0
        %1587 = vmatpush1.msra.mxu0 0.0
        %1588 = vmatprep.subr.mxu0 0.0
        %1589 = vmatpush1.msra.mxu0 0.0
        %1590 = vmatprep.subr.mxu0 0.0
        %1591 = vmatpush1.msra.mxu0 0.0
        %1592 = vmatprep.subr.mxu0 0.0
        %1593 = vmatpush1.msra.mxu0 0.0
        %1594 = vmatprep.subr.mxu0 0.0
        %1595 = vmatpush1.msra.mxu0 0.0
        %1596 = vmatprep.subr.mxu0 0.0
        %1597 = vmatpush1.msra.mxu0 0.0
        %1598 = vmatprep.subr.mxu0 0.0
        %1599 = vmatpush1.msra.mxu0 0.0
        %1600 = vmatprep.subr.mxu0 0.0
        %1601 = vmatpush1.msra.mxu0 0.0
        %1602 = vmatprep.subr.mxu0 0.0
        %1603 = vmatpush1.msra.mxu0 0.0
        %1604 = vmatprep.mubr.f32.mxu0 0.0
        %1605 = vmatmul.mubr.f32.gmra.mrb[0].mxu0 %v1291
        %v1606 = vpop.f32.mrb[0].mxu0
        %v1607 = vadd.f32 %v1494, %v1606
        %v1608 = vpop.f32.mrb[0].mxu0
        %v1609 = vadd.f32 %v1496, %v1608
        %1610 = vmatprep.mubr.f32.mxu0 0.0
        %1611 = vmatmul.mubr.f32.gmra.mrb[0].mxu0 %v1294
        %v1612 = vpop.f32.mrb[0].mxu0
        %v1613 = vadd.f32 %v1500, %v1612
        %v1614 = vpop.f32.mrb[0].mxu0
        %v1615 = vadd.f32 %v1502, %v1614
        %1616 = vmatprep.mubr.f32.mxu0 0.0
        %1617 = vmatmul.mubr.f32.gmra.mrb[0].mxu0 %v1297
        %v1618 = vpop.f32.mrb[0].mxu0
        %v1619 = vadd.f32 %v1506, %v1618
        %v1620 = vpop.f32.mrb[0].mxu0
        %v1621 = vadd.f32 %v1508, %v1620
        %1622 = vmatprep.mubr.f32.mxu0 0.0
        %1623 = vmatmul.mubr.f32.gmra.mrb[0].mxu0 %v1300
        %v1624 = vpop.f32.mrb[0].mxu0
        %v1625 = vadd.f32 %v1512, %v1624
        %v1626 = vpop.f32.mrb[0].mxu0
        %v1627 = vadd.f32 %v1514, %v1626
        %1628 = vmatprep.mubr.f32.mxu0 0.0
        %1629 = vmatmul.mubr.f32.gmra.mrb[0].mxu0 %v1303
        %v1630 = vpop.f32.mrb[0].mxu0
        %v1631 = vadd.f32 %v1518, %v1630
        %v1632 = vpop.f32.mrb[0].mxu0
        %v1633 = vadd.f32 %v1520, %v1632
        %1634 = vmatprep.mubr.f32.mxu0 0.0
        %1635 = vmatmul.mubr.f32.gmra.mrb[0].mxu0 %v1306
        %v1636 = vpop.f32.mrb[0].mxu0
        %v1637 = vadd.f32 %v1524, %v1636
        %v1638 = vpop.f32.mrb[0].mxu0
        %v1639 = vadd.f32 %v1526, %v1638
        %1640 = vmatprep.mubr.f32.mxu0 0.0
        %1641 = vmatmul.mubr.f32.gmra.mrb[0].mxu0 %v1309
        %v1642 = vpop.f32.mrb[0].mxu0
        %v1643 = vadd.f32 %v1530, %v1642
        %v1644 = vpop.f32.mrb[0].mxu0
        %v1645 = vadd.f32 %v1532, %v1644
        %1646 = vmatprep.mubr.f32.mxu0 0.0
        %1647 = vmatmul.mubr.f32.gmra.mrb[0].mxu0 %v1312
        %v1648 = vpop.f32.mrb[0].mxu0
        %v1649 = vadd.f32 %v1536, %v1648
        %v1650 = vpop.f32.mrb[0].mxu0
        %v1651 = vadd.f32 %v1538, %v1650
        %1652 = vdwg.mxu0
        %v1653 = vmax.f32 %v1607, 0.0
        %v1654 = vmax.f32 %v1609, 0.0
        %v1655 = vmax.f32 %v1613, 0.0
        %v1656 = vmax.f32 %v1615, 0.0
        %v1657 = vmax.f32 %v1619, 0.0
        %v1658 = vmax.f32 %v1621, 0.0
        %v1659 = vmax.f32 %v1625, 0.0
        %v1660 = vmax.f32 %v1627, 0.0
        %v1661 = vmax.f32 %v1631, 0.0
        %v1662 = vmax.f32 %v1633, 0.0
        %v1663 = vmax.f32 %v1637, 0.0
        %v1664 = vmax.f32 %v1639, 0.0
        %v1665 = vmax.f32 %v1643, 0.0
        %v1666 = vmax.f32 %v1645, 0.0
        %v1667 = vmax.f32 %v1649, 0.0
        %v1668 = vmax.f32 %v1651, 0.0
        %1669 = vst [vmem:[#allocation2] sm:$0xff] %v1653
        %1670 = vst.msk [vmem:[#allocation2 + $0x8] sm:$0xff] %vm1289, %v1654
        %1671 = vst [vmem:[#allocation2 + $0x10] sm:$0xff] %v1655
        %1672 = vst.msk [vmem:[#allocation2 + $0x18] sm:$0xff] %vm1289, %v1656
        %1673 = vst [vmem:[#allocation2 + $0x20] sm:$0xff] %v1657
        %1674 = vst.msk [vmem:[#allocation2 + $0x28] sm:$0xff] %vm1289, %v1658
        %1675 = vst [vmem:[#allocation2 + $0x30] sm:$0xff] %v1659
        %1676 = vst.msk [vmem:[#allocation2 + $0x38] sm:$0xff] %vm1289, %v1660
        %1677 = vst [vmem:[#allocation2 + $0x40] sm:$0xff] %v1661
        %1678 = vst.msk [vmem:[#allocation2 + $0x48] sm:$0xff] %vm1289, %v1662
        %1679 = vst [vmem:[#allocation2 + $0x50] sm:$0xff] %v1663
        %1680 = vst.msk [vmem:[#allocation2 + $0x58] sm:$0xff] %vm1289, %v1664
        %1681 = vst [vmem:[#allocation2 + $0x60] sm:$0xff] %v1665
        %1682 = vst.msk [vmem:[#allocation2 + $0x68] sm:$0xff] %vm1289, %v1666
        %1683 = vst [vmem:[#allocation2 + $0x70] sm:$0xff] %v1667
        %1684 = vst.msk [vmem:[#allocation2 + $0x78] sm:$0xff] %vm1289, %v1668
        %vm1685 = vcmask 851456
        %1686 = vst.msk [vmem:[#allocation2 + $0x8] sm:$0xff] %vm1685, 0.0
        %1687 = vst.msk [vmem:[#allocation2 + $0x18] sm:$0xff] %vm1685, 0.0
        %1688 = vst.msk [vmem:[#allocation2 + $0x28] sm:$0xff] %vm1685, 0.0
        %1689 = vst.msk [vmem:[#allocation2 + $0x38] sm:$0xff] %vm1685, 0.0
        %1690 = vst.msk [vmem:[#allocation2 + $0x48] sm:$0xff] %vm1685, 0.0
        %1691 = vst.msk [vmem:[#allocation2 + $0x58] sm:$0xff] %vm1685, 0.0
        %1692 = vst.msk [vmem:[#allocation2 + $0x68] sm:$0xff] %vm1685, 0.0
        %1693 = vst.msk [vmem:[#allocation2 + $0x78] sm:$0xff] %vm1685, 0.0
        %v1694 = vld [vmem:[#allocation2] sm:$0xff]
        %v1695 = vld [vmem:[#allocation2 + $0x8] sm:$0xff]
        %v1696 = vld [vmem:[#allocation2 + $0x10] sm:$0xff]
        %v1697 = vld [vmem:[#allocation2 + $0x18] sm:$0xff]
        %v1698 = vld [vmem:[#allocation2 + $0x20] sm:$0xff]
        %v1699 = vld [vmem:[#allocation2 + $0x28] sm:$0xff]
        %v1700 = vld [vmem:[#allocation2 + $0x30] sm:$0xff]
        %v1701 = vld [vmem:[#allocation2 + $0x38] sm:$0xff]
        %v1702 = vld [vmem:[#allocation2 + $0x40] sm:$0xff]
        %v1703 = vld [vmem:[#allocation2 + $0x48] sm:$0xff]
        %v1704 = vld [vmem:[#allocation2 + $0x50] sm:$0xff]
        %v1705 = vld [vmem:[#allocation2 + $0x58] sm:$0xff]
        %v1706 = vld [vmem:[#allocation2 + $0x60] sm:$0xff]
        %v1707 = vld [vmem:[#allocation2 + $0x68] sm:$0xff]
        %v1708 = vld [vmem:[#allocation2 + $0x70] sm:$0xff]
        %v1709 = vld [vmem:[#allocation2 + $0x78] sm:$0xff]
        %1726 = vrot.lane.b32.xlu0 %v1694, 127
        %v1727 = vpop.permute.xlu0 %1726
        %1728 = vrot.lane.b32.xlu0 %v1695, 127
        %v1729 = vpop.permute.xlu0 %1728
        %1730 = vrot.lane.b32.xlu0 %v1696, 127
        %v1731 = vpop.permute.xlu0 %1730
        %1732 = vrot.lane.b32.xlu0 %v1697, 127
        %v1733 = vpop.permute.xlu0 %1732
        %1734 = vrot.lane.b32.xlu0 %v1698, 127
        %v1735 = vpop.permute.xlu0 %1734
        %1736 = vrot.lane.b32.xlu0 %v1699, 127
        %v1737 = vpop.permute.xlu0 %1736
        %1738 = vrot.lane.b32.xlu0 %v1700, 127
        %v1739 = vpop.permute.xlu0 %1738
        %1740 = vrot.lane.b32.xlu0 %v1701, 127
        %v1741 = vpop.permute.xlu0 %1740
        %1742 = vrot.lane.b32.xlu0 %v1702, 127
        %v1743 = vpop.permute.xlu0 %1742
        %1744 = vrot.lane.b32.xlu0 %v1703, 127
        %v1745 = vpop.permute.xlu0 %1744
        %1746 = vrot.lane.b32.xlu0 %v1704, 127
        %v1747 = vpop.permute.xlu0 %1746
        %1748 = vrot.lane.b32.xlu0 %v1705, 127
        %v1749 = vpop.permute.xlu0 %1748
        %1750 = vrot.lane.b32.xlu0 %v1706, 127
        %v1751 = vpop.permute.xlu0 %1750
        %1752 = vrot.lane.b32.xlu0 %v1707, 127
        %v1753 = vpop.permute.xlu0 %1752
        %1754 = vrot.lane.b32.xlu0 %v1708, 127
        %v1755 = vpop.permute.xlu0 %1754
        %1756 = vrot.lane.b32.xlu0 %v1709, 127
        %v1757 = vpop.permute.xlu0 %1756
        %v1758 = vsel %vm383, %v1727, %v1729
        %v1759 = vsel %vm383, %v1731, %v1733
        %v1760 = vsel %vm383, %v1735, %v1737
        %v1761 = vsel %vm383, %v1739, %v1741
        %v1762 = vsel %vm383, %v1743, %v1745
        %v1763 = vsel %vm383, %v1747, %v1749
        %v1764 = vsel %vm383, %v1751, %v1753
        %v1765 = vsel %vm383, %v1755, %v1757
        %1782 = vrot.lane.b32.xlu0 %v1694, 126
        %v1783 = vpop.permute.xlu0 %1782
        %1784 = vrot.lane.b32.xlu0 %v1695, 126
        %v1785 = vpop.permute.xlu0 %1784
        %1786 = vrot.lane.b32.xlu0 %v1696, 126
        %v1787 = vpop.permute.xlu0 %1786
        %1788 = vrot.lane.b32.xlu0 %v1697, 126
        %v1789 = vpop.permute.xlu0 %1788
        %1790 = vrot.lane.b32.xlu0 %v1698, 126
        %v1791 = vpop.permute.xlu0 %1790
        %1792 = vrot.lane.b32.xlu0 %v1699, 126
        %v1793 = vpop.permute.xlu0 %1792
        %1794 = vrot.lane.b32.xlu0 %v1700, 126
        %v1795 = vpop.permute.xlu0 %1794
        %1796 = vrot.lane.b32.xlu0 %v1701, 126
        %v1797 = vpop.permute.xlu0 %1796
        %1798 = vrot.lane.b32.xlu0 %v1702, 126
        %v1799 = vpop.permute.xlu0 %1798
        %1800 = vrot.lane.b32.xlu0 %v1703, 126
        %v1801 = vpop.permute.xlu0 %1800
        %1802 = vrot.lane.b32.xlu0 %v1704, 126
        %v1803 = vpop.permute.xlu0 %1802
        %1804 = vrot.lane.b32.xlu0 %v1705, 126
        %v1805 = vpop.permute.xlu0 %1804
        %1806 = vrot.lane.b32.xlu0 %v1706, 126
        %v1807 = vpop.permute.xlu0 %1806
        %1808 = vrot.lane.b32.xlu0 %v1707, 126
        %v1809 = vpop.permute.xlu0 %1808
        %1810 = vrot.lane.b32.xlu0 %v1708, 126
        %v1811 = vpop.permute.xlu0 %1810
        %1812 = vrot.lane.b32.xlu0 %v1709, 126
        %v1813 = vpop.permute.xlu0 %1812
        %v1814 = vsel %vm393, %v1783, %v1785
        %v1815 = vsel %vm393, %v1787, %v1789
        %v1816 = vsel %vm393, %v1791, %v1793
        %v1817 = vsel %vm393, %v1795, %v1797
        %v1818 = vsel %vm393, %v1799, %v1801
        %v1819 = vsel %vm393, %v1803, %v1805
        %v1820 = vsel %vm393, %v1807, %v1809
        %v1821 = vsel %vm393, %v1811, %v1813
        %1838 = vrot.lane.b32.xlu0 %v1694, 112
        %v1839 = vpop.permute.xlu0 %1838
        %1840 = vrot.lane.b32.xlu0 %v1695, 112
        %v1841 = vpop.permute.xlu0 %1840
        %1842 = vrot.lane.b32.xlu0 %v1696, 112
        %v1843 = vpop.permute.xlu0 %1842
        %1844 = vrot.lane.b32.xlu0 %v1697, 112
        %v1845 = vpop.permute.xlu0 %1844
        %1846 = vrot.lane.b32.xlu0 %v1698, 112
        %v1847 = vpop.permute.xlu0 %1846
        %1848 = vrot.lane.b32.xlu0 %v1699, 112
        %v1849 = vpop.permute.xlu0 %1848
        %1850 = vrot.lane.b32.xlu0 %v1700, 112
        %v1851 = vpop.permute.xlu0 %1850
        %1852 = vrot.lane.b32.xlu0 %v1701, 112
        %v1853 = vpop.permute.xlu0 %1852
        %1854 = vrot.lane.b32.xlu0 %v1702, 112
        %v1855 = vpop.permute.xlu0 %1854
        %1856 = vrot.lane.b32.xlu0 %v1703, 112
        %v1857 = vpop.permute.xlu0 %1856
        %1858 = vrot.lane.b32.xlu0 %v1704, 112
        %v1859 = vpop.permute.xlu0 %1858
        %1860 = vrot.lane.b32.xlu0 %v1705, 112
        %v1861 = vpop.permute.xlu0 %1860
        %1862 = vrot.lane.b32.xlu0 %v1706, 112
        %v1863 = vpop.permute.xlu0 %1862
        %1864 = vrot.lane.b32.xlu0 %v1707, 112
        %v1865 = vpop.permute.xlu0 %1864
        %1866 = vrot.lane.b32.xlu0 %v1708, 112
        %v1867 = vpop.permute.xlu0 %1866
        %1868 = vrot.lane.b32.xlu0 %v1709, 112
        %v1869 = vpop.permute.xlu0 %1868
        %v1870 = vsel %vm403, %v1839, %v1841
        %v1871 = vsel %vm403, %v1843, %v1845
        %v1872 = vsel %vm403, %v1847, %v1849
        %v1873 = vsel %vm403, %v1851, %v1853
        %v1874 = vsel %vm403, %v1855, %v1857
        %v1875 = vsel %vm403, %v1859, %v1861
        %v1876 = vsel %vm403, %v1863, %v1865
        %v1877 = vsel %vm403, %v1867, %v1869
        %1894 = vrot.lane.b32.xlu0 %v1694, 111
        %v1895 = vpop.permute.xlu0 %1894
        %1896 = vrot.lane.b32.xlu0 %v1695, 111
        %v1897 = vpop.permute.xlu0 %1896
        %1898 = vrot.lane.b32.xlu0 %v1696, 111
        %v1899 = vpop.permute.xlu0 %1898
        %1900 = vrot.lane.b32.xlu0 %v1697, 111
        %v1901 = vpop.permute.xlu0 %1900
        %1902 = vrot.lane.b32.xlu0 %v1698, 111
        %v1903 = vpop.permute.xlu0 %1902
        %1904 = vrot.lane.b32.xlu0 %v1699, 111
        %v1905 = vpop.permute.xlu0 %1904
        %1906 = vrot.lane.b32.xlu0 %v1700, 111
        %v1907 = vpop.permute.xlu0 %1906
        %1908 = vrot.lane.b32.xlu0 %v1701, 111
        %v1909 = vpop.permute.xlu0 %1908
        %1910 = vrot.lane.b32.xlu0 %v1702, 111
        %v1911 = vpop.permute.xlu0 %1910
        %1912 = vrot.lane.b32.xlu0 %v1703, 111
        %v1913 = vpop.permute.xlu0 %1912
        %1914 = vrot.lane.b32.xlu0 %v1704, 111
        %v1915 = vpop.permute.xlu0 %1914
        %1916 = vrot.lane.b32.xlu0 %v1705, 111
        %v1917 = vpop.permute.xlu0 %1916
        %1918 = vrot.lane.b32.xlu0 %v1706, 111
        %v1919 = vpop.permute.xlu0 %1918
        %1920 = vrot.lane.b32.xlu0 %v1707, 111
        %v1921 = vpop.permute.xlu0 %1920
        %1922 = vrot.lane.b32.xlu0 %v1708, 111
        %v1923 = vpop.permute.xlu0 %1922
        %1924 = vrot.lane.b32.xlu0 %v1709, 111
        %v1925 = vpop.permute.xlu0 %1924
        %v1926 = vsel %vm413, %v1895, %v1897
        %v1927 = vsel %vm413, %v1899, %v1901
        %v1928 = vsel %vm413, %v1903, %v1905
        %v1929 = vsel %vm413, %v1907, %v1909
        %v1930 = vsel %vm413, %v1911, %v1913
        %v1931 = vsel %vm413, %v1915, %v1917
        %v1932 = vsel %vm413, %v1919, %v1921
        %v1933 = vsel %vm413, %v1923, %v1925
        %1950 = vrot.lane.b32.xlu0 %v1694, 110
        %v1951 = vpop.permute.xlu0 %1950
        %1952 = vrot.lane.b32.xlu0 %v1695, 110
        %v1953 = vpop.permute.xlu0 %1952
        %1954 = vrot.lane.b32.xlu0 %v1696, 110
        %v1955 = vpop.permute.xlu0 %1954
        %1956 = vrot.lane.b32.xlu0 %v1697, 110
        %v1957 = vpop.permute.xlu0 %1956
        %1958 = vrot.lane.b32.xlu0 %v1698, 110
        %v1959 = vpop.permute.xlu0 %1958
        %1960 = vrot.lane.b32.xlu0 %v1699, 110
        %v1961 = vpop.permute.xlu0 %1960
        %1962 = vrot.lane.b32.xlu0 %v1700, 110
        %v1963 = vpop.permute.xlu0 %1962
        %1964 = vrot.lane.b32.xlu0 %v1701, 110
        %v1965 = vpop.permute.xlu0 %1964
        %1966 = vrot.lane.b32.xlu0 %v1702, 110
        %v1967 = vpop.permute.xlu0 %1966
        %1968 = vrot.lane.b32.xlu0 %v1703, 110
        %v1969 = vpop.permute.xlu0 %1968
        %1970 = vrot.lane.b32.xlu0 %v1704, 110
        %v1971 = vpop.permute.xlu0 %1970
        %1972 = vrot.lane.b32.xlu0 %v1705, 110
        %v1973 = vpop.permute.xlu0 %1972
        %1974 = vrot.lane.b32.xlu0 %v1706, 110
        %v1975 = vpop.permute.xlu0 %1974
        %1976 = vrot.lane.b32.xlu0 %v1707, 110
        %v1977 = vpop.permute.xlu0 %1976
        %1978 = vrot.lane.b32.xlu0 %v1708, 110
        %v1979 = vpop.permute.xlu0 %1978
        %1980 = vrot.lane.b32.xlu0 %v1709, 110
        %v1981 = vpop.permute.xlu0 %1980
        %v1982 = vsel %vm423, %v1951, %v1953
        %v1983 = vsel %vm423, %v1955, %v1957
        %v1984 = vsel %vm423, %v1959, %v1961
        %v1985 = vsel %vm423, %v1963, %v1965
        %v1986 = vsel %vm423, %v1967, %v1969
        %v1987 = vsel %vm423, %v1971, %v1973
        %v1988 = vsel %vm423, %v1975, %v1977
        %v1989 = vsel %vm423, %v1979, %v1981
        %2006 = vrot.lane.b32.xlu0 %v1694, 96
        %v2007 = vpop.permute.xlu0 %2006
        %2008 = vrot.lane.b32.xlu0 %v1695, 96
        %v2009 = vpop.permute.xlu0 %2008
        %2010 = vrot.lane.b32.xlu0 %v1696, 96
        %v2011 = vpop.permute.xlu0 %2010
        %2012 = vrot.lane.b32.xlu0 %v1697, 96
        %v2013 = vpop.permute.xlu0 %2012
        %2014 = vrot.lane.b32.xlu0 %v1698, 96
        %v2015 = vpop.permute.xlu0 %2014
        %2016 = vrot.lane.b32.xlu0 %v1699, 96
        %v2017 = vpop.permute.xlu0 %2016
        %2018 = vrot.lane.b32.xlu0 %v1700, 96
        %v2019 = vpop.permute.xlu0 %2018
        %2020 = vrot.lane.b32.xlu0 %v1701, 96
        %v2021 = vpop.permute.xlu0 %2020
        %2022 = vrot.lane.b32.xlu0 %v1702, 96
        %v2023 = vpop.permute.xlu0 %2022
        %2024 = vrot.lane.b32.xlu0 %v1703, 96
        %v2025 = vpop.permute.xlu0 %2024
        %2026 = vrot.lane.b32.xlu0 %v1704, 96
        %v2027 = vpop.permute.xlu0 %2026
        %2028 = vrot.lane.b32.xlu0 %v1705, 96
        %v2029 = vpop.permute.xlu0 %2028
        %2030 = vrot.lane.b32.xlu0 %v1706, 96
        %v2031 = vpop.permute.xlu0 %2030
        %2032 = vrot.lane.b32.xlu0 %v1707, 96
        %v2033 = vpop.permute.xlu0 %2032
        %2034 = vrot.lane.b32.xlu0 %v1708, 96
        %v2035 = vpop.permute.xlu0 %2034
        %2036 = vrot.lane.b32.xlu0 %v1709, 96
        %v2037 = vpop.permute.xlu0 %2036
        %v2038 = vsel %vm433, %v2007, %v2009
        %v2039 = vsel %vm433, %v2011, %v2013
        %v2040 = vsel %vm433, %v2015, %v2017
        %v2041 = vsel %vm433, %v2019, %v2021
        %v2042 = vsel %vm433, %v2023, %v2025
        %v2043 = vsel %vm433, %v2027, %v2029
        %v2044 = vsel %vm433, %v2031, %v2033
        %v2045 = vsel %vm433, %v2035, %v2037
        %2062 = vrot.lane.b32.xlu0 %v1694, 95
        %v2063 = vpop.permute.xlu0 %2062
        %2064 = vrot.lane.b32.xlu0 %v1695, 95
        %v2065 = vpop.permute.xlu0 %2064
        %2066 = vrot.lane.b32.xlu0 %v1696, 95
        %v2067 = vpop.permute.xlu0 %2066
        %2068 = vrot.lane.b32.xlu0 %v1697, 95
        %v2069 = vpop.permute.xlu0 %2068
        %2070 = vrot.lane.b32.xlu0 %v1698, 95
        %v2071 = vpop.permute.xlu0 %2070
        %2072 = vrot.lane.b32.xlu0 %v1699, 95
        %v2073 = vpop.permute.xlu0 %2072
        %2074 = vrot.lane.b32.xlu0 %v1700, 95
        %v2075 = vpop.permute.xlu0 %2074
        %2076 = vrot.lane.b32.xlu0 %v1701, 95
        %v2077 = vpop.permute.xlu0 %2076
        %2078 = vrot.lane.b32.xlu0 %v1702, 95
        %v2079 = vpop.permute.xlu0 %2078
        %2080 = vrot.lane.b32.xlu0 %v1703, 95
        %v2081 = vpop.permute.xlu0 %2080
        %2082 = vrot.lane.b32.xlu0 %v1704, 95
        %v2083 = vpop.permute.xlu0 %2082
        %2084 = vrot.lane.b32.xlu0 %v1705, 95
        %v2085 = vpop.permute.xlu0 %2084
        %2086 = vrot.lane.b32.xlu0 %v1706, 95
        %v2087 = vpop.permute.xlu0 %2086
        %2088 = vrot.lane.b32.xlu0 %v1707, 95
        %v2089 = vpop.permute.xlu0 %2088
        %2090 = vrot.lane.b32.xlu0 %v1708, 95
        %v2091 = vpop.permute.xlu0 %2090
        %2092 = vrot.lane.b32.xlu0 %v1709, 95
        %v2093 = vpop.permute.xlu0 %2092
        %v2094 = vsel %vm447, %v2063, %v2065
        %v2095 = vsel %vm447, %v2067, %v2069
        %v2096 = vsel %vm447, %v2071, %v2073
        %v2097 = vsel %vm447, %v2075, %v2077
        %v2098 = vsel %vm447, %v2079, %v2081
        %v2099 = vsel %vm447, %v2083, %v2085
        %v2100 = vsel %vm447, %v2087, %v2089
        %v2101 = vsel %vm447, %v2091, %v2093
        %2118 = vrot.lane.b32.xlu0 %v1694, 94
        %v2119 = vpop.permute.xlu0 %2118
        %2120 = vrot.lane.b32.xlu0 %v1695, 94
        %v2121 = vpop.permute.xlu0 %2120
        %2122 = vrot.lane.b32.xlu0 %v1696, 94
        %v2123 = vpop.permute.xlu0 %2122
        %2124 = vrot.lane.b32.xlu0 %v1697, 94
        %v2125 = vpop.permute.xlu0 %2124
        %2126 = vrot.lane.b32.xlu0 %v1698, 94
        %v2127 = vpop.permute.xlu0 %2126
        %2128 = vrot.lane.b32.xlu0 %v1699, 94
        %v2129 = vpop.permute.xlu0 %2128
        %2130 = vrot.lane.b32.xlu0 %v1700, 94
        %v2131 = vpop.permute.xlu0 %2130
        %2132 = vrot.lane.b32.xlu0 %v1701, 94
        %v2133 = vpop.permute.xlu0 %2132
        %2134 = vrot.lane.b32.xlu0 %v1702, 94
        %v2135 = vpop.permute.xlu0 %2134
        %2136 = vrot.lane.b32.xlu0 %v1703, 94
        %v2137 = vpop.permute.xlu0 %2136
        %2138 = vrot.lane.b32.xlu0 %v1704, 94
        %v2139 = vpop.permute.xlu0 %2138
        %2140 = vrot.lane.b32.xlu0 %v1705, 94
        %v2141 = vpop.permute.xlu0 %2140
        %2142 = vrot.lane.b32.xlu0 %v1706, 94
        %v2143 = vpop.permute.xlu0 %2142
        %2144 = vrot.lane.b32.xlu0 %v1707, 94
        %v2145 = vpop.permute.xlu0 %2144
        %2146 = vrot.lane.b32.xlu0 %v1708, 94
        %v2147 = vpop.permute.xlu0 %2146
        %2148 = vrot.lane.b32.xlu0 %v1709, 94
        %v2149 = vpop.permute.xlu0 %2148
        %v2150 = vsel %vm458, %v2119, %v2121
        %v2151 = vsel %vm458, %v2123, %v2125
        %v2152 = vsel %vm458, %v2127, %v2129
        %v2153 = vsel %vm458, %v2131, %v2133
        %v2154 = vsel %vm458, %v2135, %v2137
        %v2155 = vsel %vm458, %v2139, %v2141
        %v2156 = vsel %vm458, %v2143, %v2145
        %v2157 = vsel %vm458, %v2147, %v2149
        %v2174 = vld [vmem:[%s5] sm:$0xff]
        %v2175 = vld [vmem:[%s5 + $0x8] sm:$0xff]
        %v2176 = vld [vmem:[%s5 + $0x10] sm:$0xff]
        %v2177 = vld [vmem:[%s5 + $0x18] sm:$0xff]
        %v2178 = vld [vmem:[%s5 + $0x20] sm:$0xff]
        %v2179 = vld [vmem:[%s5 + $0x28] sm:$0xff]
        %v2180 = vld [vmem:[%s5 + $0x30] sm:$0xff]
        %v2181 = vld [vmem:[%s5 + $0x38] sm:$0xff]
        %v2182 = vld [vmem:[%s5 + $0x40] sm:$0xff]
        %v2183 = vld [vmem:[%s5 + $0x48] sm:$0xff]
        %v2184 = vld [vmem:[%s5 + $0x50] sm:$0xff]
        %v2185 = vld [vmem:[%s5 + $0x58] sm:$0xff]
        %v2186 = vld [vmem:[%s5 + $0x60] sm:$0xff]
        %v2187 = vld [vmem:[%s5 + $0x68] sm:$0xff]
        %v2188 = vld [vmem:[%s5 + $0x70] sm:$0xff]
        %v2189 = vld [vmem:[%s5 + $0x78] sm:$0xff]
        %v2190 = vld [vmem:[%s5 + $0x80] sm:$0xff]
        %v2191 = vld [vmem:[%s5 + $0x88] sm:$0xff]
        %v2192 = vld [vmem:[%s5 + $0x90] sm:$0xff]
        %v2193 = vld [vmem:[%s5 + $0x98] sm:$0xff]
        %v2194 = vld [vmem:[%s5 + $0xa0] sm:$0xff]
        %v2195 = vld [vmem:[%s5 + $0xa8] sm:$0xff]
        %v2196 = vld [vmem:[%s5 + $0xb0] sm:$0xff]
        %v2197 = vld [vmem:[%s5 + $0xb8] sm:$0xff]
        %v2198 = vld [vmem:[%s5 + $0xc0] sm:$0xff]
        %v2199 = vld [vmem:[%s5 + $0xc8] sm:$0xff]
        %v2200 = vld [vmem:[%s5 + $0xd0] sm:$0xff]
        %v2201 = vld [vmem:[%s5 + $0xd8] sm:$0xff]
        %v2202 = vld [vmem:[%s5 + $0xe0] sm:$0xff]
        %v2203 = vld [vmem:[%s5 + $0xe8] sm:$0xff]
        %v2204 = vld [vmem:[%s5 + $0xf0] sm:$0xff]
        %v2205 = vld [vmem:[%s5 + $0xf8] sm:$0xff]
        %v2206 = vld [vmem:[%s5 + $0x100] sm:$0xff]
        %v2207 = vld [vmem:[%s5 + $0x108] sm:$0xff]
        %v2208 = vld [vmem:[%s5 + $0x110] sm:$0xff]
        %v2209 = vld [vmem:[%s5 + $0x118] sm:$0xff]
        %v2210 = vld [vmem:[%s5 + $0x120] sm:$0xff]
        %v2211 = vld [vmem:[%s5 + $0x128] sm:$0xff]
        %v2212 = vld [vmem:[%s5 + $0x130] sm:$0xff]
        %v2213 = vld [vmem:[%s5 + $0x138] sm:$0xff]
        %v2214 = vld [vmem:[%s6] sm:$0xff]
        %v2215 = vld [vmem:[%s6 + $0x8] sm:$0xff]
        %v2216 = vld [vmem:[%s6 + $0x10] sm:$0xff]
        %v2217 = vld [vmem:[%s6 + $0x18] sm:$0xff]
        %v2218 = vld [vmem:[%s6 + $0x20] sm:$0xff]
        %v2219 = vld [vmem:[%s6 + $0x28] sm:$0xff]
        %v2220 = vld [vmem:[%s6 + $0x30] sm:$0xff]
        %v2221 = vld [vmem:[%s6 + $0x38] sm:$0xff]
        %2223 = vset.pattern.permute.xlu0 0
        %2224 = vperm.xlu0 %2223, %v2214
        %v2225 = vpop.permute.xlu0 %2224
        %2228 = vset.pattern.permute.xlu0 0
        %2229 = vperm.xlu0 %2228, %v2215
        %v2230 = vpop.permute.xlu0 %2229
        %2233 = vset.pattern.permute.xlu0 0
        %2234 = vperm.xlu0 %2233, %v2216
        %v2235 = vpop.permute.xlu0 %2234
        %2238 = vset.pattern.permute.xlu0 0
        %2239 = vperm.xlu0 %2238, %v2217
        %v2240 = vpop.permute.xlu0 %2239
        %2243 = vset.pattern.permute.xlu0 0
        %2244 = vperm.xlu0 %2243, %v2218
        %v2245 = vpop.permute.xlu0 %2244
        %2248 = vset.pattern.permute.xlu0 0
        %2249 = vperm.xlu0 %2248, %v2219
        %v2250 = vpop.permute.xlu0 %2249
        %2253 = vset.pattern.permute.xlu0 0
        %2254 = vperm.xlu0 %2253, %v2220
        %v2255 = vpop.permute.xlu0 %2254
        %2258 = vset.pattern.permute.xlu0 0
        %2259 = vperm.xlu0 %2258, %v2221
        %v2260 = vpop.permute.xlu0 %2259
        %v2263 = vsel %vm1289, %v2178, 0
        %v2266 = vsel %vm1289, %v2183, 0
        %v2269 = vsel %vm1289, %v2188, 0
        %v2272 = vsel %vm1289, %v2193, 0
        %v2275 = vsel %vm1289, %v2198, 0
        %v2278 = vsel %vm1289, %v2203, 0
        %v2281 = vsel %vm1289, %v2208, 0
        %v2284 = vsel %vm1289, %v2213, 0
        %2286 = vmatprep.subr.mxu0 %v1695
        %2287 = vmatpush1.msra.mxu0 %v1694
        %2288 = vmatprep.subr.mxu0 %v1697
        %2289 = vmatpush1.msra.mxu0 %v1696
        %2290 = vmatprep.subr.mxu0 %v1699
        %2291 = vmatpush1.msra.mxu0 %v1698
        %2292 = vmatprep.subr.mxu0 %v1701
        %2293 = vmatpush1.msra.mxu0 %v1700
        %2294 = vmatprep.subr.mxu0 %v1703
        %2295 = vmatpush1.msra.mxu0 %v1702
        %2296 = vmatprep.subr.mxu0 %v1705
        %2297 = vmatpush1.msra.mxu0 %v1704
        %2298 = vmatprep.subr.mxu0 %v1707
        %2299 = vmatpush1.msra.mxu0 %v1706
        %2300 = vmatprep.subr.mxu0 %v1709
        %2301 = vmatpush1.msra.mxu0 %v1708
        %2302 = vmatprep.subr.mxu0 %v1729
        %2303 = vmatpush1.msra.mxu0 %v1758
        %2304 = vmatprep.subr.mxu0 %v1733
        %2305 = vmatpush1.msra.mxu0 %v1759
        %2306 = vmatprep.subr.mxu0 %v1737
        %2307 = vmatpush1.msra.mxu0 %v1760
        %2308 = vmatprep.subr.mxu0 %v1741
        %2309 = vmatpush1.msra.mxu0 %v1761
        %2310 = vmatprep.subr.mxu0 %v1745
        %2311 = vmatpush1.msra.mxu0 %v1762
        %2312 = vmatprep.subr.mxu0 %v1749
        %2313 = vmatpush1.msra.mxu0 %v1763
        %2314 = vmatprep.subr.mxu0 %v1753
        %2315 = vmatpush1.msra.mxu0 %v1764
        %2316 = vmatprep.subr.mxu0 %v1757
        %2317 = vmatpush1.msra.mxu0 %v1765
        %2318 = vmatprep.subr.mxu0 %v1785
        %2319 = vmatpush1.msra.mxu0 %v1814
        %2320 = vmatprep.subr.mxu0 %v1789
        %2321 = vmatpush1.msra.mxu0 %v1815
        %2322 = vmatprep.subr.mxu0 %v1793
        %2323 = vmatpush1.msra.mxu0 %v1816
        %2324 = vmatprep.subr.mxu0 %v1797
        %2325 = vmatpush1.msra.mxu0 %v1817
        %2326 = vmatprep.subr.mxu0 %v1801
        %2327 = vmatpush1.msra.mxu0 %v1818
        %2328 = vmatprep.subr.mxu0 %v1805
        %2329 = vmatpush1.msra.mxu0 %v1819
        %2330 = vmatprep.subr.mxu0 %v1809
        %2331 = vmatpush1.msra.mxu0 %v1820
        %2332 = vmatprep.subr.mxu0 %v1813
        %2333 = vmatpush1.msra.mxu0 %v1821
        %2334 = vmatprep.subr.mxu0 %v1841
        %2335 = vmatpush1.msra.mxu0 %v1870
        %2336 = vmatprep.subr.mxu0 %v1845
        %2337 = vmatpush1.msra.mxu0 %v1871
        %2338 = vmatprep.subr.mxu0 %v1849
        %2339 = vmatpush1.msra.mxu0 %v1872
        %2340 = vmatprep.subr.mxu0 %v1853
        %2341 = vmatpush1.msra.mxu0 %v1873
        %2342 = vmatprep.subr.mxu0 %v1857
        %2343 = vmatpush1.msra.mxu0 %v1874
        %2344 = vmatprep.subr.mxu0 %v1861
        %2345 = vmatpush1.msra.mxu0 %v1875
        %2346 = vmatprep.subr.mxu0 %v1865
        %2347 = vmatpush1.msra.mxu0 %v1876
        %2348 = vmatprep.subr.mxu0 %v1869
        %2349 = vmatpush1.msra.mxu0 %v1877
        %2350 = vmatprep.mubr.f32.mxu0 %v2175
        %2351 = vmatmul.mubr.f32.gmra.mrb[0].mxu0 %v2174
        %v2352 = vpop.f32.mrb[0].mxu0
        %v2353 = vadd.f32 %v2225, %v2352
        %v2354 = vpop.f32.mrb[0].mxu0
        %v2355 = vadd.f32 %v2225, %v2354
        %2356 = vmatprep.mubr.f32.mxu0 %v2180
        %2357 = vmatmul.mubr.f32.gmra.mrb[0].mxu0 %v2179
        %v2358 = vpop.f32.mrb[0].mxu0
        %v2359 = vadd.f32 %v2230, %v2358
        %v2360 = vpop.f32.mrb[0].mxu0
        %v2361 = vadd.f32 %v2230, %v2360
        %2362 = vmatprep.mubr.f32.mxu0 %v2185
        %2363 = vmatmul.mubr.f32.gmra.mrb[0].mxu0 %v2184
        %v2364 = vpop.f32.mrb[0].mxu0
        %v2365 = vadd.f32 %v2235, %v2364
        %v2366 = vpop.f32.mrb[0].mxu0
        %v2367 = vadd.f32 %v2235, %v2366
        %2368 = vmatprep.mubr.f32.mxu0 %v2190
        %2369 = vmatmul.mubr.f32.gmra.mrb[0].mxu0 %v2189
        %v2370 = vpop.f32.mrb[0].mxu0
        %v2371 = vadd.f32 %v2240, %v2370
        %v2372 = vpop.f32.mrb[0].mxu0
        %v2373 = vadd.f32 %v2240, %v2372
        %2374 = vmatprep.mubr.f32.mxu0 %v2195
        %2375 = vmatmul.mubr.f32.gmra.mrb[0].mxu0 %v2194
        %v2376 = vpop.f32.mrb[0].mxu0
        %v2377 = vadd.f32 %v2245, %v2376
        %v2378 = vpop.f32.mrb[0].mxu0
        %v2379 = vadd.f32 %v2245, %v2378
        %2380 = vmatprep.mubr.f32.mxu0 %v2200
        %2381 = vmatmul.mubr.f32.gmra.mrb[0].mxu0 %v2199
        %v2382 = vpop.f32.mrb[0].mxu0
        %v2383 = vadd.f32 %v2250, %v2382
        %v2384 = vpop.f32.mrb[0].mxu0
        %v2385 = vadd.f32 %v2250, %v2384
        %2386 = vmatprep.mubr.f32.mxu0 %v2205
        %2387 = vmatmul.mubr.f32.gmra.mrb[0].mxu0 %v2204
        %v2388 = vpop.f32.mrb[0].mxu0
        %v2389 = vadd.f32 %v2255, %v2388
        %v2390 = vpop.f32.mrb[0].mxu0
        %v2391 = vadd.f32 %v2255, %v2390
        %2392 = vmatprep.mubr.f32.mxu0 %v2210
        %2393 = vmatmul.mubr.f32.gmra.mrb[0].mxu0 %v2209
        %v2394 = vpop.f32.mrb[0].mxu0
        %v2395 = vadd.f32 %v2260, %v2394
        %v2396 = vpop.f32.mrb[0].mxu0
        %v2397 = vadd.f32 %v2260, %v2396
        %2398 = vdwg.mxu0
        %2399 = vmatprep.subr.mxu0 %v1897
        %2400 = vmatpush1.msra.mxu0 %v1926
        %2401 = vmatprep.subr.mxu0 %v1901
        %2402 = vmatpush1.msra.mxu0 %v1927
        %2403 = vmatprep.subr.mxu0 %v1905
        %2404 = vmatpush1.msra.mxu0 %v1928
        %2405 = vmatprep.subr.mxu0 %v1909
        %2406 = vmatpush1.msra.mxu0 %v1929
        %2407 = vmatprep.subr.mxu0 %v1913
        %2408 = vmatpush1.msra.mxu0 %v1930
        %2409 = vmatprep.subr.mxu0 %v1917
        %2410 = vmatpush1.msra.mxu0 %v1931
        %2411 = vmatprep.subr.mxu0 %v1921
        %2412 = vmatpush1.msra.mxu0 %v1932
        %2413 = vmatprep.subr.mxu0 %v1925
        %2414 = vmatpush1.msra.mxu0 %v1933
        %2415 = vmatprep.subr.mxu0 %v1953
        %2416 = vmatpush1.msra.mxu0 %v1982
        %2417 = vmatprep.subr.mxu0 %v1957
        %2418 = vmatpush1.msra.mxu0 %v1983
        %2419 = vmatprep.subr.mxu0 %v1961
        %2420 = vmatpush1.msra.mxu0 %v1984
        %2421 = vmatprep.subr.mxu0 %v1965
        %2422 = vmatpush1.msra.mxu0 %v1985
        %2423 = vmatprep.subr.mxu0 %v1969
        %2424 = vmatpush1.msra.mxu0 %v1986
        %2425 = vmatprep.subr.mxu0 %v1973
        %2426 = vmatpush1.msra.mxu0 %v1987
        %2427 = vmatprep.subr.mxu0 %v1977
        %2428 = vmatpush1.msra.mxu0 %v1988
        %2429 = vmatprep.subr.mxu0 %v1981
        %2430 = vmatpush1.msra.mxu0 %v1989
        %2431 = vmatprep.subr.mxu0 %v2009
        %2432 = vmatpush1.msra.mxu0 %v2038
        %2433 = vmatprep.subr.mxu0 %v2013
        %2434 = vmatpush1.msra.mxu0 %v2039
        %2435 = vmatprep.subr.mxu0 %v2017
        %2436 = vmatpush1.msra.mxu0 %v2040
        %2437 = vmatprep.subr.mxu0 %v2021
        %2438 = vmatpush1.msra.mxu0 %v2041
        %2439 = vmatprep.subr.mxu0 %v2025
        %2440 = vmatpush1.msra.mxu0 %v2042
        %2441 = vmatprep.subr.mxu0 %v2029
        %2442 = vmatpush1.msra.mxu0 %v2043
        %2443 = vmatprep.subr.mxu0 %v2033
        %2444 = vmatpush1.msra.mxu0 %v2044
        %2445 = vmatprep.subr.mxu0 %v2037
        %2446 = vmatpush1.msra.mxu0 %v2045
        %2447 = vmatprep.subr.mxu0 %v2065
        %2448 = vmatpush1.msra.mxu0 %v2094
        %2449 = vmatprep.subr.mxu0 %v2069
        %2450 = vmatpush1.msra.mxu0 %v2095
        %2451 = vmatprep.subr.mxu0 %v2073
        %2452 = vmatpush1.msra.mxu0 %v2096
        %2453 = vmatprep.subr.mxu0 %v2077
        %2454 = vmatpush1.msra.mxu0 %v2097
        %2455 = vmatprep.subr.mxu0 %v2081
        %2456 = vmatpush1.msra.mxu0 %v2098
        %2457 = vmatprep.subr.mxu0 %v2085
        %2458 = vmatpush1.msra.mxu0 %v2099
        %2459 = vmatprep.subr.mxu0 %v2089
        %2460 = vmatpush1.msra.mxu0 %v2100
        %2461 = vmatprep.subr.mxu0 %v2093
        %2462 = vmatpush1.msra.mxu0 %v2101
        %2463 = vmatprep.mubr.f32.mxu0 %v2177
        %2464 = vmatmul.mubr.f32.gmra.mrb[0].mxu0 %v2176
        %v2465 = vpop.f32.mrb[0].mxu0
        %v2466 = vadd.f32 %v2353, %v2465
        %v2467 = vpop.f32.mrb[0].mxu0
        %v2468 = vadd.f32 %v2355, %v2467
        %2469 = vmatprep.mubr.f32.mxu0 %v2182
        %2470 = vmatmul.mubr.f32.gmra.mrb[0].mxu0 %v2181
        %v2471 = vpop.f32.mrb[0].mxu0
        %v2472 = vadd.f32 %v2359, %v2471
        %v2473 = vpop.f32.mrb[0].mxu0
        %v2474 = vadd.f32 %v2361, %v2473
        %2475 = vmatprep.mubr.f32.mxu0 %v2187
        %2476 = vmatmul.mubr.f32.gmra.mrb[0].mxu0 %v2186
        %v2477 = vpop.f32.mrb[0].mxu0
        %v2478 = vadd.f32 %v2365, %v2477
        %v2479 = vpop.f32.mrb[0].mxu0
        %v2480 = vadd.f32 %v2367, %v2479
        %2481 = vmatprep.mubr.f32.mxu0 %v2192
        %2482 = vmatmul.mubr.f32.gmra.mrb[0].mxu0 %v2191
        %v2483 = vpop.f32.mrb[0].mxu0
        %v2484 = vadd.f32 %v2371, %v2483
        %v2485 = vpop.f32.mrb[0].mxu0
        %v2486 = vadd.f32 %v2373, %v2485
        %2487 = vmatprep.mubr.f32.mxu0 %v2197
        %2488 = vmatmul.mubr.f32.gmra.mrb[0].mxu0 %v2196
        %v2489 = vpop.f32.mrb[0].mxu0
        %v2490 = vadd.f32 %v2377, %v2489
        %v2491 = vpop.f32.mrb[0].mxu0
        %v2492 = vadd.f32 %v2379, %v2491
        %2493 = vmatprep.mubr.f32.mxu0 %v2202
        %2494 = vmatmul.mubr.f32.gmra.mrb[0].mxu0 %v2201
        %v2495 = vpop.f32.mrb[0].mxu0
        %v2496 = vadd.f32 %v2383, %v2495
        %v2497 = vpop.f32.mrb[0].mxu0
        %v2498 = vadd.f32 %v2385, %v2497
        %2499 = vmatprep.mubr.f32.mxu0 %v2207
        %2500 = vmatmul.mubr.f32.gmra.mrb[0].mxu0 %v2206
        %v2501 = vpop.f32.mrb[0].mxu0
        %v2502 = vadd.f32 %v2389, %v2501
        %v2503 = vpop.f32.mrb[0].mxu0
        %v2504 = vadd.f32 %v2391, %v2503
        %2505 = vmatprep.mubr.f32.mxu0 %v2212
        %2506 = vmatmul.mubr.f32.gmra.mrb[0].mxu0 %v2211
        %v2507 = vpop.f32.mrb[0].mxu0
        %v2508 = vadd.f32 %v2395, %v2507
        %v2509 = vpop.f32.mrb[0].mxu0
        %v2510 = vadd.f32 %v2397, %v2509
        %2511 = vdwg.mxu0
        %2512 = vmatprep.subr.mxu0 %v2121
        %2513 = vmatpush1.msra.mxu0 %v2150
        %2514 = vmatprep.subr.mxu0 %v2125
        %2515 = vmatpush1.msra.mxu0 %v2151
        %2516 = vmatprep.subr.mxu0 %v2129
        %2517 = vmatpush1.msra.mxu0 %v2152
        %2518 = vmatprep.subr.mxu0 %v2133
        %2519 = vmatpush1.msra.mxu0 %v2153
        %2520 = vmatprep.subr.mxu0 %v2137
        %2521 = vmatpush1.msra.mxu0 %v2154
        %2522 = vmatprep.subr.mxu0 %v2141
        %2523 = vmatpush1.msra.mxu0 %v2155
        %2524 = vmatprep.subr.mxu0 %v2145
        %2525 = vmatpush1.msra.mxu0 %v2156
        %2526 = vmatprep.subr.mxu0 %v2149
        %2527 = vmatpush1.msra.mxu0 %v2157
        %2528 = vmatprep.subr.mxu0 0.0
        %2529 = vmatpush1.msra.mxu0 0.0
        %2530 = vmatprep.subr.mxu0 0.0
        %2531 = vmatpush1.msra.mxu0 0.0
        %2532 = vmatprep.subr.mxu0 0.0
        %2533 = vmatpush1.msra.mxu0 0.0
        %2534 = vmatprep.subr.mxu0 0.0
        %2535 = vmatpush1.msra.mxu0 0.0
        %2536 = vmatprep.subr.mxu0 0.0
        %2537 = vmatpush1.msra.mxu0 0.0
        %2538 = vmatprep.subr.mxu0 0.0
        %2539 = vmatpush1.msra.mxu0 0.0
        %2540 = vmatprep.subr.mxu0 0.0
        %2541 = vmatpush1.msra.mxu0 0.0
        %2542 = vmatprep.subr.mxu0 0.0
        %2543 = vmatpush1.msra.mxu0 0.0
        %2544 = vmatprep.subr.mxu0 0.0
        %2545 = vmatpush1.msra.mxu0 0.0
        %2546 = vmatprep.subr.mxu0 0.0
        %2547 = vmatpush1.msra.mxu0 0.0
        %2548 = vmatprep.subr.mxu0 0.0
        %2549 = vmatpush1.msra.mxu0 0.0
        %2550 = vmatprep.subr.mxu0 0.0
        %2551 = vmatpush1.msra.mxu0 0.0
        %2552 = vmatprep.subr.mxu0 0.0
        %2553 = vmatpush1.msra.mxu0 0.0
        %2554 = vmatprep.subr.mxu0 0.0
        %2555 = vmatpush1.msra.mxu0 0.0
        %2556 = vmatprep.subr.mxu0 0.0
        %2557 = vmatpush1.msra.mxu0 0.0
        %2558 = vmatprep.subr.mxu0 0.0
        %2559 = vmatpush1.msra.mxu0 0.0
        %2560 = vmatprep.subr.mxu0 0.0
        %2561 = vmatpush1.msra.mxu0 0.0
        %2562 = vmatprep.subr.mxu0 0.0
        %2563 = vmatpush1.msra.mxu0 0.0
        %2564 = vmatprep.subr.mxu0 0.0
        %2565 = vmatpush1.msra.mxu0 0.0
        %2566 = vmatprep.subr.mxu0 0.0
        %2567 = vmatpush1.msra.mxu0 0.0
        %2568 = vmatprep.subr.mxu0 0.0
        %2569 = vmatpush1.msra.mxu0 0.0
        %2570 = vmatprep.subr.mxu0 0.0
        %2571 = vmatpush1.msra.mxu0 0.0
        %2572 = vmatprep.subr.mxu0 0.0
        %2573 = vmatpush1.msra.mxu0 0.0
        %2574 = vmatprep.subr.mxu0 0.0
        %2575 = vmatpush1.msra.mxu0 0.0
        %2576 = vmatprep.mubr.f32.mxu0 0.0
        %2577 = vmatmul.mubr.f32.gmra.mrb[0].mxu0 %v2263
        %v2578 = vpop.f32.mrb[0].mxu0
        %v2579 = vadd.f32 %v2466, %v2578
        %v2580 = vpop.f32.mrb[0].mxu0
        %v2581 = vadd.f32 %v2468, %v2580
        %2582 = vmatprep.mubr.f32.mxu0 0.0
        %2583 = vmatmul.mubr.f32.gmra.mrb[0].mxu0 %v2266
        %v2584 = vpop.f32.mrb[0].mxu0
        %v2585 = vadd.f32 %v2472, %v2584
        %v2586 = vpop.f32.mrb[0].mxu0
        %v2587 = vadd.f32 %v2474, %v2586
        %2588 = vmatprep.mubr.f32.mxu0 0.0
        %2589 = vmatmul.mubr.f32.gmra.mrb[0].mxu0 %v2269
        %v2590 = vpop.f32.mrb[0].mxu0
        %v2591 = vadd.f32 %v2478, %v2590
        %v2592 = vpop.f32.mrb[0].mxu0
        %v2593 = vadd.f32 %v2480, %v2592
        %2594 = vmatprep.mubr.f32.mxu0 0.0
        %2595 = vmatmul.mubr.f32.gmra.mrb[0].mxu0 %v2272
        %v2596 = vpop.f32.mrb[0].mxu0
        %v2597 = vadd.f32 %v2484, %v2596
        %v2598 = vpop.f32.mrb[0].mxu0
        %v2599 = vadd.f32 %v2486, %v2598
        %2600 = vmatprep.mubr.f32.mxu0 0.0
        %2601 = vmatmul.mubr.f32.gmra.mrb[0].mxu0 %v2275
        %v2602 = vpop.f32.mrb[0].mxu0
        %v2603 = vadd.f32 %v2490, %v2602
        %v2604 = vpop.f32.mrb[0].mxu0
        %v2605 = vadd.f32 %v2492, %v2604
        %2606 = vmatprep.mubr.f32.mxu0 0.0
        %2607 = vmatmul.mubr.f32.gmra.mrb[0].mxu0 %v2278
        %v2608 = vpop.f32.mrb[0].mxu0
        %v2609 = vadd.f32 %v2496, %v2608
        %v2610 = vpop.f32.mrb[0].mxu0
        %v2611 = vadd.f32 %v2498, %v2610
        %2612 = vmatprep.mubr.f32.mxu0 0.0
        %2613 = vmatmul.mubr.f32.gmra.mrb[0].mxu0 %v2281
        %v2614 = vpop.f32.mrb[0].mxu0
        %v2615 = vadd.f32 %v2502, %v2614
        %v2616 = vpop.f32.mrb[0].mxu0
        %v2617 = vadd.f32 %v2504, %v2616
        %2618 = vmatprep.mubr.f32.mxu0 0.0
        %2619 = vmatmul.mubr.f32.gmra.mrb[0].mxu0 %v2284
        %v2620 = vpop.f32.mrb[0].mxu0
        %v2621 = vadd.f32 %v2508, %v2620
        %v2622 = vpop.f32.mrb[0].mxu0
        %v2623 = vadd.f32 %v2510, %v2622
        %2624 = vdwg.mxu0
        %v2625 = vmax.f32 %v2579, 0.0
        %v2626 = vmax.f32 %v2581, 0.0
        %v2627 = vmax.f32 %v2585, 0.0
        %v2628 = vmax.f32 %v2587, 0.0
        %v2629 = vmax.f32 %v2591, 0.0
        %v2630 = vmax.f32 %v2593, 0.0
        %v2631 = vmax.f32 %v2597, 0.0
        %v2632 = vmax.f32 %v2599, 0.0
        %v2633 = vmax.f32 %v2603, 0.0
        %v2634 = vmax.f32 %v2605, 0.0
        %v2635 = vmax.f32 %v2609, 0.0
        %v2636 = vmax.f32 %v2611, 0.0
        %v2637 = vmax.f32 %v2615, 0.0
        %v2638 = vmax.f32 %v2617, 0.0
        %v2639 = vmax.f32 %v2621, 0.0
        %v2640 = vmax.f32 %v2623, 0.0
        %2649 = vrot.lane.b32.xlu0 %v2625, 122
        %v2650 = vpop.permute.xlu0 %2649
        %2651 = vrot.lane.b32.xlu0 %v2627, 122
        %v2652 = vpop.permute.xlu0 %2651
        %2653 = vrot.lane.b32.xlu0 %v2629, 122
        %v2654 = vpop.permute.xlu0 %2653
        %2655 = vrot.lane.b32.xlu0 %v2631, 122
        %v2656 = vpop.permute.xlu0 %2655
        %2657 = vrot.lane.b32.xlu0 %v2633, 122
        %v2658 = vpop.permute.xlu0 %2657
        %2659 = vrot.lane.b32.xlu0 %v2635, 122
        %v2660 = vpop.permute.xlu0 %2659
        %2661 = vrot.lane.b32.xlu0 %v2637, 122
        %v2662 = vpop.permute.xlu0 %2661
        %2663 = vrot.lane.b32.xlu0 %v2639, 122
        %v2664 = vpop.permute.xlu0 %2663
        %2673 = vrot.lane.b32.xlu0 %v2625, 116
        %v2674 = vpop.permute.xlu0 %2673
        %2675 = vrot.lane.b32.xlu0 %v2627, 116
        %v2676 = vpop.permute.xlu0 %2675
        %2677 = vrot.lane.b32.xlu0 %v2629, 116
        %v2678 = vpop.permute.xlu0 %2677
        %2679 = vrot.lane.b32.xlu0 %v2631, 116
        %v2680 = vpop.permute.xlu0 %2679
        %2681 = vrot.lane.b32.xlu0 %v2633, 116
        %v2682 = vpop.permute.xlu0 %2681
        %2683 = vrot.lane.b32.xlu0 %v2635, 116
        %v2684 = vpop.permute.xlu0 %2683
        %2685 = vrot.lane.b32.xlu0 %v2637, 116
        %v2686 = vpop.permute.xlu0 %2685
        %2687 = vrot.lane.b32.xlu0 %v2639, 116
        %v2688 = vpop.permute.xlu0 %2687
        %2697 = vrot.lane.b32.xlu0 %v2625, 110
        %v2698 = vpop.permute.xlu0 %2697
        %2699 = vrot.lane.b32.xlu0 %v2627, 110
        %v2700 = vpop.permute.xlu0 %2699
        %2701 = vrot.lane.b32.xlu0 %v2629, 110
        %v2702 = vpop.permute.xlu0 %2701
        %2703 = vrot.lane.b32.xlu0 %v2631, 110
        %v2704 = vpop.permute.xlu0 %2703
        %2705 = vrot.lane.b32.xlu0 %v2633, 110
        %v2706 = vpop.permute.xlu0 %2705
        %2707 = vrot.lane.b32.xlu0 %v2635, 110
        %v2708 = vpop.permute.xlu0 %2707
        %2709 = vrot.lane.b32.xlu0 %v2637, 110
        %v2710 = vpop.permute.xlu0 %2709
        %2711 = vrot.lane.b32.xlu0 %v2639, 110
        %v2712 = vpop.permute.xlu0 %2711
        %2721 = vrot.lane.b32.xlu0 %v2625, 104
        %v2722 = vpop.permute.xlu0 %2721
        %2723 = vrot.lane.b32.xlu0 %v2627, 104
        %v2724 = vpop.permute.xlu0 %2723
        %2725 = vrot.lane.b32.xlu0 %v2629, 104
        %v2726 = vpop.permute.xlu0 %2725
        %2727 = vrot.lane.b32.xlu0 %v2631, 104
        %v2728 = vpop.permute.xlu0 %2727
        %2729 = vrot.lane.b32.xlu0 %v2633, 104
        %v2730 = vpop.permute.xlu0 %2729
        %2731 = vrot.lane.b32.xlu0 %v2635, 104
        %v2732 = vpop.permute.xlu0 %2731
        %2733 = vrot.lane.b32.xlu0 %v2637, 104
        %v2734 = vpop.permute.xlu0 %2733
        %2735 = vrot.lane.b32.xlu0 %v2639, 104
        %v2736 = vpop.permute.xlu0 %2735
        %2745 = vrot.lane.b32.xlu0 %v2625, 98
        %v2746 = vpop.permute.xlu0 %2745
        %2747 = vrot.lane.b32.xlu0 %v2627, 98
        %v2748 = vpop.permute.xlu0 %2747
        %2749 = vrot.lane.b32.xlu0 %v2629, 98
        %v2750 = vpop.permute.xlu0 %2749
        %2751 = vrot.lane.b32.xlu0 %v2631, 98
        %v2752 = vpop.permute.xlu0 %2751
        %2753 = vrot.lane.b32.xlu0 %v2633, 98
        %v2754 = vpop.permute.xlu0 %2753
        %2755 = vrot.lane.b32.xlu0 %v2635, 98
        %v2756 = vpop.permute.xlu0 %2755
        %2757 = vrot.lane.b32.xlu0 %v2637, 98
        %v2758 = vpop.permute.xlu0 %2757
        %2759 = vrot.lane.b32.xlu0 %v2639, 98
        %v2760 = vpop.permute.xlu0 %2759
        %2769 = vrot.lane.b32.xlu0 %v2625, 92
        %v2770 = vpop.permute.xlu0 %2769
        %2771 = vrot.lane.b32.xlu0 %v2627, 92
        %v2772 = vpop.permute.xlu0 %2771
        %2773 = vrot.lane.b32.xlu0 %v2629, 92
        %v2774 = vpop.permute.xlu0 %2773
        %2775 = vrot.lane.b32.xlu0 %v2631, 92
        %v2776 = vpop.permute.xlu0 %2775
        %2777 = vrot.lane.b32.xlu0 %v2633, 92
        %v2778 = vpop.permute.xlu0 %2777
        %2779 = vrot.lane.b32.xlu0 %v2635, 92
        %v2780 = vpop.permute.xlu0 %2779
        %2781 = vrot.lane.b32.xlu0 %v2637, 92
        %v2782 = vpop.permute.xlu0 %2781
        %2783 = vrot.lane.b32.xlu0 %v2639, 92
        %v2784 = vpop.permute.xlu0 %2783
        %2793 = vrot.lane.b32.xlu0 %v2625, 86
        %v2794 = vpop.permute.xlu0 %2793
        %2795 = vrot.lane.b32.xlu0 %v2627, 86
        %v2796 = vpop.permute.xlu0 %2795
        %2797 = vrot.lane.b32.xlu0 %v2629, 86
        %v2798 = vpop.permute.xlu0 %2797
        %2799 = vrot.lane.b32.xlu0 %v2631, 86
        %v2800 = vpop.permute.xlu0 %2799
        %2801 = vrot.lane.b32.xlu0 %v2633, 86
        %v2802 = vpop.permute.xlu0 %2801
        %2803 = vrot.lane.b32.xlu0 %v2635, 86
        %v2804 = vpop.permute.xlu0 %2803
        %2805 = vrot.lane.b32.xlu0 %v2637, 86
        %v2806 = vpop.permute.xlu0 %2805
        %2807 = vrot.lane.b32.xlu0 %v2639, 86
        %v2808 = vpop.permute.xlu0 %2807
        %2825 = vrot.lane.b32.xlu0 %v2626, 80
        %v2826 = vpop.permute.xlu0 %2825
        %2827 = vrot.lane.b32.xlu0 %v2628, 80
        %v2828 = vpop.permute.xlu0 %2827
        %2829 = vrot.lane.b32.xlu0 %v2630, 80
        %v2830 = vpop.permute.xlu0 %2829
        %2831 = vrot.lane.b32.xlu0 %v2632, 80
        %v2832 = vpop.permute.xlu0 %2831
        %2833 = vrot.lane.b32.xlu0 %v2634, 80
        %v2834 = vpop.permute.xlu0 %2833
        %2835 = vrot.lane.b32.xlu0 %v2636, 80
        %v2836 = vpop.permute.xlu0 %2835
        %2837 = vrot.lane.b32.xlu0 %v2638, 80
        %v2838 = vpop.permute.xlu0 %2837
        %2839 = vrot.lane.b32.xlu0 %v2640, 80
        %v2840 = vpop.permute.xlu0 %2839
        %2849 = vrot.lane.b32.xlu0 %v2626, 74
        %v2850 = vpop.permute.xlu0 %2849
        %2851 = vrot.lane.b32.xlu0 %v2628, 74
        %v2852 = vpop.permute.xlu0 %2851
        %2853 = vrot.lane.b32.xlu0 %v2630, 74
        %v2854 = vpop.permute.xlu0 %2853
        %2855 = vrot.lane.b32.xlu0 %v2632, 74
        %v2856 = vpop.permute.xlu0 %2855
        %2857 = vrot.lane.b32.xlu0 %v2634, 74
        %v2858 = vpop.permute.xlu0 %2857
        %2859 = vrot.lane.b32.xlu0 %v2636, 74
        %v2860 = vpop.permute.xlu0 %2859
        %2861 = vrot.lane.b32.xlu0 %v2638, 74
        %v2862 = vpop.permute.xlu0 %2861
        %2863 = vrot.lane.b32.xlu0 %v2640, 74
        %v2864 = vpop.permute.xlu0 %2863
        %vm2873 = vcmask 80896
        %v2874 = vsel %vm2873, %v2625, %v2650
        %v2875 = vsel %vm2873, %v2627, %v2652
        %v2876 = vsel %vm2873, %v2629, %v2654
        %v2877 = vsel %vm2873, %v2631, %v2656
        %v2878 = vsel %vm2873, %v2633, %v2658
        %v2879 = vsel %vm2873, %v2635, %v2660
        %v2880 = vsel %vm2873, %v2637, %v2662
        %v2881 = vsel %vm2873, %v2639, %v2664
        %vm2882 = vcmask 162816
        %v2883 = vsel %vm2882, %v2874, %v2674
        %v2884 = vsel %vm2882, %v2875, %v2676
        %v2885 = vsel %vm2882, %v2876, %v2678
        %v2886 = vsel %vm2882, %v2877, %v2680
        %v2887 = vsel %vm2882, %v2878, %v2682
        %v2888 = vsel %vm2882, %v2879, %v2684
        %v2889 = vsel %vm2882, %v2880, %v2686
        %v2890 = vsel %vm2882, %v2881, %v2688
        %vm2891 = vcmask 244736
        %v2892 = vsel %vm2891, %v2883, %v2698
        %v2893 = vsel %vm2891, %v2884, %v2700
        %v2894 = vsel %vm2891, %v2885, %v2702
        %v2895 = vsel %vm2891, %v2886, %v2704
        %v2896 = vsel %vm2891, %v2887, %v2706
        %v2897 = vsel %vm2891, %v2888, %v2708
        %v2898 = vsel %vm2891, %v2889, %v2710
        %v2899 = vsel %vm2891, %v2890, %v2712
        %vm2900 = vcmask 326656
        %v2901 = vsel %vm2900, %v2892, %v2722
        %v2902 = vsel %vm2900, %v2893, %v2724
        %v2903 = vsel %vm2900, %v2894, %v2726
        %v2904 = vsel %vm2900, %v2895, %v2728
        %v2905 = vsel %vm2900, %v2896, %v2730
        %v2906 = vsel %vm2900, %v2897, %v2732
        %v2907 = vsel %vm2900, %v2898, %v2734
        %v2908 = vsel %vm2900, %v2899, %v2736
        %vm2909 = vcmask 408576
        %v2910 = vsel %vm2909, %v2901, %v2746
        %v2911 = vsel %vm2909, %v2902, %v2748
        %v2912 = vsel %vm2909, %v2903, %v2750
        %v2913 = vsel %vm2909, %v2904, %v2752
        %v2914 = vsel %vm2909, %v2905, %v2754
        %v2915 = vsel %vm2909, %v2906, %v2756
        %v2916 = vsel %vm2909, %v2907, %v2758
        %v2917 = vsel %vm2909, %v2908, %v2760
        %vm2918 = vcmask 490496
        %v2919 = vsel %vm2918, %v2910, %v2770
        %v2920 = vsel %vm2918, %v2911, %v2772
        %v2921 = vsel %vm2918, %v2912, %v2774
        %v2922 = vsel %vm2918, %v2913, %v2776
        %v2923 = vsel %vm2918, %v2914, %v2778
        %v2924 = vsel %vm2918, %v2915, %v2780
        %v2925 = vsel %vm2918, %v2916, %v2782
        %v2926 = vsel %vm2918, %v2917, %v2784
        %vm2927 = vcmask 572416
        %v2928 = vsel %vm2927, %v2919, %v2794
        %v2929 = vsel %vm2927, %v2920, %v2796
        %v2930 = vsel %vm2927, %v2921, %v2798
        %v2931 = vsel %vm2927, %v2922, %v2800
        %v2932 = vsel %vm2927, %v2923, %v2802
        %v2933 = vsel %vm2927, %v2924, %v2804
        %v2934 = vsel %vm2927, %v2925, %v2806
        %v2935 = vsel %vm2927, %v2926, %v2808
        %vm2936 = vcmask 654336
        %v2937 = vsel %vm2936, %v2928, %v2826
        %v2938 = vsel %vm2936, %v2929, %v2828
        %v2939 = vsel %vm2936, %v2930, %v2830
        %v2940 = vsel %vm2936, %v2931, %v2832
        %v2941 = vsel %vm2936, %v2932, %v2834
        %v2942 = vsel %vm2936, %v2933, %v2836
        %v2943 = vsel %vm2936, %v2934, %v2838
        %v2944 = vsel %vm2936, %v2935, %v2840
        %vm2945 = vcmask 736256
        %v2946 = vsel %vm2945, %v2937, %v2850
        %v2947 = vsel %vm2945, %v2938, %v2852
        %v2948 = vsel %vm2945, %v2939, %v2854
        %v2949 = vsel %vm2945, %v2940, %v2856
        %v2950 = vsel %vm2945, %v2941, %v2858
        %v2951 = vsel %vm2945, %v2942, %v2860
        %v2952 = vsel %vm2945, %v2943, %v2862
        %v2953 = vsel %vm2945, %v2944, %v2864
        %v2954 = vlaneseq
        %vm2955 = vcmp.ge.s32.totalorder %v2954, 0
        %vm2956 = vcmp.lt.s32.totalorder %v2954, 100
        %vm2957 = vmand %vm2955, %vm2956
        %2958 = vst.msk [vmem:[%s364] sm:$0x1] %vm2957, %v2946
        %v2961 = vunpack.c.l.s4 1966171168
        %v2962 = vunpack.c.0.s8 %v2961
        %v2963 = vlaneseq
        %v2964 = vshrl.u32 %v2963, 7
        %v2965 = vsub.s32 %v2962, %v2964
        %v2966 = vrot.slane %v2946, %v2965
        %v2967 = vcombine.high %v2966, %v2966
        %v2969 = vunpack.c.l.s4 1966171168
        %v2970 = vunpack.c.0.s8 %v2969
        %v2971 = vlaneseq
        %v2972 = vshrl.u32 %v2971, 7
        %v2973 = vsub.s32 %v2970, %v2972
        %v2974 = vrot.slane %v2966, %v2973
        %v2976 = vunpack.c.l.s4 1966171168
        %v2977 = vunpack.c.0.s8 %v2976
        %v2978 = vlaneseq
        %v2979 = vshrl.u32 %v2978, 7
        %v2980 = vsub.s32 %v2977, %v2979
        %v2981 = vrot.slane %v2967, %v2980
        %2982 = vrot.lane.b32.xlu0 %v2981, 100
        %v2983 = vpop.permute.xlu0 %2982
        %v2984 = vrot.slane %v2983, 7
        %vm2985 = vcmask 818176
        %v2986 = vsel %vm2985, %v2984, %v2983
        %vm2988 = vcmp.ge.s32.totalorder %v2954, 100
        %vm2989 = vcmp.lt.s32.totalorder %v2954, 200
        %vm2990 = vmand %vm2988, %vm2989
        %2991 = vst.msk [vmem:[%s364] sm:$0x3] %vm2990, %v2986
        %v2992 = vcombine.high %v2974, %v2974
        %2993 = vrot.lane.b32.xlu0 %v2992, 72
        %v2994 = vpop.permute.xlu0 %2993
        %v2995 = vrot.slane %v2994, 7
        %vm2996 = vcmask 588800
        %v2997 = vsel %vm2996, %v2995, %v2994
        %vm2999 = vcmp.ge.s32.totalorder %v2954, 72
        %vm3000 = vcmp.lt.s32.totalorder %v2954, 172
        %vm3001 = vmand %vm2999, %vm3000
        %3002 = vst.msk [vmem:[%s364 + $0x1] sm:$0x3] %vm3001, %v2997
        %v3003 = vcombine.high %v2981, %v2981
        %3004 = vrot.lane.b32.xlu0 %v3003, 44
        %v3005 = vpop.permute.xlu0 %3004
        %v3006 = vrot.slane %v3005, 7
        %vm3007 = vcmask 359424
        %v3008 = vsel %vm3007, %v3006, %v3005
        %vm3010 = vcmp.ge.s32.totalorder %v2954, 44
        %vm3011 = vcmp.lt.s32.totalorder %v2954, 144
        %vm3012 = vmand %vm3010, %vm3011
        %3013 = vst.msk [vmem:[%s364 + $0x2] sm:$0x3] %vm3012, %v3008
        %v3014 = vcombine.high %v2946, %v2946
        %v3016 = vunpack.c.l.s4 1966171168
        %v3017 = vunpack.c.0.s8 %v3016
        %v3018 = vlaneseq
        %v3019 = vshrl.u32 %v3018, 7
        %v3020 = vsub.s32 %v3017, %v3019
        %v3021 = vrot.slane %v3014, %v3020
        %v3023 = vunpack.c.l.s4 1966171168
        %v3024 = vunpack.c.0.s8 %v3023
        %v3025 = vlaneseq
        %v3026 = vshrl.u32 %v3025, 7
        %v3027 = vsub.s32 %v3024, %v3026
        %v3028 = vrot.slane %v3021, %v3027
        %3029 = vrot.lane.b32.xlu0 %v3028, 16
        %v3030 = vpop.permute.xlu0 %3029
        %vm3032 = vcmp.ge.s32.totalorder %v2954, 16
        %vm3033 = vcmp.lt.s32.totalorder %v2954, 116
        %vm3034 = vmand %vm3032, %vm3033
        %3035 = vst.msk [vmem:[%s364 + $0x3] sm:$0x1] %vm3034, %v3030
        %v3036 = vcombine.high %v3021, %v3021
        %v3038 = vunpack.c.l.s4 1966171168
        %v3039 = vunpack.c.0.s8 %v3038
        %v3040 = vlaneseq
        %v3041 = vshrl.u32 %v3040, 7
        %v3042 = vsub.s32 %v3039, %v3041
        %v3043 = vrot.slane %v3036, %v3042
        %3044 = vrot.lane.b32.xlu0 %v3043, 116
        %v3045 = vpop.permute.xlu0 %3044
        %v3046 = vrot.slane %v3045, 7
        %vm3047 = vcmask 949248
        %v3048 = vsel %vm3047, %v3046, %v3045
        %vm3050 = vcmp.ge.s32.totalorder %v2954, 116
        %vm3051 = vcmp.lt.s32.totalorder %v2954, 216
        %vm3052 = vmand %vm3050, %vm3051
        %3053 = vst.msk [vmem:[%s364 + $0x3] sm:$0x3] %vm3052, %v3048
        %v3054 = vcombine.high %v3028, %v3028
        %3055 = vrot.lane.b32.xlu0 %v3054, 88
        %v3056 = vpop.permute.xlu0 %3055
        %v3057 = vrot.slane %v3056, 7
        %vm3058 = vcmask 719872
        %v3059 = vsel %vm3058, %v3057, %v3056
        %vm3061 = vcmp.ge.s32.totalorder %v2954, 88
        %vm3062 = vcmp.lt.s32.totalorder %v2954, 188
        %vm3063 = vmand %vm3061, %vm3062
        %3064 = vst.msk [vmem:[%s364 + $0x4] sm:$0x3] %vm3063, %v3059
        %v3065 = vcombine.high %v3043, %v3043
        %3066 = vrot.lane.b32.xlu0 %v3065, 60
        %v3067 = vpop.permute.xlu0 %3066
        %v3068 = vrot.slane %v3067, 7
        %v3069 = vsel %vm2918, %v3068, %v3067
        %vm3071 = vcmp.ge.s32.totalorder %v2954, 60
        %vm3072 = vcmp.lt.s32.totalorder %v2954, 160
        %vm3073 = vmand %vm3071, %vm3072
        %3074 = vst.msk [vmem:[%s364 + $0x5] sm:$0x3] %vm3073, %v3069
        %v3077 = vunpack.c.l.s4 1966171168
        %v3078 = vunpack.c.0.s8 %v3077
        %v3079 = vlaneseq
        %v3080 = vshrl.u32 %v3079, 7
        %v3081 = vsub.s32 %v3078, %v3080
        %v3082 = vrot.slane %v2947, %v3081
        %v3084 = vunpack.c.l.s4 1966171168
        %v3085 = vunpack.c.0.s8 %v3084
        %v3086 = vlaneseq
        %v3087 = vshrl.u32 %v3086, 7
        %v3088 = vsub.s32 %v3085, %v3087
        %v3089 = vrot.slane %v3082, %v3088
        %3090 = vrot.lane.b32.xlu0 %v3089, 32
        %v3091 = vpop.permute.xlu0 %3090
        %v3092 = vrot.slane %v3091, 7
        %vm3093 = vcmask 261120
        %v3094 = vsel %vm3093, %v3092, %v3091
        %vm3096 = vcmp.ge.s32.totalorder %v2954, 32
        %vm3097 = vcmp.lt.s32.totalorder %v2954, 132
        %vm3098 = vmand %vm3096, %vm3097
        %3099 = vst.msk [vmem:[%s364 + $0x6] sm:$0x3] %vm3098, %v3094
        %v3100 = vcombine.high %v3082, %v3082
        %v3102 = vunpack.c.l.s4 1966171168
        %v3103 = vunpack.c.0.s8 %v3102
        %v3104 = vlaneseq
        %v3105 = vshrl.u32 %v3104, 7
        %v3106 = vsub.s32 %v3103, %v3105
        %v3107 = vrot.slane %v3100, %v3106
        %3108 = vrot.lane.b32.xlu0 %v3107, 4
        %v3109 = vpop.permute.xlu0 %3108
        %vm3111 = vcmp.ge.s32.totalorder %v2954, 4
        %vm3112 = vcmp.lt.s32.totalorder %v2954, 104
        %vm3113 = vmand %vm3111, %vm3112
        %3114 = vst.msk [vmem:[%s364 + $0x7] sm:$0x1] %vm3113, %v3109
        %v3115 = vcombine.high %v3089, %v3089
        %3116 = vrot.lane.b32.xlu0 %v3115, 104
        %v3117 = vpop.permute.xlu0 %3116
        %v3118 = vrot.slane %v3117, 7
        %vm3119 = vcmask 850944
        %v3120 = vsel %vm3119, %v3118, %v3117
        %vm3122 = vcmp.ge.s32.totalorder %v2954, 104
        %vm3123 = vcmp.lt.s32.totalorder %v2954, 204
        %vm3124 = vmand %vm3122, %vm3123
        %3125 = vst.msk [vmem:[%s364 + $0x7] sm:$0x3] %vm3124, %v3120
        %v3126 = vcombine.high %v3107, %v3107
        %3127 = vrot.lane.b32.xlu0 %v3126, 76
        %v3128 = vpop.permute.xlu0 %3127
        %v3129 = vrot.slane %v3128, 7
        %vm3130 = vcmask 621568
        %v3131 = vsel %vm3130, %v3129, %v3128
        %vm3133 = vcmp.ge.s32.totalorder %v2954, 76
        %vm3134 = vcmp.lt.s32.totalorder %v2954, 176
        %vm3135 = vmand %vm3133, %vm3134
        %3136 = vst.msk [vmem:[%s364 + $0x8] sm:$0x3] %vm3135, %v3131
        %v3137 = vcombine.high %v2947, %v2947
        %v3139 = vunpack.c.l.s4 1966171168
        %v3140 = vunpack.c.0.s8 %v3139
        %v3141 = vlaneseq
        %v3142 = vshrl.u32 %v3141, 7
        %v3143 = vsub.s32 %v3140, %v3142
        %v3144 = vrot.slane %v3137, %v3143
        %v3146 = vunpack.c.l.s4 1966171168
        %v3147 = vunpack.c.0.s8 %v3146
        %v3148 = vlaneseq
        %v3149 = vshrl.u32 %v3148, 7
        %v3150 = vsub.s32 %v3147, %v3149
        %v3151 = vrot.slane %v3144, %v3150
        %3152 = vrot.lane.b32.xlu0 %v3151, 48
        %v3153 = vpop.permute.xlu0 %3152
        %v3154 = vrot.slane %v3153, 7
        %vm3155 = vcmask 392192
        %v3156 = vsel %vm3155, %v3154, %v3153
        %vm3158 = vcmp.ge.s32.totalorder %v2954, 48
        %vm3159 = vcmp.lt.s32.totalorder %v2954, 148
        %vm3160 = vmand %vm3158, %vm3159
        %3161 = vst.msk [vmem:[%s364 + $0x9] sm:$0x3] %vm3160, %v3156
        %v3162 = vcombine.high %v3144, %v3144
        %v3164 = vunpack.c.l.s4 1966171168
        %v3165 = vunpack.c.0.s8 %v3164
        %v3166 = vlaneseq
        %v3167 = vshrl.u32 %v3166, 7
        %v3168 = vsub.s32 %v3165, %v3167
        %v3169 = vrot.slane %v3162, %v3168
        %3170 = vrot.lane.b32.xlu0 %v3169, 20
        %v3171 = vpop.permute.xlu0 %3170
        %vm3173 = vcmp.ge.s32.totalorder %v2954, 20
        %vm3174 = vcmp.lt.s32.totalorder %v2954, 120
        %vm3175 = vmand %vm3173, %vm3174
        %3176 = vst.msk [vmem:[%s364 + $0xa] sm:$0x1] %vm3175, %v3171
        %v3177 = vcombine.high %v3151, %v3151
        %3178 = vrot.lane.b32.xlu0 %v3177, 120
        %v3179 = vpop.permute.xlu0 %3178
        %v3180 = vrot.slane %v3179, 7
        %vm3181 = vcmask 982016
        %v3182 = vsel %vm3181, %v3180, %v3179
        %vm3184 = vcmp.ge.s32.totalorder %v2954, 120
        %vm3185 = vcmp.lt.s32.totalorder %v2954, 220
        %vm3186 = vmand %vm3184, %vm3185
        %3187 = vst.msk [vmem:[%s364 + $0xa] sm:$0x3] %vm3186, %v3182
        %v3188 = vcombine.high %v3169, %v3169
        %3189 = vrot.lane.b32.xlu0 %v3188, 92
        %v3190 = vpop.permute.xlu0 %3189
        %v3191 = vrot.slane %v3190, 7
        %vm3192 = vcmask 752640
        %v3193 = vsel %vm3192, %v3191, %v3190
        %vm3195 = vcmp.ge.s32.totalorder %v2954, 92
        %vm3196 = vcmp.lt.s32.totalorder %v2954, 192
        %vm3197 = vmand %vm3195, %vm3196
        %3198 = vst.msk [vmem:[%s364 + $0xb] sm:$0x3] %vm3197, %v3193
        %v3201 = vunpack.c.l.s4 1966171168
        %v3202 = vunpack.c.0.s8 %v3201
        %v3203 = vlaneseq
        %v3204 = vshrl.u32 %v3203, 7
        %v3205 = vsub.s32 %v3202, %v3204
        %v3206 = vrot.slane %v2948, %v3205
        %v3208 = vunpack.c.l.s4 1966171168
        %v3209 = vunpack.c.0.s8 %v3208
        %v3210 = vlaneseq
        %v3211 = vshrl.u32 %v3210, 7
        %v3212 = vsub.s32 %v3209, %v3211
        %v3213 = vrot.slane %v3206, %v3212
        %3214 = vrot.lane.b32.xlu0 %v3213, 64
        %v3215 = vpop.permute.xlu0 %3214
        %v3216 = vrot.slane %v3215, 7
        %v3217 = vsel %vm1289, %v3216, %v3215
        %vm3219 = vcmp.ge.s32.totalorder %v2954, 64
        %vm3220 = vcmp.lt.s32.totalorder %v2954, 164
        %vm3221 = vmand %vm3219, %vm3220
        %3222 = vst.msk [vmem:[%s364 + $0xc] sm:$0x3] %vm3221, %v3217
        %v3223 = vcombine.high %v3206, %v3206
        %v3225 = vunpack.c.l.s4 1966171168
        %v3226 = vunpack.c.0.s8 %v3225
        %v3227 = vlaneseq
        %v3228 = vshrl.u32 %v3227, 7
        %v3229 = vsub.s32 %v3226, %v3228
        %v3230 = vrot.slane %v3223, %v3229
        %3231 = vrot.lane.b32.xlu0 %v3230, 36
        %v3232 = vpop.permute.xlu0 %3231
        %v3233 = vrot.slane %v3232, 7
        %vm3234 = vcmask 293888
        %v3235 = vsel %vm3234, %v3233, %v3232
        %vm3237 = vcmp.ge.s32.totalorder %v2954, 36
        %vm3238 = vcmp.lt.s32.totalorder %v2954, 136
        %vm3239 = vmand %vm3237, %vm3238
        %3240 = vst.msk [vmem:[%s364 + $0xd] sm:$0x3] %vm3239, %v3235
        %v3241 = vcombine.high %v3213, %v3213
        %3242 = vrot.lane.b32.xlu0 %v3241, 8
        %v3243 = vpop.permute.xlu0 %3242
        %vm3245 = vcmp.ge.s32.totalorder %v2954, 8
        %vm3246 = vcmp.lt.s32.totalorder %v2954, 108
        %vm3247 = vmand %vm3245, %vm3246
        %3248 = vst.msk [vmem:[%s364 + $0xe] sm:$0x1] %vm3247, %v3243
        %v3249 = vcombine.high %v3230, %v3230
        %3250 = vrot.lane.b32.xlu0 %v3249, 108
        %v3251 = vpop.permute.xlu0 %3250
        %v3252 = vrot.slane %v3251, 7
        %vm3253 = vcmask 883712
        %v3254 = vsel %vm3253, %v3252, %v3251
        %vm3256 = vcmp.ge.s32.totalorder %v2954, 108
        %vm3257 = vcmp.lt.s32.totalorder %v2954, 208
        %vm3258 = vmand %vm3256, %vm3257
        %3259 = vst.msk [vmem:[%s364 + $0xe] sm:$0x3] %vm3258, %v3254
        %v3260 = vcombine.high %v2948, %v2948
        %v3262 = vunpack.c.l.s4 1966171168
        %v3263 = vunpack.c.0.s8 %v3262
        %v3264 = vlaneseq
        %v3265 = vshrl.u32 %v3264, 7
        %v3266 = vsub.s32 %v3263, %v3265
        %v3267 = vrot.slane %v3260, %v3266
        %v3269 = vunpack.c.l.s4 1966171168
        %v3270 = vunpack.c.0.s8 %v3269
        %v3271 = vlaneseq
        %v3272 = vshrl.u32 %v3271, 7
        %v3273 = vsub.s32 %v3270, %v3272
        %v3274 = vrot.slane %v3267, %v3273
        %3275 = vrot.lane.b32.xlu0 %v3274, 80
        %v3276 = vpop.permute.xlu0 %3275
        %v3277 = vrot.slane %v3276, 7
        %v3278 = vsel %vm2936, %v3277, %v3276
        %vm3280 = vcmp.ge.s32.totalorder %v2954, 80
        %vm3281 = vcmp.lt.s32.totalorder %v2954, 180
        %vm3282 = vmand %vm3280, %vm3281
        %3283 = vst.msk [vmem:[%s364 + $0xf] sm:$0x3] %vm3282, %v3278
        %v3284 = vcombine.high %v3267, %v3267
        %v3286 = vunpack.c.l.s4 1966171168
        %v3287 = vunpack.c.0.s8 %v3286
        %v3288 = vlaneseq
        %v3289 = vshrl.u32 %v3288, 7
        %v3290 = vsub.s32 %v3287, %v3289
        %v3291 = vrot.slane %v3284, %v3290
        %3292 = vrot.lane.b32.xlu0 %v3291, 52
        %v3293 = vpop.permute.xlu0 %3292
        %v3294 = vrot.slane %v3293, 7
        %vm3295 = vcmask 424960
        %v3296 = vsel %vm3295, %v3294, %v3293
        %vm3298 = vcmp.ge.s32.totalorder %v2954, 52
        %vm3299 = vcmp.lt.s32.totalorder %v2954, 152
        %vm3300 = vmand %vm3298, %vm3299
        %3301 = vst.msk [vmem:[%s364 + $0x10] sm:$0x3] %vm3300, %v3296
        %v3302 = vcombine.high %v3274, %v3274
        %3303 = vrot.lane.b32.xlu0 %v3302, 24
        %v3304 = vpop.permute.xlu0 %3303
        %vm3306 = vcmp.ge.s32.totalorder %v2954, 24
        %vm3307 = vcmp.lt.s32.totalorder %v2954, 124
        %vm3308 = vmand %vm3306, %vm3307
        %3309 = vst.msk [vmem:[%s364 + $0x11] sm:$0x1] %vm3308, %v3304
        %v3310 = vcombine.high %v3291, %v3291
        %3311 = vrot.lane.b32.xlu0 %v3310, 124
        %v3312 = vpop.permute.xlu0 %3311
        %v3313 = vrot.slane %v3312, 7
        %vm3314 = vcmask 1014784
        %v3315 = vsel %vm3314, %v3313, %v3312
        %vm3317 = vcmp.ge.s32.totalorder %v2954, 124
        %vm3318 = vcmp.lt.s32.totalorder %v2954, 224
        %vm3319 = vmand %vm3317, %vm3318
        %3320 = vst.msk [vmem:[%s364 + $0x11] sm:$0x3] %vm3319, %v3315
        %v3323 = vunpack.c.l.s4 1966171168
        %v3324 = vunpack.c.0.s8 %v3323
        %v3325 = vlaneseq
        %v3326 = vshrl.u32 %v3325, 7
        %v3327 = vsub.s32 %v3324, %v3326
        %v3328 = vrot.slane %v2949, %v3327
        %v3330 = vunpack.c.l.s4 1966171168
        %v3331 = vunpack.c.0.s8 %v3330
        %v3332 = vlaneseq
        %v3333 = vshrl.u32 %v3332, 7
        %v3334 = vsub.s32 %v3331, %v3333
        %v3335 = vrot.slane %v3328, %v3334
        %3336 = vrot.lane.b32.xlu0 %v3335, 96
        %v3337 = vpop.permute.xlu0 %3336
        %v3338 = vrot.slane %v3337, 7
        %v3339 = vsel %vm433, %v3338, %v3337
        %vm3341 = vcmp.ge.s32.totalorder %v2954, 96
        %vm3342 = vcmp.lt.s32.totalorder %v2954, 196
        %vm3343 = vmand %vm3341, %vm3342
        %3344 = vst.msk [vmem:[%s364 + $0x12] sm:$0x3] %vm3343, %v3339
        %v3345 = vcombine.high %v3328, %v3328
        %v3347 = vunpack.c.l.s4 1966171168
        %v3348 = vunpack.c.0.s8 %v3347
        %v3349 = vlaneseq
        %v3350 = vshrl.u32 %v3349, 7
        %v3351 = vsub.s32 %v3348, %v3350
        %v3352 = vrot.slane %v3345, %v3351
        %3353 = vrot.lane.b32.xlu0 %v3352, 68
        %v3354 = vpop.permute.xlu0 %3353
        %v3355 = vrot.slane %v3354, 7
        %vm3356 = vcmask 556032
        %v3357 = vsel %vm3356, %v3355, %v3354
        %vm3359 = vcmp.ge.s32.totalorder %v2954, 68
        %vm3360 = vcmp.lt.s32.totalorder %v2954, 168
        %vm3361 = vmand %vm3359, %vm3360
        %3362 = vst.msk [vmem:[%s364 + $0x13] sm:$0x3] %vm3361, %v3357
        %v3363 = vcombine.high %v3335, %v3335
        %3364 = vrot.lane.b32.xlu0 %v3363, 40
        %v3365 = vpop.permute.xlu0 %3364
        %v3366 = vrot.slane %v3365, 7
        %v3367 = vsel %vm2900, %v3366, %v3365
        %vm3369 = vcmp.ge.s32.totalorder %v2954, 40
        %vm3370 = vcmp.lt.s32.totalorder %v2954, 140
        %vm3371 = vmand %vm3369, %vm3370
        %3372 = vst.msk [vmem:[%s364 + $0x14] sm:$0x3] %vm3371, %v3367
        %v3373 = vcombine.high %v3352, %v3352
        %3374 = vrot.lane.b32.xlu0 %v3373, 12
        %v3375 = vpop.permute.xlu0 %3374
        %vm3377 = vcmp.ge.s32.totalorder %v2954, 12
        %vm3378 = vcmp.lt.s32.totalorder %v2954, 112
        %vm3379 = vmand %vm3377, %vm3378
        %3380 = vst.msk [vmem:[%s364 + $0x15] sm:$0x1] %vm3379, %v3375
        %v3381 = vcombine.high %v2949, %v2949
        %v3383 = vunpack.c.l.s4 1966171168
        %v3384 = vunpack.c.0.s8 %v3383
        %v3385 = vlaneseq
        %v3386 = vshrl.u32 %v3385, 7
        %v3387 = vsub.s32 %v3384, %v3386
        %v3388 = vrot.slane %v3381, %v3387
        %v3390 = vunpack.c.l.s4 1966171168
        %v3391 = vunpack.c.0.s8 %v3390
        %v3392 = vlaneseq
        %v3393 = vshrl.u32 %v3392, 7
        %v3394 = vsub.s32 %v3391, %v3393
        %v3395 = vrot.slane %v3388, %v3394
        %3396 = vrot.lane.b32.xlu0 %v3395, 112
        %v3397 = vpop.permute.xlu0 %3396
        %v3398 = vrot.slane %v3397, 7
        %v3399 = vsel %vm403, %v3398, %v3397
        %vm3401 = vcmp.ge.s32.totalorder %v2954, 112
        %vm3402 = vcmp.lt.s32.totalorder %v2954, 212
        %vm3403 = vmand %vm3401, %vm3402
        %3404 = vst.msk [vmem:[%s364 + $0x15] sm:$0x3] %vm3403, %v3399
        %v3405 = vcombine.high %v3388, %v3388
        %v3407 = vunpack.c.l.s4 1966171168
        %v3408 = vunpack.c.0.s8 %v3407
        %v3409 = vlaneseq
        %v3410 = vshrl.u32 %v3409, 7
        %v3411 = vsub.s32 %v3408, %v3410
        %v3412 = vrot.slane %v3405, %v3411
        %3413 = vrot.lane.b32.xlu0 %v3412, 84
        %v3414 = vpop.permute.xlu0 %3413
        %v3415 = vrot.slane %v3414, 7
        %vm3416 = vcmask 687104
        %v3417 = vsel %vm3416, %v3415, %v3414
        %vm3419 = vcmp.ge.s32.totalorder %v2954, 84
        %vm3420 = vcmp.lt.s32.totalorder %v2954, 184
        %vm3421 = vmand %vm3419, %vm3420
        %3422 = vst.msk [vmem:[%s364 + $0x16] sm:$0x3] %vm3421, %v3417
        %v3423 = vcombine.high %v3395, %v3395
        %3424 = vrot.lane.b32.xlu0 %v3423, 56
        %v3425 = vpop.permute.xlu0 %3424
        %v3426 = vrot.slane %v3425, 7
        %vm3427 = vcmask 457728
        %v3428 = vsel %vm3427, %v3426, %v3425
        %vm3430 = vcmp.ge.s32.totalorder %v2954, 56
        %vm3431 = vcmp.lt.s32.totalorder %v2954, 156
        %vm3432 = vmand %vm3430, %vm3431
        %3433 = vst.msk [vmem:[%s364 + $0x17] sm:$0x3] %vm3432, %v3428
        %v3434 = vcombine.high %v3412, %v3412
        %3435 = vrot.lane.b32.xlu0 %v3434, 28
        %v3436 = vpop.permute.xlu0 %3435
        %vm3438 = vcmp.ge.s32.totalorder %v2954, 28
        %vm3439 = vcmp.lt.s32.totalorder %v2954, 128
        %vm3440 = vmand %vm3438, %vm3439
        %3441 = vst.msk [vmem:[%s364 + $0x18] sm:$0x1] %vm3440, %v3436
        %3442 = vst.msk [vmem:[%s364 + $0x19] sm:$0x1] %vm2957, %v2950
        %v3445 = vunpack.c.l.s4 1966171168
        %v3446 = vunpack.c.0.s8 %v3445
        %v3447 = vlaneseq
        %v3448 = vshrl.u32 %v3447, 7
        %v3449 = vsub.s32 %v3446, %v3448
        %v3450 = vrot.slane %v2950, %v3449
        %v3451 = vcombine.high %v3450, %v3450
        %v3453 = vunpack.c.l.s4 1966171168
        %v3454 = vunpack.c.0.s8 %v3453
        %v3455 = vlaneseq
        %v3456 = vshrl.u32 %v3455, 7
        %v3457 = vsub.s32 %v3454, %v3456
        %v3458 = vrot.slane %v3450, %v3457
        %v3460 = vunpack.c.l.s4 1966171168
        %v3461 = vunpack.c.0.s8 %v3460
        %v3462 = vlaneseq
        %v3463 = vshrl.u32 %v3462, 7
        %v3464 = vsub.s32 %v3461, %v3463
        %v3465 = vrot.slane %v3451, %v3464
        %3466 = vrot.lane.b32.xlu0 %v3465, 100
        %v3467 = vpop.permute.xlu0 %3466
        %v3468 = vrot.slane %v3467, 7
        %v3469 = vsel %vm2985, %v3468, %v3467
        %3471 = vst.msk [vmem:[%s364 + $0x19] sm:$0x3] %vm2990, %v3469
        %v3472 = vcombine.high %v3458, %v3458
        %3473 = vrot.lane.b32.xlu0 %v3472, 72
        %v3474 = vpop.permute.xlu0 %3473
        %v3475 = vrot.slane %v3474, 7
        %v3476 = vsel %vm2996, %v3475, %v3474
        %3478 = vst.msk [vmem:[%s364 + $0x1a] sm:$0x3] %vm3001, %v3476
        %v3479 = vcombine.high %v3465, %v3465
        %3480 = vrot.lane.b32.xlu0 %v3479, 44
        %v3481 = vpop.permute.xlu0 %3480
        %v3482 = vrot.slane %v3481, 7
        %v3483 = vsel %vm3007, %v3482, %v3481
        %3485 = vst.msk [vmem:[%s364 + $0x1b] sm:$0x3] %vm3012, %v3483
        %v3486 = vcombine.high %v2950, %v2950
        %v3488 = vunpack.c.l.s4 1966171168
        %v3489 = vunpack.c.0.s8 %v3488
        %v3490 = vlaneseq
        %v3491 = vshrl.u32 %v3490, 7
        %v3492 = vsub.s32 %v3489, %v3491
        %v3493 = vrot.slane %v3486, %v3492
        %v3495 = vunpack.c.l.s4 1966171168
        %v3496 = vunpack.c.0.s8 %v3495
        %v3497 = vlaneseq
        %v3498 = vshrl.u32 %v3497, 7
        %v3499 = vsub.s32 %v3496, %v3498
        %v3500 = vrot.slane %v3493, %v3499
        %3501 = vrot.lane.b32.xlu0 %v3500, 16
        %v3502 = vpop.permute.xlu0 %3501
        %3504 = vst.msk [vmem:[%s364 + $0x1c] sm:$0x1] %vm3034, %v3502
        %v3505 = vcombine.high %v3493, %v3493
        %v3507 = vunpack.c.l.s4 1966171168
        %v3508 = vunpack.c.0.s8 %v3507
        %v3509 = vlaneseq
        %v3510 = vshrl.u32 %v3509, 7
        %v3511 = vsub.s32 %v3508, %v3510
        %v3512 = vrot.slane %v3505, %v3511
        %3513 = vrot.lane.b32.xlu0 %v3512, 116
        %v3514 = vpop.permute.xlu0 %3513
        %v3515 = vrot.slane %v3514, 7
        %v3516 = vsel %vm3047, %v3515, %v3514
        %3518 = vst.msk [vmem:[%s364 + $0x1c] sm:$0x3] %vm3052, %v3516
        %v3519 = vcombine.high %v3500, %v3500
        %3520 = vrot.lane.b32.xlu0 %v3519, 88
        %v3521 = vpop.permute.xlu0 %3520
        %v3522 = vrot.slane %v3521, 7
        %v3523 = vsel %vm3058, %v3522, %v3521
        %3525 = vst.msk [vmem:[%s364 + $0x1d] sm:$0x3] %vm3063, %v3523
        %v3526 = vcombine.high %v3512, %v3512
        %3527 = vrot.lane.b32.xlu0 %v3526, 60
        %v3528 = vpop.permute.xlu0 %3527
        %v3529 = vrot.slane %v3528, 7
        %v3530 = vsel %vm2918, %v3529, %v3528
        %3532 = vst.msk [vmem:[%s364 + $0x1e] sm:$0x3] %vm3073, %v3530
        %v3535 = vunpack.c.l.s4 1966171168
        %v3536 = vunpack.c.0.s8 %v3535
        %v3537 = vlaneseq
        %v3538 = vshrl.u32 %v3537, 7
        %v3539 = vsub.s32 %v3536, %v3538
        %v3540 = vrot.slane %v2951, %v3539
        %v3542 = vunpack.c.l.s4 1966171168
        %v3543 = vunpack.c.0.s8 %v3542
        %v3544 = vlaneseq
        %v3545 = vshrl.u32 %v3544, 7
        %v3546 = vsub.s32 %v3543, %v3545
        %v3547 = vrot.slane %v3540, %v3546
        %3548 = vrot.lane.b32.xlu0 %v3547, 32
        %v3549 = vpop.permute.xlu0 %3548
        %v3550 = vrot.slane %v3549, 7
        %v3551 = vsel %vm3093, %v3550, %v3549
        %3553 = vst.msk [vmem:[%s364 + $0x1f] sm:$0x3] %vm3098, %v3551
        %v3554 = vcombine.high %v3540, %v3540
        %v3556 = vunpack.c.l.s4 1966171168
        %v3557 = vunpack.c.0.s8 %v3556
        %v3558 = vlaneseq
        %v3559 = vshrl.u32 %v3558, 7
        %v3560 = vsub.s32 %v3557, %v3559
        %v3561 = vrot.slane %v3554, %v3560
        %3562 = vrot.lane.b32.xlu0 %v3561, 4
        %v3563 = vpop.permute.xlu0 %3562
        %3565 = vst.msk [vmem:[%s364 + $0x20] sm:$0x1] %vm3113, %v3563
        %v3566 = vcombine.high %v3547, %v3547
        %3567 = vrot.lane.b32.xlu0 %v3566, 104
        %v3568 = vpop.permute.xlu0 %3567
        %v3569 = vrot.slane %v3568, 7
        %v3570 = vsel %vm3119, %v3569, %v3568
        %3572 = vst.msk [vmem:[%s364 + $0x20] sm:$0x3] %vm3124, %v3570
        %v3573 = vcombine.high %v3561, %v3561
        %3574 = vrot.lane.b32.xlu0 %v3573, 76
        %v3575 = vpop.permute.xlu0 %3574
        %v3576 = vrot.slane %v3575, 7
        %v3577 = vsel %vm3130, %v3576, %v3575
        %3579 = vst.msk [vmem:[%s364 + $0x21] sm:$0x3] %vm3135, %v3577
        %v3580 = vcombine.high %v2951, %v2951
        %v3582 = vunpack.c.l.s4 1966171168
        %v3583 = vunpack.c.0.s8 %v3582
        %v3584 = vlaneseq
        %v3585 = vshrl.u32 %v3584, 7
        %v3586 = vsub.s32 %v3583, %v3585
        %v3587 = vrot.slane %v3580, %v3586
        %v3589 = vunpack.c.l.s4 1966171168
        %v3590 = vunpack.c.0.s8 %v3589
        %v3591 = vlaneseq
        %v3592 = vshrl.u32 %v3591, 7
        %v3593 = vsub.s32 %v3590, %v3592
        %v3594 = vrot.slane %v3587, %v3593
        %3595 = vrot.lane.b32.xlu0 %v3594, 48
        %v3596 = vpop.permute.xlu0 %3595
        %v3597 = vrot.slane %v3596, 7
        %v3598 = vsel %vm3155, %v3597, %v3596
        %3600 = vst.msk [vmem:[%s364 + $0x22] sm:$0x3] %vm3160, %v3598
        %v3601 = vcombine.high %v3587, %v3587
        %v3603 = vunpack.c.l.s4 1966171168
        %v3604 = vunpack.c.0.s8 %v3603
        %v3605 = vlaneseq
        %v3606 = vshrl.u32 %v3605, 7
        %v3607 = vsub.s32 %v3604, %v3606
        %v3608 = vrot.slane %v3601, %v3607
        %3609 = vrot.lane.b32.xlu0 %v3608, 20
        %v3610 = vpop.permute.xlu0 %3609
        %3612 = vst.msk [vmem:[%s364 + $0x23] sm:$0x1] %vm3175, %v3610
        %v3613 = vcombine.high %v3594, %v3594
        %3614 = vrot.lane.b32.xlu0 %v3613, 120
        %v3615 = vpop.permute.xlu0 %3614
        %v3616 = vrot.slane %v3615, 7
        %v3617 = vsel %vm3181, %v3616, %v3615
        %3619 = vst.msk [vmem:[%s364 + $0x23] sm:$0x3] %vm3186, %v3617
        %v3620 = vcombine.high %v3608, %v3608
        %3621 = vrot.lane.b32.xlu0 %v3620, 92
        %v3622 = vpop.permute.xlu0 %3621
        %v3623 = vrot.slane %v3622, 7
        %v3624 = vsel %vm3192, %v3623, %v3622
        %3626 = vst.msk [vmem:[%s364 + $0x24] sm:$0x3] %vm3197, %v3624
        %v3629 = vunpack.c.l.s4 1966171168
        %v3630 = vunpack.c.0.s8 %v3629
        %v3631 = vlaneseq
        %v3632 = vshrl.u32 %v3631, 7
        %v3633 = vsub.s32 %v3630, %v3632
        %v3634 = vrot.slane %v2952, %v3633
        %v3636 = vunpack.c.l.s4 1966171168
        %v3637 = vunpack.c.0.s8 %v3636
        %v3638 = vlaneseq
        %v3639 = vshrl.u32 %v3638, 7
        %v3640 = vsub.s32 %v3637, %v3639
        %v3641 = vrot.slane %v3634, %v3640
        %3642 = vrot.lane.b32.xlu0 %v3641, 64
        %v3643 = vpop.permute.xlu0 %3642
        %v3644 = vrot.slane %v3643, 7
        %v3645 = vsel %vm1289, %v3644, %v3643
        %3647 = vst.msk [vmem:[%s364 + $0x25] sm:$0x3] %vm3221, %v3645
        %v3648 = vcombine.high %v3634, %v3634
        %v3650 = vunpack.c.l.s4 1966171168
        %v3651 = vunpack.c.0.s8 %v3650
        %v3652 = vlaneseq
        %v3653 = vshrl.u32 %v3652, 7
        %v3654 = vsub.s32 %v3651, %v3653
        %v3655 = vrot.slane %v3648, %v3654
        %3656 = vrot.lane.b32.xlu0 %v3655, 36
        %v3657 = vpop.permute.xlu0 %3656
        %v3658 = vrot.slane %v3657, 7
        %v3659 = vsel %vm3234, %v3658, %v3657
        %3661 = vst.msk [vmem:[%s364 + $0x26] sm:$0x3] %vm3239, %v3659
        %v3662 = vcombine.high %v3641, %v3641
        %3663 = vrot.lane.b32.xlu0 %v3662, 8
        %v3664 = vpop.permute.xlu0 %3663
        %3666 = vst.msk [vmem:[%s364 + $0x27] sm:$0x1] %vm3247, %v3664
        %v3667 = vcombine.high %v3655, %v3655
        %3668 = vrot.lane.b32.xlu0 %v3667, 108
        %v3669 = vpop.permute.xlu0 %3668
        %v3670 = vrot.slane %v3669, 7
        %v3671 = vsel %vm3253, %v3670, %v3669
        %3673 = vst.msk [vmem:[%s364 + $0x27] sm:$0x3] %vm3258, %v3671
        %v3674 = vcombine.high %v2952, %v2952
        %v3676 = vunpack.c.l.s4 1966171168
        %v3677 = vunpack.c.0.s8 %v3676
        %v3678 = vlaneseq
        %v3679 = vshrl.u32 %v3678, 7
        %v3680 = vsub.s32 %v3677, %v3679
        %v3681 = vrot.slane %v3674, %v3680
        %v3683 = vunpack.c.l.s4 1966171168
        %v3684 = vunpack.c.0.s8 %v3683
        %v3685 = vlaneseq
        %v3686 = vshrl.u32 %v3685, 7
        %v3687 = vsub.s32 %v3684, %v3686
        %v3688 = vrot.slane %v3681, %v3687
        %3689 = vrot.lane.b32.xlu0 %v3688, 80
        %v3690 = vpop.permute.xlu0 %3689
        %v3691 = vrot.slane %v3690, 7
        %v3692 = vsel %vm2936, %v3691, %v3690
        %3694 = vst.msk [vmem:[%s364 + $0x28] sm:$0x3] %vm3282, %v3692
        %v3695 = vcombine.high %v3681, %v3681
        %v3697 = vunpack.c.l.s4 1966171168
        %v3698 = vunpack.c.0.s8 %v3697
        %v3699 = vlaneseq
        %v3700 = vshrl.u32 %v3699, 7
        %v3701 = vsub.s32 %v3698, %v3700
        %v3702 = vrot.slane %v3695, %v3701
        %3703 = vrot.lane.b32.xlu0 %v3702, 52
        %v3704 = vpop.permute.xlu0 %3703
        %v3705 = vrot.slane %v3704, 7
        %v3706 = vsel %vm3295, %v3705, %v3704
        %3708 = vst.msk [vmem:[%s364 + $0x29] sm:$0x3] %vm3300, %v3706
        %v3709 = vcombine.high %v3688, %v3688
        %3710 = vrot.lane.b32.xlu0 %v3709, 24
        %v3711 = vpop.permute.xlu0 %3710
        %3713 = vst.msk [vmem:[%s364 + $0x2a] sm:$0x1] %vm3308, %v3711
        %v3714 = vcombine.high %v3702, %v3702
        %3715 = vrot.lane.b32.xlu0 %v3714, 124
        %v3716 = vpop.permute.xlu0 %3715
        %v3717 = vrot.slane %v3716, 7
        %v3718 = vsel %vm3314, %v3717, %v3716
        %3720 = vst.msk [vmem:[%s364 + $0x2a] sm:$0x3] %vm3319, %v3718
        %v3723 = vunpack.c.l.s4 1966171168
        %v3724 = vunpack.c.0.s8 %v3723
        %v3725 = vlaneseq
        %v3726 = vshrl.u32 %v3725, 7
        %v3727 = vsub.s32 %v3724, %v3726
        %v3728 = vrot.slane %v2953, %v3727
        %v3730 = vunpack.c.l.s4 1966171168
        %v3731 = vunpack.c.0.s8 %v3730
        %v3732 = vlaneseq
        %v3733 = vshrl.u32 %v3732, 7
        %v3734 = vsub.s32 %v3731, %v3733
        %v3735 = vrot.slane %v3728, %v3734
        %3736 = vrot.lane.b32.xlu0 %v3735, 96
        %v3737 = vpop.permute.xlu0 %3736
        %v3738 = vrot.slane %v3737, 7
        %v3739 = vsel %vm433, %v3738, %v3737
        %3741 = vst.msk [vmem:[%s364 + $0x2b] sm:$0x3] %vm3343, %v3739
        %v3742 = vcombine.high %v3728, %v3728
        %v3744 = vunpack.c.l.s4 1966171168
        %v3745 = vunpack.c.0.s8 %v3744
        %v3746 = vlaneseq
        %v3747 = vshrl.u32 %v3746, 7
        %v3748 = vsub.s32 %v3745, %v3747
        %v3749 = vrot.slane %v3742, %v3748
        %3750 = vrot.lane.b32.xlu0 %v3749, 68
        %v3751 = vpop.permute.xlu0 %3750
        %v3752 = vrot.slane %v3751, 7
        %v3753 = vsel %vm3356, %v3752, %v3751
        %3755 = vst.msk [vmem:[%s364 + $0x2c] sm:$0x3] %vm3361, %v3753
        %v3756 = vcombine.high %v3735, %v3735
        %3757 = vrot.lane.b32.xlu0 %v3756, 40
        %v3758 = vpop.permute.xlu0 %3757
        %v3759 = vrot.slane %v3758, 7
        %v3760 = vsel %vm2900, %v3759, %v3758
        %3762 = vst.msk [vmem:[%s364 + $0x2d] sm:$0x3] %vm3371, %v3760
        %v3763 = vcombine.high %v3749, %v3749
        %3764 = vrot.lane.b32.xlu0 %v3763, 12
        %v3765 = vpop.permute.xlu0 %3764
        %3767 = vst.msk [vmem:[%s364 + $0x2e] sm:$0x1] %vm3379, %v3765
        %v3768 = vcombine.high %v2953, %v2953
        %v3770 = vunpack.c.l.s4 1966171168
        %v3771 = vunpack.c.0.s8 %v3770
        %v3772 = vlaneseq
        %v3773 = vshrl.u32 %v3772, 7
        %v3774 = vsub.s32 %v3771, %v3773
        %v3775 = vrot.slane %v3768, %v3774
        %v3777 = vunpack.c.l.s4 1966171168
        %v3778 = vunpack.c.0.s8 %v3777
        %v3779 = vlaneseq
        %v3780 = vshrl.u32 %v3779, 7
        %v3781 = vsub.s32 %v3778, %v3780
        %v3782 = vrot.slane %v3775, %v3781
        %3783 = vrot.lane.b32.xlu0 %v3782, 112
        %v3784 = vpop.permute.xlu0 %3783
        %v3785 = vrot.slane %v3784, 7
        %v3786 = vsel %vm403, %v3785, %v3784
        %3788 = vst.msk [vmem:[%s364 + $0x2e] sm:$0x3] %vm3403, %v3786
        %v3789 = vcombine.high %v3775, %v3775
        %v3791 = vunpack.c.l.s4 1966171168
        %v3792 = vunpack.c.0.s8 %v3791
        %v3793 = vlaneseq
        %v3794 = vshrl.u32 %v3793, 7
        %v3795 = vsub.s32 %v3792, %v3794
        %v3796 = vrot.slane %v3789, %v3795
        %3797 = vrot.lane.b32.xlu0 %v3796, 84
        %v3798 = vpop.permute.xlu0 %3797
        %v3799 = vrot.slane %v3798, 7
        %v3800 = vsel %vm3416, %v3799, %v3798
        %3802 = vst.msk [vmem:[%s364 + $0x2f] sm:$0x3] %vm3421, %v3800
        %v3803 = vcombine.high %v3782, %v3782
        %3804 = vrot.lane.b32.xlu0 %v3803, 56
        %v3805 = vpop.permute.xlu0 %3804
        %v3806 = vrot.slane %v3805, 7
        %v3807 = vsel %vm3427, %v3806, %v3805
        %3809 = vst.msk [vmem:[%s364 + $0x30] sm:$0x3] %vm3432, %v3807
        %v3810 = vcombine.high %v3796, %v3796
        %3811 = vrot.lane.b32.xlu0 %v3810, 28
        %v3812 = vpop.permute.xlu0 %3811
        %3814 = vst.msk [vmem:[%s364 + $0x31] sm:$0x1] %vm3440, %v3812
        %v3815 = vld [vmem:[%s364] sm:$0xff]
        %v3816 = vld [vmem:[%s364 + $0x8] sm:$0xff]
        %v3817 = vld [vmem:[%s364 + $0x10] sm:$0xff]
        %v3818 = vld [vmem:[%s364 + $0x18] sm:$0xff]
        %v3819 = vld [vmem:[%s364 + $0x20] sm:$0xff]
        %v3820 = vld [vmem:[%s364 + $0x28] sm:$0xff]
        %v3821 = vld [vmem:[%s364 + $0x30] sm:$0x3]
        %v3822 = vld [vmem:[%s7] sm:$0xff]
        %v3823 = vld [vmem:[%s7 + $0x8] sm:$0xff]
        %v3824 = vld [vmem:[%s7 + $0x10] sm:$0xff]
        %v3825 = vld [vmem:[%s7 + $0x18] sm:$0xff]
        %v3826 = vld [vmem:[%s7 + $0x20] sm:$0xff]
        %v3827 = vld [vmem:[%s7 + $0x28] sm:$0xff]
        %v3828 = vld [vmem:[%s7 + $0x30] sm:$0xff]
        %v3829 = vld [vmem:[%s7 + $0x38] sm:$0xff]
        %v3830 = vld [vmem:[%s7 + $0x40] sm:$0xff]
        %v3831 = vld [vmem:[%s7 + $0x48] sm:$0xff]
        %v3832 = vld [vmem:[%s7 + $0x50] sm:$0xff]
        %v3833 = vld [vmem:[%s7 + $0x58] sm:$0xff]
        %v3834 = vld [vmem:[%s7 + $0x60] sm:$0xff]
        %v3835 = vld [vmem:[%s7 + $0x68] sm:$0xff]
        %v3836 = vld [vmem:[%s7 + $0x70] sm:$0xff]
        %v3837 = vld [vmem:[%s7 + $0x78] sm:$0xff]
        %v3838 = vld [vmem:[%s7 + $0x80] sm:$0xff]
        %v3839 = vld [vmem:[%s7 + $0x88] sm:$0xff]
        %v3840 = vld [vmem:[%s7 + $0x90] sm:$0xff]
        %v3841 = vld [vmem:[%s7 + $0x98] sm:$0xff]
        %v3842 = vld [vmem:[%s7 + $0xa0] sm:$0xff]
        %v3843 = vld [vmem:[%s7 + $0xa8] sm:$0xff]
        %v3844 = vld [vmem:[%s7 + $0xb0] sm:$0xff]
        %v3845 = vld [vmem:[%s7 + $0xb8] sm:$0xff]
        %v3846 = vld [vmem:[%s7 + $0xc0] sm:$0xff]
        %v3847 = vld [vmem:[%s7 + $0xc8] sm:$0xff]
        %v3848 = vld [vmem:[%s7 + $0xd0] sm:$0xff]
        %v3849 = vld [vmem:[%s7 + $0xd8] sm:$0xff]
        %v3850 = vld [vmem:[%s7 + $0xe0] sm:$0xff]
        %v3851 = vld [vmem:[%s7 + $0xe8] sm:$0xff]
        %v3852 = vld [vmem:[%s7 + $0xf0] sm:$0xff]
        %v3853 = vld [vmem:[%s7 + $0xf8] sm:$0xff]
        %v3854 = vld [vmem:[%s7 + $0x100] sm:$0xff]
        %v3855 = vld [vmem:[%s7 + $0x108] sm:$0xff]
        %v3856 = vld [vmem:[%s7 + $0x110] sm:$0xff]
        %v3857 = vld [vmem:[%s7 + $0x118] sm:$0xff]
        %v3858 = vld [vmem:[%s7 + $0x120] sm:$0xff]
        %v3859 = vld [vmem:[%s7 + $0x128] sm:$0xff]
        %v3860 = vld [vmem:[%s7 + $0x130] sm:$0xff]
        %v3861 = vld [vmem:[%s7 + $0x138] sm:$0xff]
        %v3862 = vld [vmem:[%s7 + $0x140] sm:$0xff]
        %v3863 = vld [vmem:[%s7 + $0x148] sm:$0xff]
        %v3864 = vld [vmem:[%s7 + $0x150] sm:$0xff]
        %v3865 = vld [vmem:[%s7 + $0x158] sm:$0xff]
        %v3866 = vld [vmem:[%s7 + $0x160] sm:$0xff]
        %v3867 = vld [vmem:[%s7 + $0x168] sm:$0xff]
        %v3868 = vld [vmem:[%s7 + $0x170] sm:$0xff]
        %v3869 = vld [vmem:[%s7 + $0x178] sm:$0xff]
        %v3870 = vld [vmem:[%s7 + $0x180] sm:$0xff]
        %v3871 = vld [vmem:[%s7 + $0x188] sm:$0xff]
        %v3872 = vld [vmem:[%s7 + $0x190] sm:$0xff]
        %v3873 = vld [vmem:[%s7 + $0x198] sm:$0xff]
        %v3874 = vld [vmem:[%s7 + $0x1a0] sm:$0xff]
        %v3875 = vld [vmem:[%s7 + $0x1a8] sm:$0xff]
        %v3876 = vld [vmem:[%s7 + $0x1b0] sm:$0xff]
        %v3877 = vld [vmem:[%s7 + $0x1b8] sm:$0xff]
        %v3878 = vld [vmem:[%s7 + $0x1c0] sm:$0xff]
        %v3879 = vld [vmem:[%s7 + $0x1c8] sm:$0xff]
        %v3880 = vld [vmem:[%s7 + $0x1d0] sm:$0xff]
        %v3881 = vld [vmem:[%s7 + $0x1d8] sm:$0xff]
        %v3882 = vld [vmem:[%s7 + $0x1e0] sm:$0xff]
        %v3883 = vld [vmem:[%s7 + $0x1e8] sm:$0xff]
        %v3884 = vld [vmem:[%s7 + $0x1f0] sm:$0xff]
        %v3885 = vld [vmem:[%s7 + $0x1f8] sm:$0xff]
        %v3886 = vld [vmem:[%s7 + $0x200] sm:$0xff]
        %v3887 = vld [vmem:[%s7 + $0x208] sm:$0xff]
        %v3888 = vld [vmem:[%s7 + $0x210] sm:$0xff]
        %v3889 = vld [vmem:[%s7 + $0x218] sm:$0xff]
        %v3890 = vld [vmem:[%s7 + $0x220] sm:$0xff]
        %v3891 = vld [vmem:[%s7 + $0x228] sm:$0xff]
        %v3892 = vld [vmem:[%s7 + $0x230] sm:$0xff]
        %v3893 = vld [vmem:[%s7 + $0x238] sm:$0xff]
        %v3894 = vld [vmem:[%s7 + $0x240] sm:$0xff]
        %v3895 = vld [vmem:[%s7 + $0x248] sm:$0xff]
        %v3896 = vld [vmem:[%s7 + $0x250] sm:$0xff]
        %v3897 = vld [vmem:[%s7 + $0x258] sm:$0xff]
        %v3898 = vld [vmem:[%s7 + $0x260] sm:$0xff]
        %v3899 = vld [vmem:[%s7 + $0x268] sm:$0xff]
        %v3900 = vld [vmem:[%s7 + $0x270] sm:$0xff]
        %v3901 = vld [vmem:[%s7 + $0x278] sm:$0xff]
        %v3902 = vld [vmem:[%s7 + $0x280] sm:$0xff]
        %v3903 = vld [vmem:[%s7 + $0x288] sm:$0xff]
        %v3904 = vld [vmem:[%s7 + $0x290] sm:$0xff]
        %v3905 = vld [vmem:[%s7 + $0x298] sm:$0xff]
        %v3906 = vld [vmem:[%s7 + $0x2a0] sm:$0xff]
        %v3907 = vld [vmem:[%s7 + $0x2a8] sm:$0xff]
        %v3908 = vld [vmem:[%s7 + $0x2b0] sm:$0xff]
        %v3909 = vld [vmem:[%s7 + $0x2b8] sm:$0xff]
        %v3910 = vld [vmem:[%s7 + $0x2c0] sm:$0xff]
        %v3911 = vld [vmem:[%s7 + $0x2c8] sm:$0xff]
        %v3912 = vld [vmem:[%s7 + $0x2d0] sm:$0xff]
        %v3913 = vld [vmem:[%s7 + $0x2d8] sm:$0xff]
        %v3914 = vld [vmem:[%s7 + $0x2e0] sm:$0xff]
        %v3915 = vld [vmem:[%s7 + $0x2e8] sm:$0xff]
        %v3916 = vld [vmem:[%s7 + $0x2f0] sm:$0xff]
        %v3917 = vld [vmem:[%s7 + $0x2f8] sm:$0xff]
        %v3918 = vld [vmem:[%s7 + $0x300] sm:$0xff]
        %v3919 = vld [vmem:[%s7 + $0x308] sm:$0xff]
        %v3920 = vld [vmem:[%s7 + $0x310] sm:$0xff]
        %v3921 = vld [vmem:[%s7 + $0x318] sm:$0xff]
        %v3922 = vld [vmem:[%s7 + $0x320] sm:$0xff]
        %v3923 = vld [vmem:[%s7 + $0x328] sm:$0xff]
        %v3924 = vld [vmem:[%s7 + $0x330] sm:$0xff]
        %v3925 = vld [vmem:[%s7 + $0x338] sm:$0xff]
        %v3926 = vld [vmem:[%s7 + $0x340] sm:$0xff]
        %v3927 = vld [vmem:[%s7 + $0x348] sm:$0xff]
        %v3928 = vld [vmem:[%s7 + $0x350] sm:$0xff]
        %v3929 = vld [vmem:[%s7 + $0x358] sm:$0xff]
        %v3930 = vld [vmem:[%s7 + $0x360] sm:$0xff]
        %v3931 = vld [vmem:[%s7 + $0x368] sm:$0xff]
        %v3932 = vld [vmem:[%s7 + $0x370] sm:$0xff]
        %v3933 = vld [vmem:[%s7 + $0x378] sm:$0xff]
        %v3934 = vld [vmem:[%s7 + $0x380] sm:$0xff]
        %v3935 = vld [vmem:[%s7 + $0x388] sm:$0xff]
        %v3936 = vld [vmem:[%s7 + $0x390] sm:$0xff]
        %v3937 = vld [vmem:[%s7 + $0x398] sm:$0xff]
        %v3938 = vld [vmem:[%s7 + $0x3a0] sm:$0xff]
        %v3939 = vld [vmem:[%s7 + $0x3a8] sm:$0xff]
        %v3940 = vld [vmem:[%s7 + $0x3b0] sm:$0xff]
        %v3941 = vld [vmem:[%s7 + $0x3b8] sm:$0xff]
        %v3942 = vld [vmem:[%s7 + $0x3c0] sm:$0xff]
        %v3943 = vld [vmem:[%s7 + $0x3c8] sm:$0xff]
        %v3944 = vld [vmem:[%s7 + $0x3d0] sm:$0xff]
        %v3945 = vld [vmem:[%s7 + $0x3d8] sm:$0xff]
        %v3946 = vld [vmem:[%s7 + $0x3e0] sm:$0xff]
        %v3947 = vld [vmem:[%s7 + $0x3e8] sm:$0xff]
        %v3948 = vld [vmem:[%s7 + $0x3f0] sm:$0xff]
        %v3949 = vld [vmem:[%s7 + $0x3f8] sm:$0xff]
        %v3950 = vld [vmem:[%s7 + $0x400] sm:$0xff]
        %v3951 = vld [vmem:[%s7 + $0x408] sm:$0xff]
        %v3952 = vld [vmem:[%s7 + $0x410] sm:$0xff]
        %v3953 = vld [vmem:[%s7 + $0x418] sm:$0xff]
        %v3954 = vld [vmem:[%s7 + $0x420] sm:$0xff]
        %v3955 = vld [vmem:[%s7 + $0x428] sm:$0xff]
        %v3956 = vld [vmem:[%s7 + $0x430] sm:$0xff]
        %v3957 = vld [vmem:[%s7 + $0x438] sm:$0xff]
        %v3958 = vld [vmem:[%s7 + $0x440] sm:$0xff]
        %v3959 = vld [vmem:[%s7 + $0x448] sm:$0xff]
        %v3960 = vld [vmem:[%s7 + $0x450] sm:$0xff]
        %v3961 = vld [vmem:[%s7 + $0x458] sm:$0xff]
        %v3962 = vld [vmem:[%s7 + $0x460] sm:$0xff]
        %v3963 = vld [vmem:[%s7 + $0x468] sm:$0xff]
        %v3964 = vld [vmem:[%s7 + $0x470] sm:$0xff]
        %v3965 = vld [vmem:[%s7 + $0x478] sm:$0xff]
        %v3966 = vld [vmem:[%s7 + $0x480] sm:$0xff]
        %v3967 = vld [vmem:[%s7 + $0x488] sm:$0xff]
        %v3968 = vld [vmem:[%s7 + $0x490] sm:$0xff]
        %v3969 = vld [vmem:[%s7 + $0x498] sm:$0xff]
        %v3970 = vld [vmem:[%s7 + $0x4a0] sm:$0xff]
        %v3971 = vld [vmem:[%s7 + $0x4a8] sm:$0xff]
        %v3972 = vld [vmem:[%s7 + $0x4b0] sm:$0xff]
        %v3973 = vld [vmem:[%s7 + $0x4b8] sm:$0xff]
        %v3974 = vld [vmem:[%s7 + $0x4c0] sm:$0xff]
        %v3975 = vld [vmem:[%s7 + $0x4c8] sm:$0xff]
        %v3976 = vld [vmem:[%s7 + $0x4d0] sm:$0xff]
        %v3977 = vld [vmem:[%s7 + $0x4d8] sm:$0xff]
        %v3978 = vld [vmem:[%s7 + $0x4e0] sm:$0xff]
        %v3979 = vld [vmem:[%s7 + $0x4e8] sm:$0xff]
        %v3980 = vld [vmem:[%s7 + $0x4f0] sm:$0xff]
        %v3981 = vld [vmem:[%s7 + $0x4f8] sm:$0xff]
        %v3982 = vld [vmem:[%s7 + $0x500] sm:$0xff]
        %v3983 = vld [vmem:[%s7 + $0x508] sm:$0xff]
        %v3984 = vld [vmem:[%s7 + $0x510] sm:$0xff]
        %v3985 = vld [vmem:[%s7 + $0x518] sm:$0xff]
        %v3986 = vld [vmem:[%s7 + $0x520] sm:$0xff]
        %v3987 = vld [vmem:[%s7 + $0x528] sm:$0xff]
        %v3988 = vld [vmem:[%s7 + $0x530] sm:$0xff]
        %v3989 = vld [vmem:[%s7 + $0x538] sm:$0xff]
        %v3990 = vld [vmem:[%s7 + $0x540] sm:$0xff]
        %v3991 = vld [vmem:[%s7 + $0x548] sm:$0xff]
        %v3992 = vld [vmem:[%s7 + $0x550] sm:$0xff]
        %v3993 = vld [vmem:[%s7 + $0x558] sm:$0xff]
        %v3994 = vld [vmem:[%s7 + $0x560] sm:$0xff]
        %v3995 = vld [vmem:[%s7 + $0x568] sm:$0xff]
        %v3996 = vld [vmem:[%s7 + $0x570] sm:$0xff]
        %v3997 = vld [vmem:[%s7 + $0x578] sm:$0xff]
        %v3998 = vld [vmem:[%s7 + $0x580] sm:$0xff]
        %v3999 = vld [vmem:[%s7 + $0x588] sm:$0xff]
        %v4000 = vld [vmem:[%s7 + $0x590] sm:$0xff]
        %v4001 = vld [vmem:[%s7 + $0x598] sm:$0xff]
        %v4002 = vld [vmem:[%s7 + $0x5a0] sm:$0xff]
        %v4003 = vld [vmem:[%s7 + $0x5a8] sm:$0xff]
        %v4004 = vld [vmem:[%s7 + $0x5b0] sm:$0xff]
        %v4005 = vld [vmem:[%s7 + $0x5b8] sm:$0xff]
        %v4006 = vld [vmem:[%s7 + $0x5c0] sm:$0xff]
        %v4007 = vld [vmem:[%s7 + $0x5c8] sm:$0xff]
        %v4008 = vld [vmem:[%s7 + $0x5d0] sm:$0xff]
        %v4009 = vld [vmem:[%s7 + $0x5d8] sm:$0xff]
        %v4010 = vld [vmem:[%s7 + $0x5e0] sm:$0xff]
        %v4011 = vld [vmem:[%s7 + $0x5e8] sm:$0xff]
        %v4012 = vld [vmem:[%s7 + $0x5f0] sm:$0xff]
        %v4013 = vld [vmem:[%s7 + $0x5f8] sm:$0xff]
        %v4014 = vld [vmem:[%s7 + $0x600] sm:$0xff]
        %v4015 = vld [vmem:[%s7 + $0x608] sm:$0xff]
        %v4016 = vld [vmem:[%s7 + $0x610] sm:$0xff]
        %v4017 = vld [vmem:[%s7 + $0x618] sm:$0xff]
        %v4018 = vld [vmem:[%s7 + $0x620] sm:$0xff]
        %v4019 = vld [vmem:[%s7 + $0x628] sm:$0xff]
        %v4020 = vld [vmem:[%s7 + $0x630] sm:$0xff]
        %v4021 = vld [vmem:[%s7 + $0x638] sm:$0xff]
        %v4022 = vld [vmem:[%s7 + $0x640] sm:$0xff]
        %v4023 = vld [vmem:[%s7 + $0x648] sm:$0xff]
        %v4024 = vld [vmem:[%s7 + $0x650] sm:$0xff]
        %v4025 = vld [vmem:[%s7 + $0x658] sm:$0xff]
        %v4026 = vld [vmem:[%s7 + $0x660] sm:$0xff]
        %v4027 = vld [vmem:[%s7 + $0x668] sm:$0xff]
        %v4028 = vld [vmem:[%s7 + $0x670] sm:$0xff]
        %v4029 = vld [vmem:[%s7 + $0x678] sm:$0xff]
        %v4030 = vld [vmem:[%s7 + $0x680] sm:$0xff]
        %v4031 = vld [vmem:[%s7 + $0x688] sm:$0xff]
        %v4032 = vld [vmem:[%s7 + $0x690] sm:$0xff]
        %v4033 = vld [vmem:[%s7 + $0x698] sm:$0xff]
        %v4034 = vld [vmem:[%s7 + $0x6a0] sm:$0xff]
        %v4035 = vld [vmem:[%s7 + $0x6a8] sm:$0xff]
        %v4036 = vld [vmem:[%s7 + $0x6b0] sm:$0xff]
        %v4037 = vld [vmem:[%s7 + $0x6b8] sm:$0xff]
        %v4038 = vld [vmem:[%s7 + $0x6c0] sm:$0xff]
        %v4039 = vld [vmem:[%s7 + $0x6c8] sm:$0xff]
        %v4040 = vld [vmem:[%s7 + $0x6d0] sm:$0xff]
        %v4041 = vld [vmem:[%s7 + $0x6d8] sm:$0xff]
        %v4042 = vld [vmem:[%s7 + $0x6e0] sm:$0xff]
        %v4043 = vld [vmem:[%s7 + $0x6e8] sm:$0xff]
        %v4044 = vld [vmem:[%s7 + $0x6f0] sm:$0xff]
        %v4045 = vld [vmem:[%s7 + $0x6f8] sm:$0xff]
        %v4046 = vld [vmem:[%s7 + $0x700] sm:$0xff]
        %v4047 = vld [vmem:[%s7 + $0x708] sm:$0xff]
        %v4048 = vld [vmem:[%s7 + $0x710] sm:$0xff]
        %v4049 = vld [vmem:[%s7 + $0x718] sm:$0xff]
        %v4050 = vld [vmem:[%s7 + $0x720] sm:$0xff]
        %v4051 = vld [vmem:[%s7 + $0x728] sm:$0xff]
        %v4052 = vld [vmem:[%s7 + $0x730] sm:$0xff]
        %v4053 = vld [vmem:[%s7 + $0x738] sm:$0xff]
        %v4054 = vld [vmem:[%s7 + $0x740] sm:$0xff]
        %v4055 = vld [vmem:[%s7 + $0x748] sm:$0xff]
        %v4056 = vld [vmem:[%s7 + $0x750] sm:$0xff]
        %v4057 = vld [vmem:[%s7 + $0x758] sm:$0xff]
        %v4058 = vld [vmem:[%s7 + $0x760] sm:$0xff]
        %v4059 = vld [vmem:[%s7 + $0x768] sm:$0xff]
        %v4060 = vld [vmem:[%s7 + $0x770] sm:$0xff]
        %v4061 = vld [vmem:[%s7 + $0x778] sm:$0xff]
        %v4062 = vld [vmem:[%s7 + $0x780] sm:$0xff]
        %v4063 = vld [vmem:[%s7 + $0x788] sm:$0xff]
        %v4064 = vld [vmem:[%s7 + $0x790] sm:$0xff]
        %v4065 = vld [vmem:[%s7 + $0x798] sm:$0xff]
        %v4066 = vld [vmem:[%s7 + $0x7a0] sm:$0xff]
        %v4067 = vld [vmem:[%s7 + $0x7a8] sm:$0xff]
        %v4068 = vld [vmem:[%s7 + $0x7b0] sm:$0xff]
        %v4069 = vld [vmem:[%s7 + $0x7b8] sm:$0xff]
        %v4070 = vld [vmem:[%s7 + $0x7c0] sm:$0xff]
        %v4071 = vld [vmem:[%s7 + $0x7c8] sm:$0xff]
        %v4072 = vld [vmem:[%s7 + $0x7d0] sm:$0xff]
        %v4073 = vld [vmem:[%s7 + $0x7d8] sm:$0xff]
        %v4074 = vld [vmem:[%s7 + $0x7e0] sm:$0xff]
        %v4075 = vld [vmem:[%s7 + $0x7e8] sm:$0xff]
        %v4076 = vld [vmem:[%s7 + $0x7f0] sm:$0xff]
        %v4077 = vld [vmem:[%s7 + $0x7f8] sm:$0xff]
        %v4078 = vld [vmem:[%s7 + $0x800] sm:$0xff]
        %v4079 = vld [vmem:[%s7 + $0x808] sm:$0xff]
        %v4080 = vld [vmem:[%s7 + $0x810] sm:$0xff]
        %v4081 = vld [vmem:[%s7 + $0x818] sm:$0xff]
        %v4082 = vld [vmem:[%s7 + $0x820] sm:$0xff]
        %v4083 = vld [vmem:[%s7 + $0x828] sm:$0xff]
        %v4084 = vld [vmem:[%s7 + $0x830] sm:$0xff]
        %v4085 = vld [vmem:[%s7 + $0x838] sm:$0xff]
        %v4086 = vld [vmem:[%s7 + $0x840] sm:$0xff]
        %v4087 = vld [vmem:[%s7 + $0x848] sm:$0xff]
        %v4088 = vld [vmem:[%s7 + $0x850] sm:$0xff]
        %v4089 = vld [vmem:[%s7 + $0x858] sm:$0xff]
        %v4090 = vld [vmem:[%s7 + $0x860] sm:$0xff]
        %v4091 = vld [vmem:[%s7 + $0x868] sm:$0xff]
        %v4092 = vld [vmem:[%s7 + $0x870] sm:$0xff]
        %v4093 = vld [vmem:[%s7 + $0x878] sm:$0xff]
        %v4094 = vld [vmem:[%s7 + $0x880] sm:$0xff]
        %v4095 = vld [vmem:[%s7 + $0x888] sm:$0xff]
        %v4096 = vld [vmem:[%s7 + $0x890] sm:$0xff]
        %v4097 = vld [vmem:[%s7 + $0x898] sm:$0xff]
        %v4098 = vld [vmem:[%s7 + $0x8a0] sm:$0xff]
        %v4099 = vld [vmem:[%s7 + $0x8a8] sm:$0xff]
        %v4100 = vld [vmem:[%s7 + $0x8b0] sm:$0xff]
        %v4101 = vld [vmem:[%s7 + $0x8b8] sm:$0xff]
        %v4102 = vld [vmem:[%s7 + $0x8c0] sm:$0xff]
        %v4103 = vld [vmem:[%s7 + $0x8c8] sm:$0xff]
        %v4104 = vld [vmem:[%s7 + $0x8d0] sm:$0xff]
        %v4105 = vld [vmem:[%s7 + $0x8d8] sm:$0xff]
        %v4106 = vld [vmem:[%s7 + $0x8e0] sm:$0xff]
        %v4107 = vld [vmem:[%s7 + $0x8e8] sm:$0xff]
        %v4108 = vld [vmem:[%s7 + $0x8f0] sm:$0xff]
        %v4109 = vld [vmem:[%s7 + $0x8f8] sm:$0xff]
        %v4110 = vld [vmem:[%s7 + $0x900] sm:$0xff]
        %v4111 = vld [vmem:[%s7 + $0x908] sm:$0xff]
        %v4112 = vld [vmem:[%s7 + $0x910] sm:$0xff]
        %v4113 = vld [vmem:[%s7 + $0x918] sm:$0xff]
        %v4114 = vld [vmem:[%s7 + $0x920] sm:$0xff]
        %v4115 = vld [vmem:[%s7 + $0x928] sm:$0xff]
        %v4116 = vld [vmem:[%s7 + $0x930] sm:$0xff]
        %v4117 = vld [vmem:[%s7 + $0x938] sm:$0xff]
        %v4118 = vld [vmem:[%s7 + $0x940] sm:$0xff]
        %v4119 = vld [vmem:[%s7 + $0x948] sm:$0xff]
        %v4120 = vld [vmem:[%s7 + $0x950] sm:$0xff]
        %v4121 = vld [vmem:[%s7 + $0x958] sm:$0xff]
        %v4122 = vld [vmem:[%s7 + $0x960] sm:$0xff]
        %v4123 = vld [vmem:[%s7 + $0x968] sm:$0xff]
        %v4124 = vld [vmem:[%s7 + $0x970] sm:$0xff]
        %v4125 = vld [vmem:[%s7 + $0x978] sm:$0xff]
        %v4126 = vld [vmem:[%s7 + $0x980] sm:$0xff]
        %v4127 = vld [vmem:[%s7 + $0x988] sm:$0xff]
        %v4128 = vld [vmem:[%s7 + $0x990] sm:$0xff]
        %v4129 = vld [vmem:[%s7 + $0x998] sm:$0xff]
        %v4130 = vld [vmem:[%s7 + $0x9a0] sm:$0xff]
        %v4131 = vld [vmem:[%s7 + $0x9a8] sm:$0xff]
        %v4132 = vld [vmem:[%s7 + $0x9b0] sm:$0xff]
        %v4133 = vld [vmem:[%s7 + $0x9b8] sm:$0xff]
        %v4134 = vld [vmem:[%s7 + $0x9c0] sm:$0xff]
        %v4135 = vld [vmem:[%s7 + $0x9c8] sm:$0xff]
        %v4136 = vld [vmem:[%s7 + $0x9d0] sm:$0xff]
        %v4137 = vld [vmem:[%s7 + $0x9d8] sm:$0xff]
        %v4138 = vld [vmem:[%s7 + $0x9e0] sm:$0xff]
        %v4139 = vld [vmem:[%s7 + $0x9e8] sm:$0xff]
        %v4140 = vld [vmem:[%s7 + $0x9f0] sm:$0xff]
        %v4141 = vld [vmem:[%s7 + $0x9f8] sm:$0xff]
        %v4142 = vld [vmem:[%s7 + $0xa00] sm:$0xff]
        %v4143 = vld [vmem:[%s7 + $0xa08] sm:$0xff]
        %v4144 = vld [vmem:[%s7 + $0xa10] sm:$0xff]
        %v4145 = vld [vmem:[%s7 + $0xa18] sm:$0xff]
        %v4146 = vld [vmem:[%s7 + $0xa20] sm:$0xff]
        %v4147 = vld [vmem:[%s7 + $0xa28] sm:$0xff]
        %v4148 = vld [vmem:[%s7 + $0xa30] sm:$0xff]
        %v4149 = vld [vmem:[%s7 + $0xa38] sm:$0xff]
        %v4150 = vld [vmem:[%s7 + $0xa40] sm:$0xff]
        %v4151 = vld [vmem:[%s7 + $0xa48] sm:$0xff]
        %v4152 = vld [vmem:[%s7 + $0xa50] sm:$0xff]
        %v4153 = vld [vmem:[%s7 + $0xa58] sm:$0xff]
        %v4154 = vld [vmem:[%s7 + $0xa60] sm:$0xff]
        %v4155 = vld [vmem:[%s7 + $0xa68] sm:$0xff]
        %v4156 = vld [vmem:[%s7 + $0xa70] sm:$0xff]
        %v4157 = vld [vmem:[%s7 + $0xa78] sm:$0xff]
        %v4158 = vld [vmem:[%s7 + $0xa80] sm:$0xff]
        %v4159 = vld [vmem:[%s7 + $0xa88] sm:$0xff]
        %v4160 = vld [vmem:[%s7 + $0xa90] sm:$0xff]
        %v4161 = vld [vmem:[%s7 + $0xa98] sm:$0xff]
        %v4162 = vld [vmem:[%s7 + $0xaa0] sm:$0xff]
        %v4163 = vld [vmem:[%s7 + $0xaa8] sm:$0xff]
        %v4164 = vld [vmem:[%s7 + $0xab0] sm:$0xff]
        %v4165 = vld [vmem:[%s7 + $0xab8] sm:$0xff]
        %v4166 = vld [vmem:[%s7 + $0xac0] sm:$0xff]
        %v4167 = vld [vmem:[%s7 + $0xac8] sm:$0xff]
        %v4168 = vld [vmem:[%s7 + $0xad0] sm:$0xff]
        %v4169 = vld [vmem:[%s7 + $0xad8] sm:$0xff]
        %v4170 = vld [vmem:[%s7 + $0xae0] sm:$0xff]
        %v4171 = vld [vmem:[%s7 + $0xae8] sm:$0xff]
        %v4172 = vld [vmem:[%s7 + $0xaf0] sm:$0xff]
        %v4173 = vld [vmem:[%s7 + $0xaf8] sm:$0xff]
        %v4174 = vld [vmem:[%s7 + $0xb00] sm:$0xff]
        %v4175 = vld [vmem:[%s7 + $0xb08] sm:$0xff]
        %v4176 = vld [vmem:[%s7 + $0xb10] sm:$0xff]
        %v4177 = vld [vmem:[%s7 + $0xb18] sm:$0xff]
        %v4178 = vld [vmem:[%s7 + $0xb20] sm:$0xff]
        %v4179 = vld [vmem:[%s7 + $0xb28] sm:$0xff]
        %v4180 = vld [vmem:[%s7 + $0xb30] sm:$0xff]
        %v4181 = vld [vmem:[%s7 + $0xb38] sm:$0xff]
        %v4182 = vld [vmem:[%s7 + $0xb40] sm:$0xff]
        %v4183 = vld [vmem:[%s7 + $0xb48] sm:$0xff]
        %v4184 = vld [vmem:[%s7 + $0xb50] sm:$0xff]
        %v4185 = vld [vmem:[%s7 + $0xb58] sm:$0xff]
        %v4186 = vld [vmem:[%s7 + $0xb60] sm:$0xff]
        %v4187 = vld [vmem:[%s7 + $0xb68] sm:$0xff]
        %v4188 = vld [vmem:[%s7 + $0xb70] sm:$0xff]
        %v4189 = vld [vmem:[%s7 + $0xb78] sm:$0xff]
        %v4190 = vld [vmem:[%s7 + $0xb80] sm:$0xff]
        %v4191 = vld [vmem:[%s7 + $0xb88] sm:$0xff]
        %v4192 = vld [vmem:[%s7 + $0xb90] sm:$0xff]
        %v4193 = vld [vmem:[%s7 + $0xb98] sm:$0xff]
        %v4194 = vld [vmem:[%s7 + $0xba0] sm:$0xff]
        %v4195 = vld [vmem:[%s7 + $0xba8] sm:$0xff]
        %v4196 = vld [vmem:[%s7 + $0xbb0] sm:$0xff]
        %v4197 = vld [vmem:[%s7 + $0xbb8] sm:$0xff]
        %v4198 = vld [vmem:[%s7 + $0xbc0] sm:$0xff]
        %v4199 = vld [vmem:[%s7 + $0xbc8] sm:$0xff]
        %v4200 = vld [vmem:[%s7 + $0xbd0] sm:$0xff]
        %v4201 = vld [vmem:[%s7 + $0xbd8] sm:$0xff]
        %v4202 = vld [vmem:[%s7 + $0xbe0] sm:$0xff]
        %v4203 = vld [vmem:[%s7 + $0xbe8] sm:$0xff]
        %v4204 = vld [vmem:[%s7 + $0xbf0] sm:$0xff]
        %v4205 = vld [vmem:[%s7 + $0xbf8] sm:$0xff]
        %v4206 = vld [vmem:[%s7 + $0xc00] sm:$0xff]
        %v4207 = vld [vmem:[%s7 + $0xc08] sm:$0xff]
        %v4208 = vld [vmem:[%s7 + $0xc10] sm:$0xff]
        %v4209 = vld [vmem:[%s7 + $0xc18] sm:$0xff]
        %v4210 = vld [vmem:[%s7 + $0xc20] sm:$0xff]
        %v4211 = vld [vmem:[%s7 + $0xc28] sm:$0xff]
        %v4212 = vld [vmem:[%s7 + $0xc30] sm:$0xff]
        %v4213 = vld [vmem:[%s7 + $0xc38] sm:$0xff]
        %v4214 = vld [vmem:[%s7 + $0xc40] sm:$0xff]
        %v4215 = vld [vmem:[%s7 + $0xc48] sm:$0xff]
        %v4216 = vld [vmem:[%s7 + $0xc50] sm:$0xff]
        %v4217 = vld [vmem:[%s7 + $0xc58] sm:$0xff]
        %v4218 = vld [vmem:[%s7 + $0xc60] sm:$0xff]
        %v4219 = vld [vmem:[%s7 + $0xc68] sm:$0xff]
        %v4220 = vld [vmem:[%s7 + $0xc70] sm:$0xff]
        %v4221 = vld [vmem:[%s7 + $0xc78] sm:$0xff]
        %v4222 = vld [vmem:[%s7 + $0xc80] sm:$0xff]
        %v4223 = vld [vmem:[%s7 + $0xc88] sm:$0xff]
        %v4224 = vld [vmem:[%s7 + $0xc90] sm:$0xff]
        %v4225 = vld [vmem:[%s7 + $0xc98] sm:$0xff]
        %v4226 = vld [vmem:[%s7 + $0xca0] sm:$0xff]
        %v4227 = vld [vmem:[%s7 + $0xca8] sm:$0xff]
        %v4228 = vld [vmem:[%s7 + $0xcb0] sm:$0xff]
        %v4229 = vld [vmem:[%s7 + $0xcb8] sm:$0xff]
        %v4230 = vld [vmem:[%s7 + $0xcc0] sm:$0xff]
        %v4231 = vld [vmem:[%s7 + $0xcc8] sm:$0xff]
        %v4232 = vld [vmem:[%s7 + $0xcd0] sm:$0xff]
        %v4233 = vld [vmem:[%s7 + $0xcd8] sm:$0xff]
        %v4234 = vld [vmem:[%s7 + $0xce0] sm:$0xff]
        %v4235 = vld [vmem:[%s7 + $0xce8] sm:$0xff]
        %v4236 = vld [vmem:[%s7 + $0xcf0] sm:$0xff]
        %v4237 = vld [vmem:[%s7 + $0xcf8] sm:$0xff]
        %v4238 = vld [vmem:[%s7 + $0xd00] sm:$0xff]
        %v4239 = vld [vmem:[%s7 + $0xd08] sm:$0xff]
        %v4240 = vld [vmem:[%s7 + $0xd10] sm:$0xff]
        %v4241 = vld [vmem:[%s7 + $0xd18] sm:$0xff]
        %v4242 = vld [vmem:[%s7 + $0xd20] sm:$0xff]
        %v4243 = vld [vmem:[%s7 + $0xd28] sm:$0xff]
        %v4244 = vld [vmem:[%s7 + $0xd30] sm:$0xff]
        %v4245 = vld [vmem:[%s7 + $0xd38] sm:$0xff]
        %v4246 = vld [vmem:[%s7 + $0xd40] sm:$0xff]
        %v4247 = vld [vmem:[%s7 + $0xd48] sm:$0xff]
        %v4248 = vld [vmem:[%s7 + $0xd50] sm:$0xff]
        %v4249 = vld [vmem:[%s7 + $0xd58] sm:$0xff]
        %v4250 = vld [vmem:[%s7 + $0xd60] sm:$0xff]
        %v4251 = vld [vmem:[%s7 + $0xd68] sm:$0xff]
        %v4252 = vld [vmem:[%s7 + $0xd70] sm:$0xff]
        %v4253 = vld [vmem:[%s7 + $0xd78] sm:$0xff]
        %v4254 = vld [vmem:[%s7 + $0xd80] sm:$0xff]
        %v4255 = vld [vmem:[%s7 + $0xd88] sm:$0xff]
        %v4256 = vld [vmem:[%s7 + $0xd90] sm:$0xff]
        %v4257 = vld [vmem:[%s7 + $0xd98] sm:$0xff]
        %v4258 = vld [vmem:[%s7 + $0xda0] sm:$0xff]
        %v4259 = vld [vmem:[%s7 + $0xda8] sm:$0xff]
        %v4260 = vld [vmem:[%s7 + $0xdb0] sm:$0xff]
        %v4261 = vld [vmem:[%s7 + $0xdb8] sm:$0xff]
        %v4262 = vld [vmem:[%s7 + $0xdc0] sm:$0xff]
        %v4263 = vld [vmem:[%s7 + $0xdc8] sm:$0xff]
        %v4264 = vld [vmem:[%s7 + $0xdd0] sm:$0xff]
        %v4265 = vld [vmem:[%s7 + $0xdd8] sm:$0xff]
        %v4266 = vld [vmem:[%s7 + $0xde0] sm:$0xff]
        %v4267 = vld [vmem:[%s7 + $0xde8] sm:$0xff]
        %v4268 = vld [vmem:[%s7 + $0xdf0] sm:$0xff]
        %v4269 = vld [vmem:[%s7 + $0xdf8] sm:$0xff]
        %v4270 = vld [vmem:[%s7 + $0xe00] sm:$0xff]
        %v4271 = vld [vmem:[%s7 + $0xe08] sm:$0xff]
        %v4272 = vld [vmem:[%s7 + $0xe10] sm:$0xff]
        %v4273 = vld [vmem:[%s7 + $0xe18] sm:$0xff]
        %v4274 = vld [vmem:[%s7 + $0xe20] sm:$0xff]
        %v4275 = vld [vmem:[%s7 + $0xe28] sm:$0xff]
        %v4276 = vld [vmem:[%s7 + $0xe30] sm:$0xff]
        %v4277 = vld [vmem:[%s7 + $0xe38] sm:$0xff]
        %v4278 = vld [vmem:[%s7 + $0xe40] sm:$0xff]
        %v4279 = vld [vmem:[%s7 + $0xe48] sm:$0xff]
        %v4280 = vld [vmem:[%s7 + $0xe50] sm:$0xff]
        %v4281 = vld [vmem:[%s7 + $0xe58] sm:$0xff]
        %v4282 = vld [vmem:[%s7 + $0xe60] sm:$0xff]
        %v4283 = vld [vmem:[%s7 + $0xe68] sm:$0xff]
        %v4284 = vld [vmem:[%s7 + $0xe70] sm:$0xff]
        %v4285 = vld [vmem:[%s7 + $0xe78] sm:$0xff]
        %v4286 = vld [vmem:[%s7 + $0xe80] sm:$0xff]
        %v4287 = vld [vmem:[%s7 + $0xe88] sm:$0xff]
        %v4288 = vld [vmem:[%s7 + $0xe90] sm:$0xff]
        %v4289 = vld [vmem:[%s7 + $0xe98] sm:$0xff]
        %v4290 = vld [vmem:[%s7 + $0xea0] sm:$0xff]
        %v4291 = vld [vmem:[%s7 + $0xea8] sm:$0xff]
        %v4292 = vld [vmem:[%s7 + $0xeb0] sm:$0xff]
        %v4293 = vld [vmem:[%s7 + $0xeb8] sm:$0xff]
        %v4294 = vld [vmem:[%s7 + $0xec0] sm:$0xff]
        %v4295 = vld [vmem:[%s7 + $0xec8] sm:$0xff]
        %v4296 = vld [vmem:[%s7 + $0xed0] sm:$0xff]
        %v4297 = vld [vmem:[%s7 + $0xed8] sm:$0xff]
        %v4298 = vld [vmem:[%s7 + $0xee0] sm:$0xff]
        %v4299 = vld [vmem:[%s7 + $0xee8] sm:$0xff]
        %v4300 = vld [vmem:[%s7 + $0xef0] sm:$0xff]
        %v4301 = vld [vmem:[%s7 + $0xef8] sm:$0xff]
        %v4302 = vld [vmem:[%s7 + $0xf00] sm:$0xff]
        %v4303 = vld [vmem:[%s7 + $0xf08] sm:$0xff]
        %v4304 = vld [vmem:[%s7 + $0xf10] sm:$0xff]
        %v4305 = vld [vmem:[%s7 + $0xf18] sm:$0xff]
        %v4306 = vld [vmem:[%s7 + $0xf20] sm:$0xff]
        %v4307 = vld [vmem:[%s7 + $0xf28] sm:$0xff]
        %v4308 = vld [vmem:[%s7 + $0xf30] sm:$0xff]
        %v4309 = vld [vmem:[%s7 + $0xf38] sm:$0xff]
        %v4310 = vld [vmem:[%s7 + $0xf40] sm:$0xff]
        %v4311 = vld [vmem:[%s7 + $0xf48] sm:$0xff]
        %v4312 = vld [vmem:[%s7 + $0xf50] sm:$0xff]
        %v4313 = vld [vmem:[%s7 + $0xf58] sm:$0xff]
        %v4314 = vld [vmem:[%s7 + $0xf60] sm:$0xff]
        %v4315 = vld [vmem:[%s7 + $0xf68] sm:$0xff]
        %v4316 = vld [vmem:[%s7 + $0xf70] sm:$0xff]
        %v4317 = vld [vmem:[%s7 + $0xf78] sm:$0xff]
        %v4318 = vld [vmem:[%s7 + $0xf80] sm:$0xff]
        %v4319 = vld [vmem:[%s7 + $0xf88] sm:$0xff]
        %v4320 = vld [vmem:[%s7 + $0xf90] sm:$0xff]
        %v4321 = vld [vmem:[%s7 + $0xf98] sm:$0xff]
        %v4322 = vld [vmem:[%s7 + $0xfa0] sm:$0xff]
        %v4323 = vld [vmem:[%s7 + $0xfa8] sm:$0xff]
        %v4324 = vld [vmem:[%s7 + $0xfb0] sm:$0xff]
        %v4325 = vld [vmem:[%s7 + $0xfb8] sm:$0xff]
        %v4326 = vld [vmem:[%s7 + $0xfc0] sm:$0xff]
        %v4327 = vld [vmem:[%s7 + $0xfc8] sm:$0xff]
        %v4328 = vld [vmem:[%s7 + $0xfd0] sm:$0xff]
        %v4329 = vld [vmem:[%s7 + $0xfd8] sm:$0xff]
        %v4330 = vld [vmem:[%s7 + $0xfe0] sm:$0xff]
        %v4331 = vld [vmem:[%s7 + $0xfe8] sm:$0xff]
        %v4332 = vld [vmem:[%s7 + $0xff0] sm:$0xff]
        %v4333 = vld [vmem:[%s7 + $0xff8] sm:$0xff]
        %v4334 = vld [vmem:[%s7 + $0x1000] sm:$0xff]
        %v4335 = vld [vmem:[%s7 + $0x1008] sm:$0xff]
        %v4336 = vld [vmem:[%s7 + $0x1010] sm:$0xff]
        %v4337 = vld [vmem:[%s7 + $0x1018] sm:$0xff]
        %v4338 = vld [vmem:[%s7 + $0x1020] sm:$0xff]
        %v4339 = vld [vmem:[%s7 + $0x1028] sm:$0xff]
        %v4340 = vld [vmem:[%s7 + $0x1030] sm:$0xff]
        %v4341 = vld [vmem:[%s7 + $0x1038] sm:$0xff]
        %v4342 = vld [vmem:[%s7 + $0x1040] sm:$0xff]
        %v4343 = vld [vmem:[%s7 + $0x1048] sm:$0xff]
        %v4344 = vld [vmem:[%s7 + $0x1050] sm:$0xff]
        %v4345 = vld [vmem:[%s7 + $0x1058] sm:$0xff]
        %v4346 = vld [vmem:[%s7 + $0x1060] sm:$0xff]
        %v4347 = vld [vmem:[%s7 + $0x1068] sm:$0xff]
        %v4348 = vld [vmem:[%s7 + $0x1070] sm:$0xff]
        %v4349 = vld [vmem:[%s7 + $0x1078] sm:$0xff]
        %v4350 = vld [vmem:[%s7 + $0x1080] sm:$0xff]
        %v4351 = vld [vmem:[%s7 + $0x1088] sm:$0xff]
        %v4352 = vld [vmem:[%s7 + $0x1090] sm:$0xff]
        %v4353 = vld [vmem:[%s7 + $0x1098] sm:$0xff]
        %v4354 = vld [vmem:[%s7 + $0x10a0] sm:$0xff]
        %v4355 = vld [vmem:[%s7 + $0x10a8] sm:$0xff]
        %v4356 = vld [vmem:[%s7 + $0x10b0] sm:$0xff]
        %v4357 = vld [vmem:[%s7 + $0x10b8] sm:$0xff]
        %v4358 = vld [vmem:[%s7 + $0x10c0] sm:$0xff]
        %v4359 = vld [vmem:[%s7 + $0x10c8] sm:$0xff]
        %v4360 = vld [vmem:[%s7 + $0x10d0] sm:$0xff]
        %v4361 = vld [vmem:[%s7 + $0x10d8] sm:$0xff]
        %v4362 = vld [vmem:[%s7 + $0x10e0] sm:$0xff]
        %v4363 = vld [vmem:[%s7 + $0x10e8] sm:$0xff]
        %v4364 = vld [vmem:[%s7 + $0x10f0] sm:$0xff]
        %v4365 = vld [vmem:[%s7 + $0x10f8] sm:$0xff]
        %v4366 = vld [vmem:[%s7 + $0x1100] sm:$0xff]
        %v4367 = vld [vmem:[%s7 + $0x1108] sm:$0xff]
        %v4368 = vld [vmem:[%s7 + $0x1110] sm:$0xff]
        %v4369 = vld [vmem:[%s7 + $0x1118] sm:$0xff]
        %v4370 = vld [vmem:[%s7 + $0x1120] sm:$0xff]
        %v4371 = vld [vmem:[%s7 + $0x1128] sm:$0xff]
        %v4372 = vld [vmem:[%s7 + $0x1130] sm:$0xff]
        %v4373 = vld [vmem:[%s7 + $0x1138] sm:$0xff]
        %v4374 = vld [vmem:[%s7 + $0x1140] sm:$0xff]
        %v4375 = vld [vmem:[%s7 + $0x1148] sm:$0xff]
        %v4376 = vld [vmem:[%s7 + $0x1150] sm:$0xff]
        %v4377 = vld [vmem:[%s7 + $0x1158] sm:$0xff]
        %v4378 = vld [vmem:[%s7 + $0x1160] sm:$0xff]
        %v4379 = vld [vmem:[%s7 + $0x1168] sm:$0xff]
        %v4380 = vld [vmem:[%s7 + $0x1170] sm:$0xff]
        %v4381 = vld [vmem:[%s7 + $0x1178] sm:$0xff]
        %v4382 = vld [vmem:[%s7 + $0x1180] sm:$0xff]
        %v4383 = vld [vmem:[%s7 + $0x1188] sm:$0xff]
        %v4384 = vld [vmem:[%s7 + $0x1190] sm:$0xff]
        %v4385 = vld [vmem:[%s7 + $0x1198] sm:$0xff]
        %v4386 = vld [vmem:[%s7 + $0x11a0] sm:$0xff]
        %v4387 = vld [vmem:[%s7 + $0x11a8] sm:$0xff]
        %v4388 = vld [vmem:[%s7 + $0x11b0] sm:$0xff]
        %v4389 = vld [vmem:[%s7 + $0x11b8] sm:$0xff]
        %v4390 = vld [vmem:[%s7 + $0x11c0] sm:$0xff]
        %v4391 = vld [vmem:[%s7 + $0x11c8] sm:$0xff]
        %v4392 = vld [vmem:[%s7 + $0x11d0] sm:$0xff]
        %v4393 = vld [vmem:[%s7 + $0x11d8] sm:$0xff]
        %v4394 = vld [vmem:[%s7 + $0x11e0] sm:$0xff]
        %v4395 = vld [vmem:[%s7 + $0x11e8] sm:$0xff]
        %v4396 = vld [vmem:[%s7 + $0x11f0] sm:$0xff]
        %v4397 = vld [vmem:[%s7 + $0x11f8] sm:$0xff]
        %v4398 = vld [vmem:[%s7 + $0x1200] sm:$0xff]
        %v4399 = vld [vmem:[%s7 + $0x1208] sm:$0xff]
        %v4400 = vld [vmem:[%s7 + $0x1210] sm:$0xff]
        %v4401 = vld [vmem:[%s7 + $0x1218] sm:$0xff]
        %v4402 = vld [vmem:[%s7 + $0x1220] sm:$0xff]
        %v4403 = vld [vmem:[%s7 + $0x1228] sm:$0xff]
        %v4404 = vld [vmem:[%s7 + $0x1230] sm:$0xff]
        %v4405 = vld [vmem:[%s7 + $0x1238] sm:$0xff]
        %v4406 = vld [vmem:[%s7 + $0x1240] sm:$0xff]
        %v4407 = vld [vmem:[%s7 + $0x1248] sm:$0xff]
        %v4408 = vld [vmem:[%s7 + $0x1250] sm:$0xff]
        %v4409 = vld [vmem:[%s7 + $0x1258] sm:$0xff]
        %v4410 = vld [vmem:[%s7 + $0x1260] sm:$0xff]
        %v4411 = vld [vmem:[%s7 + $0x1268] sm:$0xff]
        %v4412 = vld [vmem:[%s7 + $0x1270] sm:$0xff]
        %v4413 = vld [vmem:[%s7 + $0x1278] sm:$0xff]
        %v4414 = vld [vmem:[%s7 + $0x1280] sm:$0xff]
        %v4415 = vld [vmem:[%s7 + $0x1288] sm:$0xff]
        %v4416 = vld [vmem:[%s7 + $0x1290] sm:$0xff]
        %v4417 = vld [vmem:[%s7 + $0x1298] sm:$0xff]
        %v4418 = vld [vmem:[%s7 + $0x12a0] sm:$0xff]
        %v4419 = vld [vmem:[%s7 + $0x12a8] sm:$0xff]
        %v4420 = vld [vmem:[%s7 + $0x12b0] sm:$0xff]
        %v4421 = vld [vmem:[%s7 + $0x12b8] sm:$0xff]
        %v4422 = vld [vmem:[%s7 + $0x12c0] sm:$0xff]
        %v4423 = vld [vmem:[%s7 + $0x12c8] sm:$0xff]
        %v4424 = vld [vmem:[%s7 + $0x12d0] sm:$0xff]
        %v4425 = vld [vmem:[%s7 + $0x12d8] sm:$0xff]
        %v4426 = vld [vmem:[%s7 + $0x12e0] sm:$0xff]
        %v4427 = vld [vmem:[%s7 + $0x12e8] sm:$0xff]
        %v4428 = vld [vmem:[%s7 + $0x12f0] sm:$0xff]
        %v4429 = vld [vmem:[%s7 + $0x12f8] sm:$0xff]
        %v4430 = vld [vmem:[%s7 + $0x1300] sm:$0xff]
        %v4431 = vld [vmem:[%s7 + $0x1308] sm:$0xff]
        %v4432 = vld [vmem:[%s7 + $0x1310] sm:$0xff]
        %v4433 = vld [vmem:[%s7 + $0x1318] sm:$0xff]
        %v4434 = vld [vmem:[%s7 + $0x1320] sm:$0xff]
        %v4435 = vld [vmem:[%s7 + $0x1328] sm:$0xff]
        %v4436 = vld [vmem:[%s7 + $0x1330] sm:$0xff]
        %v4437 = vld [vmem:[%s7 + $0x1338] sm:$0xff]
        %v4438 = vld [vmem:[%s7 + $0x1340] sm:$0xff]
        %v4439 = vld [vmem:[%s7 + $0x1348] sm:$0xff]
        %v4440 = vld [vmem:[%s7 + $0x1350] sm:$0xff]
        %v4441 = vld [vmem:[%s7 + $0x1358] sm:$0xff]
        %v4442 = vld [vmem:[%s7 + $0x1360] sm:$0xff]
        %v4443 = vld [vmem:[%s7 + $0x1368] sm:$0xff]
        %v4444 = vld [vmem:[%s7 + $0x1370] sm:$0xff]
        %v4445 = vld [vmem:[%s7 + $0x1378] sm:$0xff]
        %v4446 = vld [vmem:[%s7 + $0x1380] sm:$0xff]
        %v4447 = vld [vmem:[%s7 + $0x1388] sm:$0xff]
        %v4448 = vld [vmem:[%s7 + $0x1390] sm:$0xff]
        %v4449 = vld [vmem:[%s7 + $0x1398] sm:$0xff]
        %v4450 = vld [vmem:[%s7 + $0x13a0] sm:$0xff]
        %v4451 = vld [vmem:[%s7 + $0x13a8] sm:$0xff]
        %v4452 = vld [vmem:[%s7 + $0x13b0] sm:$0xff]
        %v4453 = vld [vmem:[%s7 + $0x13b8] sm:$0xff]
        %v4454 = vld [vmem:[%s7 + $0x13c0] sm:$0xff]
        %v4455 = vld [vmem:[%s7 + $0x13c8] sm:$0xff]
        %v4456 = vld [vmem:[%s7 + $0x13d0] sm:$0xff]
        %v4457 = vld [vmem:[%s7 + $0x13d8] sm:$0xff]
        %v4458 = vld [vmem:[%s7 + $0x13e0] sm:$0xff]
        %v4459 = vld [vmem:[%s7 + $0x13e8] sm:$0xff]
        %v4460 = vld [vmem:[%s7 + $0x13f0] sm:$0xff]
        %v4461 = vld [vmem:[%s7 + $0x13f8] sm:$0xff]
        %v4462 = vld [vmem:[%s7 + $0x1400] sm:$0xff]
        %v4463 = vld [vmem:[%s7 + $0x1408] sm:$0xff]
        %v4464 = vld [vmem:[%s7 + $0x1410] sm:$0xff]
        %v4465 = vld [vmem:[%s7 + $0x1418] sm:$0xff]
        %v4466 = vld [vmem:[%s7 + $0x1420] sm:$0xff]
        %v4467 = vld [vmem:[%s7 + $0x1428] sm:$0xff]
        %v4468 = vld [vmem:[%s7 + $0x1430] sm:$0xff]
        %v4469 = vld [vmem:[%s7 + $0x1438] sm:$0xff]
        %v4470 = vld [vmem:[%s7 + $0x1440] sm:$0xff]
        %v4471 = vld [vmem:[%s7 + $0x1448] sm:$0xff]
        %v4472 = vld [vmem:[%s7 + $0x1450] sm:$0xff]
        %v4473 = vld [vmem:[%s7 + $0x1458] sm:$0xff]
        %v4474 = vld [vmem:[%s7 + $0x1460] sm:$0xff]
        %v4475 = vld [vmem:[%s7 + $0x1468] sm:$0xff]
        %v4476 = vld [vmem:[%s7 + $0x1470] sm:$0xff]
        %v4477 = vld [vmem:[%s7 + $0x1478] sm:$0xff]
        %v4478 = vld [vmem:[%s7 + $0x1480] sm:$0xff]
        %v4479 = vld [vmem:[%s7 + $0x1488] sm:$0xff]
        %v4480 = vld [vmem:[%s7 + $0x1490] sm:$0xff]
        %v4481 = vld [vmem:[%s7 + $0x1498] sm:$0xff]
        %v4482 = vld [vmem:[%s7 + $0x14a0] sm:$0xff]
        %v4483 = vld [vmem:[%s7 + $0x14a8] sm:$0xff]
        %v4484 = vld [vmem:[%s7 + $0x14b0] sm:$0xff]
        %v4485 = vld [vmem:[%s7 + $0x14b8] sm:$0xff]
        %v4486 = vld [vmem:[%s7 + $0x14c0] sm:$0xff]
        %v4487 = vld [vmem:[%s7 + $0x14c8] sm:$0xff]
        %v4488 = vld [vmem:[%s7 + $0x14d0] sm:$0xff]
        %v4489 = vld [vmem:[%s7 + $0x14d8] sm:$0xff]
        %v4490 = vld [vmem:[%s7 + $0x14e0] sm:$0xff]
        %v4491 = vld [vmem:[%s7 + $0x14e8] sm:$0xff]
        %v4492 = vld [vmem:[%s7 + $0x14f0] sm:$0xff]
        %v4493 = vld [vmem:[%s7 + $0x14f8] sm:$0xff]
        %v4494 = vld [vmem:[%s7 + $0x1500] sm:$0xff]
        %v4495 = vld [vmem:[%s7 + $0x1508] sm:$0xff]
        %v4496 = vld [vmem:[%s7 + $0x1510] sm:$0xff]
        %v4497 = vld [vmem:[%s7 + $0x1518] sm:$0xff]
        %v4498 = vld [vmem:[%s7 + $0x1520] sm:$0xff]
        %v4499 = vld [vmem:[%s7 + $0x1528] sm:$0xff]
        %v4500 = vld [vmem:[%s7 + $0x1530] sm:$0xff]
        %v4501 = vld [vmem:[%s7 + $0x1538] sm:$0xff]
        %v4502 = vld [vmem:[%s7 + $0x1540] sm:$0xff]
        %v4503 = vld [vmem:[%s7 + $0x1548] sm:$0xff]
        %v4504 = vld [vmem:[%s7 + $0x1550] sm:$0xff]
        %v4505 = vld [vmem:[%s7 + $0x1558] sm:$0xff]
        %v4506 = vld [vmem:[%s7 + $0x1560] sm:$0xff]
        %v4507 = vld [vmem:[%s7 + $0x1568] sm:$0xff]
        %v4508 = vld [vmem:[%s7 + $0x1570] sm:$0xff]
        %v4509 = vld [vmem:[%s7 + $0x1578] sm:$0xff]
        %v4510 = vld [vmem:[%s7 + $0x1580] sm:$0xff]
        %v4511 = vld [vmem:[%s7 + $0x1588] sm:$0xff]
        %v4512 = vld [vmem:[%s7 + $0x1590] sm:$0xff]
        %v4513 = vld [vmem:[%s7 + $0x1598] sm:$0xff]
        %v4514 = vld [vmem:[%s7 + $0x15a0] sm:$0xff]
        %v4515 = vld [vmem:[%s7 + $0x15a8] sm:$0xff]
        %v4516 = vld [vmem:[%s7 + $0x15b0] sm:$0xff]
        %v4517 = vld [vmem:[%s7 + $0x15b8] sm:$0xff]
        %v4518 = vld [vmem:[%s7 + $0x15c0] sm:$0xff]
        %v4519 = vld [vmem:[%s7 + $0x15c8] sm:$0xff]
        %v4520 = vld [vmem:[%s7 + $0x15d0] sm:$0xff]
        %v4521 = vld [vmem:[%s7 + $0x15d8] sm:$0xff]
        %v4522 = vld [vmem:[%s7 + $0x15e0] sm:$0xff]
        %v4523 = vld [vmem:[%s7 + $0x15e8] sm:$0xff]
        %v4524 = vld [vmem:[%s7 + $0x15f0] sm:$0xff]
        %v4525 = vld [vmem:[%s7 + $0x15f8] sm:$0xff]
        %v4526 = vld [vmem:[%s7 + $0x1600] sm:$0xff]
        %v4527 = vld [vmem:[%s7 + $0x1608] sm:$0xff]
        %v4528 = vld [vmem:[%s7 + $0x1610] sm:$0xff]
        %v4529 = vld [vmem:[%s7 + $0x1618] sm:$0xff]
        %v4530 = vld [vmem:[%s7 + $0x1620] sm:$0xff]
        %v4531 = vld [vmem:[%s7 + $0x1628] sm:$0xff]
        %v4532 = vld [vmem:[%s7 + $0x1630] sm:$0xff]
        %v4533 = vld [vmem:[%s7 + $0x1638] sm:$0xff]
        %v4534 = vld [vmem:[%s7 + $0x1640] sm:$0xff]
        %v4535 = vld [vmem:[%s7 + $0x1648] sm:$0xff]
        %v4536 = vld [vmem:[%s7 + $0x1650] sm:$0xff]
        %v4537 = vld [vmem:[%s7 + $0x1658] sm:$0xff]
        %v4538 = vld [vmem:[%s7 + $0x1660] sm:$0xff]
        %v4539 = vld [vmem:[%s7 + $0x1668] sm:$0xff]
        %v4540 = vld [vmem:[%s7 + $0x1670] sm:$0xff]
        %v4541 = vld [vmem:[%s7 + $0x1678] sm:$0xff]
        %v4542 = vld [vmem:[%s7 + $0x1680] sm:$0xff]
        %v4543 = vld [vmem:[%s7 + $0x1688] sm:$0xff]
        %v4544 = vld [vmem:[%s7 + $0x1690] sm:$0xff]
        %v4545 = vld [vmem:[%s7 + $0x1698] sm:$0xff]
        %v4546 = vld [vmem:[%s7 + $0x16a0] sm:$0xff]
        %v4547 = vld [vmem:[%s7 + $0x16a8] sm:$0xff]
        %v4548 = vld [vmem:[%s7 + $0x16b0] sm:$0xff]
        %v4549 = vld [vmem:[%s7 + $0x16b8] sm:$0xff]
        %v4550 = vld [vmem:[%s7 + $0x16c0] sm:$0xff]
        %v4551 = vld [vmem:[%s7 + $0x16c8] sm:$0xff]
        %v4552 = vld [vmem:[%s7 + $0x16d0] sm:$0xff]
        %v4553 = vld [vmem:[%s7 + $0x16d8] sm:$0xff]
        %v4554 = vld [vmem:[%s7 + $0x16e0] sm:$0xff]
        %v4555 = vld [vmem:[%s7 + $0x16e8] sm:$0xff]
        %v4556 = vld [vmem:[%s7 + $0x16f0] sm:$0xff]
        %v4557 = vld [vmem:[%s7 + $0x16f8] sm:$0xff]
        %v4558 = vld [vmem:[%s7 + $0x1700] sm:$0xff]
        %v4559 = vld [vmem:[%s7 + $0x1708] sm:$0xff]
        %v4560 = vld [vmem:[%s7 + $0x1710] sm:$0xff]
        %v4561 = vld [vmem:[%s7 + $0x1718] sm:$0xff]
        %v4562 = vld [vmem:[%s7 + $0x1720] sm:$0xff]
        %v4563 = vld [vmem:[%s7 + $0x1728] sm:$0xff]
        %v4564 = vld [vmem:[%s7 + $0x1730] sm:$0xff]
        %v4565 = vld [vmem:[%s7 + $0x1738] sm:$0xff]
        %v4566 = vld [vmem:[%s7 + $0x1740] sm:$0xff]
        %v4567 = vld [vmem:[%s7 + $0x1748] sm:$0xff]
        %v4568 = vld [vmem:[%s7 + $0x1750] sm:$0xff]
        %v4569 = vld [vmem:[%s7 + $0x1758] sm:$0xff]
        %v4570 = vld [vmem:[%s7 + $0x1760] sm:$0xff]
        %v4571 = vld [vmem:[%s7 + $0x1768] sm:$0xff]
        %v4572 = vld [vmem:[%s7 + $0x1770] sm:$0xff]
        %v4573 = vld [vmem:[%s7 + $0x1778] sm:$0xff]
        %v4574 = vld [vmem:[%s7 + $0x1780] sm:$0xff]
        %v4575 = vld [vmem:[%s7 + $0x1788] sm:$0xff]
        %v4576 = vld [vmem:[%s7 + $0x1790] sm:$0xff]
        %v4577 = vld [vmem:[%s7 + $0x1798] sm:$0xff]
        %v4578 = vld [vmem:[%s7 + $0x17a0] sm:$0xff]
        %v4579 = vld [vmem:[%s7 + $0x17a8] sm:$0xff]
        %v4580 = vld [vmem:[%s7 + $0x17b0] sm:$0xff]
        %v4581 = vld [vmem:[%s7 + $0x17b8] sm:$0xff]
        %v4582 = vld [vmem:[%s7 + $0x17c0] sm:$0xff]
        %v4583 = vld [vmem:[%s7 + $0x17c8] sm:$0xff]
        %v4584 = vld [vmem:[%s7 + $0x17d0] sm:$0xff]
        %v4585 = vld [vmem:[%s7 + $0x17d8] sm:$0xff]
        %v4586 = vld [vmem:[%s7 + $0x17e0] sm:$0xff]
        %v4587 = vld [vmem:[%s7 + $0x17e8] sm:$0xff]
        %v4588 = vld [vmem:[%s7 + $0x17f0] sm:$0xff]
        %v4589 = vld [vmem:[%s7 + $0x17f8] sm:$0xff]
        %v4590 = vld [vmem:[%s7 + $0x1800] sm:$0xff]
        %v4591 = vld [vmem:[%s7 + $0x1808] sm:$0xff]
        %v4592 = vld [vmem:[%s7 + $0x1810] sm:$0xff]
        %v4593 = vld [vmem:[%s7 + $0x1818] sm:$0xff]
        %v4594 = vld [vmem:[%s7 + $0x1820] sm:$0xff]
        %v4595 = vld [vmem:[%s7 + $0x1828] sm:$0xff]
        %v4596 = vld [vmem:[%s7 + $0x1830] sm:$0xff]
        %v4597 = vld [vmem:[%s7 + $0x1838] sm:$0xff]
        %v4598 = vld [vmem:[%s7 + $0x1840] sm:$0xff]
        %v4599 = vld [vmem:[%s7 + $0x1848] sm:$0xff]
        %v4600 = vld [vmem:[%s7 + $0x1850] sm:$0xff]
        %v4601 = vld [vmem:[%s7 + $0x1858] sm:$0xff]
        %v4602 = vld [vmem:[%s7 + $0x1860] sm:$0xff]
        %v4603 = vld [vmem:[%s7 + $0x1868] sm:$0xff]
        %v4604 = vld [vmem:[%s7 + $0x1870] sm:$0xff]
        %v4605 = vld [vmem:[%s7 + $0x1878] sm:$0xff]
        %v4606 = vld [vmem:[%s7 + $0x1880] sm:$0xff]
        %v4607 = vld [vmem:[%s7 + $0x1888] sm:$0xff]
        %v4608 = vld [vmem:[%s7 + $0x1890] sm:$0xff]
        %v4609 = vld [vmem:[%s7 + $0x1898] sm:$0xff]
        %v4610 = vld [vmem:[%s7 + $0x18a0] sm:$0xff]
        %v4611 = vld [vmem:[%s7 + $0x18a8] sm:$0xff]
        %v4612 = vld [vmem:[%s7 + $0x18b0] sm:$0xff]
        %v4613 = vld [vmem:[%s7 + $0x18b8] sm:$0xff]
        %v4614 = vld [vmem:[%s7 + $0x18c0] sm:$0xff]
        %v4615 = vld [vmem:[%s7 + $0x18c8] sm:$0xff]
        %v4616 = vld [vmem:[%s7 + $0x18d0] sm:$0xff]
        %v4617 = vld [vmem:[%s7 + $0x18d8] sm:$0xff]
        %v4618 = vld [vmem:[%s7 + $0x18e0] sm:$0xff]
        %v4619 = vld [vmem:[%s7 + $0x18e8] sm:$0xff]
        %v4620 = vld [vmem:[%s7 + $0x18f0] sm:$0xff]
        %v4621 = vld [vmem:[%s7 + $0x18f8] sm:$0xff]
        %v4622 = vld [vmem:[%s8] sm:$0x1]
        %v4630 = vlaneseq
        %v4631 = vshrl.u32 %v4630, 7
        %v4632 = vsub.s32 0, %v4631
        %v4633 = vrot.slane %v3815, %v4632
        %v4634 = vlaneseq
        %v4635 = vshrl.u32 %v4634, 7
        %v4636 = vsub.s32 1, %v4635
        %v4637 = vrot.slane %v3815, %v4636
        %v4638 = vlaneseq
        %v4639 = vshrl.u32 %v4638, 7
        %v4640 = vsub.s32 2, %v4639
        %v4641 = vrot.slane %v3815, %v4640
        %v4642 = vlaneseq
        %v4643 = vshrl.u32 %v4642, 7
        %v4644 = vsub.s32 3, %v4643
        %v4645 = vrot.slane %v3815, %v4644
        %v4646 = vlaneseq
        %v4647 = vshrl.u32 %v4646, 7
        %v4648 = vsub.s32 4, %v4647
        %v4649 = vrot.slane %v3815, %v4648
        %v4650 = vlaneseq
        %v4651 = vshrl.u32 %v4650, 7
        %v4652 = vsub.s32 5, %v4651
        %v4653 = vrot.slane %v3815, %v4652
        %v4654 = vlaneseq
        %v4655 = vshrl.u32 %v4654, 7
        %v4656 = vsub.s32 6, %v4655
        %v4657 = vrot.slane %v3815, %v4656
        %v4658 = vlaneseq
        %v4659 = vshrl.u32 %v4658, 7
        %v4660 = vsub.s32 7, %v4659
        %v4661 = vrot.slane %v3815, %v4660
        %v4662 = vlaneseq
        %v4663 = vshrl.u32 %v4662, 7
        %v4664 = vsub.s32 0, %v4663
        %v4665 = vrot.slane %v3816, %v4664
        %v4666 = vlaneseq
        %v4667 = vshrl.u32 %v4666, 7
        %v4668 = vsub.s32 1, %v4667
        %v4669 = vrot.slane %v3816, %v4668
        %v4670 = vlaneseq
        %v4671 = vshrl.u32 %v4670, 7
        %v4672 = vsub.s32 2, %v4671
        %v4673 = vrot.slane %v3816, %v4672
        %v4674 = vlaneseq
        %v4675 = vshrl.u32 %v4674, 7
        %v4676 = vsub.s32 3, %v4675
        %v4677 = vrot.slane %v3816, %v4676
        %v4678 = vlaneseq
        %v4679 = vshrl.u32 %v4678, 7
        %v4680 = vsub.s32 4, %v4679
        %v4681 = vrot.slane %v3816, %v4680
        %v4682 = vlaneseq
        %v4683 = vshrl.u32 %v4682, 7
        %v4684 = vsub.s32 5, %v4683
        %v4685 = vrot.slane %v3816, %v4684
        %v4686 = vlaneseq
        %v4687 = vshrl.u32 %v4686, 7
        %v4688 = vsub.s32 6, %v4687
        %v4689 = vrot.slane %v3816, %v4688
        %v4690 = vlaneseq
        %v4691 = vshrl.u32 %v4690, 7
        %v4692 = vsub.s32 7, %v4691
        %v4693 = vrot.slane %v3816, %v4692
        %v4694 = vlaneseq
        %v4695 = vshrl.u32 %v4694, 7
        %v4696 = vsub.s32 0, %v4695
        %v4697 = vrot.slane %v3817, %v4696
        %v4698 = vlaneseq
        %v4699 = vshrl.u32 %v4698, 7
        %v4700 = vsub.s32 1, %v4699
        %v4701 = vrot.slane %v3817, %v4700
        %v4702 = vlaneseq
        %v4703 = vshrl.u32 %v4702, 7
        %v4704 = vsub.s32 2, %v4703
        %v4705 = vrot.slane %v3817, %v4704
        %v4706 = vlaneseq
        %v4707 = vshrl.u32 %v4706, 7
        %v4708 = vsub.s32 3, %v4707
        %v4709 = vrot.slane %v3817, %v4708
        %v4710 = vlaneseq
        %v4711 = vshrl.u32 %v4710, 7
        %v4712 = vsub.s32 4, %v4711
        %v4713 = vrot.slane %v3817, %v4712
        %v4714 = vlaneseq
        %v4715 = vshrl.u32 %v4714, 7
        %v4716 = vsub.s32 5, %v4715
        %v4717 = vrot.slane %v3817, %v4716
        %v4718 = vlaneseq
        %v4719 = vshrl.u32 %v4718, 7
        %v4720 = vsub.s32 6, %v4719
        %v4721 = vrot.slane %v3817, %v4720
        %v4722 = vlaneseq
        %v4723 = vshrl.u32 %v4722, 7
        %v4724 = vsub.s32 7, %v4723
        %v4725 = vrot.slane %v3817, %v4724
        %v4726 = vlaneseq
        %v4727 = vshrl.u32 %v4726, 7
        %v4728 = vsub.s32 0, %v4727
        %v4729 = vrot.slane %v3818, %v4728
        %v4730 = vlaneseq
        %v4731 = vshrl.u32 %v4730, 7
        %v4732 = vsub.s32 1, %v4731
        %v4733 = vrot.slane %v3818, %v4732
        %v4734 = vlaneseq
        %v4735 = vshrl.u32 %v4734, 7
        %v4736 = vsub.s32 2, %v4735
        %v4737 = vrot.slane %v3818, %v4736
        %v4738 = vlaneseq
        %v4739 = vshrl.u32 %v4738, 7
        %v4740 = vsub.s32 3, %v4739
        %v4741 = vrot.slane %v3818, %v4740
        %v4742 = vlaneseq
        %v4743 = vshrl.u32 %v4742, 7
        %v4744 = vsub.s32 4, %v4743
        %v4745 = vrot.slane %v3818, %v4744
        %v4746 = vlaneseq
        %v4747 = vshrl.u32 %v4746, 7
        %v4748 = vsub.s32 5, %v4747
        %v4749 = vrot.slane %v3818, %v4748
        %v4750 = vlaneseq
        %v4751 = vshrl.u32 %v4750, 7
        %v4752 = vsub.s32 6, %v4751
        %v4753 = vrot.slane %v3818, %v4752
        %v4754 = vlaneseq
        %v4755 = vshrl.u32 %v4754, 7
        %v4756 = vsub.s32 7, %v4755
        %v4757 = vrot.slane %v3818, %v4756
        %v4758 = vlaneseq
        %v4759 = vshrl.u32 %v4758, 7
        %v4760 = vsub.s32 0, %v4759
        %v4761 = vrot.slane %v3819, %v4760
        %v4762 = vlaneseq
        %v4763 = vshrl.u32 %v4762, 7
        %v4764 = vsub.s32 1, %v4763
        %v4765 = vrot.slane %v3819, %v4764
        %v4766 = vlaneseq
        %v4767 = vshrl.u32 %v4766, 7
        %v4768 = vsub.s32 2, %v4767
        %v4769 = vrot.slane %v3819, %v4768
        %v4770 = vlaneseq
        %v4771 = vshrl.u32 %v4770, 7
        %v4772 = vsub.s32 3, %v4771
        %v4773 = vrot.slane %v3819, %v4772
        %v4774 = vlaneseq
        %v4775 = vshrl.u32 %v4774, 7
        %v4776 = vsub.s32 4, %v4775
        %v4777 = vrot.slane %v3819, %v4776
        %v4778 = vlaneseq
        %v4779 = vshrl.u32 %v4778, 7
        %v4780 = vsub.s32 5, %v4779
        %v4781 = vrot.slane %v3819, %v4780
        %v4782 = vlaneseq
        %v4783 = vshrl.u32 %v4782, 7
        %v4784 = vsub.s32 6, %v4783
        %v4785 = vrot.slane %v3819, %v4784
        %v4786 = vlaneseq
        %v4787 = vshrl.u32 %v4786, 7
        %v4788 = vsub.s32 7, %v4787
        %v4789 = vrot.slane %v3819, %v4788
        %v4790 = vlaneseq
        %v4791 = vshrl.u32 %v4790, 7
        %v4792 = vsub.s32 0, %v4791
        %v4793 = vrot.slane %v3820, %v4792
        %v4794 = vlaneseq
        %v4795 = vshrl.u32 %v4794, 7
        %v4796 = vsub.s32 1, %v4795
        %v4797 = vrot.slane %v3820, %v4796
        %v4798 = vlaneseq
        %v4799 = vshrl.u32 %v4798, 7
        %v4800 = vsub.s32 2, %v4799
        %v4801 = vrot.slane %v3820, %v4800
        %v4802 = vlaneseq
        %v4803 = vshrl.u32 %v4802, 7
        %v4804 = vsub.s32 3, %v4803
        %v4805 = vrot.slane %v3820, %v4804
        %v4806 = vlaneseq
        %v4807 = vshrl.u32 %v4806, 7
        %v4808 = vsub.s32 4, %v4807
        %v4809 = vrot.slane %v3820, %v4808
        %v4810 = vlaneseq
        %v4811 = vshrl.u32 %v4810, 7
        %v4812 = vsub.s32 5, %v4811
        %v4813 = vrot.slane %v3820, %v4812
        %v4814 = vlaneseq
        %v4815 = vshrl.u32 %v4814, 7
        %v4816 = vsub.s32 6, %v4815
        %v4817 = vrot.slane %v3820, %v4816
        %v4818 = vlaneseq
        %v4819 = vshrl.u32 %v4818, 7
        %v4820 = vsub.s32 7, %v4819
        %v4821 = vrot.slane %v3820, %v4820
        %v4822 = vlaneseq
        %v4823 = vshrl.u32 %v4822, 7
        %v4824 = vsub.s32 0, %v4823
        %v4825 = vrot.slane %v3821, %v4824
        %v4826 = vlaneseq
        %v4827 = vshrl.u32 %v4826, 7
        %v4828 = vsub.s32 1, %v4827
        %v4829 = vrot.slane %v3821, %v4828
        %4880 = vmatprep.subr.mxu0 0.0
        %4881 = vmatpush1.msra.mxu0 %v3822
        %4882 = vmatprep.subr.mxu0 0.0
        %4883 = vmatpush1.msra.mxu0 %v3823
        %4884 = vmatprep.subr.mxu0 0.0
        %4885 = vmatpush1.msra.mxu0 %v3824
        %4886 = vmatprep.subr.mxu0 0.0
        %4887 = vmatpush1.msra.mxu0 %v3825
        %4888 = vmatprep.subr.mxu0 0.0
        %4889 = vmatpush1.msra.mxu0 %v3826
        %4890 = vmatprep.subr.mxu0 0.0
        %4891 = vmatpush1.msra.mxu0 %v3827
        %4892 = vmatprep.subr.mxu0 0.0
        %4893 = vmatpush1.msra.mxu0 %v3828
        %4894 = vmatprep.subr.mxu0 0.0
        %4895 = vmatpush1.msra.mxu0 %v3829
        %4896 = vmatprep.subr.mxu0 0.0
        %4897 = vmatpush1.msra.mxu0 %v3830
        %4898 = vmatprep.subr.mxu0 0.0
        %4899 = vmatpush1.msra.mxu0 %v3831
        %4900 = vmatprep.subr.mxu0 0.0
        %4901 = vmatpush1.msra.mxu0 %v3832
        %4902 = vmatprep.subr.mxu0 0.0
        %4903 = vmatpush1.msra.mxu0 %v3833
        %4904 = vmatprep.subr.mxu0 0.0
        %4905 = vmatpush1.msra.mxu0 %v3834
        %4906 = vmatprep.subr.mxu0 0.0
        %4907 = vmatpush1.msra.mxu0 %v3835
        %4908 = vmatprep.subr.mxu0 0.0
        %4909 = vmatpush1.msra.mxu0 %v3836
        %4910 = vmatprep.subr.mxu0 0.0
        %4911 = vmatpush1.msra.mxu0 %v3837
        %4912 = vmatprep.subr.mxu0 0.0
        %4913 = vmatpush1.msra.mxu0 %v3838
        %4914 = vmatprep.subr.mxu0 0.0
        %4915 = vmatpush1.msra.mxu0 %v3839
        %4916 = vmatprep.subr.mxu0 0.0
        %4917 = vmatpush1.msra.mxu0 %v3840
        %4918 = vmatprep.subr.mxu0 0.0
        %4919 = vmatpush1.msra.mxu0 %v3841
        %4920 = vmatprep.subr.mxu0 0.0
        %4921 = vmatpush1.msra.mxu0 %v3842
        %4922 = vmatprep.subr.mxu0 0.0
        %4923 = vmatpush1.msra.mxu0 %v3843
        %4924 = vmatprep.subr.mxu0 0.0
        %4925 = vmatpush1.msra.mxu0 %v3844
        %4926 = vmatprep.subr.mxu0 0.0
        %4927 = vmatpush1.msra.mxu0 %v3845
        %4928 = vmatprep.subr.mxu0 0.0
        %4929 = vmatpush1.msra.mxu0 %v3846
        %4930 = vmatprep.subr.mxu0 0.0
        %4931 = vmatpush1.msra.mxu0 %v3847
        %4932 = vmatprep.subr.mxu0 0.0
        %4933 = vmatpush1.msra.mxu0 %v3848
        %4934 = vmatprep.subr.mxu0 0.0
        %4935 = vmatpush1.msra.mxu0 %v3849
        %4936 = vmatprep.subr.mxu0 0.0
        %4937 = vmatpush1.msra.mxu0 %v3850
        %4938 = vmatprep.subr.mxu0 0.0
        %4939 = vmatpush1.msra.mxu0 %v3851
        %4940 = vmatprep.subr.mxu0 0.0
        %4941 = vmatpush1.msra.mxu0 %v3852
        %4942 = vmatprep.subr.mxu0 0.0
        %4943 = vmatpush1.msra.mxu0 %v3853
        %4944 = vmatprep.mubr.f32.mxu0 %v4637
        %4945 = vmatmul.mubr.f32.gmra.mrb[0].mxu0 %v4633
        %v4946 = vpop.f32.mrb[0].mxu0
        %v4947 = vadd.f32 %v4622, %v4946
        %v4948 = vpop.f32.mrb[0].mxu0
        %4949 = vdwg.mxu0
        %4950 = vmatprep.subr.mxu0 0.0
        %4951 = vmatpush1.msra.mxu0 %v3854
        %4952 = vmatprep.subr.mxu0 0.0
        %4953 = vmatpush1.msra.mxu0 %v3855
        %4954 = vmatprep.subr.mxu0 0.0
        %4955 = vmatpush1.msra.mxu0 %v3856
        %4956 = vmatprep.subr.mxu0 0.0
        %4957 = vmatpush1.msra.mxu0 %v3857
        %4958 = vmatprep.subr.mxu0 0.0
        %4959 = vmatpush1.msra.mxu0 %v3858
        %4960 = vmatprep.subr.mxu0 0.0
        %4961 = vmatpush1.msra.mxu0 %v3859
        %4962 = vmatprep.subr.mxu0 0.0
        %4963 = vmatpush1.msra.mxu0 %v3860
        %4964 = vmatprep.subr.mxu0 0.0
        %4965 = vmatpush1.msra.mxu0 %v3861
        %4966 = vmatprep.subr.mxu0 0.0
        %4967 = vmatpush1.msra.mxu0 %v3862
        %4968 = vmatprep.subr.mxu0 0.0
        %4969 = vmatpush1.msra.mxu0 %v3863
        %4970 = vmatprep.subr.mxu0 0.0
        %4971 = vmatpush1.msra.mxu0 %v3864
        %4972 = vmatprep.subr.mxu0 0.0
        %4973 = vmatpush1.msra.mxu0 %v3865
        %4974 = vmatprep.subr.mxu0 0.0
        %4975 = vmatpush1.msra.mxu0 %v3866
        %4976 = vmatprep.subr.mxu0 0.0
        %4977 = vmatpush1.msra.mxu0 %v3867
        %4978 = vmatprep.subr.mxu0 0.0
        %4979 = vmatpush1.msra.mxu0 %v3868
        %4980 = vmatprep.subr.mxu0 0.0
        %4981 = vmatpush1.msra.mxu0 %v3869
        %4982 = vmatprep.subr.mxu0 0.0
        %4983 = vmatpush1.msra.mxu0 %v3870
        %4984 = vmatprep.subr.mxu0 0.0
        %4985 = vmatpush1.msra.mxu0 %v3871
        %4986 = vmatprep.subr.mxu0 0.0
        %4987 = vmatpush1.msra.mxu0 %v3872
        %4988 = vmatprep.subr.mxu0 0.0
        %4989 = vmatpush1.msra.mxu0 %v3873
        %4990 = vmatprep.subr.mxu0 0.0
        %4991 = vmatpush1.msra.mxu0 %v3874
        %4992 = vmatprep.subr.mxu0 0.0
        %4993 = vmatpush1.msra.mxu0 %v3875
        %4994 = vmatprep.subr.mxu0 0.0
        %4995 = vmatpush1.msra.mxu0 %v3876
        %4996 = vmatprep.subr.mxu0 0.0
        %4997 = vmatpush1.msra.mxu0 %v3877
        %4998 = vmatprep.subr.mxu0 0.0
        %4999 = vmatpush1.msra.mxu0 %v3878
        %5000 = vmatprep.subr.mxu0 0.0
        %5001 = vmatpush1.msra.mxu0 %v3879
        %5002 = vmatprep.subr.mxu0 0.0
        %5003 = vmatpush1.msra.mxu0 %v3880
        %5004 = vmatprep.subr.mxu0 0.0
        %5005 = vmatpush1.msra.mxu0 %v3881
        %5006 = vmatprep.subr.mxu0 0.0
        %5007 = vmatpush1.msra.mxu0 %v3882
        %5008 = vmatprep.subr.mxu0 0.0
        %5009 = vmatpush1.msra.mxu0 %v3883
        %5010 = vmatprep.subr.mxu0 0.0
        %5011 = vmatpush1.msra.mxu0 %v3884
        %5012 = vmatprep.subr.mxu0 0.0
        %5013 = vmatpush1.msra.mxu0 %v3885
        %5014 = vmatprep.mubr.f32.mxu0 %v4645
        %5015 = vmatmul.mubr.f32.gmra.mrb[0].mxu0 %v4641
        %v5016 = vpop.f32.mrb[0].mxu0
        %v5017 = vadd.f32 %v4947, %v5016
        %v5018 = vpop.f32.mrb[0].mxu0
        %5019 = vdwg.mxu0
        %5020 = vmatprep.subr.mxu0 0.0
        %5021 = vmatpush1.msra.mxu0 %v3886
        %5022 = vmatprep.subr.mxu0 0.0
        %5023 = vmatpush1.msra.mxu0 %v3887
        %5024 = vmatprep.subr.mxu0 0.0
        %5025 = vmatpush1.msra.mxu0 %v3888
        %5026 = vmatprep.subr.mxu0 0.0
        %5027 = vmatpush1.msra.mxu0 %v3889
        %5028 = vmatprep.subr.mxu0 0.0
        %5029 = vmatpush1.msra.mxu0 %v3890
        %5030 = vmatprep.subr.mxu0 0.0
        %5031 = vmatpush1.msra.mxu0 %v3891
        %5032 = vmatprep.subr.mxu0 0.0
        %5033 = vmatpush1.msra.mxu0 %v3892
        %5034 = vmatprep.subr.mxu0 0.0
        %5035 = vmatpush1.msra.mxu0 %v3893
        %5036 = vmatprep.subr.mxu0 0.0
        %5037 = vmatpush1.msra.mxu0 %v3894
        %5038 = vmatprep.subr.mxu0 0.0
        %5039 = vmatpush1.msra.mxu0 %v3895
        %5040 = vmatprep.subr.mxu0 0.0
        %5041 = vmatpush1.msra.mxu0 %v3896
        %5042 = vmatprep.subr.mxu0 0.0
        %5043 = vmatpush1.msra.mxu0 %v3897
        %5044 = vmatprep.subr.mxu0 0.0
        %5045 = vmatpush1.msra.mxu0 %v3898
        %5046 = vmatprep.subr.mxu0 0.0
        %5047 = vmatpush1.msra.mxu0 %v3899
        %5048 = vmatprep.subr.mxu0 0.0
        %5049 = vmatpush1.msra.mxu0 %v3900
        %5050 = vmatprep.subr.mxu0 0.0
        %5051 = vmatpush1.msra.mxu0 %v3901
        %5052 = vmatprep.subr.mxu0 0.0
        %5053 = vmatpush1.msra.mxu0 %v3902
        %5054 = vmatprep.subr.mxu0 0.0
        %5055 = vmatpush1.msra.mxu0 %v3903
        %5056 = vmatprep.subr.mxu0 0.0
        %5057 = vmatpush1.msra.mxu0 %v3904
        %5058 = vmatprep.subr.mxu0 0.0
        %5059 = vmatpush1.msra.mxu0 %v3905
        %5060 = vmatprep.subr.mxu0 0.0
        %5061 = vmatpush1.msra.mxu0 %v3906
        %5062 = vmatprep.subr.mxu0 0.0
        %5063 = vmatpush1.msra.mxu0 %v3907
        %5064 = vmatprep.subr.mxu0 0.0
        %5065 = vmatpush1.msra.mxu0 %v3908
        %5066 = vmatprep.subr.mxu0 0.0
        %5067 = vmatpush1.msra.mxu0 %v3909
        %5068 = vmatprep.subr.mxu0 0.0
        %5069 = vmatpush1.msra.mxu0 %v3910
        %5070 = vmatprep.subr.mxu0 0.0
        %5071 = vmatpush1.msra.mxu0 %v3911
        %5072 = vmatprep.subr.mxu0 0.0
        %5073 = vmatpush1.msra.mxu0 %v3912
        %5074 = vmatprep.subr.mxu0 0.0
        %5075 = vmatpush1.msra.mxu0 %v3913
        %5076 = vmatprep.subr.mxu0 0.0
        %5077 = vmatpush1.msra.mxu0 %v3914
        %5078 = vmatprep.subr.mxu0 0.0
        %5079 = vmatpush1.msra.mxu0 %v3915
        %5080 = vmatprep.subr.mxu0 0.0
        %5081 = vmatpush1.msra.mxu0 %v3916
        %5082 = vmatprep.subr.mxu0 0.0
        %5083 = vmatpush1.msra.mxu0 %v3917
        %5084 = vmatprep.mubr.f32.mxu0 %v4653
        %5085 = vmatmul.mubr.f32.gmra.mrb[0].mxu0 %v4649
        %v5086 = vpop.f32.mrb[0].mxu0
        %v5087 = vadd.f32 %v5017, %v5086
        %v5088 = vpop.f32.mrb[0].mxu0
        %5089 = vdwg.mxu0
        %5090 = vmatprep.subr.mxu0 0.0
        %5091 = vmatpush1.msra.mxu0 %v3918
        %5092 = vmatprep.subr.mxu0 0.0
        %5093 = vmatpush1.msra.mxu0 %v3919
        %5094 = vmatprep.subr.mxu0 0.0
        %5095 = vmatpush1.msra.mxu0 %v3920
        %5096 = vmatprep.subr.mxu0 0.0
        %5097 = vmatpush1.msra.mxu0 %v3921
        %5098 = vmatprep.subr.mxu0 0.0
        %5099 = vmatpush1.msra.mxu0 %v3922
        %5100 = vmatprep.subr.mxu0 0.0
        %5101 = vmatpush1.msra.mxu0 %v3923
        %5102 = vmatprep.subr.mxu0 0.0
        %5103 = vmatpush1.msra.mxu0 %v3924
        %5104 = vmatprep.subr.mxu0 0.0
        %5105 = vmatpush1.msra.mxu0 %v3925
        %5106 = vmatprep.subr.mxu0 0.0
        %5107 = vmatpush1.msra.mxu0 %v3926
        %5108 = vmatprep.subr.mxu0 0.0
        %5109 = vmatpush1.msra.mxu0 %v3927
        %5110 = vmatprep.subr.mxu0 0.0
        %5111 = vmatpush1.msra.mxu0 %v3928
        %5112 = vmatprep.subr.mxu0 0.0
        %5113 = vmatpush1.msra.mxu0 %v3929
        %5114 = vmatprep.subr.mxu0 0.0
        %5115 = vmatpush1.msra.mxu0 %v3930
        %5116 = vmatprep.subr.mxu0 0.0
        %5117 = vmatpush1.msra.mxu0 %v3931
        %5118 = vmatprep.subr.mxu0 0.0
        %5119 = vmatpush1.msra.mxu0 %v3932
        %5120 = vmatprep.subr.mxu0 0.0
        %5121 = vmatpush1.msra.mxu0 %v3933
        %5122 = vmatprep.subr.mxu0 0.0
        %5123 = vmatpush1.msra.mxu0 %v3934
        %5124 = vmatprep.subr.mxu0 0.0
        %5125 = vmatpush1.msra.mxu0 %v3935
        %5126 = vmatprep.subr.mxu0 0.0
        %5127 = vmatpush1.msra.mxu0 %v3936
        %5128 = vmatprep.subr.mxu0 0.0
        %5129 = vmatpush1.msra.mxu0 %v3937
        %5130 = vmatprep.subr.mxu0 0.0
        %5131 = vmatpush1.msra.mxu0 %v3938
        %5132 = vmatprep.subr.mxu0 0.0
        %5133 = vmatpush1.msra.mxu0 %v3939
        %5134 = vmatprep.subr.mxu0 0.0
        %5135 = vmatpush1.msra.mxu0 %v3940
        %5136 = vmatprep.subr.mxu0 0.0
        %5137 = vmatpush1.msra.mxu0 %v3941
        %5138 = vmatprep.subr.mxu0 0.0
        %5139 = vmatpush1.msra.mxu0 %v3942
        %5140 = vmatprep.subr.mxu0 0.0
        %5141 = vmatpush1.msra.mxu0 %v3943
        %5142 = vmatprep.subr.mxu0 0.0
        %5143 = vmatpush1.msra.mxu0 %v3944
        %5144 = vmatprep.subr.mxu0 0.0
        %5145 = vmatpush1.msra.mxu0 %v3945
        %5146 = vmatprep.subr.mxu0 0.0
        %5147 = vmatpush1.msra.mxu0 %v3946
        %5148 = vmatprep.subr.mxu0 0.0
        %5149 = vmatpush1.msra.mxu0 %v3947
        %5150 = vmatprep.subr.mxu0 0.0
        %5151 = vmatpush1.msra.mxu0 %v3948
        %5152 = vmatprep.subr.mxu0 0.0
        %5153 = vmatpush1.msra.mxu0 %v3949
        %5154 = vmatprep.mubr.f32.mxu0 %v4661
        %5155 = vmatmul.mubr.f32.gmra.mrb[0].mxu0 %v4657
        %v5156 = vpop.f32.mrb[0].mxu0
        %v5157 = vadd.f32 %v5087, %v5156
        %v5158 = vpop.f32.mrb[0].mxu0
        %5159 = vdwg.mxu0
        %5160 = vmatprep.subr.mxu0 0.0
        %5161 = vmatpush1.msra.mxu0 %v3950
        %5162 = vmatprep.subr.mxu0 0.0
        %5163 = vmatpush1.msra.mxu0 %v3951
        %5164 = vmatprep.subr.mxu0 0.0
        %5165 = vmatpush1.msra.mxu0 %v3952
        %5166 = vmatprep.subr.mxu0 0.0
        %5167 = vmatpush1.msra.mxu0 %v3953
        %5168 = vmatprep.subr.mxu0 0.0
        %5169 = vmatpush1.msra.mxu0 %v3954
        %5170 = vmatprep.subr.mxu0 0.0
        %5171 = vmatpush1.msra.mxu0 %v3955
        %5172 = vmatprep.subr.mxu0 0.0
        %5173 = vmatpush1.msra.mxu0 %v3956
        %5174 = vmatprep.subr.mxu0 0.0
        %5175 = vmatpush1.msra.mxu0 %v3957
        %5176 = vmatprep.subr.mxu0 0.0
        %5177 = vmatpush1.msra.mxu0 %v3958
        %5178 = vmatprep.subr.mxu0 0.0
        %5179 = vmatpush1.msra.mxu0 %v3959
        %5180 = vmatprep.subr.mxu0 0.0
        %5181 = vmatpush1.msra.mxu0 %v3960
        %5182 = vmatprep.subr.mxu0 0.0
        %5183 = vmatpush1.msra.mxu0 %v3961
        %5184 = vmatprep.subr.mxu0 0.0
        %5185 = vmatpush1.msra.mxu0 %v3962
        %5186 = vmatprep.subr.mxu0 0.0
        %5187 = vmatpush1.msra.mxu0 %v3963
        %5188 = vmatprep.subr.mxu0 0.0
        %5189 = vmatpush1.msra.mxu0 %v3964
        %5190 = vmatprep.subr.mxu0 0.0
        %5191 = vmatpush1.msra.mxu0 %v3965
        %5192 = vmatprep.subr.mxu0 0.0
        %5193 = vmatpush1.msra.mxu0 %v3966
        %5194 = vmatprep.subr.mxu0 0.0
        %5195 = vmatpush1.msra.mxu0 %v3967
        %5196 = vmatprep.subr.mxu0 0.0
        %5197 = vmatpush1.msra.mxu0 %v3968
        %5198 = vmatprep.subr.mxu0 0.0
        %5199 = vmatpush1.msra.mxu0 %v3969
        %5200 = vmatprep.subr.mxu0 0.0
        %5201 = vmatpush1.msra.mxu0 %v3970
        %5202 = vmatprep.subr.mxu0 0.0
        %5203 = vmatpush1.msra.mxu0 %v3971
        %5204 = vmatprep.subr.mxu0 0.0
        %5205 = vmatpush1.msra.mxu0 %v3972
        %5206 = vmatprep.subr.mxu0 0.0
        %5207 = vmatpush1.msra.mxu0 %v3973
        %5208 = vmatprep.subr.mxu0 0.0
        %5209 = vmatpush1.msra.mxu0 %v3974
        %5210 = vmatprep.subr.mxu0 0.0
        %5211 = vmatpush1.msra.mxu0 %v3975
        %5212 = vmatprep.subr.mxu0 0.0
        %5213 = vmatpush1.msra.mxu0 %v3976
        %5214 = vmatprep.subr.mxu0 0.0
        %5215 = vmatpush1.msra.mxu0 %v3977
        %5216 = vmatprep.subr.mxu0 0.0
        %5217 = vmatpush1.msra.mxu0 %v3978
        %5218 = vmatprep.subr.mxu0 0.0
        %5219 = vmatpush1.msra.mxu0 %v3979
        %5220 = vmatprep.subr.mxu0 0.0
        %5221 = vmatpush1.msra.mxu0 %v3980
        %5222 = vmatprep.subr.mxu0 0.0
        %5223 = vmatpush1.msra.mxu0 %v3981
        %5224 = vmatprep.mubr.f32.mxu0 %v4669
        %5225 = vmatmul.mubr.f32.gmra.mrb[0].mxu0 %v4665
        %v5226 = vpop.f32.mrb[0].mxu0
        %v5227 = vadd.f32 %v5157, %v5226
        %v5228 = vpop.f32.mrb[0].mxu0
        %5229 = vdwg.mxu0
        %5230 = vmatprep.subr.mxu0 0.0
        %5231 = vmatpush1.msra.mxu0 %v3982
        %5232 = vmatprep.subr.mxu0 0.0
        %5233 = vmatpush1.msra.mxu0 %v3983
        %5234 = vmatprep.subr.mxu0 0.0
        %5235 = vmatpush1.msra.mxu0 %v3984
        %5236 = vmatprep.subr.mxu0 0.0
        %5237 = vmatpush1.msra.mxu0 %v3985
        %5238 = vmatprep.subr.mxu0 0.0
        %5239 = vmatpush1.msra.mxu0 %v3986
        %5240 = vmatprep.subr.mxu0 0.0
        %5241 = vmatpush1.msra.mxu0 %v3987
        %5242 = vmatprep.subr.mxu0 0.0
        %5243 = vmatpush1.msra.mxu0 %v3988
        %5244 = vmatprep.subr.mxu0 0.0
        %5245 = vmatpush1.msra.mxu0 %v3989
        %5246 = vmatprep.subr.mxu0 0.0
        %5247 = vmatpush1.msra.mxu0 %v3990
        %5248 = vmatprep.subr.mxu0 0.0
        %5249 = vmatpush1.msra.mxu0 %v3991
        %5250 = vmatprep.subr.mxu0 0.0
        %5251 = vmatpush1.msra.mxu0 %v3992
        %5252 = vmatprep.subr.mxu0 0.0
        %5253 = vmatpush1.msra.mxu0 %v3993
        %5254 = vmatprep.subr.mxu0 0.0
        %5255 = vmatpush1.msra.mxu0 %v3994
        %5256 = vmatprep.subr.mxu0 0.0
        %5257 = vmatpush1.msra.mxu0 %v3995
        %5258 = vmatprep.subr.mxu0 0.0
        %5259 = vmatpush1.msra.mxu0 %v3996
        %5260 = vmatprep.subr.mxu0 0.0
        %5261 = vmatpush1.msra.mxu0 %v3997
        %5262 = vmatprep.subr.mxu0 0.0
        %5263 = vmatpush1.msra.mxu0 %v3998
        %5264 = vmatprep.subr.mxu0 0.0
        %5265 = vmatpush1.msra.mxu0 %v3999
        %5266 = vmatprep.subr.mxu0 0.0
        %5267 = vmatpush1.msra.mxu0 %v4000
        %5268 = vmatprep.subr.mxu0 0.0
        %5269 = vmatpush1.msra.mxu0 %v4001
        %5270 = vmatprep.subr.mxu0 0.0
        %5271 = vmatpush1.msra.mxu0 %v4002
        %5272 = vmatprep.subr.mxu0 0.0
        %5273 = vmatpush1.msra.mxu0 %v4003
        %5274 = vmatprep.subr.mxu0 0.0
        %5275 = vmatpush1.msra.mxu0 %v4004
        %5276 = vmatprep.subr.mxu0 0.0
        %5277 = vmatpush1.msra.mxu0 %v4005
        %5278 = vmatprep.subr.mxu0 0.0
        %5279 = vmatpush1.msra.mxu0 %v4006
        %5280 = vmatprep.subr.mxu0 0.0
        %5281 = vmatpush1.msra.mxu0 %v4007
        %5282 = vmatprep.subr.mxu0 0.0
        %5283 = vmatpush1.msra.mxu0 %v4008
        %5284 = vmatprep.subr.mxu0 0.0
        %5285 = vmatpush1.msra.mxu0 %v4009
        %5286 = vmatprep.subr.mxu0 0.0
        %5287 = vmatpush1.msra.mxu0 %v4010
        %5288 = vmatprep.subr.mxu0 0.0
        %5289 = vmatpush1.msra.mxu0 %v4011
        %5290 = vmatprep.subr.mxu0 0.0
        %5291 = vmatpush1.msra.mxu0 %v4012
        %5292 = vmatprep.subr.mxu0 0.0
        %5293 = vmatpush1.msra.mxu0 %v4013
        %5294 = vmatprep.mubr.f32.mxu0 %v4677
        %5295 = vmatmul.mubr.f32.gmra.mrb[0].mxu0 %v4673
        %v5296 = vpop.f32.mrb[0].mxu0
        %v5297 = vadd.f32 %v5227, %v5296
        %v5298 = vpop.f32.mrb[0].mxu0
        %5299 = vdwg.mxu0
        %5300 = vmatprep.subr.mxu0 0.0
        %5301 = vmatpush1.msra.mxu0 %v4014
        %5302 = vmatprep.subr.mxu0 0.0
        %5303 = vmatpush1.msra.mxu0 %v4015
        %5304 = vmatprep.subr.mxu0 0.0
        %5305 = vmatpush1.msra.mxu0 %v4016
        %5306 = vmatprep.subr.mxu0 0.0
        %5307 = vmatpush1.msra.mxu0 %v4017
        %5308 = vmatprep.subr.mxu0 0.0
        %5309 = vmatpush1.msra.mxu0 %v4018
        %5310 = vmatprep.subr.mxu0 0.0
        %5311 = vmatpush1.msra.mxu0 %v4019
        %5312 = vmatprep.subr.mxu0 0.0
        %5313 = vmatpush1.msra.mxu0 %v4020
        %5314 = vmatprep.subr.mxu0 0.0
        %5315 = vmatpush1.msra.mxu0 %v4021
        %5316 = vmatprep.subr.mxu0 0.0
        %5317 = vmatpush1.msra.mxu0 %v4022
        %5318 = vmatprep.subr.mxu0 0.0
        %5319 = vmatpush1.msra.mxu0 %v4023
        %5320 = vmatprep.subr.mxu0 0.0
        %5321 = vmatpush1.msra.mxu0 %v4024
        %5322 = vmatprep.subr.mxu0 0.0
        %5323 = vmatpush1.msra.mxu0 %v4025
        %5324 = vmatprep.subr.mxu0 0.0
        %5325 = vmatpush1.msra.mxu0 %v4026
        %5326 = vmatprep.subr.mxu0 0.0
        %5327 = vmatpush1.msra.mxu0 %v4027
        %5328 = vmatprep.subr.mxu0 0.0
        %5329 = vmatpush1.msra.mxu0 %v4028
        %5330 = vmatprep.subr.mxu0 0.0
        %5331 = vmatpush1.msra.mxu0 %v4029
        %5332 = vmatprep.subr.mxu0 0.0
        %5333 = vmatpush1.msra.mxu0 %v4030
        %5334 = vmatprep.subr.mxu0 0.0
        %5335 = vmatpush1.msra.mxu0 %v4031
        %5336 = vmatprep.subr.mxu0 0.0
        %5337 = vmatpush1.msra.mxu0 %v4032
        %5338 = vmatprep.subr.mxu0 0.0
        %5339 = vmatpush1.msra.mxu0 %v4033
        %5340 = vmatprep.subr.mxu0 0.0
        %5341 = vmatpush1.msra.mxu0 %v4034
        %5342 = vmatprep.subr.mxu0 0.0
        %5343 = vmatpush1.msra.mxu0 %v4035
        %5344 = vmatprep.subr.mxu0 0.0
        %5345 = vmatpush1.msra.mxu0 %v4036
        %5346 = vmatprep.subr.mxu0 0.0
        %5347 = vmatpush1.msra.mxu0 %v4037
        %5348 = vmatprep.subr.mxu0 0.0
        %5349 = vmatpush1.msra.mxu0 %v4038
        %5350 = vmatprep.subr.mxu0 0.0
        %5351 = vmatpush1.msra.mxu0 %v4039
        %5352 = vmatprep.subr.mxu0 0.0
        %5353 = vmatpush1.msra.mxu0 %v4040
        %5354 = vmatprep.subr.mxu0 0.0
        %5355 = vmatpush1.msra.mxu0 %v4041
        %5356 = vmatprep.subr.mxu0 0.0
        %5357 = vmatpush1.msra.mxu0 %v4042
        %5358 = vmatprep.subr.mxu0 0.0
        %5359 = vmatpush1.msra.mxu0 %v4043
        %5360 = vmatprep.subr.mxu0 0.0
        %5361 = vmatpush1.msra.mxu0 %v4044
        %5362 = vmatprep.subr.mxu0 0.0
        %5363 = vmatpush1.msra.mxu0 %v4045
        %5364 = vmatprep.mubr.f32.mxu0 %v4685
        %5365 = vmatmul.mubr.f32.gmra.mrb[0].mxu0 %v4681
        %v5366 = vpop.f32.mrb[0].mxu0
        %v5367 = vadd.f32 %v5297, %v5366
        %v5368 = vpop.f32.mrb[0].mxu0
        %5369 = vdwg.mxu0
        %5370 = vmatprep.subr.mxu0 0.0
        %5371 = vmatpush1.msra.mxu0 %v4046
        %5372 = vmatprep.subr.mxu0 0.0
        %5373 = vmatpush1.msra.mxu0 %v4047
        %5374 = vmatprep.subr.mxu0 0.0
        %5375 = vmatpush1.msra.mxu0 %v4048
        %5376 = vmatprep.subr.mxu0 0.0
        %5377 = vmatpush1.msra.mxu0 %v4049
        %5378 = vmatprep.subr.mxu0 0.0
        %5379 = vmatpush1.msra.mxu0 %v4050
        %5380 = vmatprep.subr.mxu0 0.0
        %5381 = vmatpush1.msra.mxu0 %v4051
        %5382 = vmatprep.subr.mxu0 0.0
        %5383 = vmatpush1.msra.mxu0 %v4052
        %5384 = vmatprep.subr.mxu0 0.0
        %5385 = vmatpush1.msra.mxu0 %v4053
        %5386 = vmatprep.subr.mxu0 0.0
        %5387 = vmatpush1.msra.mxu0 %v4054
        %5388 = vmatprep.subr.mxu0 0.0
        %5389 = vmatpush1.msra.mxu0 %v4055
        %5390 = vmatprep.subr.mxu0 0.0
        %5391 = vmatpush1.msra.mxu0 %v4056
        %5392 = vmatprep.subr.mxu0 0.0
        %5393 = vmatpush1.msra.mxu0 %v4057
        %5394 = vmatprep.subr.mxu0 0.0
        %5395 = vmatpush1.msra.mxu0 %v4058
        %5396 = vmatprep.subr.mxu0 0.0
        %5397 = vmatpush1.msra.mxu0 %v4059
        %5398 = vmatprep.subr.mxu0 0.0
        %5399 = vmatpush1.msra.mxu0 %v4060
        %5400 = vmatprep.subr.mxu0 0.0
        %5401 = vmatpush1.msra.mxu0 %v4061
        %5402 = vmatprep.subr.mxu0 0.0
        %5403 = vmatpush1.msra.mxu0 %v4062
        %5404 = vmatprep.subr.mxu0 0.0
        %5405 = vmatpush1.msra.mxu0 %v4063
        %5406 = vmatprep.subr.mxu0 0.0
        %5407 = vmatpush1.msra.mxu0 %v4064
        %5408 = vmatprep.subr.mxu0 0.0
        %5409 = vmatpush1.msra.mxu0 %v4065
        %5410 = vmatprep.subr.mxu0 0.0
        %5411 = vmatpush1.msra.mxu0 %v4066
        %5412 = vmatprep.subr.mxu0 0.0
        %5413 = vmatpush1.msra.mxu0 %v4067
        %5414 = vmatprep.subr.mxu0 0.0
        %5415 = vmatpush1.msra.mxu0 %v4068
        %5416 = vmatprep.subr.mxu0 0.0
        %5417 = vmatpush1.msra.mxu0 %v4069
        %5418 = vmatprep.subr.mxu0 0.0
        %5419 = vmatpush1.msra.mxu0 %v4070
        %5420 = vmatprep.subr.mxu0 0.0
        %5421 = vmatpush1.msra.mxu0 %v4071
        %5422 = vmatprep.subr.mxu0 0.0
        %5423 = vmatpush1.msra.mxu0 %v4072
        %5424 = vmatprep.subr.mxu0 0.0
        %5425 = vmatpush1.msra.mxu0 %v4073
        %5426 = vmatprep.subr.mxu0 0.0
        %5427 = vmatpush1.msra.mxu0 %v4074
        %5428 = vmatprep.subr.mxu0 0.0
        %5429 = vmatpush1.msra.mxu0 %v4075
        %5430 = vmatprep.subr.mxu0 0.0
        %5431 = vmatpush1.msra.mxu0 %v4076
        %5432 = vmatprep.subr.mxu0 0.0
        %5433 = vmatpush1.msra.mxu0 %v4077
        %5434 = vmatprep.mubr.f32.mxu0 %v4693
        %5435 = vmatmul.mubr.f32.gmra.mrb[0].mxu0 %v4689
        %v5436 = vpop.f32.mrb[0].mxu0
        %v5437 = vadd.f32 %v5367, %v5436
        %v5438 = vpop.f32.mrb[0].mxu0
        %5439 = vdwg.mxu0
        %5440 = vmatprep.subr.mxu0 0.0
        %5441 = vmatpush1.msra.mxu0 %v4078
        %5442 = vmatprep.subr.mxu0 0.0
        %5443 = vmatpush1.msra.mxu0 %v4079
        %5444 = vmatprep.subr.mxu0 0.0
        %5445 = vmatpush1.msra.mxu0 %v4080
        %5446 = vmatprep.subr.mxu0 0.0
        %5447 = vmatpush1.msra.mxu0 %v4081
        %5448 = vmatprep.subr.mxu0 0.0
        %5449 = vmatpush1.msra.mxu0 %v4082
        %5450 = vmatprep.subr.mxu0 0.0
        %5451 = vmatpush1.msra.mxu0 %v4083
        %5452 = vmatprep.subr.mxu0 0.0
        %5453 = vmatpush1.msra.mxu0 %v4084
        %5454 = vmatprep.subr.mxu0 0.0
        %5455 = vmatpush1.msra.mxu0 %v4085
        %5456 = vmatprep.subr.mxu0 0.0
        %5457 = vmatpush1.msra.mxu0 %v4086
        %5458 = vmatprep.subr.mxu0 0.0
        %5459 = vmatpush1.msra.mxu0 %v4087
        %5460 = vmatprep.subr.mxu0 0.0
        %5461 = vmatpush1.msra.mxu0 %v4088
        %5462 = vmatprep.subr.mxu0 0.0
        %5463 = vmatpush1.msra.mxu0 %v4089
        %5464 = vmatprep.subr.mxu0 0.0
        %5465 = vmatpush1.msra.mxu0 %v4090
        %5466 = vmatprep.subr.mxu0 0.0
        %5467 = vmatpush1.msra.mxu0 %v4091
        %5468 = vmatprep.subr.mxu0 0.0
        %5469 = vmatpush1.msra.mxu0 %v4092
        %5470 = vmatprep.subr.mxu0 0.0
        %5471 = vmatpush1.msra.mxu0 %v4093
        %5472 = vmatprep.subr.mxu0 0.0
        %5473 = vmatpush1.msra.mxu0 %v4094
        %5474 = vmatprep.subr.mxu0 0.0
        %5475 = vmatpush1.msra.mxu0 %v4095
        %5476 = vmatprep.subr.mxu0 0.0
        %5477 = vmatpush1.msra.mxu0 %v4096
        %5478 = vmatprep.subr.mxu0 0.0
        %5479 = vmatpush1.msra.mxu0 %v4097
        %5480 = vmatprep.subr.mxu0 0.0
        %5481 = vmatpush1.msra.mxu0 %v4098
        %5482 = vmatprep.subr.mxu0 0.0
        %5483 = vmatpush1.msra.mxu0 %v4099
        %5484 = vmatprep.subr.mxu0 0.0
        %5485 = vmatpush1.msra.mxu0 %v4100
        %5486 = vmatprep.subr.mxu0 0.0
        %5487 = vmatpush1.msra.mxu0 %v4101
        %5488 = vmatprep.subr.mxu0 0.0
        %5489 = vmatpush1.msra.mxu0 %v4102
        %5490 = vmatprep.subr.mxu0 0.0
        %5491 = vmatpush1.msra.mxu0 %v4103
        %5492 = vmatprep.subr.mxu0 0.0
        %5493 = vmatpush1.msra.mxu0 %v4104
        %5494 = vmatprep.subr.mxu0 0.0
        %5495 = vmatpush1.msra.mxu0 %v4105
        %5496 = vmatprep.subr.mxu0 0.0
        %5497 = vmatpush1.msra.mxu0 %v4106
        %5498 = vmatprep.subr.mxu0 0.0
        %5499 = vmatpush1.msra.mxu0 %v4107
        %5500 = vmatprep.subr.mxu0 0.0
        %5501 = vmatpush1.msra.mxu0 %v4108
        %5502 = vmatprep.subr.mxu0 0.0
        %5503 = vmatpush1.msra.mxu0 %v4109
        %5504 = vmatprep.mubr.f32.mxu0 %v4701
        %5505 = vmatmul.mubr.f32.gmra.mrb[0].mxu0 %v4697
        %v5506 = vpop.f32.mrb[0].mxu0
        %v5507 = vadd.f32 %v5437, %v5506
        %v5508 = vpop.f32.mrb[0].mxu0
        %5509 = vdwg.mxu0
        %5510 = vmatprep.subr.mxu0 0.0
        %5511 = vmatpush1.msra.mxu0 %v4110
        %5512 = vmatprep.subr.mxu0 0.0
        %5513 = vmatpush1.msra.mxu0 %v4111
        %5514 = vmatprep.subr.mxu0 0.0
        %5515 = vmatpush1.msra.mxu0 %v4112
        %5516 = vmatprep.subr.mxu0 0.0
        %5517 = vmatpush1.msra.mxu0 %v4113
        %5518 = vmatprep.subr.mxu0 0.0
        %5519 = vmatpush1.msra.mxu0 %v4114
        %5520 = vmatprep.subr.mxu0 0.0
        %5521 = vmatpush1.msra.mxu0 %v4115
        %5522 = vmatprep.subr.mxu0 0.0
        %5523 = vmatpush1.msra.mxu0 %v4116
        %5524 = vmatprep.subr.mxu0 0.0
        %5525 = vmatpush1.msra.mxu0 %v4117
        %5526 = vmatprep.subr.mxu0 0.0
        %5527 = vmatpush1.msra.mxu0 %v4118
        %5528 = vmatprep.subr.mxu0 0.0
        %5529 = vmatpush1.msra.mxu0 %v4119
        %5530 = vmatprep.subr.mxu0 0.0
        %5531 = vmatpush1.msra.mxu0 %v4120
        %5532 = vmatprep.subr.mxu0 0.0
        %5533 = vmatpush1.msra.mxu0 %v4121
        %5534 = vmatprep.subr.mxu0 0.0
        %5535 = vmatpush1.msra.mxu0 %v4122
        %5536 = vmatprep.subr.mxu0 0.0
        %5537 = vmatpush1.msra.mxu0 %v4123
        %5538 = vmatprep.subr.mxu0 0.0
        %5539 = vmatpush1.msra.mxu0 %v4124
        %5540 = vmatprep.subr.mxu0 0.0
        %5541 = vmatpush1.msra.mxu0 %v4125
        %5542 = vmatprep.subr.mxu0 0.0
        %5543 = vmatpush1.msra.mxu0 %v4126
        %5544 = vmatprep.subr.mxu0 0.0
        %5545 = vmatpush1.msra.mxu0 %v4127
        %5546 = vmatprep.subr.mxu0 0.0
        %5547 = vmatpush1.msra.mxu0 %v4128
        %5548 = vmatprep.subr.mxu0 0.0
        %5549 = vmatpush1.msra.mxu0 %v4129
        %5550 = vmatprep.subr.mxu0 0.0
        %5551 = vmatpush1.msra.mxu0 %v4130
        %5552 = vmatprep.subr.mxu0 0.0
        %5553 = vmatpush1.msra.mxu0 %v4131
        %5554 = vmatprep.subr.mxu0 0.0
        %5555 = vmatpush1.msra.mxu0 %v4132
        %5556 = vmatprep.subr.mxu0 0.0
        %5557 = vmatpush1.msra.mxu0 %v4133
        %5558 = vmatprep.subr.mxu0 0.0
        %5559 = vmatpush1.msra.mxu0 %v4134
        %5560 = vmatprep.subr.mxu0 0.0
        %5561 = vmatpush1.msra.mxu0 %v4135
        %5562 = vmatprep.subr.mxu0 0.0
        %5563 = vmatpush1.msra.mxu0 %v4136
        %5564 = vmatprep.subr.mxu0 0.0
        %5565 = vmatpush1.msra.mxu0 %v4137
        %5566 = vmatprep.subr.mxu0 0.0
        %5567 = vmatpush1.msra.mxu0 %v4138
        %5568 = vmatprep.subr.mxu0 0.0
        %5569 = vmatpush1.msra.mxu0 %v4139
        %5570 = vmatprep.subr.mxu0 0.0
        %5571 = vmatpush1.msra.mxu0 %v4140
        %5572 = vmatprep.subr.mxu0 0.0
        %5573 = vmatpush1.msra.mxu0 %v4141
        %5574 = vmatprep.mubr.f32.mxu0 %v4709
        %5575 = vmatmul.mubr.f32.gmra.mrb[0].mxu0 %v4705
        %v5576 = vpop.f32.mrb[0].mxu0
        %v5577 = vadd.f32 %v5507, %v5576
        %v5578 = vpop.f32.mrb[0].mxu0
        %5579 = vdwg.mxu0
        %5580 = vmatprep.subr.mxu0 0.0
        %5581 = vmatpush1.msra.mxu0 %v4142
        %5582 = vmatprep.subr.mxu0 0.0
        %5583 = vmatpush1.msra.mxu0 %v4143
        %5584 = vmatprep.subr.mxu0 0.0
        %5585 = vmatpush1.msra.mxu0 %v4144
        %5586 = vmatprep.subr.mxu0 0.0
        %5587 = vmatpush1.msra.mxu0 %v4145
        %5588 = vmatprep.subr.mxu0 0.0
        %5589 = vmatpush1.msra.mxu0 %v4146
        %5590 = vmatprep.subr.mxu0 0.0
        %5591 = vmatpush1.msra.mxu0 %v4147
        %5592 = vmatprep.subr.mxu0 0.0
        %5593 = vmatpush1.msra.mxu0 %v4148
        %5594 = vmatprep.subr.mxu0 0.0
        %5595 = vmatpush1.msra.mxu0 %v4149
        %5596 = vmatprep.subr.mxu0 0.0
        %5597 = vmatpush1.msra.mxu0 %v4150
        %5598 = vmatprep.subr.mxu0 0.0
        %5599 = vmatpush1.msra.mxu0 %v4151
        %5600 = vmatprep.subr.mxu0 0.0
        %5601 = vmatpush1.msra.mxu0 %v4152
        %5602 = vmatprep.subr.mxu0 0.0
        %5603 = vmatpush1.msra.mxu0 %v4153
        %5604 = vmatprep.subr.mxu0 0.0
        %5605 = vmatpush1.msra.mxu0 %v4154
        %5606 = vmatprep.subr.mxu0 0.0
        %5607 = vmatpush1.msra.mxu0 %v4155
        %5608 = vmatprep.subr.mxu0 0.0
        %5609 = vmatpush1.msra.mxu0 %v4156
        %5610 = vmatprep.subr.mxu0 0.0
        %5611 = vmatpush1.msra.mxu0 %v4157
        %5612 = vmatprep.subr.mxu0 0.0
        %5613 = vmatpush1.msra.mxu0 %v4158
        %5614 = vmatprep.subr.mxu0 0.0
        %5615 = vmatpush1.msra.mxu0 %v4159
        %5616 = vmatprep.subr.mxu0 0.0
        %5617 = vmatpush1.msra.mxu0 %v4160
        %5618 = vmatprep.subr.mxu0 0.0
        %5619 = vmatpush1.msra.mxu0 %v4161
        %5620 = vmatprep.subr.mxu0 0.0
        %5621 = vmatpush1.msra.mxu0 %v4162
        %5622 = vmatprep.subr.mxu0 0.0
        %5623 = vmatpush1.msra.mxu0 %v4163
        %5624 = vmatprep.subr.mxu0 0.0
        %5625 = vmatpush1.msra.mxu0 %v4164
        %5626 = vmatprep.subr.mxu0 0.0
        %5627 = vmatpush1.msra.mxu0 %v4165
        %5628 = vmatprep.subr.mxu0 0.0
        %5629 = vmatpush1.msra.mxu0 %v4166
        %5630 = vmatprep.subr.mxu0 0.0
        %5631 = vmatpush1.msra.mxu0 %v4167
        %5632 = vmatprep.subr.mxu0 0.0
        %5633 = vmatpush1.msra.mxu0 %v4168
        %5634 = vmatprep.subr.mxu0 0.0
        %5635 = vmatpush1.msra.mxu0 %v4169
        %5636 = vmatprep.subr.mxu0 0.0
        %5637 = vmatpush1.msra.mxu0 %v4170
        %5638 = vmatprep.subr.mxu0 0.0
        %5639 = vmatpush1.msra.mxu0 %v4171
        %5640 = vmatprep.subr.mxu0 0.0
        %5641 = vmatpush1.msra.mxu0 %v4172
        %5642 = vmatprep.subr.mxu0 0.0
        %5643 = vmatpush1.msra.mxu0 %v4173
        %5644 = vmatprep.mubr.f32.mxu0 %v4717
        %5645 = vmatmul.mubr.f32.gmra.mrb[0].mxu0 %v4713
        %v5646 = vpop.f32.mrb[0].mxu0
        %v5647 = vadd.f32 %v5577, %v5646
        %v5648 = vpop.f32.mrb[0].mxu0
        %5649 = vdwg.mxu0
        %5650 = vmatprep.subr.mxu0 0.0
        %5651 = vmatpush1.msra.mxu0 %v4174
        %5652 = vmatprep.subr.mxu0 0.0
        %5653 = vmatpush1.msra.mxu0 %v4175
        %5654 = vmatprep.subr.mxu0 0.0
        %5655 = vmatpush1.msra.mxu0 %v4176
        %5656 = vmatprep.subr.mxu0 0.0
        %5657 = vmatpush1.msra.mxu0 %v4177
        %5658 = vmatprep.subr.mxu0 0.0
        %5659 = vmatpush1.msra.mxu0 %v4178
        %5660 = vmatprep.subr.mxu0 0.0
        %5661 = vmatpush1.msra.mxu0 %v4179
        %5662 = vmatprep.subr.mxu0 0.0
        %5663 = vmatpush1.msra.mxu0 %v4180
        %5664 = vmatprep.subr.mxu0 0.0
        %5665 = vmatpush1.msra.mxu0 %v4181
        %5666 = vmatprep.subr.mxu0 0.0
        %5667 = vmatpush1.msra.mxu0 %v4182
        %5668 = vmatprep.subr.mxu0 0.0
        %5669 = vmatpush1.msra.mxu0 %v4183
        %5670 = vmatprep.subr.mxu0 0.0
        %5671 = vmatpush1.msra.mxu0 %v4184
        %5672 = vmatprep.subr.mxu0 0.0
        %5673 = vmatpush1.msra.mxu0 %v4185
        %5674 = vmatprep.subr.mxu0 0.0
        %5675 = vmatpush1.msra.mxu0 %v4186
        %5676 = vmatprep.subr.mxu0 0.0
        %5677 = vmatpush1.msra.mxu0 %v4187
        %5678 = vmatprep.subr.mxu0 0.0
        %5679 = vmatpush1.msra.mxu0 %v4188
        %5680 = vmatprep.subr.mxu0 0.0
        %5681 = vmatpush1.msra.mxu0 %v4189
        %5682 = vmatprep.subr.mxu0 0.0
        %5683 = vmatpush1.msra.mxu0 %v4190
        %5684 = vmatprep.subr.mxu0 0.0
        %5685 = vmatpush1.msra.mxu0 %v4191
        %5686 = vmatprep.subr.mxu0 0.0
        %5687 = vmatpush1.msra.mxu0 %v4192
        %5688 = vmatprep.subr.mxu0 0.0
        %5689 = vmatpush1.msra.mxu0 %v4193
        %5690 = vmatprep.subr.mxu0 0.0
        %5691 = vmatpush1.msra.mxu0 %v4194
        %5692 = vmatprep.subr.mxu0 0.0
        %5693 = vmatpush1.msra.mxu0 %v4195
        %5694 = vmatprep.subr.mxu0 0.0
        %5695 = vmatpush1.msra.mxu0 %v4196
        %5696 = vmatprep.subr.mxu0 0.0
        %5697 = vmatpush1.msra.mxu0 %v4197
        %5698 = vmatprep.subr.mxu0 0.0
        %5699 = vmatpush1.msra.mxu0 %v4198
        %5700 = vmatprep.subr.mxu0 0.0
        %5701 = vmatpush1.msra.mxu0 %v4199
        %5702 = vmatprep.subr.mxu0 0.0
        %5703 = vmatpush1.msra.mxu0 %v4200
        %5704 = vmatprep.subr.mxu0 0.0
        %5705 = vmatpush1.msra.mxu0 %v4201
        %5706 = vmatprep.subr.mxu0 0.0
        %5707 = vmatpush1.msra.mxu0 %v4202
        %5708 = vmatprep.subr.mxu0 0.0
        %5709 = vmatpush1.msra.mxu0 %v4203
        %5710 = vmatprep.subr.mxu0 0.0
        %5711 = vmatpush1.msra.mxu0 %v4204
        %5712 = vmatprep.subr.mxu0 0.0
        %5713 = vmatpush1.msra.mxu0 %v4205
        %5714 = vmatprep.mubr.f32.mxu0 %v4725
        %5715 = vmatmul.mubr.f32.gmra.mrb[0].mxu0 %v4721
        %v5716 = vpop.f32.mrb[0].mxu0
        %v5717 = vadd.f32 %v5647, %v5716
        %v5718 = vpop.f32.mrb[0].mxu0
        %5719 = vdwg.mxu0
        %5720 = vmatprep.subr.mxu0 0.0
        %5721 = vmatpush1.msra.mxu0 %v4206
        %5722 = vmatprep.subr.mxu0 0.0
        %5723 = vmatpush1.msra.mxu0 %v4207
        %5724 = vmatprep.subr.mxu0 0.0
        %5725 = vmatpush1.msra.mxu0 %v4208
        %5726 = vmatprep.subr.mxu0 0.0
        %5727 = vmatpush1.msra.mxu0 %v4209
        %5728 = vmatprep.subr.mxu0 0.0
        %5729 = vmatpush1.msra.mxu0 %v4210
        %5730 = vmatprep.subr.mxu0 0.0
        %5731 = vmatpush1.msra.mxu0 %v4211
        %5732 = vmatprep.subr.mxu0 0.0
        %5733 = vmatpush1.msra.mxu0 %v4212
        %5734 = vmatprep.subr.mxu0 0.0
        %5735 = vmatpush1.msra.mxu0 %v4213
        %5736 = vmatprep.subr.mxu0 0.0
        %5737 = vmatpush1.msra.mxu0 %v4214
        %5738 = vmatprep.subr.mxu0 0.0
        %5739 = vmatpush1.msra.mxu0 %v4215
        %5740 = vmatprep.subr.mxu0 0.0
        %5741 = vmatpush1.msra.mxu0 %v4216
        %5742 = vmatprep.subr.mxu0 0.0
        %5743 = vmatpush1.msra.mxu0 %v4217
        %5744 = vmatprep.subr.mxu0 0.0
        %5745 = vmatpush1.msra.mxu0 %v4218
        %5746 = vmatprep.subr.mxu0 0.0
        %5747 = vmatpush1.msra.mxu0 %v4219
        %5748 = vmatprep.subr.mxu0 0.0
        %5749 = vmatpush1.msra.mxu0 %v4220
        %5750 = vmatprep.subr.mxu0 0.0
        %5751 = vmatpush1.msra.mxu0 %v4221
        %5752 = vmatprep.subr.mxu0 0.0
        %5753 = vmatpush1.msra.mxu0 %v4222
        %5754 = vmatprep.subr.mxu0 0.0
        %5755 = vmatpush1.msra.mxu0 %v4223
        %5756 = vmatprep.subr.mxu0 0.0
        %5757 = vmatpush1.msra.mxu0 %v4224
        %5758 = vmatprep.subr.mxu0 0.0
        %5759 = vmatpush1.msra.mxu0 %v4225
        %5760 = vmatprep.subr.mxu0 0.0
        %5761 = vmatpush1.msra.mxu0 %v4226
        %5762 = vmatprep.subr.mxu0 0.0
        %5763 = vmatpush1.msra.mxu0 %v4227
        %5764 = vmatprep.subr.mxu0 0.0
        %5765 = vmatpush1.msra.mxu0 %v4228
        %5766 = vmatprep.subr.mxu0 0.0
        %5767 = vmatpush1.msra.mxu0 %v4229
        %5768 = vmatprep.subr.mxu0 0.0
        %5769 = vmatpush1.msra.mxu0 %v4230
        %5770 = vmatprep.subr.mxu0 0.0
        %5771 = vmatpush1.msra.mxu0 %v4231
        %5772 = vmatprep.subr.mxu0 0.0
        %5773 = vmatpush1.msra.mxu0 %v4232
        %5774 = vmatprep.subr.mxu0 0.0
        %5775 = vmatpush1.msra.mxu0 %v4233
        %5776 = vmatprep.subr.mxu0 0.0
        %5777 = vmatpush1.msra.mxu0 %v4234
        %5778 = vmatprep.subr.mxu0 0.0
        %5779 = vmatpush1.msra.mxu0 %v4235
        %5780 = vmatprep.subr.mxu0 0.0
        %5781 = vmatpush1.msra.mxu0 %v4236
        %5782 = vmatprep.subr.mxu0 0.0
        %5783 = vmatpush1.msra.mxu0 %v4237
        %5784 = vmatprep.mubr.f32.mxu0 %v4733
        %5785 = vmatmul.mubr.f32.gmra.mrb[0].mxu0 %v4729
        %v5786 = vpop.f32.mrb[0].mxu0
        %v5787 = vadd.f32 %v5717, %v5786
        %v5788 = vpop.f32.mrb[0].mxu0
        %5789 = vdwg.mxu0
        %5790 = vmatprep.subr.mxu0 0.0
        %5791 = vmatpush1.msra.mxu0 %v4238
        %5792 = vmatprep.subr.mxu0 0.0
        %5793 = vmatpush1.msra.mxu0 %v4239
        %5794 = vmatprep.subr.mxu0 0.0
        %5795 = vmatpush1.msra.mxu0 %v4240
        %5796 = vmatprep.subr.mxu0 0.0
        %5797 = vmatpush1.msra.mxu0 %v4241
        %5798 = vmatprep.subr.mxu0 0.0
        %5799 = vmatpush1.msra.mxu0 %v4242
        %5800 = vmatprep.subr.mxu0 0.0
        %5801 = vmatpush1.msra.mxu0 %v4243
        %5802 = vmatprep.subr.mxu0 0.0
        %5803 = vmatpush1.msra.mxu0 %v4244
        %5804 = vmatprep.subr.mxu0 0.0
        %5805 = vmatpush1.msra.mxu0 %v4245
        %5806 = vmatprep.subr.mxu0 0.0
        %5807 = vmatpush1.msra.mxu0 %v4246
        %5808 = vmatprep.subr.mxu0 0.0
        %5809 = vmatpush1.msra.mxu0 %v4247
        %5810 = vmatprep.subr.mxu0 0.0
        %5811 = vmatpush1.msra.mxu0 %v4248
        %5812 = vmatprep.subr.mxu0 0.0
        %5813 = vmatpush1.msra.mxu0 %v4249
        %5814 = vmatprep.subr.mxu0 0.0
        %5815 = vmatpush1.msra.mxu0 %v4250
        %5816 = vmatprep.subr.mxu0 0.0
        %5817 = vmatpush1.msra.mxu0 %v4251
        %5818 = vmatprep.subr.mxu0 0.0
        %5819 = vmatpush1.msra.mxu0 %v4252
        %5820 = vmatprep.subr.mxu0 0.0
        %5821 = vmatpush1.msra.mxu0 %v4253
        %5822 = vmatprep.subr.mxu0 0.0
        %5823 = vmatpush1.msra.mxu0 %v4254
        %5824 = vmatprep.subr.mxu0 0.0
        %5825 = vmatpush1.msra.mxu0 %v4255
        %5826 = vmatprep.subr.mxu0 0.0
        %5827 = vmatpush1.msra.mxu0 %v4256
        %5828 = vmatprep.subr.mxu0 0.0
        %5829 = vmatpush1.msra.mxu0 %v4257
        %5830 = vmatprep.subr.mxu0 0.0
        %5831 = vmatpush1.msra.mxu0 %v4258
        %5832 = vmatprep.subr.mxu0 0.0
        %5833 = vmatpush1.msra.mxu0 %v4259
        %5834 = vmatprep.subr.mxu0 0.0
        %5835 = vmatpush1.msra.mxu0 %v4260
        %5836 = vmatprep.subr.mxu0 0.0
        %5837 = vmatpush1.msra.mxu0 %v4261
        %5838 = vmatprep.subr.mxu0 0.0
        %5839 = vmatpush1.msra.mxu0 %v4262
        %5840 = vmatprep.subr.mxu0 0.0
        %5841 = vmatpush1.msra.mxu0 %v4263
        %5842 = vmatprep.subr.mxu0 0.0
        %5843 = vmatpush1.msra.mxu0 %v4264
        %5844 = vmatprep.subr.mxu0 0.0
        %5845 = vmatpush1.msra.mxu0 %v4265
        %5846 = vmatprep.subr.mxu0 0.0
        %5847 = vmatpush1.msra.mxu0 %v4266
        %5848 = vmatprep.subr.mxu0 0.0
        %5849 = vmatpush1.msra.mxu0 %v4267
        %5850 = vmatprep.subr.mxu0 0.0
        %5851 = vmatpush1.msra.mxu0 %v4268
        %5852 = vmatprep.subr.mxu0 0.0
        %5853 = vmatpush1.msra.mxu0 %v4269
        %5854 = vmatprep.mubr.f32.mxu0 %v4741
        %5855 = vmatmul.mubr.f32.gmra.mrb[0].mxu0 %v4737
        %v5856 = vpop.f32.mrb[0].mxu0
        %v5857 = vadd.f32 %v5787, %v5856
        %v5858 = vpop.f32.mrb[0].mxu0
        %5859 = vdwg.mxu0
        %5860 = vmatprep.subr.mxu0 0.0
        %5861 = vmatpush1.msra.mxu0 %v4270
        %5862 = vmatprep.subr.mxu0 0.0
        %5863 = vmatpush1.msra.mxu0 %v4271
        %5864 = vmatprep.subr.mxu0 0.0
        %5865 = vmatpush1.msra.mxu0 %v4272
        %5866 = vmatprep.subr.mxu0 0.0
        %5867 = vmatpush1.msra.mxu0 %v4273
        %5868 = vmatprep.subr.mxu0 0.0
        %5869 = vmatpush1.msra.mxu0 %v4274
        %5870 = vmatprep.subr.mxu0 0.0
        %5871 = vmatpush1.msra.mxu0 %v4275
        %5872 = vmatprep.subr.mxu0 0.0
        %5873 = vmatpush1.msra.mxu0 %v4276
        %5874 = vmatprep.subr.mxu0 0.0
        %5875 = vmatpush1.msra.mxu0 %v4277
        %5876 = vmatprep.subr.mxu0 0.0
        %5877 = vmatpush1.msra.mxu0 %v4278
        %5878 = vmatprep.subr.mxu0 0.0
        %5879 = vmatpush1.msra.mxu0 %v4279
        %5880 = vmatprep.subr.mxu0 0.0
        %5881 = vmatpush1.msra.mxu0 %v4280
        %5882 = vmatprep.subr.mxu0 0.0
        %5883 = vmatpush1.msra.mxu0 %v4281
        %5884 = vmatprep.subr.mxu0 0.0
        %5885 = vmatpush1.msra.mxu0 %v4282
        %5886 = vmatprep.subr.mxu0 0.0
        %5887 = vmatpush1.msra.mxu0 %v4283
        %5888 = vmatprep.subr.mxu0 0.0
        %5889 = vmatpush1.msra.mxu0 %v4284
        %5890 = vmatprep.subr.mxu0 0.0
        %5891 = vmatpush1.msra.mxu0 %v4285
        %5892 = vmatprep.subr.mxu0 0.0
        %5893 = vmatpush1.msra.mxu0 %v4286
        %5894 = vmatprep.subr.mxu0 0.0
        %5895 = vmatpush1.msra.mxu0 %v4287
        %5896 = vmatprep.subr.mxu0 0.0
        %5897 = vmatpush1.msra.mxu0 %v4288
        %5898 = vmatprep.subr.mxu0 0.0
        %5899 = vmatpush1.msra.mxu0 %v4289
        %5900 = vmatprep.subr.mxu0 0.0
        %5901 = vmatpush1.msra.mxu0 %v4290
        %5902 = vmatprep.subr.mxu0 0.0
        %5903 = vmatpush1.msra.mxu0 %v4291
        %5904 = vmatprep.subr.mxu0 0.0
        %5905 = vmatpush1.msra.mxu0 %v4292
        %5906 = vmatprep.subr.mxu0 0.0
        %5907 = vmatpush1.msra.mxu0 %v4293
        %5908 = vmatprep.subr.mxu0 0.0
        %5909 = vmatpush1.msra.mxu0 %v4294
        %5910 = vmatprep.subr.mxu0 0.0
        %5911 = vmatpush1.msra.mxu0 %v4295
        %5912 = vmatprep.subr.mxu0 0.0
        %5913 = vmatpush1.msra.mxu0 %v4296
        %5914 = vmatprep.subr.mxu0 0.0
        %5915 = vmatpush1.msra.mxu0 %v4297
        %5916 = vmatprep.subr.mxu0 0.0
        %5917 = vmatpush1.msra.mxu0 %v4298
        %5918 = vmatprep.subr.mxu0 0.0
        %5919 = vmatpush1.msra.mxu0 %v4299
        %5920 = vmatprep.subr.mxu0 0.0
        %5921 = vmatpush1.msra.mxu0 %v4300
        %5922 = vmatprep.subr.mxu0 0.0
        %5923 = vmatpush1.msra.mxu0 %v4301
        %5924 = vmatprep.mubr.f32.mxu0 %v4749
        %5925 = vmatmul.mubr.f32.gmra.mrb[0].mxu0 %v4745
        %v5926 = vpop.f32.mrb[0].mxu0
        %v5927 = vadd.f32 %v5857, %v5926
        %v5928 = vpop.f32.mrb[0].mxu0
        %5929 = vdwg.mxu0
        %5930 = vmatprep.subr.mxu0 0.0
        %5931 = vmatpush1.msra.mxu0 %v4302
        %5932 = vmatprep.subr.mxu0 0.0
        %5933 = vmatpush1.msra.mxu0 %v4303
        %5934 = vmatprep.subr.mxu0 0.0
        %5935 = vmatpush1.msra.mxu0 %v4304
        %5936 = vmatprep.subr.mxu0 0.0
        %5937 = vmatpush1.msra.mxu0 %v4305
        %5938 = vmatprep.subr.mxu0 0.0
        %5939 = vmatpush1.msra.mxu0 %v4306
        %5940 = vmatprep.subr.mxu0 0.0
        %5941 = vmatpush1.msra.mxu0 %v4307
        %5942 = vmatprep.subr.mxu0 0.0
        %5943 = vmatpush1.msra.mxu0 %v4308
        %5944 = vmatprep.subr.mxu0 0.0
        %5945 = vmatpush1.msra.mxu0 %v4309
        %5946 = vmatprep.subr.mxu0 0.0
        %5947 = vmatpush1.msra.mxu0 %v4310
        %5948 = vmatprep.subr.mxu0 0.0
        %5949 = vmatpush1.msra.mxu0 %v4311
        %5950 = vmatprep.subr.mxu0 0.0
        %5951 = vmatpush1.msra.mxu0 %v4312
        %5952 = vmatprep.subr.mxu0 0.0
        %5953 = vmatpush1.msra.mxu0 %v4313
        %5954 = vmatprep.subr.mxu0 0.0
        %5955 = vmatpush1.msra.mxu0 %v4314
        %5956 = vmatprep.subr.mxu0 0.0
        %5957 = vmatpush1.msra.mxu0 %v4315
        %5958 = vmatprep.subr.mxu0 0.0
        %5959 = vmatpush1.msra.mxu0 %v4316
        %5960 = vmatprep.subr.mxu0 0.0
        %5961 = vmatpush1.msra.mxu0 %v4317
        %5962 = vmatprep.subr.mxu0 0.0
        %5963 = vmatpush1.msra.mxu0 %v4318
        %5964 = vmatprep.subr.mxu0 0.0
        %5965 = vmatpush1.msra.mxu0 %v4319
        %5966 = vmatprep.subr.mxu0 0.0
        %5967 = vmatpush1.msra.mxu0 %v4320
        %5968 = vmatprep.subr.mxu0 0.0
        %5969 = vmatpush1.msra.mxu0 %v4321
        %5970 = vmatprep.subr.mxu0 0.0
        %5971 = vmatpush1.msra.mxu0 %v4322
        %5972 = vmatprep.subr.mxu0 0.0
        %5973 = vmatpush1.msra.mxu0 %v4323
        %5974 = vmatprep.subr.mxu0 0.0
        %5975 = vmatpush1.msra.mxu0 %v4324
        %5976 = vmatprep.subr.mxu0 0.0
        %5977 = vmatpush1.msra.mxu0 %v4325
        %5978 = vmatprep.subr.mxu0 0.0
        %5979 = vmatpush1.msra.mxu0 %v4326
        %5980 = vmatprep.subr.mxu0 0.0
        %5981 = vmatpush1.msra.mxu0 %v4327
        %5982 = vmatprep.subr.mxu0 0.0
        %5983 = vmatpush1.msra.mxu0 %v4328
        %5984 = vmatprep.subr.mxu0 0.0
        %5985 = vmatpush1.msra.mxu0 %v4329
        %5986 = vmatprep.subr.mxu0 0.0
        %5987 = vmatpush1.msra.mxu0 %v4330
        %5988 = vmatprep.subr.mxu0 0.0
        %5989 = vmatpush1.msra.mxu0 %v4331
        %5990 = vmatprep.subr.mxu0 0.0
        %5991 = vmatpush1.msra.mxu0 %v4332
        %5992 = vmatprep.subr.mxu0 0.0
        %5993 = vmatpush1.msra.mxu0 %v4333
        %5994 = vmatprep.mubr.f32.mxu0 %v4757
        %5995 = vmatmul.mubr.f32.gmra.mrb[0].mxu0 %v4753
        %v5996 = vpop.f32.mrb[0].mxu0
        %v5997 = vadd.f32 %v5927, %v5996
        %v5998 = vpop.f32.mrb[0].mxu0
        %5999 = vdwg.mxu0
        %6000 = vmatprep.subr.mxu0 0.0
        %6001 = vmatpush1.msra.mxu0 %v4334
        %6002 = vmatprep.subr.mxu0 0.0
        %6003 = vmatpush1.msra.mxu0 %v4335
        %6004 = vmatprep.subr.mxu0 0.0
        %6005 = vmatpush1.msra.mxu0 %v4336
        %6006 = vmatprep.subr.mxu0 0.0
        %6007 = vmatpush1.msra.mxu0 %v4337
        %6008 = vmatprep.subr.mxu0 0.0
        %6009 = vmatpush1.msra.mxu0 %v4338
        %6010 = vmatprep.subr.mxu0 0.0
        %6011 = vmatpush1.msra.mxu0 %v4339
        %6012 = vmatprep.subr.mxu0 0.0
        %6013 = vmatpush1.msra.mxu0 %v4340
        %6014 = vmatprep.subr.mxu0 0.0
        %6015 = vmatpush1.msra.mxu0 %v4341
        %6016 = vmatprep.subr.mxu0 0.0
        %6017 = vmatpush1.msra.mxu0 %v4342
        %6018 = vmatprep.subr.mxu0 0.0
        %6019 = vmatpush1.msra.mxu0 %v4343
        %6020 = vmatprep.subr.mxu0 0.0
        %6021 = vmatpush1.msra.mxu0 %v4344
        %6022 = vmatprep.subr.mxu0 0.0
        %6023 = vmatpush1.msra.mxu0 %v4345
        %6024 = vmatprep.subr.mxu0 0.0
        %6025 = vmatpush1.msra.mxu0 %v4346
        %6026 = vmatprep.subr.mxu0 0.0
        %6027 = vmatpush1.msra.mxu0 %v4347
        %6028 = vmatprep.subr.mxu0 0.0
        %6029 = vmatpush1.msra.mxu0 %v4348
        %6030 = vmatprep.subr.mxu0 0.0
        %6031 = vmatpush1.msra.mxu0 %v4349
        %6032 = vmatprep.subr.mxu0 0.0
        %6033 = vmatpush1.msra.mxu0 %v4350
        %6034 = vmatprep.subr.mxu0 0.0
        %6035 = vmatpush1.msra.mxu0 %v4351
        %6036 = vmatprep.subr.mxu0 0.0
        %6037 = vmatpush1.msra.mxu0 %v4352
        %6038 = vmatprep.subr.mxu0 0.0
        %6039 = vmatpush1.msra.mxu0 %v4353
        %6040 = vmatprep.subr.mxu0 0.0
        %6041 = vmatpush1.msra.mxu0 %v4354
        %6042 = vmatprep.subr.mxu0 0.0
        %6043 = vmatpush1.msra.mxu0 %v4355
        %6044 = vmatprep.subr.mxu0 0.0
        %6045 = vmatpush1.msra.mxu0 %v4356
        %6046 = vmatprep.subr.mxu0 0.0
        %6047 = vmatpush1.msra.mxu0 %v4357
        %6048 = vmatprep.subr.mxu0 0.0
        %6049 = vmatpush1.msra.mxu0 %v4358
        %6050 = vmatprep.subr.mxu0 0.0
        %6051 = vmatpush1.msra.mxu0 %v4359
        %6052 = vmatprep.subr.mxu0 0.0
        %6053 = vmatpush1.msra.mxu0 %v4360
        %6054 = vmatprep.subr.mxu0 0.0
        %6055 = vmatpush1.msra.mxu0 %v4361
        %6056 = vmatprep.subr.mxu0 0.0
        %6057 = vmatpush1.msra.mxu0 %v4362
        %6058 = vmatprep.subr.mxu0 0.0
        %6059 = vmatpush1.msra.mxu0 %v4363
        %6060 = vmatprep.subr.mxu0 0.0
        %6061 = vmatpush1.msra.mxu0 %v4364
        %6062 = vmatprep.subr.mxu0 0.0
        %6063 = vmatpush1.msra.mxu0 %v4365
        %6064 = vmatprep.mubr.f32.mxu0 %v4765
        %6065 = vmatmul.mubr.f32.gmra.mrb[0].mxu0 %v4761
        %v6066 = vpop.f32.mrb[0].mxu0
        %v6067 = vadd.f32 %v5997, %v6066
        %v6068 = vpop.f32.mrb[0].mxu0
        %6069 = vdwg.mxu0
        %6070 = vmatprep.subr.mxu0 0.0
        %6071 = vmatpush1.msra.mxu0 %v4366
        %6072 = vmatprep.subr.mxu0 0.0
        %6073 = vmatpush1.msra.mxu0 %v4367
        %6074 = vmatprep.subr.mxu0 0.0
        %6075 = vmatpush1.msra.mxu0 %v4368
        %6076 = vmatprep.subr.mxu0 0.0
        %6077 = vmatpush1.msra.mxu0 %v4369
        %6078 = vmatprep.subr.mxu0 0.0
        %6079 = vmatpush1.msra.mxu0 %v4370
        %6080 = vmatprep.subr.mxu0 0.0
        %6081 = vmatpush1.msra.mxu0 %v4371
        %6082 = vmatprep.subr.mxu0 0.0
        %6083 = vmatpush1.msra.mxu0 %v4372
        %6084 = vmatprep.subr.mxu0 0.0
        %6085 = vmatpush1.msra.mxu0 %v4373
        %6086 = vmatprep.subr.mxu0 0.0
        %6087 = vmatpush1.msra.mxu0 %v4374
        %6088 = vmatprep.subr.mxu0 0.0
        %6089 = vmatpush1.msra.mxu0 %v4375
        %6090 = vmatprep.subr.mxu0 0.0
        %6091 = vmatpush1.msra.mxu0 %v4376
        %6092 = vmatprep.subr.mxu0 0.0
        %6093 = vmatpush1.msra.mxu0 %v4377
        %6094 = vmatprep.subr.mxu0 0.0
        %6095 = vmatpush1.msra.mxu0 %v4378
        %6096 = vmatprep.subr.mxu0 0.0
        %6097 = vmatpush1.msra.mxu0 %v4379
        %6098 = vmatprep.subr.mxu0 0.0
        %6099 = vmatpush1.msra.mxu0 %v4380
        %6100 = vmatprep.subr.mxu0 0.0
        %6101 = vmatpush1.msra.mxu0 %v4381
        %6102 = vmatprep.subr.mxu0 0.0
        %6103 = vmatpush1.msra.mxu0 %v4382
        %6104 = vmatprep.subr.mxu0 0.0
        %6105 = vmatpush1.msra.mxu0 %v4383
        %6106 = vmatprep.subr.mxu0 0.0
        %6107 = vmatpush1.msra.mxu0 %v4384
        %6108 = vmatprep.subr.mxu0 0.0
        %6109 = vmatpush1.msra.mxu0 %v4385
        %6110 = vmatprep.subr.mxu0 0.0
        %6111 = vmatpush1.msra.mxu0 %v4386
        %6112 = vmatprep.subr.mxu0 0.0
        %6113 = vmatpush1.msra.mxu0 %v4387
        %6114 = vmatprep.subr.mxu0 0.0
        %6115 = vmatpush1.msra.mxu0 %v4388
        %6116 = vmatprep.subr.mxu0 0.0
        %6117 = vmatpush1.msra.mxu0 %v4389
        %6118 = vmatprep.subr.mxu0 0.0
        %6119 = vmatpush1.msra.mxu0 %v4390
        %6120 = vmatprep.subr.mxu0 0.0
        %6121 = vmatpush1.msra.mxu0 %v4391
        %6122 = vmatprep.subr.mxu0 0.0
        %6123 = vmatpush1.msra.mxu0 %v4392
        %6124 = vmatprep.subr.mxu0 0.0
        %6125 = vmatpush1.msra.mxu0 %v4393
        %6126 = vmatprep.subr.mxu0 0.0
        %6127 = vmatpush1.msra.mxu0 %v4394
        %6128 = vmatprep.subr.mxu0 0.0
        %6129 = vmatpush1.msra.mxu0 %v4395
        %6130 = vmatprep.subr.mxu0 0.0
        %6131 = vmatpush1.msra.mxu0 %v4396
        %6132 = vmatprep.subr.mxu0 0.0
        %6133 = vmatpush1.msra.mxu0 %v4397
        %6134 = vmatprep.mubr.f32.mxu0 %v4773
        %6135 = vmatmul.mubr.f32.gmra.mrb[0].mxu0 %v4769
        %v6136 = vpop.f32.mrb[0].mxu0
        %v6137 = vadd.f32 %v6067, %v6136
        %v6138 = vpop.f32.mrb[0].mxu0
        %6139 = vdwg.mxu0
        %6140 = vmatprep.subr.mxu0 0.0
        %6141 = vmatpush1.msra.mxu0 %v4398
        %6142 = vmatprep.subr.mxu0 0.0
        %6143 = vmatpush1.msra.mxu0 %v4399
        %6144 = vmatprep.subr.mxu0 0.0
        %6145 = vmatpush1.msra.mxu0 %v4400
        %6146 = vmatprep.subr.mxu0 0.0
        %6147 = vmatpush1.msra.mxu0 %v4401
        %6148 = vmatprep.subr.mxu0 0.0
        %6149 = vmatpush1.msra.mxu0 %v4402
        %6150 = vmatprep.subr.mxu0 0.0
        %6151 = vmatpush1.msra.mxu0 %v4403
        %6152 = vmatprep.subr.mxu0 0.0
        %6153 = vmatpush1.msra.mxu0 %v4404
        %6154 = vmatprep.subr.mxu0 0.0
        %6155 = vmatpush1.msra.mxu0 %v4405
        %6156 = vmatprep.subr.mxu0 0.0
        %6157 = vmatpush1.msra.mxu0 %v4406
        %6158 = vmatprep.subr.mxu0 0.0
        %6159 = vmatpush1.msra.mxu0 %v4407
        %6160 = vmatprep.subr.mxu0 0.0
        %6161 = vmatpush1.msra.mxu0 %v4408
        %6162 = vmatprep.subr.mxu0 0.0
        %6163 = vmatpush1.msra.mxu0 %v4409
        %6164 = vmatprep.subr.mxu0 0.0
        %6165 = vmatpush1.msra.mxu0 %v4410
        %6166 = vmatprep.subr.mxu0 0.0
        %6167 = vmatpush1.msra.mxu0 %v4411
        %6168 = vmatprep.subr.mxu0 0.0
        %6169 = vmatpush1.msra.mxu0 %v4412
        %6170 = vmatprep.subr.mxu0 0.0
        %6171 = vmatpush1.msra.mxu0 %v4413
        %6172 = vmatprep.subr.mxu0 0.0
        %6173 = vmatpush1.msra.mxu0 %v4414
        %6174 = vmatprep.subr.mxu0 0.0
        %6175 = vmatpush1.msra.mxu0 %v4415
        %6176 = vmatprep.subr.mxu0 0.0
        %6177 = vmatpush1.msra.mxu0 %v4416
        %6178 = vmatprep.subr.mxu0 0.0
        %6179 = vmatpush1.msra.mxu0 %v4417
        %6180 = vmatprep.subr.mxu0 0.0
        %6181 = vmatpush1.msra.mxu0 %v4418
        %6182 = vmatprep.subr.mxu0 0.0
        %6183 = vmatpush1.msra.mxu0 %v4419
        %6184 = vmatprep.subr.mxu0 0.0
        %6185 = vmatpush1.msra.mxu0 %v4420
        %6186 = vmatprep.subr.mxu0 0.0
        %6187 = vmatpush1.msra.mxu0 %v4421
        %6188 = vmatprep.subr.mxu0 0.0
        %6189 = vmatpush1.msra.mxu0 %v4422
        %6190 = vmatprep.subr.mxu0 0.0
        %6191 = vmatpush1.msra.mxu0 %v4423
        %6192 = vmatprep.subr.mxu0 0.0
        %6193 = vmatpush1.msra.mxu0 %v4424
        %6194 = vmatprep.subr.mxu0 0.0
        %6195 = vmatpush1.msra.mxu0 %v4425
        %6196 = vmatprep.subr.mxu0 0.0
        %6197 = vmatpush1.msra.mxu0 %v4426
        %6198 = vmatprep.subr.mxu0 0.0
        %6199 = vmatpush1.msra.mxu0 %v4427
        %6200 = vmatprep.subr.mxu0 0.0
        %6201 = vmatpush1.msra.mxu0 %v4428
        %6202 = vmatprep.subr.mxu0 0.0
        %6203 = vmatpush1.msra.mxu0 %v4429
        %6204 = vmatprep.mubr.f32.mxu0 %v4781
        %6205 = vmatmul.mubr.f32.gmra.mrb[0].mxu0 %v4777
        %v6206 = vpop.f32.mrb[0].mxu0
        %v6207 = vadd.f32 %v6137, %v6206
        %v6208 = vpop.f32.mrb[0].mxu0
        %6209 = vdwg.mxu0
        %6210 = vmatprep.subr.mxu0 0.0
        %6211 = vmatpush1.msra.mxu0 %v4430
        %6212 = vmatprep.subr.mxu0 0.0
        %6213 = vmatpush1.msra.mxu0 %v4431
        %6214 = vmatprep.subr.mxu0 0.0
        %6215 = vmatpush1.msra.mxu0 %v4432
        %6216 = vmatprep.subr.mxu0 0.0
        %6217 = vmatpush1.msra.mxu0 %v4433
        %6218 = vmatprep.subr.mxu0 0.0
        %6219 = vmatpush1.msra.mxu0 %v4434
        %6220 = vmatprep.subr.mxu0 0.0
        %6221 = vmatpush1.msra.mxu0 %v4435
        %6222 = vmatprep.subr.mxu0 0.0
        %6223 = vmatpush1.msra.mxu0 %v4436
        %6224 = vmatprep.subr.mxu0 0.0
        %6225 = vmatpush1.msra.mxu0 %v4437
        %6226 = vmatprep.subr.mxu0 0.0
        %6227 = vmatpush1.msra.mxu0 %v4438
        %6228 = vmatprep.subr.mxu0 0.0
        %6229 = vmatpush1.msra.mxu0 %v4439
        %6230 = vmatprep.subr.mxu0 0.0
        %6231 = vmatpush1.msra.mxu0 %v4440
        %6232 = vmatprep.subr.mxu0 0.0
        %6233 = vmatpush1.msra.mxu0 %v4441
        %6234 = vmatprep.subr.mxu0 0.0
        %6235 = vmatpush1.msra.mxu0 %v4442
        %6236 = vmatprep.subr.mxu0 0.0
        %6237 = vmatpush1.msra.mxu0 %v4443
        %6238 = vmatprep.subr.mxu0 0.0
        %6239 = vmatpush1.msra.mxu0 %v4444
        %6240 = vmatprep.subr.mxu0 0.0
        %6241 = vmatpush1.msra.mxu0 %v4445
        %6242 = vmatprep.subr.mxu0 0.0
        %6243 = vmatpush1.msra.mxu0 %v4446
        %6244 = vmatprep.subr.mxu0 0.0
        %6245 = vmatpush1.msra.mxu0 %v4447
        %6246 = vmatprep.subr.mxu0 0.0
        %6247 = vmatpush1.msra.mxu0 %v4448
        %6248 = vmatprep.subr.mxu0 0.0
        %6249 = vmatpush1.msra.mxu0 %v4449
        %6250 = vmatprep.subr.mxu0 0.0
        %6251 = vmatpush1.msra.mxu0 %v4450
        %6252 = vmatprep.subr.mxu0 0.0
        %6253 = vmatpush1.msra.mxu0 %v4451
        %6254 = vmatprep.subr.mxu0 0.0
        %6255 = vmatpush1.msra.mxu0 %v4452
        %6256 = vmatprep.subr.mxu0 0.0
        %6257 = vmatpush1.msra.mxu0 %v4453
        %6258 = vmatprep.subr.mxu0 0.0
        %6259 = vmatpush1.msra.mxu0 %v4454
        %6260 = vmatprep.subr.mxu0 0.0
        %6261 = vmatpush1.msra.mxu0 %v4455
        %6262 = vmatprep.subr.mxu0 0.0
        %6263 = vmatpush1.msra.mxu0 %v4456
        %6264 = vmatprep.subr.mxu0 0.0
        %6265 = vmatpush1.msra.mxu0 %v4457
        %6266 = vmatprep.subr.mxu0 0.0
        %6267 = vmatpush1.msra.mxu0 %v4458
        %6268 = vmatprep.subr.mxu0 0.0
        %6269 = vmatpush1.msra.mxu0 %v4459
        %6270 = vmatprep.subr.mxu0 0.0
        %6271 = vmatpush1.msra.mxu0 %v4460
        %6272 = vmatprep.subr.mxu0 0.0
        %6273 = vmatpush1.msra.mxu0 %v4461
        %6274 = vmatprep.mubr.f32.mxu0 %v4789
        %6275 = vmatmul.mubr.f32.gmra.mrb[0].mxu0 %v4785
        %v6276 = vpop.f32.mrb[0].mxu0
        %v6277 = vadd.f32 %v6207, %v6276
        %v6278 = vpop.f32.mrb[0].mxu0
        %6279 = vdwg.mxu0
        %6280 = vmatprep.subr.mxu0 0.0
        %6281 = vmatpush1.msra.mxu0 %v4462
        %6282 = vmatprep.subr.mxu0 0.0
        %6283 = vmatpush1.msra.mxu0 %v4463
        %6284 = vmatprep.subr.mxu0 0.0
        %6285 = vmatpush1.msra.mxu0 %v4464
        %6286 = vmatprep.subr.mxu0 0.0
        %6287 = vmatpush1.msra.mxu0 %v4465
        %6288 = vmatprep.subr.mxu0 0.0
        %6289 = vmatpush1.msra.mxu0 %v4466
        %6290 = vmatprep.subr.mxu0 0.0
        %6291 = vmatpush1.msra.mxu0 %v4467
        %6292 = vmatprep.subr.mxu0 0.0
        %6293 = vmatpush1.msra.mxu0 %v4468
        %6294 = vmatprep.subr.mxu0 0.0
        %6295 = vmatpush1.msra.mxu0 %v4469
        %6296 = vmatprep.subr.mxu0 0.0
        %6297 = vmatpush1.msra.mxu0 %v4470
        %6298 = vmatprep.subr.mxu0 0.0
        %6299 = vmatpush1.msra.mxu0 %v4471
        %6300 = vmatprep.subr.mxu0 0.0
        %6301 = vmatpush1.msra.mxu0 %v4472
        %6302 = vmatprep.subr.mxu0 0.0
        %6303 = vmatpush1.msra.mxu0 %v4473
        %6304 = vmatprep.subr.mxu0 0.0
        %6305 = vmatpush1.msra.mxu0 %v4474
        %6306 = vmatprep.subr.mxu0 0.0
        %6307 = vmatpush1.msra.mxu0 %v4475
        %6308 = vmatprep.subr.mxu0 0.0
        %6309 = vmatpush1.msra.mxu0 %v4476
        %6310 = vmatprep.subr.mxu0 0.0
        %6311 = vmatpush1.msra.mxu0 %v4477
        %6312 = vmatprep.subr.mxu0 0.0
        %6313 = vmatpush1.msra.mxu0 %v4478
        %6314 = vmatprep.subr.mxu0 0.0
        %6315 = vmatpush1.msra.mxu0 %v4479
        %6316 = vmatprep.subr.mxu0 0.0
        %6317 = vmatpush1.msra.mxu0 %v4480
        %6318 = vmatprep.subr.mxu0 0.0
        %6319 = vmatpush1.msra.mxu0 %v4481
        %6320 = vmatprep.subr.mxu0 0.0
        %6321 = vmatpush1.msra.mxu0 %v4482
        %6322 = vmatprep.subr.mxu0 0.0
        %6323 = vmatpush1.msra.mxu0 %v4483
        %6324 = vmatprep.subr.mxu0 0.0
        %6325 = vmatpush1.msra.mxu0 %v4484
        %6326 = vmatprep.subr.mxu0 0.0
        %6327 = vmatpush1.msra.mxu0 %v4485
        %6328 = vmatprep.subr.mxu0 0.0
        %6329 = vmatpush1.msra.mxu0 %v4486
        %6330 = vmatprep.subr.mxu0 0.0
        %6331 = vmatpush1.msra.mxu0 %v4487
        %6332 = vmatprep.subr.mxu0 0.0
        %6333 = vmatpush1.msra.mxu0 %v4488
        %6334 = vmatprep.subr.mxu0 0.0
        %6335 = vmatpush1.msra.mxu0 %v4489
        %6336 = vmatprep.subr.mxu0 0.0
        %6337 = vmatpush1.msra.mxu0 %v4490
        %6338 = vmatprep.subr.mxu0 0.0
        %6339 = vmatpush1.msra.mxu0 %v4491
        %6340 = vmatprep.subr.mxu0 0.0
        %6341 = vmatpush1.msra.mxu0 %v4492
        %6342 = vmatprep.subr.mxu0 0.0
        %6343 = vmatpush1.msra.mxu0 %v4493
        %6344 = vmatprep.mubr.f32.mxu0 %v4797
        %6345 = vmatmul.mubr.f32.gmra.mrb[0].mxu0 %v4793
        %v6346 = vpop.f32.mrb[0].mxu0
        %v6347 = vadd.f32 %v6277, %v6346
        %v6348 = vpop.f32.mrb[0].mxu0
        %6349 = vdwg.mxu0
        %6350 = vmatprep.subr.mxu0 0.0
        %6351 = vmatpush1.msra.mxu0 %v4494
        %6352 = vmatprep.subr.mxu0 0.0
        %6353 = vmatpush1.msra.mxu0 %v4495
        %6354 = vmatprep.subr.mxu0 0.0
        %6355 = vmatpush1.msra.mxu0 %v4496
        %6356 = vmatprep.subr.mxu0 0.0
        %6357 = vmatpush1.msra.mxu0 %v4497
        %6358 = vmatprep.subr.mxu0 0.0
        %6359 = vmatpush1.msra.mxu0 %v4498
        %6360 = vmatprep.subr.mxu0 0.0
        %6361 = vmatpush1.msra.mxu0 %v4499
        %6362 = vmatprep.subr.mxu0 0.0
        %6363 = vmatpush1.msra.mxu0 %v4500
        %6364 = vmatprep.subr.mxu0 0.0
        %6365 = vmatpush1.msra.mxu0 %v4501
        %6366 = vmatprep.subr.mxu0 0.0
        %6367 = vmatpush1.msra.mxu0 %v4502
        %6368 = vmatprep.subr.mxu0 0.0
        %6369 = vmatpush1.msra.mxu0 %v4503
        %6370 = vmatprep.subr.mxu0 0.0
        %6371 = vmatpush1.msra.mxu0 %v4504
        %6372 = vmatprep.subr.mxu0 0.0
        %6373 = vmatpush1.msra.mxu0 %v4505
        %6374 = vmatprep.subr.mxu0 0.0
        %6375 = vmatpush1.msra.mxu0 %v4506
        %6376 = vmatprep.subr.mxu0 0.0
        %6377 = vmatpush1.msra.mxu0 %v4507
        %6378 = vmatprep.subr.mxu0 0.0
        %6379 = vmatpush1.msra.mxu0 %v4508
        %6380 = vmatprep.subr.mxu0 0.0
        %6381 = vmatpush1.msra.mxu0 %v4509
        %6382 = vmatprep.subr.mxu0 0.0
        %6383 = vmatpush1.msra.mxu0 %v4510
        %6384 = vmatprep.subr.mxu0 0.0
        %6385 = vmatpush1.msra.mxu0 %v4511
        %6386 = vmatprep.subr.mxu0 0.0
        %6387 = vmatpush1.msra.mxu0 %v4512
        %6388 = vmatprep.subr.mxu0 0.0
        %6389 = vmatpush1.msra.mxu0 %v4513
        %6390 = vmatprep.subr.mxu0 0.0
        %6391 = vmatpush1.msra.mxu0 %v4514
        %6392 = vmatprep.subr.mxu0 0.0
        %6393 = vmatpush1.msra.mxu0 %v4515
        %6394 = vmatprep.subr.mxu0 0.0
        %6395 = vmatpush1.msra.mxu0 %v4516
        %6396 = vmatprep.subr.mxu0 0.0
        %6397 = vmatpush1.msra.mxu0 %v4517
        %6398 = vmatprep.subr.mxu0 0.0
        %6399 = vmatpush1.msra.mxu0 %v4518
        %6400 = vmatprep.subr.mxu0 0.0
        %6401 = vmatpush1.msra.mxu0 %v4519
        %6402 = vmatprep.subr.mxu0 0.0
        %6403 = vmatpush1.msra.mxu0 %v4520
        %6404 = vmatprep.subr.mxu0 0.0
        %6405 = vmatpush1.msra.mxu0 %v4521
        %6406 = vmatprep.subr.mxu0 0.0
        %6407 = vmatpush1.msra.mxu0 %v4522
        %6408 = vmatprep.subr.mxu0 0.0
        %6409 = vmatpush1.msra.mxu0 %v4523
        %6410 = vmatprep.subr.mxu0 0.0
        %6411 = vmatpush1.msra.mxu0 %v4524
        %6412 = vmatprep.subr.mxu0 0.0
        %6413 = vmatpush1.msra.mxu0 %v4525
        %6414 = vmatprep.mubr.f32.mxu0 %v4805
        %6415 = vmatmul.mubr.f32.gmra.mrb[0].mxu0 %v4801
        %v6416 = vpop.f32.mrb[0].mxu0
        %v6417 = vadd.f32 %v6347, %v6416
        %v6418 = vpop.f32.mrb[0].mxu0
        %6419 = vdwg.mxu0
        %6420 = vmatprep.subr.mxu0 0.0
        %6421 = vmatpush1.msra.mxu0 %v4526
        %6422 = vmatprep.subr.mxu0 0.0
        %6423 = vmatpush1.msra.mxu0 %v4527
        %6424 = vmatprep.subr.mxu0 0.0
        %6425 = vmatpush1.msra.mxu0 %v4528
        %6426 = vmatprep.subr.mxu0 0.0
        %6427 = vmatpush1.msra.mxu0 %v4529
        %6428 = vmatprep.subr.mxu0 0.0
        %6429 = vmatpush1.msra.mxu0 %v4530
        %6430 = vmatprep.subr.mxu0 0.0
        %6431 = vmatpush1.msra.mxu0 %v4531
        %6432 = vmatprep.subr.mxu0 0.0
        %6433 = vmatpush1.msra.mxu0 %v4532
        %6434 = vmatprep.subr.mxu0 0.0
        %6435 = vmatpush1.msra.mxu0 %v4533
        %6436 = vmatprep.subr.mxu0 0.0
        %6437 = vmatpush1.msra.mxu0 %v4534
        %6438 = vmatprep.subr.mxu0 0.0
        %6439 = vmatpush1.msra.mxu0 %v4535
        %6440 = vmatprep.subr.mxu0 0.0
        %6441 = vmatpush1.msra.mxu0 %v4536
        %6442 = vmatprep.subr.mxu0 0.0
        %6443 = vmatpush1.msra.mxu0 %v4537
        %6444 = vmatprep.subr.mxu0 0.0
        %6445 = vmatpush1.msra.mxu0 %v4538
        %6446 = vmatprep.subr.mxu0 0.0
        %6447 = vmatpush1.msra.mxu0 %v4539
        %6448 = vmatprep.subr.mxu0 0.0
        %6449 = vmatpush1.msra.mxu0 %v4540
        %6450 = vmatprep.subr.mxu0 0.0
        %6451 = vmatpush1.msra.mxu0 %v4541
        %6452 = vmatprep.subr.mxu0 0.0
        %6453 = vmatpush1.msra.mxu0 %v4542
        %6454 = vmatprep.subr.mxu0 0.0
        %6455 = vmatpush1.msra.mxu0 %v4543
        %6456 = vmatprep.subr.mxu0 0.0
        %6457 = vmatpush1.msra.mxu0 %v4544
        %6458 = vmatprep.subr.mxu0 0.0
        %6459 = vmatpush1.msra.mxu0 %v4545
        %6460 = vmatprep.subr.mxu0 0.0
        %6461 = vmatpush1.msra.mxu0 %v4546
        %6462 = vmatprep.subr.mxu0 0.0
        %6463 = vmatpush1.msra.mxu0 %v4547
        %6464 = vmatprep.subr.mxu0 0.0
        %6465 = vmatpush1.msra.mxu0 %v4548
        %6466 = vmatprep.subr.mxu0 0.0
        %6467 = vmatpush1.msra.mxu0 %v4549
        %6468 = vmatprep.subr.mxu0 0.0
        %6469 = vmatpush1.msra.mxu0 %v4550
        %6470 = vmatprep.subr.mxu0 0.0
        %6471 = vmatpush1.msra.mxu0 %v4551
        %6472 = vmatprep.subr.mxu0 0.0
        %6473 = vmatpush1.msra.mxu0 %v4552
        %6474 = vmatprep.subr.mxu0 0.0
        %6475 = vmatpush1.msra.mxu0 %v4553
        %6476 = vmatprep.subr.mxu0 0.0
        %6477 = vmatpush1.msra.mxu0 %v4554
        %6478 = vmatprep.subr.mxu0 0.0
        %6479 = vmatpush1.msra.mxu0 %v4555
        %6480 = vmatprep.subr.mxu0 0.0
        %6481 = vmatpush1.msra.mxu0 %v4556
        %6482 = vmatprep.subr.mxu0 0.0
        %6483 = vmatpush1.msra.mxu0 %v4557
        %6484 = vmatprep.mubr.f32.mxu0 %v4813
        %6485 = vmatmul.mubr.f32.gmra.mrb[0].mxu0 %v4809
        %v6486 = vpop.f32.mrb[0].mxu0
        %v6487 = vadd.f32 %v6417, %v6486
        %v6488 = vpop.f32.mrb[0].mxu0
        %6489 = vdwg.mxu0
        %6490 = vmatprep.subr.mxu0 0.0
        %6491 = vmatpush1.msra.mxu0 %v4558
        %6492 = vmatprep.subr.mxu0 0.0
        %6493 = vmatpush1.msra.mxu0 %v4559
        %6494 = vmatprep.subr.mxu0 0.0
        %6495 = vmatpush1.msra.mxu0 %v4560
        %6496 = vmatprep.subr.mxu0 0.0
        %6497 = vmatpush1.msra.mxu0 %v4561
        %6498 = vmatprep.subr.mxu0 0.0
        %6499 = vmatpush1.msra.mxu0 %v4562
        %6500 = vmatprep.subr.mxu0 0.0
        %6501 = vmatpush1.msra.mxu0 %v4563
        %6502 = vmatprep.subr.mxu0 0.0
        %6503 = vmatpush1.msra.mxu0 %v4564
        %6504 = vmatprep.subr.mxu0 0.0
        %6505 = vmatpush1.msra.mxu0 %v4565
        %6506 = vmatprep.subr.mxu0 0.0
        %6507 = vmatpush1.msra.mxu0 %v4566
        %6508 = vmatprep.subr.mxu0 0.0
        %6509 = vmatpush1.msra.mxu0 %v4567
        %6510 = vmatprep.subr.mxu0 0.0
        %6511 = vmatpush1.msra.mxu0 %v4568
        %6512 = vmatprep.subr.mxu0 0.0
        %6513 = vmatpush1.msra.mxu0 %v4569
        %6514 = vmatprep.subr.mxu0 0.0
        %6515 = vmatpush1.msra.mxu0 %v4570
        %6516 = vmatprep.subr.mxu0 0.0
        %6517 = vmatpush1.msra.mxu0 %v4571
        %6518 = vmatprep.subr.mxu0 0.0
        %6519 = vmatpush1.msra.mxu0 %v4572
        %6520 = vmatprep.subr.mxu0 0.0
        %6521 = vmatpush1.msra.mxu0 %v4573
        %6522 = vmatprep.subr.mxu0 0.0
        %6523 = vmatpush1.msra.mxu0 %v4574
        %6524 = vmatprep.subr.mxu0 0.0
        %6525 = vmatpush1.msra.mxu0 %v4575
        %6526 = vmatprep.subr.mxu0 0.0
        %6527 = vmatpush1.msra.mxu0 %v4576
        %6528 = vmatprep.subr.mxu0 0.0
        %6529 = vmatpush1.msra.mxu0 %v4577
        %6530 = vmatprep.subr.mxu0 0.0
        %6531 = vmatpush1.msra.mxu0 %v4578
        %6532 = vmatprep.subr.mxu0 0.0
        %6533 = vmatpush1.msra.mxu0 %v4579
        %6534 = vmatprep.subr.mxu0 0.0
        %6535 = vmatpush1.msra.mxu0 %v4580
        %6536 = vmatprep.subr.mxu0 0.0
        %6537 = vmatpush1.msra.mxu0 %v4581
        %6538 = vmatprep.subr.mxu0 0.0
        %6539 = vmatpush1.msra.mxu0 %v4582
        %6540 = vmatprep.subr.mxu0 0.0
        %6541 = vmatpush1.msra.mxu0 %v4583
        %6542 = vmatprep.subr.mxu0 0.0
        %6543 = vmatpush1.msra.mxu0 %v4584
        %6544 = vmatprep.subr.mxu0 0.0
        %6545 = vmatpush1.msra.mxu0 %v4585
        %6546 = vmatprep.subr.mxu0 0.0
        %6547 = vmatpush1.msra.mxu0 %v4586
        %6548 = vmatprep.subr.mxu0 0.0
        %6549 = vmatpush1.msra.mxu0 %v4587
        %6550 = vmatprep.subr.mxu0 0.0
        %6551 = vmatpush1.msra.mxu0 %v4588
        %6552 = vmatprep.subr.mxu0 0.0
        %6553 = vmatpush1.msra.mxu0 %v4589
        %6554 = vmatprep.mubr.f32.mxu0 %v4821
        %6555 = vmatmul.mubr.f32.gmra.mrb[0].mxu0 %v4817
        %v6556 = vpop.f32.mrb[0].mxu0
        %v6557 = vadd.f32 %v6487, %v6556
        %v6558 = vpop.f32.mrb[0].mxu0
        %6559 = vdwg.mxu0
        %6560 = vmatprep.subr.mxu0 0.0
        %6561 = vmatpush1.msra.mxu0 %v4590
        %6562 = vmatprep.subr.mxu0 0.0
        %6563 = vmatpush1.msra.mxu0 %v4591
        %6564 = vmatprep.subr.mxu0 0.0
        %6565 = vmatpush1.msra.mxu0 %v4592
        %6566 = vmatprep.subr.mxu0 0.0
        %6567 = vmatpush1.msra.mxu0 %v4593
        %6568 = vmatprep.subr.mxu0 0.0
        %6569 = vmatpush1.msra.mxu0 %v4594
        %6570 = vmatprep.subr.mxu0 0.0
        %6571 = vmatpush1.msra.mxu0 %v4595
        %6572 = vmatprep.subr.mxu0 0.0
        %6573 = vmatpush1.msra.mxu0 %v4596
        %6574 = vmatprep.subr.mxu0 0.0
        %6575 = vmatpush1.msra.mxu0 %v4597
        %6576 = vmatprep.subr.mxu0 0.0
        %6577 = vmatpush1.msra.mxu0 %v4598
        %6578 = vmatprep.subr.mxu0 0.0
        %6579 = vmatpush1.msra.mxu0 %v4599
        %6580 = vmatprep.subr.mxu0 0.0
        %6581 = vmatpush1.msra.mxu0 %v4600
        %6582 = vmatprep.subr.mxu0 0.0
        %6583 = vmatpush1.msra.mxu0 %v4601
        %6584 = vmatprep.subr.mxu0 0.0
        %6585 = vmatpush1.msra.mxu0 %v4602
        %6586 = vmatprep.subr.mxu0 0.0
        %6587 = vmatpush1.msra.mxu0 %v4603
        %6588 = vmatprep.subr.mxu0 0.0
        %6589 = vmatpush1.msra.mxu0 %v4604
        %6590 = vmatprep.subr.mxu0 0.0
        %6591 = vmatpush1.msra.mxu0 %v4605
        %6592 = vmatprep.subr.mxu0 0.0
        %6593 = vmatpush1.msra.mxu0 %v4606
        %6594 = vmatprep.subr.mxu0 0.0
        %6595 = vmatpush1.msra.mxu0 %v4607
        %6596 = vmatprep.subr.mxu0 0.0
        %6597 = vmatpush1.msra.mxu0 %v4608
        %6598 = vmatprep.subr.mxu0 0.0
        %6599 = vmatpush1.msra.mxu0 %v4609
        %6600 = vmatprep.subr.mxu0 0.0
        %6601 = vmatpush1.msra.mxu0 %v4610
        %6602 = vmatprep.subr.mxu0 0.0
        %6603 = vmatpush1.msra.mxu0 %v4611
        %6604 = vmatprep.subr.mxu0 0.0
        %6605 = vmatpush1.msra.mxu0 %v4612
        %6606 = vmatprep.subr.mxu0 0.0
        %6607 = vmatpush1.msra.mxu0 %v4613
        %6608 = vmatprep.subr.mxu0 0.0
        %6609 = vmatpush1.msra.mxu0 %v4614
        %6610 = vmatprep.subr.mxu0 0.0
        %6611 = vmatpush1.msra.mxu0 %v4615
        %6612 = vmatprep.subr.mxu0 0.0
        %6613 = vmatpush1.msra.mxu0 %v4616
        %6614 = vmatprep.subr.mxu0 0.0
        %6615 = vmatpush1.msra.mxu0 %v4617
        %6616 = vmatprep.subr.mxu0 0.0
        %6617 = vmatpush1.msra.mxu0 %v4618
        %6618 = vmatprep.subr.mxu0 0.0
        %6619 = vmatpush1.msra.mxu0 %v4619
        %6620 = vmatprep.subr.mxu0 0.0
        %6621 = vmatpush1.msra.mxu0 %v4620
        %6622 = vmatprep.subr.mxu0 0.0
        %6623 = vmatpush1.msra.mxu0 %v4621
        %6624 = vmatprep.mubr.f32.mxu0 %v4829
        %6625 = vmatmul.mubr.f32.gmra.mrb[0].mxu0 %v4825
        %v6626 = vpop.f32.mrb[0].mxu0
        %v6627 = vadd.f32 %v6557, %v6626
        %v6628 = vpop.f32.mrb[0].mxu0
        %6629 = vdwg.mxu0
        %vm6630 = vcmask 73728
        %6631 = vst.msk [vmem:[%s356] sm:$0x1] %vm6630, %v6627
        %p6632 = scmp.lt.s32.totalorder %s25, 1
        %s6633 = scalar_select %p6632, %s25, 1
        %s6634 = smul.addr %s6633, 50
        %s6635 = scalar_lea.vmem %s9, %s6634
        %s6636 = sand.u32 %s253, 1
        %s6637 = scalar_lea.sflag [#allocation4], %s6636
        %s6638 = sand.u32 %s253, 1
        %s6639 = scalar_lea.vmem [#allocation3], %s6638
        // Predicated region
        $region57: #{forward.1} parent=55 // pred_check
          %p6640 = pneg %p237
        $region58: #{forward.1} parent=55 // pred_check_branch
          %6642 = sbr.rel (%p6640) target = $region60
        $region59: #{forward.1} parent=55 // pred_region
          _
        $region60: #{forward.1} parent=55 // pred_fallthru
          _
        // Predicated region
        $region61: #{forward.1} parent=55 // pred_check
          %p6643 = pneg %p263
        $region62: #{forward.1} parent=55 // pred_check_branch
          %6645 = sbr.rel (%p6643) target = $region64
        $region63: #{forward.1} parent=55 // pred_region
          %s6647 = ssub.s32 16, 16
          %6648 = vsyncadd %s6637, %s6647
          %s6649 = smul.addr %s25, 16
          %s6650 = scalar_lea.hbm %s10, %s6649
          %s6652 = sshll.u32 %s6639, 4
          %s6653 = int_to_ptr.vmem [resolvable:$true] %s6652
          %6655 = dma.vmem_to_hbm [thread:$0]  %s6653, 16, %s6650, %s6637
        $region64: #{forward.1} parent=55 // pred_fallthru
          _
      $region56: #{forward.1} parent=5 // pred_fallthru
        _
      %p6656 = scmp.le.s32.totalorder 2, %s20
      // Predicated region
      $region65: #{forward.1} parent=5 // pred_check
        %p6657 = pneg %p6656
      $region66: #{forward.1} parent=5 // pred_check_branch
        %6659 = sbr.rel (%p6657) target = $region68
      $region67: #{forward.1} parent=5 // pred_region
        %s6660 = ssub.s32 %s20, 2
        // Predicated region
        $region69: #{forward.1} parent=67 // pred_check
          %p6661 = pneg %p243
        $region70: #{forward.1} parent=67 // pred_check_branch
          %6663 = sbr.rel (%p6661) target = $region72
        $region71: #{forward.1} parent=67 // pred_region
          %p6664 = scmp.lt.s32.totalorder %s26, 1
          %s6665 = scalar_select %p6664, %s26, 1
          %s6666 = smul.addr %s6665, 50
          %s6667 = scalar_lea.vmem %s9, %s6666
        $region72: #{forward.1} parent=67 // pred_fallthru
          _
        // Predicated region
        $region73: #{forward.1} parent=67 // pred_check
          %p6668 = pneg %p269
        $region74: #{forward.1} parent=67 // pred_check_branch
          %6670 = sbr.rel (%p6668) target = $region76
        $region75: #{forward.1} parent=67 // pred_region
          %s6671 = sand.u32 %s254, 1
          %s6672 = scalar_lea.sflag [#allocation4], %s6671
          %s6673 = sand.u32 %s254, 1
          %s6674 = scalar_lea.vmem [#allocation3], %s6673
          %6675 = dma.done %s6672, 16
        $region76: #{forward.1} parent=67 // pred_fallthru
          _
      $region68: #{forward.1} parent=5 // pred_fallthru
        _
    $region6: #{forward.1} parent=1 // loop_footer
      %s24 = sadd.s32 1, %s20
    $region7: #{forward.1} parent=1 // loop_footer_branch
      %19 = sbr.rel target = $region3
    $region8: #{forward.1} parent=1 // loop_exit
      _
    %6676 = vsyncpa [#allocation4], 1
    %s6677 = scalar_lea.sflag [#allocation4], 1
    %6678 = vsyncpa %s6677, 1

</llo_original>
